<compile_context>
chip_gen: v7x
topology: tpu7x:2x2x1
jax: 0.10.0
libtpu: 0.0.40
codegen_flags: <defaults>
</compile_context>

<pallas_src>
import functools
import numpy as np

import jax
import jax.numpy as jnp
from jax.experimental import pallas as pl
from jax.experimental.pallas import tpu as pltpu


# ----------------------------------------------------------------------------
# Generation-aware limits
# ----------------------------------------------------------------------------

def _detect_vmem_capacity():
    try:
        cap = getattr(pltpu.get_tpu_info(), "vmem_capacity_bytes", None)
        if cap:
            return int(cap)
    except Exception:
        pass
    return 128 * 1024 * 1024


_VMEM_CAP = _detect_vmem_capacity()
# ~48 MiB scoped limit on v7x (64 MiB VMEM), ~96 MiB on v5e/v6e (128 MiB VMEM)
_VMEM_LIMIT = int(min(_VMEM_CAP * 3 // 4, 100 * 1024 * 1024))
_SMALL_VMEM = _VMEM_CAP <= 64 * 1024 * 1024          # v7x
_MAX_TM_LINEAR = 256 if _SMALL_VMEM else 512
_MAX_TM_MLP = 256        # keeps the (tm, 4K) f32 intermediate small everywhere
_MAX_TM_LN = 1024
_VMEM_SPEC = pl.BlockSpec(memory_space=pltpu.MemorySpace.VMEM)
_BF = jnp.bfloat16


def _round_up(x, m):
    return ((x + m - 1) // m) * m


def _gelu(x):
    # TODO(synk): tanh-approximation GELU inside kernels (exact-erf lowering
    # in Mosaic is not guaranteed); difference vs nn.GELU() is negligible.
    return jax.nn.gelu(x, approximate=True)


def _resident_spec(shape, index_map, nbytes):
    """BlockSpec for a constant-index (resident) operand; request single
    buffering when large so the 2nd pipeline buffer doesn't double VMEM use."""
    if nbytes > 2 * 1024 * 1024:
        return pl.BlockSpec(shape, index_map, pipeline_mode=pl.Buffered(1))
    return pl.BlockSpec(shape, index_map)


# ----------------------------------------------------------------------------
# Pallas kernels (hot paths)
# ----------------------------------------------------------------------------

def _linear_kernel(x_ref, w_ref, b_ref, o_ref, *, act):
    # o = x @ w + b  (bf16 inputs, f32 accumulation, optional fused GELU)
    y = jnp.dot(x_ref[...], w_ref[...],
                preferred_element_type=jnp.float32) + b_ref[...]
    if act:
        y = _gelu(y)
    o_ref[...] = y.astype(o_ref.dtype)


def _mlp_kernel(x_ref, w1_ref, b1_ref, w2_ref, b2_ref, o_ref, *, act):
    # fused FFN: (x @ w1 + b1) -> GELU -> (@ w2 + b2); both weights resident.
    h = jnp.dot(x_ref[...], w1_ref[...],
                preferred_element_type=jnp.float32) + b1_ref[...]
    if act:
        h = _gelu(h)
    h = h.astype(w2_ref.dtype)
    y = jnp.dot(h, w2_ref[...],
                preferred_element_type=jnp.float32) + b2_ref[...]
    o_ref[...] = y.astype(o_ref.dtype)


def _add_ln_kernel(x_ref, r_ref, g_ref, b_ref, o_ref):
    # fused residual add + LayerNorm (eps = 1e-5, PyTorch default)
    x = x_ref[...].astype(jnp.float32) + r_ref[...].astype(jnp.float32)
    mu = jnp.mean(x, axis=-1, keepdims=True)
    var = jnp.mean(jnp.square(x - mu), axis=-1, keepdims=True)
    inv = jax.lax.rsqrt(var + 1e-5)
    o_ref[...] = ((x - mu) * inv * g_ref[...] + b_ref[...]).astype(o_ref.dtype)


def _flash_attn_kernel(q_ref, k_ref, v_ref, o_ref, m_sc, l_sc, acc_sc,
                       *, sk, tk, scale, mask_keys):
    # flash-style attention with online softmax over the k-tile grid axis.
    ki = pl.program_id(2)

    @pl.when(ki == 0)
    def _():
        m_sc[...] = jnp.full_like(m_sc, -jnp.inf)
        l_sc[...] = jnp.zeros_like(l_sc)
        acc_sc[...] = jnp.zeros_like(acc_sc)

    # fold 1/sqrt(Dh) into q (tq x Dh) instead of scaling the (tq x tk) scores
    q = q_ref[...] * scale
    s = jnp.einsum("bqd,bkd->bqk", q, k_ref[...],
                   preferred_element_type=jnp.float32)
    if mask_keys:
        # only emitted when Sk was zero-padded; K/V padding is explicit zeros
        col = ki * tk + jax.lax.broadcasted_iota(jnp.int32, s.shape, 2)
        s = jnp.where(col < sk, s, -1e30)

    m_prev = m_sc[...]
    m_new = jnp.maximum(m_prev, jnp.max(s, axis=-1, keepdims=True))
    alpha = jnp.exp(m_prev - m_new)
    p = jnp.exp(s - m_new)
    l_sc[...] = alpha * l_sc[...] + jnp.sum(p, axis=-1, keepdims=True)
    acc_sc[...] = alpha * acc_sc[...] + jnp.einsum(
        "bqk,bkd->bqd", p.astype(v_ref.dtype), v_ref[...],
        preferred_element_type=jnp.float32)
    m_sc[...] = m_new

    @pl.when(ki == pl.num_programs(2) - 1)
    def _():
        o_ref[...] = (acc_sc[...] *
                      pl.reciprocal(l_sc[...], approx=True)).astype(o_ref.dtype)


def _gru_kernel(xg_ref, whh_ref, bhh_ref, of_ref, ob_ref, *, seq_len):
    # Bidirectional GRU recurrence, both directions in one fori_loop.
    #   xg_ref : (L, 6, B, H) bf16  precomputed input gates (t, dir*3+gate, b, h)
    #   whh_ref: (6, H, H)    bf16  recurrent weights, split per gate (lane aligned)
    #   bhh_ref: (6, 1, H)    f32
    #   of_ref : (L, B, H)    bf16  forward hidden states
    #   ob_ref : (L, B, H)    bf16  backward hidden states (at original time idx)
    B, H = xg_ref.shape[2], xg_ref.shape[3]
    w = [whh_ref[i] for i in range(6)]        # hoisted loads, stay in vregs
    bg = [bhh_ref[i] for i in range(6)]

    def cell(base, h, xgt):
        hb = h.astype(jnp.bfloat16)           # bf16 MXU path, f32 accumulation
        gr = jnp.dot(hb, w[base + 0], preferred_element_type=jnp.float32) + bg[base + 0]
        gz = jnp.dot(hb, w[base + 1], preferred_element_type=jnp.float32) + bg[base + 1]
        gn = jnp.dot(hb, w[base + 2], preferred_element_type=jnp.float32) + bg[base + 2]
        r = jax.nn.sigmoid(xgt[base + 0].astype(jnp.float32) + gr)
        z = jax.nn.sigmoid(xgt[base + 1].astype(jnp.float32) + gz)
        n = jnp.tanh(xgt[base + 2].astype(jnp.float32) + r * gn)
        return (1.0 - z) * n + z * h

    def step(t, carry):
        h_f, h_b = carry
        tb = seq_len - 1 - t
        h_f = cell(0, h_f, xg_ref[t])
        h_b = cell(3, h_b, xg_ref[tb])
        of_ref[t] = h_f.astype(of_ref.dtype)
        ob_ref[tb] = h_b.astype(ob_ref.dtype)
        return (h_f, h_b)

    h0 = jnp.zeros((B, H), jnp.float32)
    jax.lax.fori_loop(0, seq_len, step, (h0, h0))


# ----------------------------------------------------------------------------
# Pallas wrappers
# ----------------------------------------------------------------------------

def linear(x, w, b, act=False, out_dtype=jnp.bfloat16):
    """x: (..., K) @ w: (K, N) + b; bf16 MXU, f32 accumulation, no padding."""
    orig = x.shape
    K = int(orig[-1])
    N = int(w.shape[-1])
    M = int(np.prod(orig[:-1]))
    x2 = x.reshape(M, K)
    if x2.dtype != jnp.bfloat16:
        x2 = x2.astype(jnp.bfloat16)
    if w.dtype != jnp.bfloat16:
        w = w.astype(jnp.bfloat16)
    b2 = b.reshape(1, N).astype(jnp.float32)

    tm = min(_MAX_TM_LINEAR, _round_up(M, 8))
    w_bytes = 2 * K * N
    tn = 512 if (w_bytes > 4 * 1024 * 1024 and N > 512) else N
    nm = pl.cdiv(M, tm)
    nn = pl.cdiv(N, tn)
    if tn == N:                                  # truly resident weight
        w_spec = _resident_spec((K, tn), lambda i, j: (0, 0), w_bytes)
        b_spec = pl.BlockSpec((1, tn), lambda i, j: (0, 0))
    else:                                        # column-tiled weight
        w_spec = pl.BlockSpec((K, tn), lambda i, j: (0, j))
        b_spec = pl.BlockSpec((1, tn), lambda i, j: (0, j))

    out = pl.pallas_call(
        functools.partial(_linear_kernel, act=act),
        out_shape=jax.ShapeDtypeStruct((M, N), out_dtype),
        grid=(nm, nn),
        in_specs=[pl.BlockSpec((tm, K), lambda i, j: (i, 0)), w_spec, b_spec],
        out_specs=pl.BlockSpec((tm, tn), lambda i, j: (i, j)),
        compiler_params=pltpu.CompilerParams(
            dimension_semantics=("parallel", "parallel"),
            vmem_limit_bytes=_VMEM_LIMIT),
        cost_estimate=pl.CostEstimate(
            flops=2 * M * K * N,
            transcendentals=(M * N) if act else 0,
            bytes_accessed=2 * M * K + 2 * K * N + 4 * N
                           + M * N * jnp.dtype(out_dtype).itemsize),
    )(x2, w, b2)
    return out.reshape(orig[:-1] + (N,))


def mlp(x, w1, b1, w2, b2, act=True, out_dtype=jnp.bfloat16):
    """Fused (x @ w1 + b1) -> GELU -> (@ w2 + b2) in a single kernel."""
    orig = x.shape
    K = int(orig[-1])
    Hd = int(w1.shape[-1])
    N = int(w2.shape[-1])
    M = int(np.prod(orig[:-1]))
    x2 = x.reshape(M, K)
    if x2.dtype != jnp.bfloat16:
        x2 = x2.astype(jnp.bfloat16)
    if w1.dtype != jnp.bfloat16:
        w1 = w1.astype(jnp.bfloat16)
    if w2.dtype != jnp.bfloat16:
        w2 = w2.astype(jnp.bfloat16)
    tm = min(_MAX_TM_MLP, _round_up(M, 8))
    nm = pl.cdiv(M, tm)
    out = pl.pallas_call(
        functools.partial(_mlp_kernel, act=act),
        out_shape=jax.ShapeDtypeStruct((M, N), out_dtype),
        grid=(nm,),
        in_specs=[pl.BlockSpec((tm, K), lambda i: (i, 0)),
                  _resident_spec((K, Hd), lambda i: (0, 0), 2 * K * Hd),
                  pl.BlockSpec((1, Hd), lambda i: (0, 0)),
                  _resident_spec((Hd, N), lambda i: (0, 0), 2 * Hd * N),
                  pl.BlockSpec((1, N), lambda i: (0, 0))],
        out_specs=pl.BlockSpec((tm, N), lambda i: (i, 0)),
        compiler_params=pltpu.CompilerParams(
            dimension_semantics=("parallel",),
            vmem_limit_bytes=_VMEM_LIMIT),
        cost_estimate=pl.CostEstimate(
            flops=2 * M * K * Hd + 2 * M * Hd * N,
            transcendentals=(M * Hd) if act else 0,
            bytes_accessed=2 * M * K + 2 * (K * Hd + Hd * N) + 4 * (Hd + N)
                           + M * N * jnp.dtype(out_dtype).itemsize),
    )(x2, w1, b1.reshape(1, Hd).astype(jnp.float32),
      w2, b2.reshape(1, N).astype(jnp.float32))
    return out.reshape(orig[:-1] + (N,))


def add_layernorm(x, r, g, b):
    """LayerNorm(x + r), fused residual add + normalization."""
    shape = x.shape
    C = int(shape[-1])
    x2 = x.reshape(-1, C)
    r2 = r.reshape(-1, C)
    if x2.dtype != jnp.bfloat16:
        x2 = x2.astype(jnp.bfloat16)
    if r2.dtype != jnp.bfloat16:
        r2 = r2.astype(jnp.bfloat16)
    M = int(x2.shape[0])
    tm = min(_MAX_TM_LN, _round_up(M, 8))
    nm = pl.cdiv(M, tm)
    out = pl.pallas_call(
        _add_ln_kernel,
        out_shape=jax.ShapeDtypeStruct((M, C), jnp.bfloat16),
        grid=(nm,),
        in_specs=[pl.BlockSpec((tm, C), lambda i: (i, 0)),
                  pl.BlockSpec((tm, C), lambda i: (i, 0)),
                  pl.BlockSpec((1, C), lambda i: (0, 0)),
                  pl.BlockSpec((1, C), lambda i: (0, 0))],
        out_specs=pl.BlockSpec((tm, C), lambda i: (i, 0)),
        compiler_params=pltpu.CompilerParams(
            dimension_semantics=("parallel",),
            vmem_limit_bytes=_VMEM_LIMIT),
    )(x2, r2, g.reshape(1, C).astype(jnp.float32),
      b.reshape(1, C).astype(jnp.float32))
    return out.reshape(shape)


def flash_attention(q, k, v):
    """q: (BH, Sq, Dh), k/v: (BH, Sk, Dh) -> (BH, Sq, Dh); online softmax."""
    BH, Sq, Dh = (int(s) for s in q.shape)
    Sk = int(k.shape[1])
    q = q.astype(jnp.bfloat16)
    k = k.astype(jnp.bfloat16)
    v = v.astype(jnp.bfloat16)

    # short sequences (the patched U-Net case): full-extent tiles, no pad/mask.
    tq = Sq if Sq <= 256 else 256
    if Sk <= 512:
        tk, mask_keys = Sk, False
    else:
        tk = 256
        Skp = _round_up(Sk, tk)
        mask_keys = Skp != Sk
        if mask_keys:
            # keep K/V explicitly zero padded so masked columns never touch
            # garbage V rows (0 * NaN would poison the accumulator).
            k = jnp.pad(k, ((0, 0), (0, Skp - Sk), (0, 0)))
            v = jnp.pad(v, ((0, 0), (0, Skp - Sk), (0, 0)))
    nq = pl.cdiv(Sq, tq)
    nk = pl.cdiv(int(k.shape[1]), tk)
    # pack several batch entries per grid step to amortize ~0.35us step cost
    bb = min(BH, max(1, 256 // max(tq, 1)))
    nb = pl.cdiv(BH, bb)
    scale = float(1.0 / np.sqrt(Dh))

    out = pl.pallas_call(
        functools.partial(_flash_attn_kernel, sk=Sk, tk=tk, scale=scale,
                          mask_keys=mask_keys),
        out_shape=jax.ShapeDtypeStruct((BH, Sq, Dh), jnp.bfloat16),
        grid_spec=pltpu.PrefetchScalarGridSpec(
            num_scalar_prefetch=0,
            grid=(nb, nq, nk),
            in_specs=[pl.BlockSpec((bb, tq, Dh), lambda b, qi, ki: (b, qi, 0)),
                      pl.BlockSpec((bb, tk, Dh), lambda b, qi, ki: (b, ki, 0)),
                      pl.BlockSpec((bb, tk, Dh), lambda b, qi, ki: (b, ki, 0))],
            out_specs=pl.BlockSpec((bb, tq, Dh), lambda b, qi, ki: (b, qi, 0)),
            scratch_shapes=[pltpu.VMEM((bb, tq, 1), jnp.float32),
                            pltpu.VMEM((bb, tq, 1), jnp.float32),
                            pltpu.VMEM((bb, tq, Dh), jnp.float32)]),
        compiler_params=pltpu.CompilerParams(
            dimension_semantics=("parallel", "parallel", "arbitrary"),
            vmem_limit_bytes=_VMEM_LIMIT),
        cost_estimate=pl.CostEstimate(
            flops=4 * BH * Sq * Sk * Dh,
            transcendentals=BH * Sq * Sk,
            bytes_accessed=2 * BH * (2 * Sq * Dh + 2 * Sk * Dh)),
    )(q, k, v)
    return out


def gru_bidir(x, p):
    """Bidirectional GRU; both directions fused into one Pallas kernel (no
    sequence-reverse HBM copies), bf16 MXU recurrence, bf16 outputs."""
    B, L, _ = (int(s) for s in x.shape)
    H = int(p["w_hh"].shape[-1])
    # one fused input projection for both directions: (d, 6H) matmul
    xg = linear(x, p["w_ih"], p["b_ih"], out_dtype=jnp.bfloat16)     # (B, L, 6H)
    xg = jnp.transpose(xg.reshape(B, L, 6, H), (1, 2, 0, 3))         # (L, 6, B, H)
    # TODO(synk): xg is whole-array VMEM resident; chunk L with a manual
    # double-buffered DMA for very long sequences.
    hs_f, hs_b = pl.pallas_call(
        functools.partial(_gru_kernel, seq_len=L),
        out_shape=(jax.ShapeDtypeStruct((L, B, H), jnp.bfloat16),
                   jax.ShapeDtypeStruct((L, B, H), jnp.bfloat16)),
        in_specs=[_VMEM_SPEC, _VMEM_SPEC, _VMEM_SPEC],
        out_specs=(_VMEM_SPEC, _VMEM_SPEC),
        compiler_params=pltpu.CompilerParams(vmem_limit_bytes=_VMEM_LIMIT),
    )(xg, p["w_hh"], p["b_hh"])
    hs = jnp.concatenate([hs_f, hs_b], axis=-1)                      # (L, B, 2H)
    return jnp.transpose(hs, (1, 0, 2))                              # (B, L, 2H)


# ----------------------------------------------------------------------------
# Model building blocks
# ----------------------------------------------------------------------------

def multihead_attention(q_in, k_in, v_in, p, num_heads):
    """PyTorch-style nn.MultiheadAttention (batch_first), dropout=0 / eval."""
    B, Sq, E = (int(s) for s in q_in.shape)
    Sk = int(k_in.shape[1])
    H = num_heads
    Dh = E // H
    if q_in is k_in and k_in is v_in:
        qkv = linear(q_in, p["w_qkv"], p["b_qkv"])      # fused (E, 3E) projection
        q, k, v = qkv[..., :E], qkv[..., E:2 * E], qkv[..., 2 * E:]
    else:
        q = linear(q_in, p["w_qkv"][:, :E], p["b_qkv"][:E])
        kv = linear(k_in, p["w_qkv"][:, E:], p["b_qkv"][E:])
        k, v = kv[..., :E], kv[..., E:]

    def split_heads(t, S):
        # TODO(synk): head-slicing via BlockSpec needs Dh % 128 == 0; the
        # split/merge transposes stay in XLA for small Dh.
        return t.reshape(B, S, H, Dh).transpose(0, 2, 1, 3).reshape(B * H, S, Dh)

    o = flash_attention(split_heads(q, Sq), split_heads(k, Sk), split_heads(v, Sk))
    o = o.reshape(B, H, Sq, Dh).transpose(0, 2, 1, 3).reshape(B, Sq, E)
    return linear(o, p["wo"], p["bo"])


def embedding1d(x, p):
    # TODO(synk): modules.Embedding1D assumed = MLP(in -> 4d -> d) + sinusoidal PE.
    h = mlp(x, p["w1"], p["b1"], p["w2"], p["b2"], act=True)
    L = x.shape[1]
    return h + p["pe"][:L][None, :, :].astype(h.dtype)


def unfold1d(x, patch):
    # TODO(synk): modules.Folder1D with compute_padding(patch, patch) assumed -> padding 0.
    B, L, C = x.shape
    nP = L // patch
    return x.reshape(B * nP, patch, C), (B, L, C)


def fold1d(x, sizes):
    B, L, C = sizes
    return x.reshape(B, L, C)


def encoder_layer(x, p, num_heads):
    # nn.TransformerEncoderLayer, post-norm (norm_first=False), dropout=0 (eval)
    a = multihead_attention(x, x, x, p["attn"], num_heads)
    x = add_layernorm(x, a, p["ln1_g"], p["ln1_b"])
    h = mlp(x, p["w1"], p["b1"], p["w2"], p["b2"], act=True)
    x = add_layernorm(x, h, p["ln2_g"], p["ln2_b"])
    return x


def decoder_layer(x, mem, p, num_heads):
    a = multihead_attention(x, x, x, p["sa"], num_heads)
    x = add_layernorm(x, a, p["ln1_g"], p["ln1_b"])
    a = multihead_attention(x, mem, mem, p["ca"], num_heads)
    x = add_layernorm(x, a, p["ln2_g"], p["ln2_b"])
    h = mlp(x, p["w1"], p["b1"], p["w2"], p["b2"], act=True)
    x = add_layernorm(x, h, p["ln3_g"], p["ln3_b"])
    return x


def conv1d_pool(x, w2, b, k):
    """Conv1d(Cin, Cout, kernel=k, stride=k, padding=0) on channels-last x;
    weight is pre-reshaped to (k*Cin, Cout) matmul layout at build time so no
    activation transpose is needed."""
    B, L, Cin = x.shape
    nT = L // k
    xp = x[:, :nT * k, :].reshape(B, nT, k * Cin)
    return linear(xp, w2, b)


def conv_transpose1d(x, w2, b, stride, k):
    """ConvTranspose1d(Cin, Cout, kernel=k=2*stride, stride, padding=stride//2)
    on channels-last x.  Weight is pre-permuted to (Cin, k*Cout) at build time;
    the overlap-add is two dense shifted bf16 adds (no scatter, no transposes)."""
    B, L, Cin = x.shape
    Cout = int(b.shape[0])
    pad = stride // 2
    contrib = linear(x, w2, jnp.zeros((k * Cout,), jnp.float32))   # (B, L, k*Cout)
    contrib = contrib.reshape(B, L, k, Cout)
    h0 = contrib[:, :, :stride, :].reshape(B, L * stride, Cout)
    h1 = contrib[:, :, stride:, :].reshape(B, L * stride, Cout)
    mid = h0[:, stride:, :] + h1[:, :L * stride - stride, :]
    out = jnp.concatenate(
        [h0[:, :stride, :], mid, h1[:, L * stride - stride:, :]], axis=1)
    out = out + b.astype(out.dtype)[None, None, :]
    Lfull = (L - 1) * stride + k
    return out[:, pad:Lfull - pad, :]


def interp_linear(x, out_len):
    """F.interpolate(mode='linear') along length of (B, L, C); no-op when equal."""
    B, L, C = x.shape
    if out_len == L:
        return x
    scale = L / out_len
    idx = (jnp.arange(out_len, dtype=jnp.float32) + 0.5) * scale - 0.5
    idx = jnp.clip(idx, 0.0, L - 1)
    lo = jnp.floor(idx).astype(jnp.int32)
    hi = jnp.minimum(lo + 1, L - 1)
    w = (idx - lo.astype(jnp.float32))[None, :, None]
    y = (x[:, lo, :].astype(jnp.float32) * (1.0 - w)
         + x[:, hi, :].astype(jnp.float32) * w)
    return y.astype(x.dtype)


def contraction(x, p, cfg):
    xp, sizes = unfold1d(x, cfg["patch_size"])
    enc_p = encoder_layer(xp, p["enc"], cfg["num_heads"])
    enc = fold1d(enc_p, sizes)
    x_out = conv1d_pool(enc, p["pool_w"], p["pool_b"], cfg["pool_size"])
    return x_out, enc


def bottleneck(x, layers, cfg):
    for lp in layers:
        x = encoder_layer(x, lp, cfg["num_heads"])
    return x


def expansion(x, enc, p, cfg):
    stride = cfg["pool_size"]
    k = 2 * stride          # TODO(synk): compute_convt(pool) assumed = (2*pool, pool//2)
    x = conv_transpose1d(x, p["unpool_w"], p["unpool_b"], stride, k)
    x = interp_linear(x, enc.shape[1])
    xp, sizes = unfold1d(x, cfg["patch_size"])
    encp, _ = unfold1d(enc, cfg["patch_size"])
    xp = decoder_layer(xp, encp, p["dec"], cfg["num_heads"])
    return fold1d(xp, sizes)


def h19_forward(params, x, cfg, logits=False):
    # x: (B, input_size, L)  — matches the PyTorch module's input convention
    x = jnp.transpose(x, (0, 2, 1))                    # (B, L, input_size)
    x = embedding1d(x, params["embed"])
    x = gru_bidir(x, params["gru"])                    # (B, L, 2*d_model)
    encs = []
    for cp in params["contractions"]:
        x, enc = contraction(x, cp, cfg)
        encs.append(enc)
    x = bottleneck(x, params["bottleneck"], cfg)
    for ep, enc in zip(params["expansions"], reversed(encs)):
        x = expansion(x, enc, ep, cfg)
    un = params["unembed"]
    # unembed second layer is zero-padded to 128 output lanes (dense stores);
    # channel 0 is sliced outside the kernel.
    y = mlp(x, un["w1"], un["b1"], un["w2p"], un["b2p"],
            act=True, out_dtype=jnp.float32)           # (B, L, 128)
    y = y[..., 0]
    if logits:
        return y
    return jax.nn.sigmoid(y)


# ----------------------------------------------------------------------------
# Deterministic parameter initialization (weights already bf16 / matmul layout)
# ----------------------------------------------------------------------------

class Init:
    def __init__(self, seed=0):
        self.key = jax.random.PRNGKey(seed)

    def normal(self, shape, scale=0.05, dtype=jnp.float32):
        self.key, sub = jax.random.split(self.key)
        return (scale * jax.random.normal(sub, shape)).astype(dtype)

    def zeros(self, shape, dtype=jnp.float32):
        return jnp.zeros(shape, dtype)

    def ones(self, shape, dtype=jnp.float32):
        return jnp.ones(shape, dtype)


def sinusoidal_pe(max_len, d):
    pos = np.arange(max_len)[:, None].astype(np.float32)
    i = np.arange(0, d, 2)[None, :].astype(np.float32)
    div = np.exp(-np.log(10000.0) * i / d)
    pe = np.zeros((max_len, d), np.float32)
    pe[:, 0::2] = np.sin(pos * div)
    pe[:, 1::2] = np.cos(pos * div)
    return jnp.asarray(pe)


def make_attn(init, E):
    return {"w_qkv": init.normal((E, 3 * E), dtype=_BF), "b_qkv": init.zeros((3 * E,)),
            "wo": init.normal((E, E), dtype=_BF), "bo": init.zeros((E,))}


def make_encoder_layer(init, E):
    return {"attn": make_attn(init, E),
            "w1": init.normal((E, 4 * E), dtype=_BF), "b1": init.zeros((4 * E,)),
            "w2": init.normal((4 * E, E), dtype=_BF), "b2": init.zeros((E,)),
            "ln1_g": init.ones((E,)), "ln1_b": init.zeros((E,)),
            "ln2_g": init.ones((E,)), "ln2_b": init.zeros((E,))}


def make_decoder_layer(init, E):
    return {"sa": make_attn(init, E), "ca": make_attn(init, E),
            "w1": init.normal((E, 4 * E), dtype=_BF), "b1": init.zeros((4 * E,)),
            "w2": init.normal((4 * E, E), dtype=_BF), "b2": init.zeros((E,)),
            "ln1_g": init.ones((E,)), "ln1_b": init.zeros((E,)),
            "ln2_g": init.ones((E,)), "ln2_b": init.zeros((E,)),
            "ln3_g": init.ones((E,)), "ln3_b": init.zeros((E,))}


def build_params(cfg):
    init = Init(0)
    d, in_sz = cfg["d_model"], cfg["input_size"]
    p = {}
    p["embed"] = {"w1": init.normal((in_sz, 4 * d), dtype=_BF),
                  "b1": init.zeros((4 * d,)),
                  "w2": init.normal((4 * d, d), dtype=_BF),
                  "b2": init.zeros((d,)),
                  "pe": sinusoidal_pe(cfg["max_len"], d)}
    H = d
    # bidirectional GRU, both directions fused:
    #   w_ih: (d, 6H) = [fwd r|z|n | bwd r|z|n];  w_hh: (6, H, H);  b_hh: (6, 1, H)
    p["gru"] = {"w_ih": init.normal((d, 6 * H), dtype=_BF),
                "b_ih": init.zeros((6 * H,)),
                "w_hh": init.normal((6, H, H), dtype=_BF),
                "b_hh": init.zeros((6, 1, H))}
    in_ch = 2 * d
    p["contractions"] = []
    for _ in range(cfg["network_depth"]):
        out_ch = in_ch * cfg["channel_rate"]
        k = cfg["pool_size"]
        w_conv = init.normal((out_ch, in_ch, k))               # PyTorch layout
        pool_w = jnp.transpose(w_conv, (2, 1, 0)).reshape(k * in_ch, out_ch).astype(_BF)
        p["contractions"].append({
            "enc": make_encoder_layer(init, in_ch),
            "pool_w": pool_w,
            "pool_b": init.zeros((out_ch,))})
        in_ch = out_ch
    p["bottleneck"] = [make_encoder_layer(init, in_ch)
                       for _ in range(cfg["bottleneck_layers"])]
    p["expansions"] = []
    for _ in range(cfg["network_depth"]):
        out_ch = in_ch // cfg["channel_rate"]
        k = 2 * cfg["pool_size"]
        w_convt = init.normal((in_ch, out_ch, k))              # PyTorch layout
        unpool_w = jnp.transpose(w_convt, (0, 2, 1)).reshape(in_ch, k * out_ch).astype(_BF)
        p["expansions"].append({
            "unpool_w": unpool_w,
            "unpool_b": init.zeros((out_ch,)),
            "dec": make_decoder_layer(init, out_ch)})
        in_ch = out_ch
    # unembed MLP (2d -> 4d -> 1); second layer zero-padded to 128 output lanes
    w2 = init.normal((4 * d, 1))
    w2p = jnp.zeros((4 * d, 128), jnp.float32).at[:, :1].set(w2).astype(_BF)
    p["unembed"] = {"w1": init.normal((2 * d, 4 * d), dtype=_BF),
                    "b1": init.zeros((4 * d,)),
                    "w2p": w2p,
                    "b2p": jnp.zeros((128,), jnp.float32)}
    return p


# ----------------------------------------------------------------------------

if __name__ == "__main__":
    cfg = dict(network_depth=1, bottleneck_layers=1, input_size=4, max_len=64,
               d_model=8, patch_size=4, pool_size=2, channel_rate=2,
               num_heads=2, batch_size=4, activation="GELU", dropout=0.0)

    params = build_params(cfg)

    B, L = 2, 16
    key = jax.random.PRNGKey(0)
    x = jax.random.normal(key, (B, cfg["input_size"], L), jnp.float32)

    fwd = jax.jit(lambda prm, inp: h19_forward(prm, inp, cfg))
    out = fwd(params, x)
    jax.block_until_ready(out)

    assert out.shape == (B, L), out.shape
    assert bool(jnp.all(jnp.isfinite(out)))
    print("KERNEL_OK")
</pallas_src>

<mosaic_0001>
module attributes {stable_mosaic.version = 11 : i64} {
  func.func @_mlp_kernel(%arg0: i32, %arg1: memref<32x4xbf16, #tpu.memory_space<vmem>>, %arg2: memref<4x32xbf16, #tpu.memory_space<vmem>>, %arg3: memref<1x32xf32, #tpu.memory_space<vmem>>, %arg4: memref<32x8xbf16, #tpu.memory_space<vmem>>, %arg5: memref<1x8xf32, #tpu.memory_space<vmem>>, %arg6: memref<32x8xbf16, #tpu.memory_space<vmem>>) attributes {dimension_semantics = [#tpu.dimension_semantics<parallel>], iteration_bounds = array<i64: 1>, scalar_prefetch = 0 : i64, scratch_operands = 0 : i64, tpu.core_type = #tpu.core_type<tc>, window_params = [{transform_indices = @transform_0, window_bounds = array<i64: 32, 4>}, {pipeline_mode = #tpu.pipeline_mode<synchronous>, transform_indices = @transform_1, window_bounds = array<i64: 4, 32>}, {pipeline_mode = #tpu.pipeline_mode<synchronous>, transform_indices = @transform_2, window_bounds = array<i64: 1, 32>}, {pipeline_mode = #tpu.pipeline_mode<synchronous>, transform_indices = @transform_3, window_bounds = array<i64: 32, 8>}, {pipeline_mode = #tpu.pipeline_mode<synchronous>, transform_indices = @transform_4, window_bounds = array<i64: 1, 8>}, {transform_indices = @transform_5, window_bounds = array<i64: 32, 8>}]} {
    %c0 = arith.constant 0 : index
    %c0_0 = arith.constant 0 : index
    %0 = vector.load %arg1[%c0, %c0_0] : memref<32x4xbf16, #tpu.memory_space<vmem>>, vector<32x4xbf16>
    %c0_1 = arith.constant 0 : index
    %c0_2 = arith.constant 0 : index
    %1 = vector.load %arg2[%c0_1, %c0_2] : memref<4x32xbf16, #tpu.memory_space<vmem>>, vector<4x32xbf16>
    %cst = arith.constant dense<0.000000e+00> : vector<32x32xf32>
    %2 = tpu.matmul %0, %1, %cst {dimension_numbers = #tpu.dot_dimension_numbers<[1], [0], [0], [1], [0, 0, 1, 1], [], []>} : vector<32x4xbf16>, vector<4x32xbf16>, vector<32x32xf32> -> vector<32x32xf32>
    %c0_3 = arith.constant 0 : index
    %c0_4 = arith.constant 0 : index
    %3 = vector.load %arg3[%c0_3, %c0_4] : memref<1x32xf32, #tpu.memory_space<vmem>>, vector<1x32xf32>
    %4 = vector.broadcast %3 : vector<1x32xf32> to vector<32x32xf32>
    %5 = arith.addf %2, %4 : vector<32x32xf32>
    %6 = arith.mulf %5, %5 : vector<32x32xf32>
    %7 = arith.mulf %5, %6 : vector<32x32xf32>
    %cst_5 = arith.constant 4.471500e-02 : f32
    %8 = vector.broadcast %cst_5 : f32 to vector<32x32xf32>
    %9 = arith.mulf %8, %7 : vector<32x32xf32>
    %10 = arith.addf %5, %9 : vector<32x32xf32>
    %cst_6 = arith.constant 0.797884583 : f32
    %11 = vector.broadcast %cst_6 : f32 to vector<32x32xf32>
    %12 = arith.mulf %11, %10 : vector<32x32xf32>
    %13 = math.tanh %12 : vector<32x32xf32>
    %cst_7 = arith.constant 1.000000e+00 : f32
    %14 = vector.broadcast %cst_7 : f32 to vector<32x32xf32>
    %15 = arith.addf %14, %13 : vector<32x32xf32>
    %cst_8 = arith.constant 5.000000e-01 : f32
    %16 = vector.broadcast %cst_8 : f32 to vector<32x32xf32>
    %17 = arith.mulf %16, %15 : vector<32x32xf32>
    %18 = arith.mulf %5, %17 : vector<32x32xf32>
    %19 = arith.truncf %18 : vector<32x32xf32> to vector<32x32xbf16>
    %c0_9 = arith.constant 0 : index
    %c0_10 = arith.constant 0 : index
    %20 = vector.load %arg4[%c0_9, %c0_10] : memref<32x8xbf16, #tpu.memory_space<vmem>>, vector<32x8xbf16>
    %cst_11 = arith.constant dense<0.000000e+00> : vector<32x8xf32>
    %21 = tpu.matmul %19, %20, %cst_11 {dimension_numbers = #tpu.dot_dimension_numbers<[1], [0], [0], [1], [0, 0, 1, 1], [], []>} : vector<32x32xbf16>, vector<32x8xbf16>, vector<32x8xf32> -> vector<32x8xf32>
    %c0_12 = arith.constant 0 : index
    %c0_13 = arith.constant 0 : index
    %22 = vector.load %arg5[%c0_12, %c0_13] : memref<1x8xf32, #tpu.memory_space<vmem>>, vector<1x8xf32>
    %23 = vector.broadcast %22 : vector<1x8xf32> to vector<32x8xf32>
    %24 = arith.addf %21, %23 : vector<32x8xf32>
    %25 = arith.truncf %24 : vector<32x8xf32> to vector<32x8xbf16>
    %c0_14 = arith.constant 0 : index
    %c0_15 = arith.constant 0 : index
    %26 = vector.load %arg6[%c0_14, %c0_15] : memref<32x8xbf16, #tpu.memory_space<vmem>>, vector<32x8xbf16>
    tpu.vector_store %arg6[%c0_14, %c0_15], %25 {strides = array<i32>} : memref<32x8xbf16, #tpu.memory_space<vmem>>, vector<32x8xbf16>,
    return
  }
  func.func @transform_0(%arg0: i32) -> (i32, i32) {
    %c0_i32 = arith.constant 0 : i32
    %c0_i32_0 = arith.constant 0 : i32
    return %arg0, %c0_i32 : i32, i32
  }
  func.func @transform_1(%arg0: i32) -> (i32, i32) {
    %c0_i32 = arith.constant 0 : i32
    %c0_i32_0 = arith.constant 0 : i32
    %c0_i32_1 = arith.constant 0 : i32
    return %c0_i32, %c0_i32_0 : i32, i32
  }
  func.func @transform_2(%arg0: i32) -> (i32, i32) {
    %c0_i32 = arith.constant 0 : i32
    %c0_i32_0 = arith.constant 0 : i32
    %c0_i32_1 = arith.constant 0 : i32
    return %c0_i32, %c0_i32_0 : i32, i32
  }
  func.func @transform_3(%arg0: i32) -> (i32, i32) {
    %c0_i32 = arith.constant 0 : i32
    %c0_i32_0 = arith.constant 0 : i32
    %c0_i32_1 = arith.constant 0 : i32
    return %c0_i32, %c0_i32_0 : i32, i32
  }
  func.func @transform_4(%arg0: i32) -> (i32, i32) {
    %c0_i32 = arith.constant 0 : i32
    %c0_i32_0 = arith.constant 0 : i32
    %c0_i32_1 = arith.constant 0 : i32
    return %c0_i32, %c0_i32_0 : i32, i32
  }
  func.func @transform_5(%arg0: i32) -> (i32, i32) {
    %c0_i32 = arith.constant 0 : i32
    %c0_i32_0 = arith.constant 0 : i32
    return %arg0, %c0_i32 : i32, i32
  }
}

module attributes {stable_mosaic.version = 11 : i64} {
  func.func @_linear_kernel(%arg0: i32, %arg1: i32, %arg2: memref<32x8xbf16, #tpu.memory_space<vmem>>, %arg3: memref<8x48xbf16, #tpu.memory_space<vmem>>, %arg4: memref<1x48xf32, #tpu.memory_space<vmem>>, %arg5: memref<32x48xbf16, #tpu.memory_space<vmem>>) attributes {dimension_semantics = [#tpu.dimension_semantics<parallel>, #tpu.dimension_semantics<parallel>], iteration_bounds = array<i64: 1, 1>, scalar_prefetch = 0 : i64, scratch_operands = 0 : i64, tpu.core_type = #tpu.core_type<tc>, window_params = [{transform_indices = @transform_0, window_bounds = array<i64: 32, 8>}, {pipeline_mode = #tpu.pipeline_mode<synchronous>, transform_indices = @transform_1, window_bounds = array<i64: 8, 48>}, {pipeline_mode = #tpu.pipeline_mode<synchronous>, transform_indices = @transform_2, window_bounds = array<i64: 1, 48>}, {transform_indices = @transform_3, window_bounds = array<i64: 32, 48>}]} {
    %c0 = arith.constant 0 : index
    %c0_0 = arith.constant 0 : index
    %0 = vector.load %arg2[%c0, %c0_0] : memref<32x8xbf16, #tpu.memory_space<vmem>>, vector<32x8xbf16>
    %c0_1 = arith.constant 0 : index
    %c0_2 = arith.constant 0 : index
    %1 = vector.load %arg3[%c0_1, %c0_2] : memref<8x48xbf16, #tpu.memory_space<vmem>>, vector<8x48xbf16>
    %cst = arith.constant dense<0.000000e+00> : vector<32x48xf32>
    %2 = tpu.matmul %0, %1, %cst {dimension_numbers = #tpu.dot_dimension_numbers<[1], [0], [0], [1], [0, 0, 1, 1], [], []>} : vector<32x8xbf16>, vector<8x48xbf16>, vector<32x48xf32> -> vector<32x48xf32>
    %c0_3 = arith.constant 0 : index
    %c0_4 = arith.constant 0 : index
    %3 = vector.load %arg4[%c0_3, %c0_4] : memref<1x48xf32, #tpu.memory_space<vmem>>, vector<1x48xf32>
    %4 = vector.broadcast %3 : vector<1x48xf32> to vector<32x48xf32>
    %5 = arith.addf %2, %4 : vector<32x48xf32>
    %6 = arith.truncf %5 : vector<32x48xf32> to vector<32x48xbf16>
    %c0_5 = arith.constant 0 : index
    %c0_6 = arith.constant 0 : index
    %7 = vector.load %arg5[%c0_5, %c0_6] : memref<32x48xbf16, #tpu.memory_space<vmem>>, vector<32x48xbf16>
    tpu.vector_store %arg5[%c0_5, %c0_6], %6 {strides = array<i32>} : memref<32x48xbf16, #tpu.memory_space<vmem>>, vector<32x48xbf16>,
    return
  }
  func.func @transform_0(%arg0: i32, %arg1: i32) -> (i32, i32) {
    %c0_i32 = arith.constant 0 : i32
    %c0_i32_0 = arith.constant 0 : i32
    return %arg0, %c0_i32 : i32, i32
  }
  func.func @transform_1(%arg0: i32, %arg1: i32) -> (i32, i32) {
    %c0_i32 = arith.constant 0 : i32
    %c0_i32_0 = arith.constant 0 : i32
    %c0_i32_1 = arith.constant 0 : i32
    return %c0_i32, %c0_i32_0 : i32, i32
  }
  func.func @transform_2(%arg0: i32, %arg1: i32) -> (i32, i32) {
    %c0_i32 = arith.constant 0 : i32
    %c0_i32_0 = arith.constant 0 : i32
    %c0_i32_1 = arith.constant 0 : i32
    return %c0_i32, %c0_i32_0 : i32, i32
  }
  func.func @transform_3(%arg0: i32, %arg1: i32) -> (i32, i32) {
    %c0_i32 = arith.constant 0 : i32
    return %arg0, %arg1 : i32, i32
  }
}

module attributes {stable_mosaic.version = 11 : i64} {
  func.func @_gru_kernel(%arg0: memref<16x6x2x8xbf16, #tpu.memory_space<vmem>>, %arg1: memref<6x8x8xbf16, #tpu.memory_space<vmem>>, %arg2: memref<6x1x8xf32, #tpu.memory_space<vmem>>, %arg3: memref<16x2x8xbf16, #tpu.memory_space<vmem>>, %arg4: memref<16x2x8xbf16, #tpu.memory_space<vmem>>) attributes {dimension_semantics = [], scalar_prefetch = 0 : i64, scratch_operands = 0 : i64, tpu.core_type = #tpu.core_type<tc>} {
    %c0 = arith.constant 0 : index
    %c0_0 = arith.constant 0 : index
    %c0_1 = arith.constant 0 : index
    %0 = vector.load %arg1[%c0, %c0_0, %c0_1] : memref<6x8x8xbf16, #tpu.memory_space<vmem>>, vector<1x8x8xbf16>
    %1 = vector.shape_cast %0 : vector<1x8x8xbf16> to vector<8x8xbf16>
    %c1 = arith.constant 1 : index
    %c0_2 = arith.constant 0 : index
    %c0_3 = arith.constant 0 : index
    %2 = vector.load %arg1[%c1, %c0_2, %c0_3] : memref<6x8x8xbf16, #tpu.memory_space<vmem>>, vector<1x8x8xbf16>
    %3 = vector.shape_cast %2 : vector<1x8x8xbf16> to vector<8x8xbf16>
    %c2 = arith.constant 2 : index
    %c0_4 = arith.constant 0 : index
    %c0_5 = arith.constant 0 : index
    %4 = vector.load %arg1[%c2, %c0_4, %c0_5] : memref<6x8x8xbf16, #tpu.memory_space<vmem>>, vector<1x8x8xbf16>
    %5 = vector.shape_cast %4 : vector<1x8x8xbf16> to vector<8x8xbf16>
    %c3 = arith.constant 3 : index
    %c0_6 = arith.constant 0 : index
    %c0_7 = arith.constant 0 : index
    %6 = vector.load %arg1[%c3, %c0_6, %c0_7] : memref<6x8x8xbf16, #tpu.memory_space<vmem>>, vector<1x8x8xbf16>
    %7 = vector.shape_cast %6 : vector<1x8x8xbf16> to vector<8x8xbf16>
    %c4 = arith.constant 4 : index
    %c0_8 = arith.constant 0 : index
    %c0_9 = arith.constant 0 : index
    %8 = vector.load %arg1[%c4, %c0_8, %c0_9] : memref<6x8x8xbf16, #tpu.memory_space<vmem>>, vector<1x8x8xbf16>
    %9 = vector.shape_cast %8 : vector<1x8x8xbf16> to vector<8x8xbf16>
    %c5 = arith.constant 5 : index
    %c0_10 = arith.constant 0 : index
    %c0_11 = arith.constant 0 : index
    %10 = vector.load %arg1[%c5, %c0_10, %c0_11] : memref<6x8x8xbf16, #tpu.memory_space<vmem>>, vector<1x8x8xbf16>
    %11 = vector.shape_cast %10 : vector<1x8x8xbf16> to vector<8x8xbf16>
    %c0_12 = arith.constant 0 : index
    %c0_13 = arith.constant 0 : index
    %c0_14 = arith.constant 0 : index
    %12 = vector.load %arg2[%c0_12, %c0_13, %c0_14] : memref<6x1x8xf32, #tpu.memory_space<vmem>>, vector<1x1x8xf32>
    %13 = vector.shape_cast %12 : vector<1x1x8xf32> to vector<1x8xf32>
    %c1_15 = arith.constant 1 : index
    %c0_16 = arith.constant 0 : index
    %c0_17 = arith.constant 0 : index
    %14 = vector.load %arg2[%c1_15, %c0_16, %c0_17] : memref<6x1x8xf32, #tpu.memory_space<vmem>>, vector<1x1x8xf32>
    %15 = vector.shape_cast %14 : vector<1x1x8xf32> to vector<1x8xf32>
    %c2_18 = arith.constant 2 : index
    %c0_19 = arith.constant 0 : index
    %c0_20 = arith.constant 0 : index
    %16 = vector.load %arg2[%c2_18, %c0_19, %c0_20] : memref<6x1x8xf32, #tpu.memory_space<vmem>>, vector<1x1x8xf32>
    %17 = vector.shape_cast %16 : vector<1x1x8xf32> to vector<1x8xf32>
    %c3_21 = arith.constant 3 : index
    %c0_22 = arith.constant 0 : index
    %c0_23 = arith.constant 0 : index
    %18 = vector.load %arg2[%c3_21, %c0_22, %c0_23] : memref<6x1x8xf32, #tpu.memory_space<vmem>>, vector<1x1x8xf32>
    %19 = vector.shape_cast %18 : vector<1x1x8xf32> to vector<1x8xf32>
    %c4_24 = arith.constant 4 : index
    %c0_25 = arith.constant 0 : index
    %c0_26 = arith.constant 0 : index
    %20 = vector.load %arg2[%c4_24, %c0_25, %c0_26] : memref<6x1x8xf32, #tpu.memory_space<vmem>>, vector<1x1x8xf32>
    %21 = vector.shape_cast %20 : vector<1x1x8xf32> to vector<1x8xf32>
    %c5_27 = arith.constant 5 : index
    %c0_28 = arith.constant 0 : index
    %c0_29 = arith.constant 0 : index
    %22 = vector.load %arg2[%c5_27, %c0_28, %c0_29] : memref<6x1x8xf32, #tpu.memory_space<vmem>>, vector<1x1x8xf32>
    %23 = vector.shape_cast %22 : vector<1x1x8xf32> to vector<1x8xf32>
    %cst = arith.constant 0.000000e+00 : f32
    %24 = vector.broadcast %cst : f32 to vector<2x8xf32>
    %c0_i32 = arith.constant 0 : i32
    %c16_i32 = arith.constant 16 : i32
    %25 = arith.addi %c0_i32, %c16_i32 : i32
    %c1_i32 = arith.constant 1 : i32
    %26:2 = scf.for %arg5 = %c0_i32 to %25 step %c1_i32 iter_args(%arg6 = %24, %arg7 = %24) -> (vector<2x8xf32>, vector<2x8xf32>)  : i32 {
      %c15_i32 = arith.constant 15 : i32
      %27 = arith.subi %c15_i32, %arg5 : i32
      %28 = arith.index_cast %arg5 : i32 to index
      %c0_31 = arith.constant 0 : index
      %c0_32 = arith.constant 0 : index
      %c0_33 = arith.constant 0 : index
      %29 = vector.load %arg0[%28, %c0_31, %c0_32, %c0_33] : memref<16x6x2x8xbf16, #tpu.memory_space<vmem>>, vector<1x6x2x8xbf16>
      %30 = vector.shape_cast %29 : vector<1x6x2x8xbf16> to vector<6x2x8xbf16>
      %31 = arith.truncf %arg6 : vector<2x8xf32> to vector<2x8xbf16>
      %cst_34 = arith.constant dense<0.000000e+00> : vector<2x8xf32>
      %32 = tpu.matmul %31, %1, %cst_34 {dimension_numbers = #tpu.dot_dimension_numbers<[1], [0], [0], [1], [0, 0, 1, 1], [], []>} : vector<2x8xbf16>, vector<8x8xbf16>, vector<2x8xf32> -> vector<2x8xf32>
      %33 = vector.broadcast %13 : vector<1x8xf32> to vector<2x8xf32>
      %34 = arith.addf %32, %33 : vector<2x8xf32>
      %cst_35 = arith.constant dense<0.000000e+00> : vector<2x8xf32>
      %35 = tpu.matmul %31, %3, %cst_35 {dimension_numbers = #tpu.dot_dimension_numbers<[1], [0], [0], [1], [0, 0, 1, 1], [], []>} : vector<2x8xbf16>, vector<8x8xbf16>, vector<2x8xf32> -> vector<2x8xf32>
      %36 = vector.broadcast %15 : vector<1x8xf32> to vector<2x8xf32>
      %37 = arith.addf %35, %36 : vector<2x8xf32>
      %cst_36 = arith.constant dense<0.000000e+00> : vector<2x8xf32>
      %38 = tpu.matmul %31, %5, %cst_36 {dimension_numbers = #tpu.dot_dimension_numbers<[1], [0], [0], [1], [0, 0, 1, 1], [], []>} : vector<2x8xbf16>, vector<8x8xbf16>, vector<2x8xf32> -> vector<2x8xf32>
      %39 = vector.broadcast %17 : vector<1x8xf32> to vector<2x8xf32>
      %40 = arith.addf %38, %39 : vector<2x8xf32>
      %41 = vector.extract_strided_slice %30 {offsets = [0, 0, 0], sizes = [1, 2, 8], strides = [1, 1, 1]} : vector<6x2x8xbf16> to vector<1x2x8xbf16>
      %42 = vector.shape_cast %41 : vector<1x2x8xbf16> to vector<2x8xbf16>
      %43 = arith.extf %42 : vector<2x8xbf16> to vector<2x8xf32>
      %44 = arith.addf %43, %34 : vector<2x8xf32>
      %45 = arith.negf %44 : vector<2x8xf32>
      %46 = math.exp %45 : vector<2x8xf32>
      %cst_37 = arith.constant 1.000000e+00 : f32
      %47 = vector.broadcast %cst_37 : f32 to vector<2x8xf32>
      %48 = arith.addf %47, %46 : vector<2x8xf32>
      %49 = arith.divf %47, %48 : vector<2x8xf32>
      %50 = vector.extract_strided_slice %30 {offsets = [1, 0, 0], sizes = [1, 2, 8], strides = [1, 1, 1]} : vector<6x2x8xbf16> to vector<1x2x8xbf16>
      %51 = vector.shape_cast %50 : vector<1x2x8xbf16> to vector<2x8xbf16>
      %52 = arith.extf %51 : vector<2x8xbf16> to vector<2x8xf32>
      %53 = arith.addf %52, %37 : vector<2x8xf32>
      %54 = arith.negf %53 : vector<2x8xf32>
      %55 = math.exp %54 : vector<2x8xf32>
      %cst_38 = arith.constant 1.000000e+00 : f32
      %56 = vector.broadcast %cst_38 : f32 to vector<2x8xf32>
      %57 = arith.addf %56, %55 : vector<2x8xf32>
      %58 = arith.divf %56, %57 : vector<2x8xf32>
      %59 = vector.extract_strided_slice %30 {offsets = [2, 0, 0], sizes = [1, 2, 8], strides = [1, 1, 1]} : vector<6x2x8xbf16> to vector<1x2x8xbf16>
      %60 = vector.shape_cast %59 : vector<1x2x8xbf16> to vector<2x8xbf16>
      %61 = arith.extf %60 : vector<2x8xbf16> to vector<2x8xf32>
      %62 = arith.mulf %49, %40 : vector<2x8xf32>
      %63 = arith.addf %61, %62 : vector<2x8xf32>
      %64 = math.tanh %63 : vector<2x8xf32>
      %cst_39 = arith.constant 1.000000e+00 : f32
      %65 = vector.broadcast %cst_39 : f32 to vector<2x8xf32>
      %66 = arith.subf %65, %58 : vector<2x8xf32>
      %67 = arith.mulf %66, %64 : vector<2x8xf32>
      %68 = arith.mulf %58, %arg6 : vector<2x8xf32>
      %69 = arith.addf %67, %68 : vector<2x8xf32>
      %70 = arith.index_cast %27 : i32 to index
      %c0_40 = arith.constant 0 : index
      %c0_41 = arith.constant 0 : index
      %c0_42 = arith.constant 0 : index
      %71 = vector.load %arg0[%70, %c0_40, %c0_41, %c0_42] : memref<16x6x2x8xbf16, #tpu.memory_space<vmem>>, vector<1x6x2x8xbf16>
      %72 = vector.shape_cast %71 : vector<1x6x2x8xbf16> to vector<6x2x8xbf16>
      %73 = arith.truncf %arg7 : vector<2x8xf32> to vector<2x8xbf16>
      %cst_43 = arith.constant dense<0.000000e+00> : vector<2x8xf32>
      %74 = tpu.matmul %73, %7, %cst_43 {dimension_numbers = #tpu.dot_dimension_numbers<[1], [0], [0], [1], [0, 0, 1, 1], [], []>} : vector<2x8xbf16>, vector<8x8xbf16>, vector<2x8xf32> -> vector<2x8xf32>
      %75 = vector.broadcast %19 : vector<1x8xf32> to vector<2x8xf32>
      %76 = arith.addf %74, %75 : vector<2x8xf32>
      %cst_44 = arith.constant dense<0.000000e+00> : vector<2x8xf32>
      %77 = tpu.matmul %73, %9, %cst_44 {dimension_numbers = #tpu.dot_dimension_numbers<[1], [0], [0], [1], [0, 0, 1, 1], [], []>} : vector<2x8xbf16>, vector<8x8xbf16>, vector<2x8xf32> -> vector<2x8xf32>
      %78 = vector.broadcast %21 : vector<1x8xf32> to vector<2x8xf32>
      %79 = arith.addf %77, %78 : vector<2x8xf32>
      %cst_45 = arith.constant dense<0.000000e+00> : vector<2x8xf32>
      %80 = tpu.matmul %73, %11, %cst_45 {dimension_numbers = #tpu.dot_dimension_numbers<[1], [0], [0], [1], [0, 0, 1, 1], [], []>} : vector<2x8xbf16>, vector<8x8xbf16>, vector<2x8xf32> -> vector<2x8xf32>
      %81 = vector.broadcast %23 : vector<1x8xf32> to vector<2x8xf32>
      %82 = arith.addf %80, %81 : vector<2x8xf32>
      %83 = vector.extract_strided_slice %72 {offsets = [3, 0, 0], sizes = [1, 2, 8], strides = [1, 1, 1]} : vector<6x2x8xbf16> to vector<1x2x8xbf16>
      %84 = vector.shape_cast %83 : vector<1x2x8xbf16> to vector<2x8xbf16>
      %85 = arith.extf %84 : vector<2x8xbf16> to vector<2x8xf32>
      %86 = arith.addf %85, %76 : vector<2x8xf32>
      %87 = arith.negf %86 : vector<2x8xf32>
      %88 = math.exp %87 : vector<2x8xf32>
      %cst_46 = arith.constant 1.000000e+00 : f32
      %89 = vector.broadcast %cst_46 : f32 to vector<2x8xf32>
      %90 = arith.addf %89, %88 : vector<2x8xf32>
      %91 = arith.divf %89, %90 : vector<2x8xf32>
      %92 = vector.extract_strided_slice %72 {offsets = [4, 0, 0], sizes = [1, 2, 8], strides = [1, 1, 1]} : vector<6x2x8xbf16> to vector<1x2x8xbf16>
      %93 = vector.shape_cast %92 : vector<1x2x8xbf16> to vector<2x8xbf16>
      %94 = arith.extf %93 : vector<2x8xbf16> to vector<2x8xf32>
      %95 = arith.addf %94, %79 : vector<2x8xf32>
      %96 = arith.negf %95 : vector<2x8xf32>
      %97 = math.exp %96 : vector<2x8xf32>
      %cst_47 = arith.constant 1.000000e+00 : f32
      %98 = vector.broadcast %cst_47 : f32 to vector<2x8xf32>
      %99 = arith.addf %98, %97 : vector<2x8xf32>
      %100 = arith.divf %98, %99 : vector<2x8xf32>
      %101 = vector.extract_strided_slice %72 {offsets = [5, 0, 0], sizes = [1, 2, 8], strides = [1, 1, 1]} : vector<6x2x8xbf16> to vector<1x2x8xbf16>
      %102 = vector.shape_cast %101 : vector<1x2x8xbf16> to vector<2x8xbf16>
      %103 = arith.extf %102 : vector<2x8xbf16> to vector<2x8xf32>
      %104 = arith.mulf %91, %82 : vector<2x8xf32>
      %105 = arith.addf %103, %104 : vector<2x8xf32>
      %106 = math.tanh %105 : vector<2x8xf32>
      %cst_48 = arith.constant 1.000000e+00 : f32
      %107 = vector.broadcast %cst_48 : f32 to vector<2x8xf32>
      %108 = arith.subf %107, %100 : vector<2x8xf32>
      %109 = arith.mulf %108, %106 : vector<2x8xf32>
      %110 = arith.mulf %100, %arg7 : vector<2x8xf32>
      %111 = arith.addf %109, %110 : vector<2x8xf32>
      %112 = arith.truncf %69 : vector<2x8xf32> to vector<2x8xbf16>
      %113 = arith.index_cast %arg5 : i32 to index
      %c0_49 = arith.constant 0 : index
      %c0_50 = arith.constant 0 : index
      %114 = vector.load %arg3[%113, %c0_49, %c0_50] : memref<16x2x8xbf16, #tpu.memory_space<vmem>>, vector<1x2x8xbf16>
      %115 = vector.shape_cast %114 : vector<1x2x8xbf16> to vector<2x8xbf16>
      %116 = vector.shape_cast %112 : vector<2x8xbf16> to vector<1x2x8xbf16>
      tpu.vector_store %arg3[%113, %c0_49, %c0_50], %116 {strides = array<i32>} : memref<16x2x8xbf16, #tpu.memory_space<vmem>>, vector<1x2x8xbf16>,
      %117 = arith.truncf %111 : vector<2x8xf32> to vector<2x8xbf16>
      %118 = arith.index_cast %27 : i32 to index
      %c0_51 = arith.constant 0 : index
      %c0_52 = arith.constant 0 : index
      %119 = vector.load %arg4[%118, %c0_51, %c0_52] : memref<16x2x8xbf16, #tpu.memory_space<vmem>>, vector<1x2x8xbf16>
      %120 = vector.shape_cast %119 : vector<1x2x8xbf16> to vector<2x8xbf16>
      %121 = vector.shape_cast %117 : vector<2x8xbf16> to vector<1x2x8xbf16>
      tpu.vector_store %arg4[%118, %c0_51, %c0_52], %121 {strides = array<i32>} : memref<16x2x8xbf16, #tpu.memory_space<vmem>>, vector<1x2x8xbf16>,
      scf.yield %69, %111 : vector<2x8xf32>, vector<2x8xf32>
    }
    %c16_i32_30 = arith.constant 16 : i32
    return
  }
}

module attributes {stable_mosaic.version = 11 : i64} {
  func.func @_linear_kernel(%arg0: i32, %arg1: i32, %arg2: memref<32x16xbf16, #tpu.memory_space<vmem>>, %arg3: memref<16x48xbf16, #tpu.memory_space<vmem>>, %arg4: memref<1x48xf32, #tpu.memory_space<vmem>>, %arg5: memref<32x48xbf16, #tpu.memory_space<vmem>>) attributes {dimension_semantics = [#tpu.dimension_semantics<parallel>, #tpu.dimension_semantics<parallel>], iteration_bounds = array<i64: 1, 1>, scalar_prefetch = 0 : i64, scratch_operands = 0 : i64, tpu.core_type = #tpu.core_type<tc>, window_params = [{transform_indices = @transform_0, window_bounds = array<i64: 32, 16>}, {pipeline_mode = #tpu.pipeline_mode<synchronous>, transform_indices = @transform_1, window_bounds = array<i64: 16, 48>}, {pipeline_mode = #tpu.pipeline_mode<synchronous>, transform_indices = @transform_2, window_bounds = array<i64: 1, 48>}, {transform_indices = @transform_3, window_bounds = array<i64: 32, 48>}]} {
    %c0 = arith.constant 0 : index
    %c0_0 = arith.constant 0 : index
    %0 = vector.load %arg2[%c0, %c0_0] : memref<32x16xbf16, #tpu.memory_space<vmem>>, vector<32x16xbf16>
    %c0_1 = arith.constant 0 : index
    %c0_2 = arith.constant 0 : index
    %1 = vector.load %arg3[%c0_1, %c0_2] : memref<16x48xbf16, #tpu.memory_space<vmem>>, vector<16x48xbf16>
    %cst = arith.constant dense<0.000000e+00> : vector<32x48xf32>
    %2 = tpu.matmul %0, %1, %cst {dimension_numbers = #tpu.dot_dimension_numbers<[1], [0], [0], [1], [0, 0, 1, 1], [], []>} : vector<32x16xbf16>, vector<16x48xbf16>, vector<32x48xf32> -> vector<32x48xf32>
    %c0_3 = arith.constant 0 : index
    %c0_4 = arith.constant 0 : index
    %3 = vector.load %arg4[%c0_3, %c0_4] : memref<1x48xf32, #tpu.memory_space<vmem>>, vector<1x48xf32>
    %4 = vector.broadcast %3 : vector<1x48xf32> to vector<32x48xf32>
    %5 = arith.addf %2, %4 : vector<32x48xf32>
    %6 = arith.truncf %5 : vector<32x48xf32> to vector<32x48xbf16>
    %c0_5 = arith.constant 0 : index
    %c0_6 = arith.constant 0 : index
    %7 = vector.load %arg5[%c0_5, %c0_6] : memref<32x48xbf16, #tpu.memory_space<vmem>>, vector<32x48xbf16>
    tpu.vector_store %arg5[%c0_5, %c0_6], %6 {strides = array<i32>} : memref<32x48xbf16, #tpu.memory_space<vmem>>, vector<32x48xbf16>,
    return
  }
  func.func @transform_0(%arg0: i32, %arg1: i32) -> (i32, i32) {
    %c0_i32 = arith.constant 0 : i32
    %c0_i32_0 = arith.constant 0 : i32
    return %arg0, %c0_i32 : i32, i32
  }
  func.func @transform_1(%arg0: i32, %arg1: i32) -> (i32, i32) {
    %c0_i32 = arith.constant 0 : i32
    %c0_i32_0 = arith.constant 0 : i32
    %c0_i32_1 = arith.constant 0 : i32
    return %c0_i32, %c0_i32_0 : i32, i32
  }
  func.func @transform_2(%arg0: i32, %arg1: i32) -> (i32, i32) {
    %c0_i32 = arith.constant 0 : i32
    %c0_i32_0 = arith.constant 0 : i32
    %c0_i32_1 = arith.constant 0 : i32
    return %c0_i32, %c0_i32_0 : i32, i32
  }
  func.func @transform_3(%arg0: i32, %arg1: i32) -> (i32, i32) {
    %c0_i32 = arith.constant 0 : i32
    return %arg0, %arg1 : i32, i32
  }
}

module attributes {stable_mosaic.version = 11 : i64} {
  func.func @_linear_kernel(%arg0: i32, %arg1: i32, %arg2: memref<32x16xbf16, #tpu.memory_space<vmem>>, %arg3: memref<16x16xbf16, #tpu.memory_space<vmem>>, %arg4: memref<1x16xf32, #tpu.memory_space<vmem>>, %arg5: memref<32x16xbf16, #tpu.memory_space<vmem>>) attributes {dimension_semantics = [#tpu.dimension_semantics<parallel>, #tpu.dimension_semantics<parallel>], iteration_bounds = array<i64: 1, 1>, scalar_prefetch = 0 : i64, scratch_operands = 0 : i64, tpu.core_type = #tpu.core_type<tc>, window_params = [{transform_indices = @transform_0, window_bounds = array<i64: 32, 16>}, {pipeline_mode = #tpu.pipeline_mode<synchronous>, transform_indices = @transform_1, window_bounds = array<i64: 16, 16>}, {pipeline_mode = #tpu.pipeline_mode<synchronous>, transform_indices = @transform_2, window_bounds = array<i64: 1, 16>}, {transform_indices = @transform_3, window_bounds = array<i64: 32, 16>}]} {
    %c0 = arith.constant 0 : index
    %c0_0 = arith.constant 0 : index
    %0 = vector.load %arg2[%c0, %c0_0] : memref<32x16xbf16, #tpu.memory_space<vmem>>, vector<32x16xbf16>
    %c0_1 = arith.constant 0 : index
    %c0_2 = arith.constant 0 : index
    %1 = vector.load %arg3[%c0_1, %c0_2] : memref<16x16xbf16, #tpu.memory_space<vmem>>, vector<16x16xbf16>
    %cst = arith.constant dense<0.000000e+00> : vector<32x16xf32>
    %2 = tpu.matmul %0, %1, %cst {dimension_numbers = #tpu.dot_dimension_numbers<[1], [0], [0], [1], [0, 0, 1, 1], [], []>} : vector<32x16xbf16>, vector<16x16xbf16>, vector<32x16xf32> -> vector<32x16xf32>
    %c0_3 = arith.constant 0 : index
    %c0_4 = arith.constant 0 : index
    %3 = vector.load %arg4[%c0_3, %c0_4] : memref<1x16xf32, #tpu.memory_space<vmem>>, vector<1x16xf32>
    %4 = vector.broadcast %3 : vector<1x16xf32> to vector<32x16xf32>
    %5 = arith.addf %2, %4 : vector<32x16xf32>
    %6 = arith.truncf %5 : vector<32x16xf32> to vector<32x16xbf16>
    %c0_5 = arith.constant 0 : index
    %c0_6 = arith.constant 0 : index
    %7 = vector.load %arg5[%c0_5, %c0_6] : memref<32x16xbf16, #tpu.memory_space<vmem>>, vector<32x16xbf16>
    tpu.vector_store %arg5[%c0_5, %c0_6], %6 {strides = array<i32>} : memref<32x16xbf16, #tpu.memory_space<vmem>>, vector<32x16xbf16>,
    return
  }
  func.func @transform_0(%arg0: i32, %arg1: i32) -> (i32, i32) {
    %c0_i32 = arith.constant 0 : i32
    %c0_i32_0 = arith.constant 0 : i32
    return %arg0, %c0_i32 : i32, i32
  }
  func.func @transform_1(%arg0: i32, %arg1: i32) -> (i32, i32) {
    %c0_i32 = arith.constant 0 : i32
    %c0_i32_0 = arith.constant 0 : i32
    %c0_i32_1 = arith.constant 0 : i32
    return %c0_i32, %c0_i32_0 : i32, i32
  }
  func.func @transform_2(%arg0: i32, %arg1: i32) -> (i32, i32) {
    %c0_i32 = arith.constant 0 : i32
    %c0_i32_0 = arith.constant 0 : i32
    %c0_i32_1 = arith.constant 0 : i32
    return %c0_i32, %c0_i32_0 : i32, i32
  }
  func.func @transform_3(%arg0: i32, %arg1: i32) -> (i32, i32) {
    %c0_i32 = arith.constant 0 : i32
    return %arg0, %arg1 : i32, i32
  }
}

module attributes {stable_mosaic.version = 11 : i64} {
  func.func @_flash_attn_kernel(%arg0: i32, %arg1: i32, %arg2: i32, %arg3: memref<16x4x8xbf16, #tpu.memory_space<vmem>>, %arg4: memref<16x4x8xbf16, #tpu.memory_space<vmem>>, %arg5: memref<16x4x8xbf16, #tpu.memory_space<vmem>>, %arg6: memref<16x4x8xbf16, #tpu.memory_space<vmem>>, %arg7: memref<16x4x1xf32, #tpu.memory_space<vmem>>, %arg8: memref<16x4x1xf32, #tpu.memory_space<vmem>>, %arg9: memref<16x4x8xf32, #tpu.memory_space<vmem>>) attributes {dimension_semantics = [#tpu.dimension_semantics<parallel>, #tpu.dimension_semantics<parallel>, #tpu.dimension_semantics<arbitrary>], iteration_bounds = array<i64: 1, 1, 1>, scalar_prefetch = 0 : i64, scratch_operands = 3 : i64, tpu.core_type = #tpu.core_type<tc>, window_params = [{transform_indices = @transform_0, window_bounds = array<i64: 16, 4, 8>}, {transform_indices = @transform_1, window_bounds = array<i64: 16, 4, 8>}, {transform_indices = @transform_2, window_bounds = array<i64: 16, 4, 8>}, {transform_indices = @transform_3, window_bounds = array<i64: 16, 4, 8>}]} {
    %c0_i32 = arith.constant 0 : i32
    %0 = arith.cmpi eq, %arg2, %c0_i32 : i32
    %1 = arith.extui %0 : i1 to i32
    %c0_i32_0 = arith.constant 0 : i32
    %2 = arith.cmpi ne, %1, %c0_i32_0 : i32
    scf.if %2 {
      %cst_33 = arith.constant 0xFF800000 : f32
      %35 = vector.broadcast %cst_33 : f32 to vector<16x4x1xf32>
      %c0_34 = arith.constant 0 : index
      %c0_35 = arith.constant 0 : index
      %c0_36 = arith.constant 0 : index
      %36 = vector.load %arg7[%c0_34, %c0_35, %c0_36] : memref<16x4x1xf32, #tpu.memory_space<vmem>>, vector<16x4x1xf32>
      tpu.vector_store %arg7[%c0_34, %c0_35, %c0_36], %35 {strides = array<i32>} : memref<16x4x1xf32, #tpu.memory_space<vmem>>, vector<16x4x1xf32>,
      %cst_37 = arith.constant 0.000000e+00 : f32
      %37 = vector.broadcast %cst_37 : f32 to vector<16x4x1xf32>
      %c0_38 = arith.constant 0 : index
      %c0_39 = arith.constant 0 : index
      %c0_40 = arith.constant 0 : index
      %38 = vector.load %arg8[%c0_38, %c0_39, %c0_40] : memref<16x4x1xf32, #tpu.memory_space<vmem>>, vector<16x4x1xf32>
      tpu.vector_store %arg8[%c0_38, %c0_39, %c0_40], %37 {strides = array<i32>} : memref<16x4x1xf32, #tpu.memory_space<vmem>>, vector<16x4x1xf32>,
      %cst_41 = arith.constant 0.000000e+00 : f32
      %39 = vector.broadcast %cst_41 : f32 to vector<16x4x8xf32>
      %c0_42 = arith.constant 0 : index
      %c0_43 = arith.constant 0 : index
      %c0_44 = arith.constant 0 : index
      %40 = vector.load %arg9[%c0_42, %c0_43, %c0_44] : memref<16x4x8xf32, #tpu.memory_space<vmem>>, vector<16x4x8xf32>
      tpu.vector_store %arg9[%c0_42, %c0_43, %c0_44], %39 {strides = array<i32>} : memref<16x4x8xf32, #tpu.memory_space<vmem>>, vector<16x4x8xf32>,
    } else {
    }
    %c0 = arith.constant 0 : index
    %c0_1 = arith.constant 0 : index
    %c0_2 = arith.constant 0 : index
    %3 = vector.load %arg3[%c0, %c0_1, %c0_2] : memref<16x4x8xbf16, #tpu.memory_space<vmem>>, vector<16x4x8xbf16>
    %cst = arith.constant 3.535160e-01 : bf16
    %4 = vector.broadcast %cst : bf16 to vector<16x4x8xbf16>
    %5 = arith.mulf %3, %4 : vector<16x4x8xbf16>
    %c0_3 = arith.constant 0 : index
    %c0_4 = arith.constant 0 : index
    %c0_5 = arith.constant 0 : index
    %6 = vector.load %arg4[%c0_3, %c0_4, %c0_5] : memref<16x4x8xbf16, #tpu.memory_space<vmem>>, vector<16x4x8xbf16>
    "tpu.trace_start"() <{level = 10 : i32, message = "bqd,bkd->bqk"}> : () -> ()
    %cst_6 = arith.constant dense<0.000000e+00> : vector<16x4x4xf32>
    %7 = tpu.matmul %5, %6, %cst_6 {dimension_numbers = #tpu.dot_dimension_numbers<[2], [2], [1], [1], [0, 0, 0, 1, 1, 1], [0], [0]>} : vector<16x4x8xbf16>, vector<16x4x8xbf16>, vector<16x4x4xf32> -> vector<16x4x4xf32>
    "tpu.trace_stop"() : () -> ()
    %c0_7 = arith.constant 0 : index
    %c0_8 = arith.constant 0 : index
    %c0_9 = arith.constant 0 : index
    %8 = vector.load %arg7[%c0_7, %c0_8, %c0_9] : memref<16x4x1xf32, #tpu.memory_space<vmem>>, vector<16x4x1xf32>
    %cst_10 = arith.constant dense<0xFF800000> : vector<16x4xf32>
    %9 = vector.multi_reduction <maximumf>, %7, %cst_10 [2] : vector<16x4x4xf32> to vector<16x4xf32>
    %10 = vector.shape_cast %9 : vector<16x4xf32> to vector<16x4x1xf32>
    %11 = arith.maximumf %8, %10 : vector<16x4x1xf32>
    %12 = arith.subf %8, %11 : vector<16x4x1xf32>
    %13 = math.exp %12 : vector<16x4x1xf32>
    %14 = vector.broadcast %11 : vector<16x4x1xf32> to vector<16x4x4xf32>
    %15 = arith.subf %7, %14 : vector<16x4x4xf32>
    %16 = math.exp %15 : vector<16x4x4xf32>
    %c0_11 = arith.constant 0 : index
    %c0_12 = arith.constant 0 : index
    %c0_13 = arith.constant 0 : index
    %17 = vector.load %arg8[%c0_11, %c0_12, %c0_13] : memref<16x4x1xf32, #tpu.memory_space<vmem>>, vector<16x4x1xf32>
    %18 = arith.mulf %13, %17 : vector<16x4x1xf32>
    %cst_14 = arith.constant dense<0.000000e+00> : vector<16x4xf32>
    %19 = vector.multi_reduction <add>, %16, %cst_14 [2] : vector<16x4x4xf32> to vector<16x4xf32>
    %20 = vector.shape_cast %19 : vector<16x4xf32> to vector<16x4x1xf32>
    %21 = arith.addf %18, %20 : vector<16x4x1xf32>
    %c0_15 = arith.constant 0 : index
    %c0_16 = arith.constant 0 : index
    %c0_17 = arith.constant 0 : index
    %22 = vector.load %arg8[%c0_15, %c0_16, %c0_17] : memref<16x4x1xf32, #tpu.memory_space<vmem>>, vector<16x4x1xf32>
    tpu.vector_store %arg8[%c0_15, %c0_16, %c0_17], %21 {strides = array<i32>} : memref<16x4x1xf32, #tpu.memory_space<vmem>>, vector<16x4x1xf32>,
    %c0_18 = arith.constant 0 : index
    %c0_19 = arith.constant 0 : index
    %c0_20 = arith.constant 0 : index
    %23 = vector.load %arg9[%c0_18, %c0_19, %c0_20] : memref<16x4x8xf32, #tpu.memory_space<vmem>>, vector<16x4x8xf32>
    %24 = vector.broadcast %13 : vector<16x4x1xf32> to vector<16x4x8xf32>
    %25 = arith.mulf %24, %23 : vector<16x4x8xf32>
    %26 = arith.truncf %16 : vector<16x4x4xf32> to vector<16x4x4xbf16>
    %c0_21 = arith.constant 0 : index
    %c0_22 = arith.constant 0 : index
    %c0_23 = arith.constant 0 : index
    %27 = vector.load %arg5[%c0_21, %c0_22, %c0_23] : memref<16x4x8xbf16, #tpu.memory_space<vmem>>, vector<16x4x8xbf16>
    "tpu.trace_start"() <{level = 10 : i32, message = "bqk,bkd->bqd"}> : () -> ()
    %cst_24 = arith.constant dense<0.000000e+00> : vector<16x4x8xf32>
    %28 = tpu.matmul %26, %27, %cst_24 {dimension_numbers = #tpu.dot_dimension_numbers<[2], [1], [1], [2], [0, 0, 0, 1, 1, 2], [0], [0]>} : vector<16x4x4xbf16>, vector<16x4x8xbf16>, vector<16x4x8xf32> -> vector<16x4x8xf32>
    "tpu.trace_stop"() : () -> ()
    %29 = arith.addf %25, %28 : vector<16x4x8xf32>
    %c0_25 = arith.constant 0 : index
    %c0_26 = arith.constant 0 : index
    %c0_27 = arith.constant 0 : index
    %30 = vector.load %arg9[%c0_25, %c0_26, %c0_27] : memref<16x4x8xf32, #tpu.memory_space<vmem>>, vector<16x4x8xf32>
    tpu.vector_store %arg9[%c0_25, %c0_26, %c0_27], %29 {strides = array<i32>} : memref<16x4x8xf32, #tpu.memory_space<vmem>>, vector<16x4x8xf32>,
    %c0_28 = arith.constant 0 : index
    %c0_29 = arith.constant 0 : index
    %c0_30 = arith.constant 0 : index
    %31 = vector.load %arg7[%c0_28, %c0_29, %c0_30] : memref<16x4x1xf32, #tpu.memory_space<vmem>>, vector<16x4x1xf32>
    tpu.vector_store %arg7[%c0_28, %c0_29, %c0_30], %11 {strides = array<i32>} : memref<16x4x1xf32, #tpu.memory_space<vmem>>, vector<16x4x1xf32>,
    %c0_i32_31 = arith.constant 0 : i32
    %32 = arith.cmpi eq, %arg2, %c0_i32_31 : i32
    %33 = arith.extui %32 : i1 to i32
    %c0_i32_32 = arith.constant 0 : i32
    %34 = arith.cmpi ne, %33, %c0_i32_32 : i32
    scf.if %34 {
      %c0_33 = arith.constant 0 : index
      %c0_34 = arith.constant 0 : index
      %c0_35 = arith.constant 0 : index
      %35 = vector.load %arg9[%c0_33, %c0_34, %c0_35] : memref<16x4x8xf32, #tpu.memory_space<vmem>>, vector<16x4x8xf32>
      %c0_36 = arith.constant 0 : index
      %c0_37 = arith.constant 0 : index
      %c0_38 = arith.constant 0 : index
      %36 = vector.load %arg8[%c0_36, %c0_37, %c0_38] : memref<16x4x1xf32, #tpu.memory_space<vmem>>, vector<16x4x1xf32>
      %37 = tpu.reciprocal %36 {approx = true} : vector<16x4x1xf32> -> vector<16x4x1xf32>
      %38 = vector.broadcast %37 : vector<16x4x1xf32> to vector<16x4x8xf32>
      %39 = arith.mulf %35, %38 : vector<16x4x8xf32>
      %40 = arith.truncf %39 : vector<16x4x8xf32> to vector<16x4x8xbf16>
      %c0_39 = arith.constant 0 : index
      %c0_40 = arith.constant 0 : index
      %c0_41 = arith.constant 0 : index
      %41 = vector.load %arg6[%c0_39, %c0_40, %c0_41] : memref<16x4x8xbf16, #tpu.memory_space<vmem>>, vector<16x4x8xbf16>
      tpu.vector_store %arg6[%c0_39, %c0_40, %c0_41], %40 {strides = array<i32>} : memref<16x4x8xbf16, #tpu.memory_space<vmem>>, vector<16x4x8xbf16>,
    } else {
    }
    return
  }
  func.func @transform_0(%arg0: i32, %arg1: i32, %arg2: i32) -> (i32, i32, i32) {
    %c0_i32 = arith.constant 0 : i32
    %c0_i32_0 = arith.constant 0 : i32
    return %arg0, %arg1, %c0_i32 : i32, i32, i32
  }
  func.func @transform_1(%arg0: i32, %arg1: i32, %arg2: i32) -> (i32, i32, i32) {
    %c0_i32 = arith.constant 0 : i32
    %c0_i32_0 = arith.constant 0 : i32
    return %arg0, %arg2, %c0_i32 : i32, i32, i32
  }
  func.func @transform_2(%arg0: i32, %arg1: i32, %arg2: i32) -> (i32, i32, i32) {
    %c0_i32 = arith.constant 0 : i32
    %c0_i32_0 = arith.constant 0 : i32
    return %arg0, %arg2, %c0_i32 : i32, i32, i32
  }
  func.func @transform_3(%arg0: i32, %arg1: i32, %arg2: i32) -> (i32, i32, i32) {
    %c0_i32 = arith.constant 0 : i32
    %c0_i32_0 = arith.constant 0 : i32
    return %arg0, %arg1, %c0_i32 : i32, i32, i32
  }
}

module attributes {stable_mosaic.version = 11 : i64} {
  func.func @_add_ln_kernel(%arg0: i32, %arg1: memref<32x16xbf16, #tpu.memory_space<vmem>>, %arg2: memref<32x16xbf16, #tpu.memory_space<vmem>>, %arg3: memref<1x16xf32, #tpu.memory_space<vmem>>, %arg4: memref<1x16xf32, #tpu.memory_space<vmem>>, %arg5: memref<32x16xbf16, #tpu.memory_space<vmem>>) attributes {dimension_semantics = [#tpu.dimension_semantics<parallel>], iteration_bounds = array<i64: 1>, scalar_prefetch = 0 : i64, scratch_operands = 0 : i64, tpu.core_type = #tpu.core_type<tc>, window_params = [{transform_indices = @transform_0, window_bounds = array<i64: 32, 16>}, {transform_indices = @transform_1, window_bounds = array<i64: 32, 16>}, {pipeline_mode = #tpu.pipeline_mode<synchronous>, transform_indices = @transform_2, window_bounds = array<i64: 1, 16>}, {pipeline_mode = #tpu.pipeline_mode<synchronous>, transform_indices = @transform_3, window_bounds = array<i64: 1, 16>}, {transform_indices = @transform_4, window_bounds = array<i64: 32, 16>}]} {
    %c0 = arith.constant 0 : index
    %c0_0 = arith.constant 0 : index
    %0 = vector.load %arg1[%c0, %c0_0] : memref<32x16xbf16, #tpu.memory_space<vmem>>, vector<32x16xbf16>
    %1 = arith.extf %0 : vector<32x16xbf16> to vector<32x16xf32>
    %c0_1 = arith.constant 0 : index
    %c0_2 = arith.constant 0 : index
    %2 = vector.load %arg2[%c0_1, %c0_2] : memref<32x16xbf16, #tpu.memory_space<vmem>>, vector<32x16xbf16>
    %3 = arith.extf %2 : vector<32x16xbf16> to vector<32x16xf32>
    %4 = arith.addf %1, %3 : vector<32x16xf32>
    %cst = arith.constant dense<0.000000e+00> : vector<32xf32>
    %5 = vector.multi_reduction <add>, %4, %cst [1] : vector<32x16xf32> to vector<32xf32>
    %6 = vector.shape_cast %5 : vector<32xf32> to vector<32x1xf32>
    %cst_3 = arith.constant 1.600000e+01 : f32
    %7 = vector.broadcast %cst_3 : f32 to vector<32x1xf32>
    %8 = arith.divf %6, %7 : vector<32x1xf32>
    %9 = vector.broadcast %8 : vector<32x1xf32> to vector<32x16xf32>
    %10 = arith.subf %4, %9 : vector<32x16xf32>
    %11 = arith.mulf %10, %10 : vector<32x16xf32>
    %cst_4 = arith.constant dense<0.000000e+00> : vector<32xf32>
    %12 = vector.multi_reduction <add>, %11, %cst_4 [1] : vector<32x16xf32> to vector<32xf32>
    %13 = vector.shape_cast %12 : vector<32xf32> to vector<32x1xf32>
    %cst_5 = arith.constant 1.600000e+01 : f32
    %14 = vector.broadcast %cst_5 : f32 to vector<32x1xf32>
    %15 = arith.divf %13, %14 : vector<32x1xf32>
    %cst_6 = arith.constant 9.99999974E-6 : f32
    %16 = vector.broadcast %cst_6 : f32 to vector<32x1xf32>
    %17 = arith.addf %15, %16 : vector<32x1xf32>
    %18 = math.rsqrt %17 : vector<32x1xf32>
    %19 = vector.broadcast %8 : vector<32x1xf32> to vector<32x16xf32>
    %20 = arith.subf %4, %19 : vector<32x16xf32>
    %21 = vector.broadcast %18 : vector<32x1xf32> to vector<32x16xf32>
    %22 = arith.mulf %20, %21 : vector<32x16xf32>
    %c0_7 = arith.constant 0 : index
    %c0_8 = arith.constant 0 : index
    %23 = vector.load %arg3[%c0_7, %c0_8] : memref<1x16xf32, #tpu.memory_space<vmem>>, vector<1x16xf32>
    %24 = vector.broadcast %23 : vector<1x16xf32> to vector<32x16xf32>
    %25 = arith.mulf %22, %24 : vector<32x16xf32>
    %c0_9 = arith.constant 0 : index
    %c0_10 = arith.constant 0 : index
    %26 = vector.load %arg4[%c0_9, %c0_10] : memref<1x16xf32, #tpu.memory_space<vmem>>, vector<1x16xf32>
    %27 = vector.broadcast %26 : vector<1x16xf32> to vector<32x16xf32>
    %28 = arith.addf %25, %27 : vector<32x16xf32>
    %29 = arith.truncf %28 : vector<32x16xf32> to vector<32x16xbf16>
    %c0_11 = arith.constant 0 : index
    %c0_12 = arith.constant 0 : index
    %30 = vector.load %arg5[%c0_11, %c0_12] : memref<32x16xbf16, #tpu.memory_space<vmem>>, vector<32x16xbf16>
    tpu.vector_store %arg5[%c0_11, %c0_12], %29 {strides = array<i32>} : memref<32x16xbf16, #tpu.memory_space<vmem>>, vector<32x16xbf16>,
    return
  }
  func.func @transform_0(%arg0: i32) -> (i32, i32) {
    %c0_i32 = arith.constant 0 : i32
    %c0_i32_0 = arith.constant 0 : i32
    return %arg0, %c0_i32 : i32, i32
  }
  func.func @transform_1(%arg0: i32) -> (i32, i32) {
    %c0_i32 = arith.constant 0 : i32
    %c0_i32_0 = arith.constant 0 : i32
    return %arg0, %c0_i32 : i32, i32
  }
  func.func @transform_2(%arg0: i32) -> (i32, i32) {
    %c0_i32 = arith.constant 0 : i32
    %c0_i32_0 = arith.constant 0 : i32
    %c0_i32_1 = arith.constant 0 : i32
    return %c0_i32, %c0_i32_0 : i32, i32
  }
  func.func @transform_3(%arg0: i32) -> (i32, i32) {
    %c0_i32 = arith.constant 0 : i32
    %c0_i32_0 = arith.constant 0 : i32
    %c0_i32_1 = arith.constant 0 : i32
    return %c0_i32, %c0_i32_0 : i32, i32
  }
  func.func @transform_4(%arg0: i32) -> (i32, i32) {
    %c0_i32 = arith.constant 0 : i32
    %c0_i32_0 = arith.constant 0 : i32
    return %arg0, %c0_i32 : i32, i32
  }
}

module attributes {stable_mosaic.version = 11 : i64} {
  func.func @_mlp_kernel(%arg0: i32, %arg1: memref<32x16xbf16, #tpu.memory_space<vmem>>, %arg2: memref<16x64xbf16, #tpu.memory_space<vmem>>, %arg3: memref<1x64xf32, #tpu.memory_space<vmem>>, %arg4: memref<64x16xbf16, #tpu.memory_space<vmem>>, %arg5: memref<1x16xf32, #tpu.memory_space<vmem>>, %arg6: memref<32x16xbf16, #tpu.memory_space<vmem>>) attributes {dimension_semantics = [#tpu.dimension_semantics<parallel>], iteration_bounds = array<i64: 1>, scalar_prefetch = 0 : i64, scratch_operands = 0 : i64, tpu.core_type = #tpu.core_type<tc>, window_params = [{transform_indices = @transform_0, window_bounds = array<i64: 32, 16>}, {pipeline_mode = #tpu.pipeline_mode<synchronous>, transform_indices = @transform_1, window_bounds = array<i64: 16, 64>}, {pipeline_mode = #tpu.pipeline_mode<synchronous>, transform_indices = @transform_2, window_bounds = array<i64: 1, 64>}, {pipeline_mode = #tpu.pipeline_mode<synchronous>, transform_indices = @transform_3, window_bounds = array<i64: 64, 16>}, {pipeline_mode = #tpu.pipeline_mode<synchronous>, transform_indices = @transform_4, window_bounds = array<i64: 1, 16>}, {transform_indices = @transform_5, window_bounds = array<i64: 32, 16>}]} {
    %c0 = arith.constant 0 : index
    %c0_0 = arith.constant 0 : index
    %0 = vector.load %arg1[%c0, %c0_0] : memref<32x16xbf16, #tpu.memory_space<vmem>>, vector<32x16xbf16>
    %c0_1 = arith.constant 0 : index
    %c0_2 = arith.constant 0 : index
    %1 = vector.load %arg2[%c0_1, %c0_2] : memref<16x64xbf16, #tpu.memory_space<vmem>>, vector<16x64xbf16>
    %cst = arith.constant dense<0.000000e+00> : vector<32x64xf32>
    %2 = tpu.matmul %0, %1, %cst {dimension_numbers = #tpu.dot_dimension_numbers<[1], [0], [0], [1], [0, 0, 1, 1], [], []>} : vector<32x16xbf16>, vector<16x64xbf16>, vector<32x64xf32> -> vector<32x64xf32>
    %c0_3 = arith.constant 0 : index
    %c0_4 = arith.constant 0 : index
    %3 = vector.load %arg3[%c0_3, %c0_4] : memref<1x64xf32, #tpu.memory_space<vmem>>, vector<1x64xf32>
    %4 = vector.broadcast %3 : vector<1x64xf32> to vector<32x64xf32>
    %5 = arith.addf %2, %4 : vector<32x64xf32>
    %6 = arith.mulf %5, %5 : vector<32x64xf32>
    %7 = arith.mulf %5, %6 : vector<32x64xf32>
    %cst_5 = arith.constant 4.471500e-02 : f32
    %8 = vector.broadcast %cst_5 : f32 to vector<32x64xf32>
    %9 = arith.mulf %8, %7 : vector<32x64xf32>
    %10 = arith.addf %5, %9 : vector<32x64xf32>
    %cst_6 = arith.constant 0.797884583 : f32
    %11 = vector.broadcast %cst_6 : f32 to vector<32x64xf32>
    %12 = arith.mulf %11, %10 : vector<32x64xf32>
    %13 = math.tanh %12 : vector<32x64xf32>
    %cst_7 = arith.constant 1.000000e+00 : f32
    %14 = vector.broadcast %cst_7 : f32 to vector<32x64xf32>
    %15 = arith.addf %14, %13 : vector<32x64xf32>
    %cst_8 = arith.constant 5.000000e-01 : f32
    %16 = vector.broadcast %cst_8 : f32 to vector<32x64xf32>
    %17 = arith.mulf %16, %15 : vector<32x64xf32>
    %18 = arith.mulf %5, %17 : vector<32x64xf32>
    %19 = arith.truncf %18 : vector<32x64xf32> to vector<32x64xbf16>
    %c0_9 = arith.constant 0 : index
    %c0_10 = arith.constant 0 : index
    %20 = vector.load %arg4[%c0_9, %c0_10] : memref<64x16xbf16, #tpu.memory_space<vmem>>, vector<64x16xbf16>
    %cst_11 = arith.constant dense<0.000000e+00> : vector<32x16xf32>
    %21 = tpu.matmul %19, %20, %cst_11 {dimension_numbers = #tpu.dot_dimension_numbers<[1], [0], [0], [1], [0, 0, 1, 1], [], []>} : vector<32x64xbf16>, vector<64x16xbf16>, vector<32x16xf32> -> vector<32x16xf32>
    %c0_12 = arith.constant 0 : index
    %c0_13 = arith.constant 0 : index
    %22 = vector.load %arg5[%c0_12, %c0_13] : memref<1x16xf32, #tpu.memory_space<vmem>>, vector<1x16xf32>
    %23 = vector.broadcast %22 : vector<1x16xf32> to vector<32x16xf32>
    %24 = arith.addf %21, %23 : vector<32x16xf32>
    %25 = arith.truncf %24 : vector<32x16xf32> to vector<32x16xbf16>
    %c0_14 = arith.constant 0 : index
    %c0_15 = arith.constant 0 : index
    %26 = vector.load %arg6[%c0_14, %c0_15] : memref<32x16xbf16, #tpu.memory_space<vmem>>, vector<32x16xbf16>
    tpu.vector_store %arg6[%c0_14, %c0_15], %25 {strides = array<i32>} : memref<32x16xbf16, #tpu.memory_space<vmem>>, vector<32x16xbf16>,
    return
  }
  func.func @transform_0(%arg0: i32) -> (i32, i32) {
    %c0_i32 = arith.constant 0 : i32
    %c0_i32_0 = arith.constant 0 : i32
    return %arg0, %c0_i32 : i32, i32
  }
  func.func @transform_1(%arg0: i32) -> (i32, i32) {
    %c0_i32 = arith.constant 0 : i32
    %c0_i32_0 = arith.constant 0 : i32
    %c0_i32_1 = arith.constant 0 : i32
    return %c0_i32, %c0_i32_0 : i32, i32
  }
  func.func @transform_2(%arg0: i32) -> (i32, i32) {
    %c0_i32 = arith.constant 0 : i32
    %c0_i32_0 = arith.constant 0 : i32
    %c0_i32_1 = arith.constant 0 : i32
    return %c0_i32, %c0_i32_0 : i32, i32
  }
  func.func @transform_3(%arg0: i32) -> (i32, i32) {
    %c0_i32 = arith.constant 0 : i32
    %c0_i32_0 = arith.constant 0 : i32
    %c0_i32_1 = arith.constant 0 : i32
    return %c0_i32, %c0_i32_0 : i32, i32
  }
  func.func @transform_4(%arg0: i32) -> (i32, i32) {
    %c0_i32 = arith.constant 0 : i32
    %c0_i32_0 = arith.constant 0 : i32
    %c0_i32_1 = arith.constant 0 : i32
    return %c0_i32, %c0_i32_0 : i32, i32
  }
  func.func @transform_5(%arg0: i32) -> (i32, i32) {
    %c0_i32 = arith.constant 0 : i32
    %c0_i32_0 = arith.constant 0 : i32
    return %arg0, %c0_i32 : i32, i32
  }
}

module attributes {stable_mosaic.version = 11 : i64} {
  func.func @_linear_kernel(%arg0: i32, %arg1: i32, %arg2: memref<16x32xbf16, #tpu.memory_space<vmem>>, %arg3: memref<32x32xbf16, #tpu.memory_space<vmem>>, %arg4: memref<1x32xf32, #tpu.memory_space<vmem>>, %arg5: memref<16x32xbf16, #tpu.memory_space<vmem>>) attributes {dimension_semantics = [#tpu.dimension_semantics<parallel>, #tpu.dimension_semantics<parallel>], iteration_bounds = array<i64: 1, 1>, scalar_prefetch = 0 : i64, scratch_operands = 0 : i64, tpu.core_type = #tpu.core_type<tc>, window_params = [{transform_indices = @transform_0, window_bounds = array<i64: 16, 32>}, {pipeline_mode = #tpu.pipeline_mode<synchronous>, transform_indices = @transform_1, window_bounds = array<i64: 32, 32>}, {pipeline_mode = #tpu.pipeline_mode<synchronous>, transform_indices = @transform_2, window_bounds = array<i64: 1, 32>}, {transform_indices = @transform_3, window_bounds = array<i64: 16, 32>}]} {
    %c0 = arith.constant 0 : index
    %c0_0 = arith.constant 0 : index
    %0 = vector.load %arg2[%c0, %c0_0] : memref<16x32xbf16, #tpu.memory_space<vmem>>, vector<16x32xbf16>
    %c0_1 = arith.constant 0 : index
    %c0_2 = arith.constant 0 : index
    %1 = vector.load %arg3[%c0_1, %c0_2] : memref<32x32xbf16, #tpu.memory_space<vmem>>, vector<32x32xbf16>
    %cst = arith.constant dense<0.000000e+00> : vector<16x32xf32>
    %2 = tpu.matmul %0, %1, %cst {dimension_numbers = #tpu.dot_dimension_numbers<[1], [0], [0], [1], [0, 0, 1, 1], [], []>} : vector<16x32xbf16>, vector<32x32xbf16>, vector<16x32xf32> -> vector<16x32xf32>
    %c0_3 = arith.constant 0 : index
    %c0_4 = arith.constant 0 : index
    %3 = vector.load %arg4[%c0_3, %c0_4] : memref<1x32xf32, #tpu.memory_space<vmem>>, vector<1x32xf32>
    %4 = vector.broadcast %3 : vector<1x32xf32> to vector<16x32xf32>
    %5 = arith.addf %2, %4 : vector<16x32xf32>
    %6 = arith.truncf %5 : vector<16x32xf32> to vector<16x32xbf16>
    %c0_5 = arith.constant 0 : index
    %c0_6 = arith.constant 0 : index
    %7 = vector.load %arg5[%c0_5, %c0_6] : memref<16x32xbf16, #tpu.memory_space<vmem>>, vector<16x32xbf16>
    tpu.vector_store %arg5[%c0_5, %c0_6], %6 {strides = array<i32>} : memref<16x32xbf16, #tpu.memory_space<vmem>>, vector<16x32xbf16>,
    return
  }
  func.func @transform_0(%arg0: i32, %arg1: i32) -> (i32, i32) {
    %c0_i32 = arith.constant 0 : i32
    %c0_i32_0 = arith.constant 0 : i32
    return %arg0, %c0_i32 : i32, i32
  }
  func.func @transform_1(%arg0: i32, %arg1: i32) -> (i32, i32) {
    %c0_i32 = arith.constant 0 : i32
    %c0_i32_0 = arith.constant 0 : i32
    %c0_i32_1 = arith.constant 0 : i32
    return %c0_i32, %c0_i32_0 : i32, i32
  }
  func.func @transform_2(%arg0: i32, %arg1: i32) -> (i32, i32) {
    %c0_i32 = arith.constant 0 : i32
    %c0_i32_0 = arith.constant 0 : i32
    %c0_i32_1 = arith.constant 0 : i32
    return %c0_i32, %c0_i32_0 : i32, i32
  }
  func.func @transform_3(%arg0: i32, %arg1: i32) -> (i32, i32) {
    %c0_i32 = arith.constant 0 : i32
    return %arg0, %arg1 : i32, i32
  }
}

module attributes {stable_mosaic.version = 11 : i64} {
  func.func @_linear_kernel(%arg0: i32, %arg1: i32, %arg2: memref<16x32xbf16, #tpu.memory_space<vmem>>, %arg3: memref<32x96xbf16, #tpu.memory_space<vmem>>, %arg4: memref<1x96xf32, #tpu.memory_space<vmem>>, %arg5: memref<16x96xbf16, #tpu.memory_space<vmem>>) attributes {dimension_semantics = [#tpu.dimension_semantics<parallel>, #tpu.dimension_semantics<parallel>], iteration_bounds = array<i64: 1, 1>, scalar_prefetch = 0 : i64, scratch_operands = 0 : i64, tpu.core_type = #tpu.core_type<tc>, window_params = [{transform_indices = @transform_0, window_bounds = array<i64: 16, 32>}, {pipeline_mode = #tpu.pipeline_mode<synchronous>, transform_indices = @transform_1, window_bounds = array<i64: 32, 96>}, {pipeline_mode = #tpu.pipeline_mode<synchronous>, transform_indices = @transform_2, window_bounds = array<i64: 1, 96>}, {transform_indices = @transform_3, window_bounds = array<i64: 16, 96>}]} {
    %c0 = arith.constant 0 : index
    %c0_0 = arith.constant 0 : index
    %0 = vector.load %arg2[%c0, %c0_0] : memref<16x32xbf16, #tpu.memory_space<vmem>>, vector<16x32xbf16>
    %c0_1 = arith.constant 0 : index
    %c0_2 = arith.constant 0 : index
    %1 = vector.load %arg3[%c0_1, %c0_2] : memref<32x96xbf16, #tpu.memory_space<vmem>>, vector<32x96xbf16>
    %cst = arith.constant dense<0.000000e+00> : vector<16x96xf32>
    %2 = tpu.matmul %0, %1, %cst {dimension_numbers = #tpu.dot_dimension_numbers<[1], [0], [0], [1], [0, 0, 1, 1], [], []>} : vector<16x32xbf16>, vector<32x96xbf16>, vector<16x96xf32> -> vector<16x96xf32>
    %c0_3 = arith.constant 0 : index
    %c0_4 = arith.constant 0 : index
    %3 = vector.load %arg4[%c0_3, %c0_4] : memref<1x96xf32, #tpu.memory_space<vmem>>, vector<1x96xf32>
    %4 = vector.broadcast %3 : vector<1x96xf32> to vector<16x96xf32>
    %5 = arith.addf %2, %4 : vector<16x96xf32>
    %6 = arith.truncf %5 : vector<16x96xf32> to vector<16x96xbf16>
    %c0_5 = arith.constant 0 : index
    %c0_6 = arith.constant 0 : index
    %7 = vector.load %arg5[%c0_5, %c0_6] : memref<16x96xbf16, #tpu.memory_space<vmem>>, vector<16x96xbf16>
    tpu.vector_store %arg5[%c0_5, %c0_6], %6 {strides = array<i32>} : memref<16x96xbf16, #tpu.memory_space<vmem>>, vector<16x96xbf16>,
    return
  }
  func.func @transform_0(%arg0: i32, %arg1: i32) -> (i32, i32) {
    %c0_i32 = arith.constant 0 : i32
    %c0_i32_0 = arith.constant 0 : i32
    return %arg0, %c0_i32 : i32, i32
  }
  func.func @transform_1(%arg0: i32, %arg1: i32) -> (i32, i32) {
    %c0_i32 = arith.constant 0 : i32
    %c0_i32_0 = arith.constant 0 : i32
    %c0_i32_1 = arith.constant 0 : i32
    return %c0_i32, %c0_i32_0 : i32, i32
  }
  func.func @transform_2(%arg0: i32, %arg1: i32) -> (i32, i32) {
    %c0_i32 = arith.constant 0 : i32
    %c0_i32_0 = arith.constant 0 : i32
    %c0_i32_1 = arith.constant 0 : i32
    return %c0_i32, %c0_i32_0 : i32, i32
  }
  func.func @transform_3(%arg0: i32, %arg1: i32) -> (i32, i32) {
    %c0_i32 = arith.constant 0 : i32
    return %arg0, %arg1 : i32, i32
  }
}

module attributes {stable_mosaic.version = 11 : i64} {
  func.func @_add_ln_kernel(%arg0: i32, %arg1: memref<16x32xbf16, #tpu.memory_space<vmem>>, %arg2: memref<16x32xbf16, #tpu.memory_space<vmem>>, %arg3: memref<1x32xf32, #tpu.memory_space<vmem>>, %arg4: memref<1x32xf32, #tpu.memory_space<vmem>>, %arg5: memref<16x32xbf16, #tpu.memory_space<vmem>>) attributes {dimension_semantics = [#tpu.dimension_semantics<parallel>], iteration_bounds = array<i64: 1>, scalar_prefetch = 0 : i64, scratch_operands = 0 : i64, tpu.core_type = #tpu.core_type<tc>, window_params = [{transform_indices = @transform_0, window_bounds = array<i64: 16, 32>}, {transform_indices = @transform_1, window_bounds = array<i64: 16, 32>}, {pipeline_mode = #tpu.pipeline_mode<synchronous>, transform_indices = @transform_2, window_bounds = array<i64: 1, 32>}, {pipeline_mode = #tpu.pipeline_mode<synchronous>, transform_indices = @transform_3, window_bounds = array<i64: 1, 32>}, {transform_indices = @transform_4, window_bounds = array<i64: 16, 32>}]} {
    %c0 = arith.constant 0 : index
    %c0_0 = arith.constant 0 : index
    %0 = vector.load %arg1[%c0, %c0_0] : memref<16x32xbf16, #tpu.memory_space<vmem>>, vector<16x32xbf16>
    %1 = arith.extf %0 : vector<16x32xbf16> to vector<16x32xf32>
    %c0_1 = arith.constant 0 : index
    %c0_2 = arith.constant 0 : index
    %2 = vector.load %arg2[%c0_1, %c0_2] : memref<16x32xbf16, #tpu.memory_space<vmem>>, vector<16x32xbf16>
    %3 = arith.extf %2 : vector<16x32xbf16> to vector<16x32xf32>
    %4 = arith.addf %1, %3 : vector<16x32xf32>
    %cst = arith.constant dense<0.000000e+00> : vector<16xf32>
    %5 = vector.multi_reduction <add>, %4, %cst [1] : vector<16x32xf32> to vector<16xf32>
    %6 = vector.shape_cast %5 : vector<16xf32> to vector<16x1xf32>
    %cst_3 = arith.constant 3.200000e+01 : f32
    %7 = vector.broadcast %cst_3 : f32 to vector<16x1xf32>
    %8 = arith.divf %6, %7 : vector<16x1xf32>
    %9 = vector.broadcast %8 : vector<16x1xf32> to vector<16x32xf32>
    %10 = arith.subf %4, %9 : vector<16x32xf32>
    %11 = arith.mulf %10, %10 : vector<16x32xf32>
    %cst_4 = arith.constant dense<0.000000e+00> : vector<16xf32>
    %12 = vector.multi_reduction <add>, %11, %cst_4 [1] : vector<16x32xf32> to vector<16xf32>
    %13 = vector.shape_cast %12 : vector<16xf32> to vector<16x1xf32>
    %cst_5 = arith.constant 3.200000e+01 : f32
    %14 = vector.broadcast %cst_5 : f32 to vector<16x1xf32>
    %15 = arith.divf %13, %14 : vector<16x1xf32>
    %cst_6 = arith.constant 9.99999974E-6 : f32
    %16 = vector.broadcast %cst_6 : f32 to vector<16x1xf32>
    %17 = arith.addf %15, %16 : vector<16x1xf32>
    %18 = math.rsqrt %17 : vector<16x1xf32>
    %19 = vector.broadcast %8 : vector<16x1xf32> to vector<16x32xf32>
    %20 = arith.subf %4, %19 : vector<16x32xf32>
    %21 = vector.broadcast %18 : vector<16x1xf32> to vector<16x32xf32>
    %22 = arith.mulf %20, %21 : vector<16x32xf32>
    %c0_7 = arith.constant 0 : index
    %c0_8 = arith.constant 0 : index
    %23 = vector.load %arg3[%c0_7, %c0_8] : memref<1x32xf32, #tpu.memory_space<vmem>>, vector<1x32xf32>
    %24 = vector.broadcast %23 : vector<1x32xf32> to vector<16x32xf32>
    %25 = arith.mulf %22, %24 : vector<16x32xf32>
    %c0_9 = arith.constant 0 : index
    %c0_10 = arith.constant 0 : index
    %26 = vector.load %arg4[%c0_9, %c0_10] : memref<1x32xf32, #tpu.memory_space<vmem>>, vector<1x32xf32>
    %27 = vector.broadcast %26 : vector<1x32xf32> to vector<16x32xf32>
    %28 = arith.addf %25, %27 : vector<16x32xf32>
    %29 = arith.truncf %28 : vector<16x32xf32> to vector<16x32xbf16>
    %c0_11 = arith.constant 0 : index
    %c0_12 = arith.constant 0 : index
    %30 = vector.load %arg5[%c0_11, %c0_12] : memref<16x32xbf16, #tpu.memory_space<vmem>>, vector<16x32xbf16>
    tpu.vector_store %arg5[%c0_11, %c0_12], %29 {strides = array<i32>} : memref<16x32xbf16, #tpu.memory_space<vmem>>, vector<16x32xbf16>,
    return
  }
  func.func @transform_0(%arg0: i32) -> (i32, i32) {
    %c0_i32 = arith.constant 0 : i32
    %c0_i32_0 = arith.constant 0 : i32
    return %arg0, %c0_i32 : i32, i32
  }
  func.func @transform_1(%arg0: i32) -> (i32, i32) {
    %c0_i32 = arith.constant 0 : i32
    %c0_i32_0 = arith.constant 0 : i32
    return %arg0, %c0_i32 : i32, i32
  }
  func.func @transform_2(%arg0: i32) -> (i32, i32) {
    %c0_i32 = arith.constant 0 : i32
    %c0_i32_0 = arith.constant 0 : i32
    %c0_i32_1 = arith.constant 0 : i32
    return %c0_i32, %c0_i32_0 : i32, i32
  }
  func.func @transform_3(%arg0: i32) -> (i32, i32) {
    %c0_i32 = arith.constant 0 : i32
    %c0_i32_0 = arith.constant 0 : i32
    %c0_i32_1 = arith.constant 0 : i32
    return %c0_i32, %c0_i32_0 : i32, i32
  }
  func.func @transform_4(%arg0: i32) -> (i32, i32) {
    %c0_i32 = arith.constant 0 : i32
    %c0_i32_0 = arith.constant 0 : i32
    return %arg0, %c0_i32 : i32, i32
  }
}

module attributes {stable_mosaic.version = 11 : i64} {
  func.func @_mlp_kernel(%arg0: i32, %arg1: memref<16x32xbf16, #tpu.memory_space<vmem>>, %arg2: memref<32x128xbf16, #tpu.memory_space<vmem>>, %arg3: memref<1x128xf32, #tpu.memory_space<vmem>>, %arg4: memref<128x32xbf16, #tpu.memory_space<vmem>>, %arg5: memref<1x32xf32, #tpu.memory_space<vmem>>, %arg6: memref<16x32xbf16, #tpu.memory_space<vmem>>) attributes {dimension_semantics = [#tpu.dimension_semantics<parallel>], iteration_bounds = array<i64: 1>, scalar_prefetch = 0 : i64, scratch_operands = 0 : i64, tpu.core_type = #tpu.core_type<tc>, window_params = [{transform_indices = @transform_0, window_bounds = array<i64: 16, 32>}, {pipeline_mode = #tpu.pipeline_mode<synchronous>, transform_indices = @transform_1, window_bounds = array<i64: 32, 128>}, {pipeline_mode = #tpu.pipeline_mode<synchronous>, transform_indices = @transform_2, window_bounds = array<i64: 1, 128>}, {pipeline_mode = #tpu.pipeline_mode<synchronous>, transform_indices = @transform_3, window_bounds = array<i64: 128, 32>}, {pipeline_mode = #tpu.pipeline_mode<synchronous>, transform_indices = @transform_4, window_bounds = array<i64: 1, 32>}, {transform_indices = @transform_5, window_bounds = array<i64: 16, 32>}]} {
    %c0 = arith.constant 0 : index
    %c0_0 = arith.constant 0 : index
    %0 = vector.load %arg1[%c0, %c0_0] : memref<16x32xbf16, #tpu.memory_space<vmem>>, vector<16x32xbf16>
    %c0_1 = arith.constant 0 : index
    %c0_2 = arith.constant 0 : index
    %1 = vector.load %arg2[%c0_1, %c0_2] : memref<32x128xbf16, #tpu.memory_space<vmem>>, vector<32x128xbf16>
    %cst = arith.constant dense<0.000000e+00> : vector<16x128xf32>
    %2 = tpu.matmul %0, %1, %cst {dimension_numbers = #tpu.dot_dimension_numbers<[1], [0], [0], [1], [0, 0, 1, 1], [], []>} : vector<16x32xbf16>, vector<32x128xbf16>, vector<16x128xf32> -> vector<16x128xf32>
    %c0_3 = arith.constant 0 : index
    %c0_4 = arith.constant 0 : index
    %3 = vector.load %arg3[%c0_3, %c0_4] : memref<1x128xf32, #tpu.memory_space<vmem>>, vector<1x128xf32>
    %4 = vector.broadcast %3 : vector<1x128xf32> to vector<16x128xf32>
    %5 = arith.addf %2, %4 : vector<16x128xf32>
    %6 = arith.mulf %5, %5 : vector<16x128xf32>
    %7 = arith.mulf %5, %6 : vector<16x128xf32>
    %cst_5 = arith.constant 4.471500e-02 : f32
    %8 = vector.broadcast %cst_5 : f32 to vector<16x128xf32>
    %9 = arith.mulf %8, %7 : vector<16x128xf32>
    %10 = arith.addf %5, %9 : vector<16x128xf32>
    %cst_6 = arith.constant 0.797884583 : f32
    %11 = vector.broadcast %cst_6 : f32 to vector<16x128xf32>
    %12 = arith.mulf %11, %10 : vector<16x128xf32>
    %13 = math.tanh %12 : vector<16x128xf32>
    %cst_7 = arith.constant 1.000000e+00 : f32
    %14 = vector.broadcast %cst_7 : f32 to vector<16x128xf32>
    %15 = arith.addf %14, %13 : vector<16x128xf32>
    %cst_8 = arith.constant 5.000000e-01 : f32
    %16 = vector.broadcast %cst_8 : f32 to vector<16x128xf32>
    %17 = arith.mulf %16, %15 : vector<16x128xf32>
    %18 = arith.mulf %5, %17 : vector<16x128xf32>
    %19 = arith.truncf %18 : vector<16x128xf32> to vector<16x128xbf16>
    %c0_9 = arith.constant 0 : index
    %c0_10 = arith.constant 0 : index
    %20 = vector.load %arg4[%c0_9, %c0_10] : memref<128x32xbf16, #tpu.memory_space<vmem>>, vector<128x32xbf16>
    %cst_11 = arith.constant dense<0.000000e+00> : vector<16x32xf32>
    %21 = tpu.matmul %19, %20, %cst_11 {dimension_numbers = #tpu.dot_dimension_numbers<[1], [0], [0], [1], [0, 0, 1, 1], [], []>} : vector<16x128xbf16>, vector<128x32xbf16>, vector<16x32xf32> -> vector<16x32xf32>
    %c0_12 = arith.constant 0 : index
    %c0_13 = arith.constant 0 : index
    %22 = vector.load %arg5[%c0_12, %c0_13] : memref<1x32xf32, #tpu.memory_space<vmem>>, vector<1x32xf32>
    %23 = vector.broadcast %22 : vector<1x32xf32> to vector<16x32xf32>
    %24 = arith.addf %21, %23 : vector<16x32xf32>
    %25 = arith.truncf %24 : vector<16x32xf32> to vector<16x32xbf16>
    %c0_14 = arith.constant 0 : index
    %c0_15 = arith.constant 0 : index
    %26 = vector.load %arg6[%c0_14, %c0_15] : memref<16x32xbf16, #tpu.memory_space<vmem>>, vector<16x32xbf16>
    tpu.vector_store %arg6[%c0_14, %c0_15], %25 {strides = array<i32>} : memref<16x32xbf16, #tpu.memory_space<vmem>>, vector<16x32xbf16>,
    return
  }
  func.func @transform_0(%arg0: i32) -> (i32, i32) {
    %c0_i32 = arith.constant 0 : i32
    %c0_i32_0 = arith.constant 0 : i32
    return %arg0, %c0_i32 : i32, i32
  }
  func.func @transform_1(%arg0: i32) -> (i32, i32) {
    %c0_i32 = arith.constant 0 : i32
    %c0_i32_0 = arith.constant 0 : i32
    %c0_i32_1 = arith.constant 0 : i32
    return %c0_i32, %c0_i32_0 : i32, i32
  }
  func.func @transform_2(%arg0: i32) -> (i32, i32) {
    %c0_i32 = arith.constant 0 : i32
    %c0_i32_0 = arith.constant 0 : i32
    %c0_i32_1 = arith.constant 0 : i32
    return %c0_i32, %c0_i32_0 : i32, i32
  }
  func.func @transform_3(%arg0: i32) -> (i32, i32) {
    %c0_i32 = arith.constant 0 : i32
    %c0_i32_0 = arith.constant 0 : i32
    %c0_i32_1 = arith.constant 0 : i32
    return %c0_i32, %c0_i32_0 : i32, i32
  }
  func.func @transform_4(%arg0: i32) -> (i32, i32) {
    %c0_i32 = arith.constant 0 : i32
    %c0_i32_0 = arith.constant 0 : i32
    %c0_i32_1 = arith.constant 0 : i32
    return %c0_i32, %c0_i32_0 : i32, i32
  }
  func.func @transform_5(%arg0: i32) -> (i32, i32) {
    %c0_i32 = arith.constant 0 : i32
    %c0_i32_0 = arith.constant 0 : i32
    return %arg0, %c0_i32 : i32, i32
  }
}

module attributes {stable_mosaic.version = 11 : i64} {
  func.func @_flash_attn_kernel(%arg0: i32, %arg1: i32, %arg2: i32, %arg3: memref<4x8x16xbf16, #tpu.memory_space<vmem>>, %arg4: memref<4x8x16xbf16, #tpu.memory_space<vmem>>, %arg5: memref<4x8x16xbf16, #tpu.memory_space<vmem>>, %arg6: memref<4x8x16xbf16, #tpu.memory_space<vmem>>, %arg7: memref<4x8x1xf32, #tpu.memory_space<vmem>>, %arg8: memref<4x8x1xf32, #tpu.memory_space<vmem>>, %arg9: memref<4x8x16xf32, #tpu.memory_space<vmem>>) attributes {dimension_semantics = [#tpu.dimension_semantics<parallel>, #tpu.dimension_semantics<parallel>, #tpu.dimension_semantics<arbitrary>], iteration_bounds = array<i64: 1, 1, 1>, scalar_prefetch = 0 : i64, scratch_operands = 3 : i64, tpu.core_type = #tpu.core_type<tc>, window_params = [{transform_indices = @transform_0, window_bounds = array<i64: 4, 8, 16>}, {transform_indices = @transform_1, window_bounds = array<i64: 4, 8, 16>}, {transform_indices = @transform_2, window_bounds = array<i64: 4, 8, 16>}, {transform_indices = @transform_3, window_bounds = array<i64: 4, 8, 16>}]} {
    %c0_i32 = arith.constant 0 : i32
    %0 = arith.cmpi eq, %arg2, %c0_i32 : i32
    %1 = arith.extui %0 : i1 to i32
    %c0_i32_0 = arith.constant 0 : i32
    %2 = arith.cmpi ne, %1, %c0_i32_0 : i32
    scf.if %2 {
      %cst_33 = arith.constant 0xFF800000 : f32
      %35 = vector.broadcast %cst_33 : f32 to vector<4x8x1xf32>
      %c0_34 = arith.constant 0 : index
      %c0_35 = arith.constant 0 : index
      %c0_36 = arith.constant 0 : index
      %36 = vector.load %arg7[%c0_34, %c0_35, %c0_36] : memref<4x8x1xf32, #tpu.memory_space<vmem>>, vector<4x8x1xf32>
      tpu.vector_store %arg7[%c0_34, %c0_35, %c0_36], %35 {strides = array<i32>} : memref<4x8x1xf32, #tpu.memory_space<vmem>>, vector<4x8x1xf32>,
      %cst_37 = arith.constant 0.000000e+00 : f32
      %37 = vector.broadcast %cst_37 : f32 to vector<4x8x1xf32>
      %c0_38 = arith.constant 0 : index
      %c0_39 = arith.constant 0 : index
      %c0_40 = arith.constant 0 : index
      %38 = vector.load %arg8[%c0_38, %c0_39, %c0_40] : memref<4x8x1xf32, #tpu.memory_space<vmem>>, vector<4x8x1xf32>
      tpu.vector_store %arg8[%c0_38, %c0_39, %c0_40], %37 {strides = array<i32>} : memref<4x8x1xf32, #tpu.memory_space<vmem>>, vector<4x8x1xf32>,
      %cst_41 = arith.constant 0.000000e+00 : f32
      %39 = vector.broadcast %cst_41 : f32 to vector<4x8x16xf32>
      %c0_42 = arith.constant 0 : index
      %c0_43 = arith.constant 0 : index
      %c0_44 = arith.constant 0 : index
      %40 = vector.load %arg9[%c0_42, %c0_43, %c0_44] : memref<4x8x16xf32, #tpu.memory_space<vmem>>, vector<4x8x16xf32>
      tpu.vector_store %arg9[%c0_42, %c0_43, %c0_44], %39 {strides = array<i32>} : memref<4x8x16xf32, #tpu.memory_space<vmem>>, vector<4x8x16xf32>,
    } else {
    }
    %c0 = arith.constant 0 : index
    %c0_1 = arith.constant 0 : index
    %c0_2 = arith.constant 0 : index
    %3 = vector.load %arg3[%c0, %c0_1, %c0_2] : memref<4x8x16xbf16, #tpu.memory_space<vmem>>, vector<4x8x16xbf16>
    %cst = arith.constant 2.500000e-01 : bf16
    %4 = vector.broadcast %cst : bf16 to vector<4x8x16xbf16>
    %5 = arith.mulf %3, %4 : vector<4x8x16xbf16>
    %c0_3 = arith.constant 0 : index
    %c0_4 = arith.constant 0 : index
    %c0_5 = arith.constant 0 : index
    %6 = vector.load %arg4[%c0_3, %c0_4, %c0_5] : memref<4x8x16xbf16, #tpu.memory_space<vmem>>, vector<4x8x16xbf16>
    "tpu.trace_start"() <{level = 10 : i32, message = "bqd,bkd->bqk"}> : () -> ()
    %cst_6 = arith.constant dense<0.000000e+00> : vector<4x8x8xf32>
    %7 = tpu.matmul %5, %6, %cst_6 {dimension_numbers = #tpu.dot_dimension_numbers<[2], [2], [1], [1], [0, 0, 0, 1, 1, 1], [0], [0]>} : vector<4x8x16xbf16>, vector<4x8x16xbf16>, vector<4x8x8xf32> -> vector<4x8x8xf32>
    "tpu.trace_stop"() : () -> ()
    %c0_7 = arith.constant 0 : index
    %c0_8 = arith.constant 0 : index
    %c0_9 = arith.constant 0 : index
    %8 = vector.load %arg7[%c0_7, %c0_8, %c0_9] : memref<4x8x1xf32, #tpu.memory_space<vmem>>, vector<4x8x1xf32>
    %cst_10 = arith.constant dense<0xFF800000> : vector<4x8xf32>
    %9 = vector.multi_reduction <maximumf>, %7, %cst_10 [2] : vector<4x8x8xf32> to vector<4x8xf32>
    %10 = vector.shape_cast %9 : vector<4x8xf32> to vector<4x8x1xf32>
    %11 = arith.maximumf %8, %10 : vector<4x8x1xf32>
    %12 = arith.subf %8, %11 : vector<4x8x1xf32>
    %13 = math.exp %12 : vector<4x8x1xf32>
    %14 = vector.broadcast %11 : vector<4x8x1xf32> to vector<4x8x8xf32>
    %15 = arith.subf %7, %14 : vector<4x8x8xf32>
    %16 = math.exp %15 : vector<4x8x8xf32>
    %c0_11 = arith.constant 0 : index
    %c0_12 = arith.constant 0 : index
    %c0_13 = arith.constant 0 : index
    %17 = vector.load %arg8[%c0_11, %c0_12, %c0_13] : memref<4x8x1xf32, #tpu.memory_space<vmem>>, vector<4x8x1xf32>
    %18 = arith.mulf %13, %17 : vector<4x8x1xf32>
    %cst_14 = arith.constant dense<0.000000e+00> : vector<4x8xf32>
    %19 = vector.multi_reduction <add>, %16, %cst_14 [2] : vector<4x8x8xf32> to vector<4x8xf32>
    %20 = vector.shape_cast %19 : vector<4x8xf32> to vector<4x8x1xf32>
    %21 = arith.addf %18, %20 : vector<4x8x1xf32>
    %c0_15 = arith.constant 0 : index
    %c0_16 = arith.constant 0 : index
    %c0_17 = arith.constant 0 : index
    %22 = vector.load %arg8[%c0_15, %c0_16, %c0_17] : memref<4x8x1xf32, #tpu.memory_space<vmem>>, vector<4x8x1xf32>
    tpu.vector_store %arg8[%c0_15, %c0_16, %c0_17], %21 {strides = array<i32>} : memref<4x8x1xf32, #tpu.memory_space<vmem>>, vector<4x8x1xf32>,
    %c0_18 = arith.constant 0 : index
    %c0_19 = arith.constant 0 : index
    %c0_20 = arith.constant 0 : index
    %23 = vector.load %arg9[%c0_18, %c0_19, %c0_20] : memref<4x8x16xf32, #tpu.memory_space<vmem>>, vector<4x8x16xf32>
    %24 = vector.broadcast %13 : vector<4x8x1xf32> to vector<4x8x16xf32>
    %25 = arith.mulf %24, %23 : vector<4x8x16xf32>
    %26 = arith.truncf %16 : vector<4x8x8xf32> to vector<4x8x8xbf16>
    %c0_21 = arith.constant 0 : index
    %c0_22 = arith.constant 0 : index
    %c0_23 = arith.constant 0 : index
    %27 = vector.load %arg5[%c0_21, %c0_22, %c0_23] : memref<4x8x16xbf16, #tpu.memory_space<vmem>>, vector<4x8x16xbf16>
    "tpu.trace_start"() <{level = 10 : i32, message = "bqk,bkd->bqd"}> : () -> ()
    %cst_24 = arith.constant dense<0.000000e+00> : vector<4x8x16xf32>
    %28 = tpu.matmul %26, %27, %cst_24 {dimension_numbers = #tpu.dot_dimension_numbers<[2], [1], [1], [2], [0, 0, 0, 1, 1, 2], [0], [0]>} : vector<4x8x8xbf16>, vector<4x8x16xbf16>, vector<4x8x16xf32> -> vector<4x8x16xf32>
    "tpu.trace_stop"() : () -> ()
    %29 = arith.addf %25, %28 : vector<4x8x16xf32>
    %c0_25 = arith.constant 0 : index
    %c0_26 = arith.constant 0 : index
    %c0_27 = arith.constant 0 : index
    %30 = vector.load %arg9[%c0_25, %c0_26, %c0_27] : memref<4x8x16xf32, #tpu.memory_space<vmem>>, vector<4x8x16xf32>
    tpu.vector_store %arg9[%c0_25, %c0_26, %c0_27], %29 {strides = array<i32>} : memref<4x8x16xf32, #tpu.memory_space<vmem>>, vector<4x8x16xf32>,
    %c0_28 = arith.constant 0 : index
    %c0_29 = arith.constant 0 : index
    %c0_30 = arith.constant 0 : index
    %31 = vector.load %arg7[%c0_28, %c0_29, %c0_30] : memref<4x8x1xf32, #tpu.memory_space<vmem>>, vector<4x8x1xf32>
    tpu.vector_store %arg7[%c0_28, %c0_29, %c0_30], %11 {strides = array<i32>} : memref<4x8x1xf32, #tpu.memory_space<vmem>>, vector<4x8x1xf32>,
    %c0_i32_31 = arith.constant 0 : i32
    %32 = arith.cmpi eq, %arg2, %c0_i32_31 : i32
    %33 = arith.extui %32 : i1 to i32
    %c0_i32_32 = arith.constant 0 : i32
    %34 = arith.cmpi ne, %33, %c0_i32_32 : i32
    scf.if %34 {
      %c0_33 = arith.constant 0 : index
      %c0_34 = arith.constant 0 : index
      %c0_35 = arith.constant 0 : index
      %35 = vector.load %arg9[%c0_33, %c0_34, %c0_35] : memref<4x8x16xf32, #tpu.memory_space<vmem>>, vector<4x8x16xf32>
      %c0_36 = arith.constant 0 : index
      %c0_37 = arith.constant 0 : index
      %c0_38 = arith.constant 0 : index
      %36 = vector.load %arg8[%c0_36, %c0_37, %c0_38] : memref<4x8x1xf32, #tpu.memory_space<vmem>>, vector<4x8x1xf32>
      %37 = tpu.reciprocal %36 {approx = true} : vector<4x8x1xf32> -> vector<4x8x1xf32>
      %38 = vector.broadcast %37 : vector<4x8x1xf32> to vector<4x8x16xf32>
      %39 = arith.mulf %35, %38 : vector<4x8x16xf32>
      %40 = arith.truncf %39 : vector<4x8x16xf32> to vector<4x8x16xbf16>
      %c0_39 = arith.constant 0 : index
      %c0_40 = arith.constant 0 : index
      %c0_41 = arith.constant 0 : index
      %41 = vector.load %arg6[%c0_39, %c0_40, %c0_41] : memref<4x8x16xbf16, #tpu.memory_space<vmem>>, vector<4x8x16xbf16>
      tpu.vector_store %arg6[%c0_39, %c0_40, %c0_41], %40 {strides = array<i32>} : memref<4x8x16xbf16, #tpu.memory_space<vmem>>, vector<4x8x16xbf16>,
    } else {
    }
    return
  }
  func.func @transform_0(%arg0: i32, %arg1: i32, %arg2: i32) -> (i32, i32, i32) {
    %c0_i32 = arith.constant 0 : i32
    %c0_i32_0 = arith.constant 0 : i32
    return %arg0, %arg1, %c0_i32 : i32, i32, i32
  }
  func.func @transform_1(%arg0: i32, %arg1: i32, %arg2: i32) -> (i32, i32, i32) {
    %c0_i32 = arith.constant 0 : i32
    %c0_i32_0 = arith.constant 0 : i32
    return %arg0, %arg2, %c0_i32 : i32, i32, i32
  }
  func.func @transform_2(%arg0: i32, %arg1: i32, %arg2: i32) -> (i32, i32, i32) {
    %c0_i32 = arith.constant 0 : i32
    %c0_i32_0 = arith.constant 0 : i32
    return %arg0, %arg2, %c0_i32 : i32, i32, i32
  }
  func.func @transform_3(%arg0: i32, %arg1: i32, %arg2: i32) -> (i32, i32, i32) {
    %c0_i32 = arith.constant 0 : i32
    %c0_i32_0 = arith.constant 0 : i32
    return %arg0, %arg1, %c0_i32 : i32, i32, i32
  }
}

module attributes {stable_mosaic.version = 11 : i64} {
  func.func @_linear_kernel(%arg0: i32, %arg1: i32, %arg2: memref<16x32xbf16, #tpu.memory_space<vmem>>, %arg3: memref<32x64xbf16, #tpu.memory_space<vmem>>, %arg4: memref<1x64xf32, #tpu.memory_space<vmem>>, %arg5: memref<16x64xbf16, #tpu.memory_space<vmem>>) attributes {dimension_semantics = [#tpu.dimension_semantics<parallel>, #tpu.dimension_semantics<parallel>], iteration_bounds = array<i64: 1, 1>, scalar_prefetch = 0 : i64, scratch_operands = 0 : i64, tpu.core_type = #tpu.core_type<tc>, window_params = [{transform_indices = @transform_0, window_bounds = array<i64: 16, 32>}, {pipeline_mode = #tpu.pipeline_mode<synchronous>, transform_indices = @transform_1, window_bounds = array<i64: 32, 64>}, {pipeline_mode = #tpu.pipeline_mode<synchronous>, transform_indices = @transform_2, window_bounds = array<i64: 1, 64>}, {transform_indices = @transform_3, window_bounds = array<i64: 16, 64>}]} {
    %c0 = arith.constant 0 : index
    %c0_0 = arith.constant 0 : index
    %0 = vector.load %arg2[%c0, %c0_0] : memref<16x32xbf16, #tpu.memory_space<vmem>>, vector<16x32xbf16>
    %c0_1 = arith.constant 0 : index
    %c0_2 = arith.constant 0 : index
    %1 = vector.load %arg3[%c0_1, %c0_2] : memref<32x64xbf16, #tpu.memory_space<vmem>>, vector<32x64xbf16>
    %cst = arith.constant dense<0.000000e+00> : vector<16x64xf32>
    %2 = tpu.matmul %0, %1, %cst {dimension_numbers = #tpu.dot_dimension_numbers<[1], [0], [0], [1], [0, 0, 1, 1], [], []>} : vector<16x32xbf16>, vector<32x64xbf16>, vector<16x64xf32> -> vector<16x64xf32>
    %c0_3 = arith.constant 0 : index
    %c0_4 = arith.constant 0 : index
    %3 = vector.load %arg4[%c0_3, %c0_4] : memref<1x64xf32, #tpu.memory_space<vmem>>, vector<1x64xf32>
    %4 = vector.broadcast %3 : vector<1x64xf32> to vector<16x64xf32>
    %5 = arith.addf %2, %4 : vector<16x64xf32>
    %6 = arith.truncf %5 : vector<16x64xf32> to vector<16x64xbf16>
    %c0_5 = arith.constant 0 : index
    %c0_6 = arith.constant 0 : index
    %7 = vector.load %arg5[%c0_5, %c0_6] : memref<16x64xbf16, #tpu.memory_space<vmem>>, vector<16x64xbf16>
    tpu.vector_store %arg5[%c0_5, %c0_6], %6 {strides = array<i32>} : memref<16x64xbf16, #tpu.memory_space<vmem>>, vector<16x64xbf16>,
    return
  }
  func.func @transform_0(%arg0: i32, %arg1: i32) -> (i32, i32) {
    %c0_i32 = arith.constant 0 : i32
    %c0_i32_0 = arith.constant 0 : i32
    return %arg0, %c0_i32 : i32, i32
  }
  func.func @transform_1(%arg0: i32, %arg1: i32) -> (i32, i32) {
    %c0_i32 = arith.constant 0 : i32
    %c0_i32_0 = arith.constant 0 : i32
    %c0_i32_1 = arith.constant 0 : i32
    return %c0_i32, %c0_i32_0 : i32, i32
  }
  func.func @transform_2(%arg0: i32, %arg1: i32) -> (i32, i32) {
    %c0_i32 = arith.constant 0 : i32
    %c0_i32_0 = arith.constant 0 : i32
    %c0_i32_1 = arith.constant 0 : i32
    return %c0_i32, %c0_i32_0 : i32, i32
  }
  func.func @transform_3(%arg0: i32, %arg1: i32) -> (i32, i32) {
    %c0_i32 = arith.constant 0 : i32
    return %arg0, %arg1 : i32, i32
  }
}

module attributes {stable_mosaic.version = 11 : i64} {
  func.func @_mlp_kernel(%arg0: i32, %arg1: memref<32x16xbf16, #tpu.memory_space<vmem>>, %arg2: memref<16x32xbf16, #tpu.memory_space<vmem>>, %arg3: memref<1x32xf32, #tpu.memory_space<vmem>>, %arg4: memref<32x128xbf16, #tpu.memory_space<vmem>>, %arg5: memref<1x128xf32, #tpu.memory_space<vmem>>, %arg6: memref<32x128xf32, #tpu.memory_space<vmem>>) attributes {dimension_semantics = [#tpu.dimension_semantics<parallel>], iteration_bounds = array<i64: 1>, scalar_prefetch = 0 : i64, scratch_operands = 0 : i64, tpu.core_type = #tpu.core_type<tc>, window_params = [{transform_indices = @transform_0, window_bounds = array<i64: 32, 16>}, {pipeline_mode = #tpu.pipeline_mode<synchronous>, transform_indices = @transform_1, window_bounds = array<i64: 16, 32>}, {pipeline_mode = #tpu.pipeline_mode<synchronous>, transform_indices = @transform_2, window_bounds = array<i64: 1, 32>}, {pipeline_mode = #tpu.pipeline_mode<synchronous>, transform_indices = @transform_3, window_bounds = array<i64: 32, 128>}, {pipeline_mode = #tpu.pipeline_mode<synchronous>, transform_indices = @transform_4, window_bounds = array<i64: 1, 128>}, {transform_indices = @transform_5, window_bounds = array<i64: 32, 128>}]} {
    %c0 = arith.constant 0 : index
    %c0_0 = arith.constant 0 : index
    %0 = vector.load %arg1[%c0, %c0_0] : memref<32x16xbf16, #tpu.memory_space<vmem>>, vector<32x16xbf16>
    %c0_1 = arith.constant 0 : index
    %c0_2 = arith.constant 0 : index
    %1 = vector.load %arg2[%c0_1, %c0_2] : memref<16x32xbf16, #tpu.memory_space<vmem>>, vector<16x32xbf16>
    %cst = arith.constant dense<0.000000e+00> : vector<32x32xf32>
    %2 = tpu.matmul %0, %1, %cst {dimension_numbers = #tpu.dot_dimension_numbers<[1], [0], [0], [1], [0, 0, 1, 1], [], []>} : vector<32x16xbf16>, vector<16x32xbf16>, vector<32x32xf32> -> vector<32x32xf32>
    %c0_3 = arith.constant 0 : index
    %c0_4 = arith.constant 0 : index
    %3 = vector.load %arg3[%c0_3, %c0_4] : memref<1x32xf32, #tpu.memory_space<vmem>>, vector<1x32xf32>
    %4 = vector.broadcast %3 : vector<1x32xf32> to vector<32x32xf32>
    %5 = arith.addf %2, %4 : vector<32x32xf32>
    %6 = arith.mulf %5, %5 : vector<32x32xf32>
    %7 = arith.mulf %5, %6 : vector<32x32xf32>
    %cst_5 = arith.constant 4.471500e-02 : f32
    %8 = vector.broadcast %cst_5 : f32 to vector<32x32xf32>
    %9 = arith.mulf %8, %7 : vector<32x32xf32>
    %10 = arith.addf %5, %9 : vector<32x32xf32>
    %cst_6 = arith.constant 0.797884583 : f32
    %11 = vector.broadcast %cst_6 : f32 to vector<32x32xf32>
    %12 = arith.mulf %11, %10 : vector<32x32xf32>
    %13 = math.tanh %12 : vector<32x32xf32>
    %cst_7 = arith.constant 1.000000e+00 : f32
    %14 = vector.broadcast %cst_7 : f32 to vector<32x32xf32>
    %15 = arith.addf %14, %13 : vector<32x32xf32>
    %cst_8 = arith.constant 5.000000e-01 : f32
    %16 = vector.broadcast %cst_8 : f32 to vector<32x32xf32>
    %17 = arith.mulf %16, %15 : vector<32x32xf32>
    %18 = arith.mulf %5, %17 : vector<32x32xf32>
    %19 = arith.truncf %18 : vector<32x32xf32> to vector<32x32xbf16>
    %c0_9 = arith.constant 0 : index
    %c0_10 = arith.constant 0 : index
    %20 = vector.load %arg4[%c0_9, %c0_10] : memref<32x128xbf16, #tpu.memory_space<vmem>>, vector<32x128xbf16>
    %cst_11 = arith.constant dense<0.000000e+00> : vector<32x128xf32>
    %21 = tpu.matmul %19, %20, %cst_11 {dimension_numbers = #tpu.dot_dimension_numbers<[1], [0], [0], [1], [0, 0, 1, 1], [], []>} : vector<32x32xbf16>, vector<32x128xbf16>, vector<32x128xf32> -> vector<32x128xf32>
    %c0_12 = arith.constant 0 : index
    %c0_13 = arith.constant 0 : index
    %22 = vector.load %arg5[%c0_12, %c0_13] : memref<1x128xf32, #tpu.memory_space<vmem>>, vector<1x128xf32>
    %23 = vector.broadcast %22 : vector<1x128xf32> to vector<32x128xf32>
    %24 = arith.addf %21, %23 : vector<32x128xf32>
    %c0_14 = arith.constant 0 : index
    %c0_15 = arith.constant 0 : index
    %25 = vector.load %arg6[%c0_14, %c0_15] : memref<32x128xf32, #tpu.memory_space<vmem>>, vector<32x128xf32>
    tpu.vector_store %arg6[%c0_14, %c0_15], %24 {strides = array<i32>} : memref<32x128xf32, #tpu.memory_space<vmem>>, vector<32x128xf32>,
    return
  }
  func.func @transform_0(%arg0: i32) -> (i32, i32) {
    %c0_i32 = arith.constant 0 : i32
    %c0_i32_0 = arith.constant 0 : i32
    return %arg0, %c0_i32 : i32, i32
  }
  func.func @transform_1(%arg0: i32) -> (i32, i32) {
    %c0_i32 = arith.constant 0 : i32
    %c0_i32_0 = arith.constant 0 : i32
    %c0_i32_1 = arith.constant 0 : i32
    return %c0_i32, %c0_i32_0 : i32, i32
  }
  func.func @transform_2(%arg0: i32) -> (i32, i32) {
    %c0_i32 = arith.constant 0 : i32
    %c0_i32_0 = arith.constant 0 : i32
    %c0_i32_1 = arith.constant 0 : i32
    return %c0_i32, %c0_i32_0 : i32, i32
  }
  func.func @transform_3(%arg0: i32) -> (i32, i32) {
    %c0_i32 = arith.constant 0 : i32
    %c0_i32_0 = arith.constant 0 : i32
    %c0_i32_1 = arith.constant 0 : i32
    return %c0_i32, %c0_i32_0 : i32, i32
  }
  func.func @transform_4(%arg0: i32) -> (i32, i32) {
    %c0_i32 = arith.constant 0 : i32
    %c0_i32_0 = arith.constant 0 : i32
    %c0_i32_1 = arith.constant 0 : i32
    return %c0_i32, %c0_i32_0 : i32, i32
  }
  func.func @transform_5(%arg0: i32) -> (i32, i32) {
    %c0_i32 = arith.constant 0 : i32
    %c0_i32_0 = arith.constant 0 : i32
    return %arg0, %c0_i32 : i32, i32
  }
}

module attributes {stable_mosaic.version = 11 : i64} {
  func.func @_linear_kernel(%arg0: i32, %arg1: i32, %arg2: memref<32x16xbf16, #tpu.memory_space<vmem>>, %arg3: memref<16x32xbf16, #tpu.memory_space<vmem>>, %arg4: memref<1x32xf32, #tpu.memory_space<vmem>>, %arg5: memref<32x32xbf16, #tpu.memory_space<vmem>>) attributes {dimension_semantics = [#tpu.dimension_semantics<parallel>, #tpu.dimension_semantics<parallel>], iteration_bounds = array<i64: 1, 1>, scalar_prefetch = 0 : i64, scratch_operands = 0 : i64, tpu.core_type = #tpu.core_type<tc>, window_params = [{transform_indices = @transform_0, window_bounds = array<i64: 32, 16>}, {pipeline_mode = #tpu.pipeline_mode<synchronous>, transform_indices = @transform_1, window_bounds = array<i64: 16, 32>}, {pipeline_mode = #tpu.pipeline_mode<synchronous>, transform_indices = @transform_2, window_bounds = array<i64: 1, 32>}, {transform_indices = @transform_3, window_bounds = array<i64: 32, 32>}]} {
    %c0 = arith.constant 0 : index
    %c0_0 = arith.constant 0 : index
    %0 = vector.load %arg2[%c0, %c0_0] : memref<32x16xbf16, #tpu.memory_space<vmem>>, vector<32x16xbf16>
    %c0_1 = arith.constant 0 : index
    %c0_2 = arith.constant 0 : index
    %1 = vector.load %arg3[%c0_1, %c0_2] : memref<16x32xbf16, #tpu.memory_space<vmem>>, vector<16x32xbf16>
    %cst = arith.constant dense<0.000000e+00> : vector<32x32xf32>
    %2 = tpu.matmul %0, %1, %cst {dimension_numbers = #tpu.dot_dimension_numbers<[1], [0], [0], [1], [0, 0, 1, 1], [], []>} : vector<32x16xbf16>, vector<16x32xbf16>, vector<32x32xf32> -> vector<32x32xf32>
    %c0_3 = arith.constant 0 : index
    %c0_4 = arith.constant 0 : index
    %3 = vector.load %arg4[%c0_3, %c0_4] : memref<1x32xf32, #tpu.memory_space<vmem>>, vector<1x32xf32>
    %4 = vector.broadcast %3 : vector<1x32xf32> to vector<32x32xf32>
    %5 = arith.addf %2, %4 : vector<32x32xf32>
    %6 = arith.truncf %5 : vector<32x32xf32> to vector<32x32xbf16>
    %c0_5 = arith.constant 0 : index
    %c0_6 = arith.constant 0 : index
    %7 = vector.load %arg5[%c0_5, %c0_6] : memref<32x32xbf16, #tpu.memory_space<vmem>>, vector<32x32xbf16>
    tpu.vector_store %arg5[%c0_5, %c0_6], %6 {strides = array<i32>} : memref<32x32xbf16, #tpu.memory_space<vmem>>, vector<32x32xbf16>,
    return
  }
  func.func @transform_0(%arg0: i32, %arg1: i32) -> (i32, i32) {
    %c0_i32 = arith.constant 0 : i32
    %c0_i32_0 = arith.constant 0 : i32
    return %arg0, %c0_i32 : i32, i32
  }
  func.func @transform_1(%arg0: i32, %arg1: i32) -> (i32, i32) {
    %c0_i32 = arith.constant 0 : i32
    %c0_i32_0 = arith.constant 0 : i32
    %c0_i32_1 = arith.constant 0 : i32
    return %c0_i32, %c0_i32_0 : i32, i32
  }
  func.func @transform_2(%arg0: i32, %arg1: i32) -> (i32, i32) {
    %c0_i32 = arith.constant 0 : i32
    %c0_i32_0 = arith.constant 0 : i32
    %c0_i32_1 = arith.constant 0 : i32
    return %c0_i32, %c0_i32_0 : i32, i32
  }
  func.func @transform_3(%arg0: i32, %arg1: i32) -> (i32, i32) {
    %c0_i32 = arith.constant 0 : i32
    return %arg0, %arg1 : i32, i32
  }
}

</mosaic_0001>

<llo_original>
// kernel: _lambda_.29
$region0: #{_lambda_.29}
  #allocation0 [shape = 'u32[]', space=smem, size = 0x4, offset = 0x4, fixed_abs, tag = 'smem constant byte address 0x4 - core index']
  #allocation1 [shape = 'u32[144,128]{1,0:T(1,128)}', space=vmem, size = 0x12000, scoped, tag = 'internal scratch']
  %s0 = inlined_call_operand.hbm [shape: bf16[32,4], index: 0, kind: input, shape index: {}]
  %s1 = inlined_call_operand.hbm [shape: bf16[4,32], index: 1, kind: input, shape index: {}]
  %s2 = inlined_call_operand.hbm [shape: f32[1,32], index: 2, kind: input, shape index: {}]
  %s3 = inlined_call_operand.hbm [shape: bf16[32,8], index: 3, kind: input, shape index: {}]
  %s4 = inlined_call_operand.hbm [shape: f32[1,8], index: 4, kind: input, shape index: {}]
  %s5 = inlined_call_operand.hbm [shape: bf16[32,8], index: 5, kind: output, shape index: {}]
  %s6 = sld [smem:[#allocation0]]
  $region50: #{_lambda_.29} parent=0
    _
  %s8 = ssub.s32 1, %s6
  %s9 = scalar_select 0, %s8, %s6
  $region1: #{_lambda_.29} parent=0
    #allocation2 [shape = 'u8[8192]{0}', space=vmem, size = 0x2000, scoped, tag = 'input window, operand 0, single buffered']
    #allocation3 [shape = 's32[1]{0}', space=sflag, size = 0x4, scoped, tag = 'scoped memory for _lambda_.29']
    #allocation4 [shape = 's32[1]{0}', space=sflag, size = 0x4, scoped, tag = 'scoped memory for _lambda_.29']
    #allocation5 [shape = 'u8[1024]{0}', space=vmem, size = 0x400, scoped, tag = 'input window, operand 1, single buffered']
    #allocation6 [shape = 's32[1]{0}', space=sflag, size = 0x4, scoped, tag = 'scoped memory for _lambda_.29']
    #allocation7 [shape = 'u8[512]{0}', space=vmem, size = 0x400, scoped, tag = 'input window, operand 2, single buffered']
    #allocation8 [shape = 'u8[8192]{0}', space=vmem, size = 0x2000, scoped, tag = 'input window, operand 3, single buffered']
    #allocation9 [shape = 's32[1]{0}', space=sflag, size = 0x4, scoped, tag = 'scoped memory for _lambda_.29']
    #allocation10 [shape = 'u8[512]{0}', space=vmem, size = 0x400, scoped, tag = 'input window, operand 4, single buffered']
    #allocation11 [shape = 'u8[8192]{0}', space=vmem, size = 0x2000, scoped, tag = 'output window, operand 0, single buffered']
    %10 = vsyncpa [#allocation3], 0
    %11 = vsyncpa [#allocation6], 0
    %12 = vsyncpa [#allocation9], 0
    %13 = vsyncpa [#allocation4], 0
    // Predicated region
    $region2: #{_lambda_.29} parent=1 // pred_check
      _
    $region3: #{_lambda_.29} parent=1 // pred_check_branch
      %15 = sbr.rel (0) target = $region5
    $region4: #{_lambda_.29} parent=1 // pred_region
      %s17 = ssub.s32 256, 256
      %18 = vsyncadd [#allocation3], %s17
      %s19 = sshll.u32 [#allocation2], 4
      %s20 = int_to_ptr.vmem [resolvable:$true] %s19
      %25 = dma.hbm_to_vmem [thread:$0]  %s0, 256, %s20, [#allocation3], 64, 64, 4
    $region5: #{_lambda_.29} parent=1 // pred_fallthru
      _
    // Predicated region
    $region6: #{_lambda_.29} parent=1 // pred_check
      _
    $region7: #{_lambda_.29} parent=1 // pred_check_branch
      %27 = sbr.rel (0) target = $region9
    $region8: #{_lambda_.29} parent=1 // pred_region
      %s29 = ssub.s32 32, 32
      %30 = vsyncadd [#allocation6], %s29
      %s32 = sshll.u32 [#allocation5], 4
      %s33 = int_to_ptr.vmem [resolvable:$true] %s32
      %35 = dma.hbm_to_vmem [thread:$0]  %s1, 32, %s33, [#allocation6]
    $region9: #{_lambda_.29} parent=1 // pred_fallthru
      _
    // Predicated region
    $region10: #{_lambda_.29} parent=1 // pred_check
      _
    $region11: #{_lambda_.29} parent=1 // pred_check_branch
      %37 = sbr.rel (0) target = $region13
    $region12: #{_lambda_.29} parent=1 // pred_region
      %s39 = ssub.s32 16, 16
      %40 = vsyncadd [#allocation6], %s39
      %s42 = sshll.u32 [#allocation7], 4
      %s43 = int_to_ptr.vmem [resolvable:$true] %s42
      %45 = dma.hbm_to_vmem [thread:$0]  %s2, 16, %s43, [#allocation6]
    $region13: #{_lambda_.29} parent=1 // pred_fallthru
      _
    // Predicated region
    $region14: #{_lambda_.29} parent=1 // pred_check
      _
    $region15: #{_lambda_.29} parent=1 // pred_check_branch
      %47 = sbr.rel (0) target = $region17
    $region16: #{_lambda_.29} parent=1 // pred_region
      %s49 = ssub.s32 256, 256
      %50 = vsyncadd [#allocation9], %s49
      %s51 = sshll.u32 [#allocation8], 4
      %s52 = int_to_ptr.vmem [resolvable:$true] %s51
      %57 = dma.hbm_to_vmem [thread:$0]  %s3, 256, %s52, [#allocation9], 64, 64, 4
    $region17: #{_lambda_.29} parent=1 // pred_fallthru
      _
    // Predicated region
    $region18: #{_lambda_.29} parent=1 // pred_check
      _
    $region19: #{_lambda_.29} parent=1 // pred_check_branch
      %59 = sbr.rel (0) target = $region21
    $region20: #{_lambda_.29} parent=1 // pred_region
      %s61 = ssub.s32 16, 16
      %62 = vsyncadd [#allocation9], %s61
      %s64 = sshll.u32 [#allocation10], 4
      %s65 = int_to_ptr.vmem [resolvable:$true] %s64
      %67 = dma.hbm_to_vmem [thread:$0]  %s4, 16, %s65, [#allocation9]
    $region21: #{_lambda_.29} parent=1 // pred_fallthru
      _
    // Predicated region
    $region22: #{_lambda_.29} parent=1 // pred_check
      _
    $region23: #{_lambda_.29} parent=1 // pred_check_branch
      %69 = sbr.rel (0) target = $region25
    $region24: #{_lambda_.29} parent=1 // pred_region
      %70 = dma.done [#allocation3], 256
    $region25: #{_lambda_.29} parent=1 // pred_fallthru
      _
    // Predicated region
    $region26: #{_lambda_.29} parent=1 // pred_check
      _
    $region27: #{_lambda_.29} parent=1 // pred_check_branch
      %72 = sbr.rel (0) target = $region29
    $region28: #{_lambda_.29} parent=1 // pred_region
      %73 = dma.done [#allocation6], 32
    $region29: #{_lambda_.29} parent=1 // pred_fallthru
      _
    // Predicated region
    $region30: #{_lambda_.29} parent=1 // pred_check
      _
    $region31: #{_lambda_.29} parent=1 // pred_check_branch
      %75 = sbr.rel (0) target = $region33
    $region32: #{_lambda_.29} parent=1 // pred_region
      %76 = dma.done [#allocation6], 16
    $region33: #{_lambda_.29} parent=1 // pred_fallthru
      _
    // Predicated region
    $region34: #{_lambda_.29} parent=1 // pred_check
      _
    $region35: #{_lambda_.29} parent=1 // pred_check_branch
      %78 = sbr.rel (0) target = $region37
    $region36: #{_lambda_.29} parent=1 // pred_region
      %79 = dma.done [#allocation9], 256
    $region37: #{_lambda_.29} parent=1 // pred_fallthru
      _
    // Predicated region
    $region38: #{_lambda_.29} parent=1 // pred_check
      _
    $region39: #{_lambda_.29} parent=1 // pred_check_branch
      %81 = sbr.rel (0) target = $region41
    $region40: #{_lambda_.29} parent=1 // pred_region
      %82 = dma.done [#allocation9], 16
    $region41: #{_lambda_.29} parent=1 // pred_fallthru
      _
    %v84 = vld [vmem:[#allocation2] sm:$0xf]
    %v85 = vld [vmem:[#allocation2 + $0x4] sm:$0xf]
    %v86 = vld [vmem:[#allocation2 + $0x8] sm:$0xf]
    %v87 = vld [vmem:[#allocation2 + $0xc] sm:$0xf]
    %v88 = vld [vmem:[#allocation5] sm:$0x3]
    %v89 = vld [vmem:[#allocation7] sm:$0x1]
    %v91 = vlaneseq
    %v92 = vshrl.u32 %v91, 7
    %v93 = vsub.s32 0, %v92
    %v94 = vrot.slane %v89, %v93
    %v100 = vunpack.c.l.b16 %v84
    %v101 = vunpack.c.l.b16 %v85
    %v102 = vunpack.c.l.b16 %v86
    %v103 = vunpack.c.l.b16 %v87
    %v104 = vpack.c.b16 %v101, %v100
    %v105 = vpack.c.b16 %v103, %v102
    %vm106 = vcmask 31744
    %v108 = vsel %vm106, %v104, 0
    %v111 = vsel %vm106, %v105, 0
    %vm113 = vcmask 1041408
    %v115 = vsel %vm113, %v88, 0
    %117 = vmatprep.subr.bf16.mxu0 0
    %118 = vmatpush1.bf16.msra.mxu0 %v115
    %119 = vmatprep.subr.bf16.mxu0 0
    %120 = vmatpush1.bf16.msra.mxu0 0
    %121 = vmatprep.subr.bf16.mxu0 0
    %122 = vmatpush1.bf16.msra.mxu0 0
    %123 = vmatprep.subr.bf16.mxu0 0
    %124 = vmatpush1.bf16.msra.mxu0 0
    %125 = vmatprep.subr.bf16.mxu0 0
    %126 = vmatpush1.bf16.msra.mxu0 0
    %127 = vmatprep.subr.bf16.mxu0 0
    %128 = vmatpush1.bf16.msra.mxu0 0
    %129 = vmatprep.subr.bf16.mxu0 0
    %130 = vmatpush1.bf16.msra.mxu0 0
    %131 = vmatprep.subr.bf16.mxu0 0
    %132 = vmatpush1.bf16.msra.mxu0 0
    %133 = vmatprep.subr.bf16.mxu0 0
    %134 = vmatpush1.bf16.msra.mxu0 0
    %135 = vmatprep.subr.bf16.mxu0 0
    %136 = vmatpush1.bf16.msra.mxu0 0
    %137 = vmatprep.subr.bf16.mxu0 0
    %138 = vmatpush1.bf16.msra.mxu0 0
    %139 = vmatprep.subr.bf16.mxu0 0
    %140 = vmatpush1.bf16.msra.mxu0 0
    %141 = vmatprep.subr.bf16.mxu0 0
    %142 = vmatpush1.bf16.msra.mxu0 0
    %143 = vmatprep.subr.bf16.mxu0 0
    %144 = vmatpush1.bf16.msra.mxu0 0
    %145 = vmatprep.subr.bf16.mxu0 0
    %146 = vmatpush1.bf16.msra.mxu0 0
    %147 = vmatprep.subr.bf16.mxu0 0
    %148 = vmatpush1.bf16.msra.mxu0 0
    %149 = vmatprep.mubr.bf16.mxu0 0
    %150 = vmatmul.mubr.bf16.gmra.mrb[0].mxu0 %v108
    %v151 = vpop.f32.mrb[0].mxu0
    %v152 = vadd.f32 %v94, %v151
    %v153 = vpop.f32.mrb[0].mxu0
    %v154 = vpop.f32.mrb[0].mxu0
    %v155 = vadd.f32 %v94, %v154
    %v156 = vpop.f32.mrb[0].mxu0
    %157 = vmatprep.mubr.bf16.mxu0 0
    %158 = vmatmul.mubr.bf16.gmra.mrb[0].mxu0 %v111
    %v159 = vpop.f32.mrb[0].mxu0
    %v160 = vadd.f32 %v94, %v159
    %v161 = vpop.f32.mrb[0].mxu0
    %v162 = vpop.f32.mrb[0].mxu0
    %v163 = vadd.f32 %v94, %v162
    %v164 = vpop.f32.mrb[0].mxu0
    %165 = vdwg.mxu0
    %v166 = vmul.f32 %v152, %v152
    %v167 = vmul.f32 %v155, %v155
    %v168 = vmul.f32 %v160, %v160
    %v169 = vmul.f32 %v163, %v163
    %v170 = vmul.f32 %v152, %v166
    %v171 = vmul.f32 %v155, %v167
    %v172 = vmul.f32 %v160, %v168
    %v173 = vmul.f32 %v163, %v169
    %v174 = vmul.f32 %v170, 0.044715
    %v175 = vmul.f32 %v171, 0.044715
    %v176 = vmul.f32 %v172, 0.044715
    %v177 = vmul.f32 %v173, 0.044715
    %v178 = vadd.f32 %v152, %v174
    %v179 = vadd.f32 %v155, %v175
    %v180 = vadd.f32 %v160, %v176
    %v181 = vadd.f32 %v163, %v177
    %v182 = vmul.f32 %v178, 0.7978846
    %v183 = vmul.f32 %v179, 0.7978846
    %v184 = vmul.f32 %v180, 0.7978846
    %v185 = vmul.f32 %v181, 0.7978846
    %v186 = vtanh.pop %v182
    %v187 = vtanh.pop %v183
    %v188 = vtanh.pop %v184
    %v189 = vtanh.pop %v185
    %v190 = vadd.f32 %v186, 1.0
    %v191 = vadd.f32 %v187, 1.0
    %v192 = vadd.f32 %v188, 1.0
    %v193 = vadd.f32 %v189, 1.0
    %v194 = vmul.f32 %v190, 0.5
    %v195 = vmul.f32 %v191, 0.5
    %v196 = vmul.f32 %v192, 0.5
    %v197 = vmul.f32 %v193, 0.5
    %v198 = vmul.f32 %v152, %v194
    %v199 = vmul.f32 %v155, %v195
    %v200 = vmul.f32 %v160, %v196
    %v201 = vmul.f32 %v163, %v197
    %v202 = vpack.c.bf16 %v199, %v198
    %v203 = vpack.c.bf16 %v201, %v200
    %v204 = vld [vmem:[#allocation8] sm:$0xf]
    %v205 = vld [vmem:[#allocation8 + $0x4] sm:$0xf]
    %v206 = vld [vmem:[#allocation8 + $0x8] sm:$0xf]
    %v207 = vld [vmem:[#allocation8 + $0xc] sm:$0xf]
    %v208 = vld [vmem:[#allocation10] sm:$0x1]
    %v210 = vlaneseq
    %v211 = vshrl.u32 %v210, 7
    %v212 = vsub.s32 0, %v211
    %v213 = vrot.slane %v208, %v212
    %v219 = vunpack.c.l.b16 %v204
    %v220 = vunpack.c.l.b16 %v205
    %v221 = vunpack.c.l.b16 %v206
    %v222 = vunpack.c.l.b16 %v207
    %v223 = vpack.c.b16 %v220, %v219
    %v224 = vpack.c.b16 %v222, %v221
    %vm227 = vcmask 261120
    %v229 = vsel %vm227, %v202, 0
    %v232 = vsel %vm227, %v203, 0
    %234 = vmatprep.subr.bf16.mxu0 0
    %235 = vmatpush1.bf16.msra.mxu0 %v223
    %236 = vmatprep.subr.bf16.mxu0 0
    %237 = vmatpush1.bf16.msra.mxu0 %v224
    %238 = vmatprep.subr.bf16.mxu0 0
    %239 = vmatpush1.bf16.msra.mxu0 0
    %240 = vmatprep.subr.bf16.mxu0 0
    %241 = vmatpush1.bf16.msra.mxu0 0
    %242 = vmatprep.subr.bf16.mxu0 0
    %243 = vmatpush1.bf16.msra.mxu0 0
    %244 = vmatprep.subr.bf16.mxu0 0
    %245 = vmatpush1.bf16.msra.mxu0 0
    %246 = vmatprep.subr.bf16.mxu0 0
    %247 = vmatpush1.bf16.msra.mxu0 0
    %248 = vmatprep.subr.bf16.mxu0 0
    %249 = vmatpush1.bf16.msra.mxu0 0
    %250 = vmatprep.subr.bf16.mxu0 0
    %251 = vmatpush1.bf16.msra.mxu0 0
    %252 = vmatprep.subr.bf16.mxu0 0
    %253 = vmatpush1.bf16.msra.mxu0 0
    %254 = vmatprep.subr.bf16.mxu0 0
    %255 = vmatpush1.bf16.msra.mxu0 0
    %256 = vmatprep.subr.bf16.mxu0 0
    %257 = vmatpush1.bf16.msra.mxu0 0
    %258 = vmatprep.subr.bf16.mxu0 0
    %259 = vmatpush1.bf16.msra.mxu0 0
    %260 = vmatprep.subr.bf16.mxu0 0
    %261 = vmatpush1.bf16.msra.mxu0 0
    %262 = vmatprep.subr.bf16.mxu0 0
    %263 = vmatpush1.bf16.msra.mxu0 0
    %264 = vmatprep.subr.bf16.mxu0 0
    %265 = vmatpush1.bf16.msra.mxu0 0
    %266 = vmatprep.mubr.bf16.mxu0 0
    %267 = vmatmul.mubr.bf16.gmra.mrb[0].mxu0 %v229
    %v268 = vpop.f32.mrb[0].mxu0
    %v269 = vadd.f32 %v213, %v268
    %v270 = vpop.f32.mrb[0].mxu0
    %v271 = vpop.f32.mrb[0].mxu0
    %v272 = vadd.f32 %v213, %v271
    %v273 = vpop.f32.mrb[0].mxu0
    %274 = vmatprep.mubr.bf16.mxu0 0
    %275 = vmatmul.mubr.bf16.gmra.mrb[0].mxu0 %v232
    %v276 = vpop.f32.mrb[0].mxu0
    %v277 = vadd.f32 %v213, %v276
    %v278 = vpop.f32.mrb[0].mxu0
    %v279 = vpop.f32.mrb[0].mxu0
    %v280 = vadd.f32 %v213, %v279
    %v281 = vpop.f32.mrb[0].mxu0
    %282 = vdwg.mxu0
    %v283 = vpack.c.bf16 %v272, %v269
    %v284 = vpack.c.bf16 %v280, %v277
    %v287 = vunpack.c.l.b16 %v283
    %v288 = vunpack.c.h.b16 %v283
    %v289 = vunpack.c.l.b16 %v284
    %v290 = vunpack.c.h.b16 %v284
    %v291 = vpack.c.b16 %v287, %v287
    %v292 = vpack.c.b16 %v288, %v288
    %v293 = vpack.c.b16 %v289, %v289
    %v294 = vpack.c.b16 %v290, %v290
    %vm299 = vcmask 60416
    %300 = vst.msk [vmem:[#allocation11] sm:$0xf] %vm299, %v291
    %301 = vst.msk [vmem:[#allocation11 + $0x4] sm:$0xf] %vm299, %v292
    %302 = vst.msk [vmem:[#allocation11 + $0x8] sm:$0xf] %vm299, %v293
    %303 = vst.msk [vmem:[#allocation11 + $0xc] sm:$0xf] %vm299, %v294
    // Predicated region
    $region42: #{_lambda_.29} parent=1 // pred_check
      _
    $region43: #{_lambda_.29} parent=1 // pred_check_branch
      %305 = sbr.rel (0) target = $region45
    $region44: #{_lambda_.29} parent=1 // pred_region
      %s307 = ssub.s32 256, 256
      %308 = vsyncadd [#allocation4], %s307
      %s309 = sshll.u32 [#allocation11], 4
      %s310 = int_to_ptr.vmem [resolvable:$true] %s309
      %315 = dma.vmem_to_hbm [thread:$0]  %s310, 256, %s5, [#allocation4], 64, 64, 4
    $region45: #{_lambda_.29} parent=1 // pred_fallthru
      _
    // Predicated region
    $region46: #{_lambda_.29} parent=1 // pred_check
      _
    $region47: #{_lambda_.29} parent=1 // pred_check_branch
      %317 = sbr.rel (0) target = $region49
    $region48: #{_lambda_.29} parent=1 // pred_region
      %318 = dma.done [#allocation4], 256
    $region49: #{_lambda_.29} parent=1 // pred_fallthru
      _
    %319 = vsyncpa [#allocation3], 1
    %320 = vsyncpa [#allocation6], 1
    %321 = vsyncpa [#allocation9], 1
    %322 = vsyncpa [#allocation4], 1

// kernel: _lambda_.30
$region0: #{_lambda_.30}
  #allocation0 [shape = 'u32[]', space=smem, size = 0x4, offset = 0x4, fixed_abs, tag = 'smem constant byte address 0x4 - core index']
  #allocation1 [shape = 'u32[144,128]{1,0:T(1,128)}', space=vmem, size = 0x12000, scoped, tag = 'internal scratch']
  %s0 = inlined_call_operand.hbm [shape: bf16[32,8], index: 0, kind: input, shape index: {}]
  %s1 = inlined_call_operand.hbm [shape: bf16[8,48], index: 1, kind: input, shape index: {}]
  %s2 = inlined_call_operand.hbm [shape: f32[1,48], index: 2, kind: input, shape index: {}]
  %s3 = inlined_call_operand.hbm [shape: bf16[32,48], index: 3, kind: output, shape index: {}]
  %s4 = sld [smem:[#allocation0]]
  $region34: #{_lambda_.30} parent=0
    _
  %s6 = ssub.s32 1, %s4
  %s7 = scalar_select 0, %s6, %s4
  $region1: #{_lambda_.30} parent=0
    #allocation2 [shape = 'u8[8192]{0}', space=vmem, size = 0x2000, scoped, tag = 'input window, operand 0, single buffered']
    #allocation3 [shape = 's32[1]{0}', space=sflag, size = 0x4, scoped, tag = 'scoped memory for _lambda_.30']
    #allocation4 [shape = 's32[1]{0}', space=sflag, size = 0x4, scoped, tag = 'scoped memory for _lambda_.30']
    #allocation5 [shape = 'u8[2048]{0}', space=vmem, size = 0x800, scoped, tag = 'input window, operand 1, single buffered']
    #allocation6 [shape = 's32[1]{0}', space=sflag, size = 0x4, scoped, tag = 'scoped memory for _lambda_.30']
    #allocation7 [shape = 'u8[512]{0}', space=vmem, size = 0x400, scoped, tag = 'input window, operand 2, single buffered']
    #allocation8 [shape = 'u8[8192]{0}', space=vmem, size = 0x2000, scoped, tag = 'output window, operand 0, single buffered']
    %8 = vsyncpa [#allocation3], 0
    %9 = vsyncpa [#allocation6], 0
    %10 = vsyncpa [#allocation4], 0
    // Predicated region
    $region2: #{_lambda_.30} parent=1 // pred_check
      _
    $region3: #{_lambda_.30} parent=1 // pred_check_branch
      %12 = sbr.rel (0) target = $region5
    $region4: #{_lambda_.30} parent=1 // pred_region
      %s14 = ssub.s32 256, 256
      %15 = vsyncadd [#allocation3], %s14
      %s16 = sshll.u32 [#allocation2], 4
      %s17 = int_to_ptr.vmem [resolvable:$true] %s16
      %22 = dma.hbm_to_vmem [thread:$0]  %s0, 256, %s17, [#allocation3], 64, 64, 4
    $region5: #{_lambda_.30} parent=1 // pred_fallthru
      _
    // Predicated region
    $region6: #{_lambda_.30} parent=1 // pred_check
      _
    $region7: #{_lambda_.30} parent=1 // pred_check_branch
      %24 = sbr.rel (0) target = $region9
    $region8: #{_lambda_.30} parent=1 // pred_region
      %s26 = ssub.s32 64, 64
      %27 = vsyncadd [#allocation6], %s26
      %s29 = sshll.u32 [#allocation5], 4
      %s30 = int_to_ptr.vmem [resolvable:$true] %s29
      %32 = dma.hbm_to_vmem [thread:$0]  %s1, 64, %s30, [#allocation6]
    $region9: #{_lambda_.30} parent=1 // pred_fallthru
      _
    // Predicated region
    $region10: #{_lambda_.30} parent=1 // pred_check
      _
    $region11: #{_lambda_.30} parent=1 // pred_check_branch
      %34 = sbr.rel (0) target = $region13
    $region12: #{_lambda_.30} parent=1 // pred_region
      %s36 = ssub.s32 16, 16
      %37 = vsyncadd [#allocation6], %s36
      %s39 = sshll.u32 [#allocation7], 4
      %s40 = int_to_ptr.vmem [resolvable:$true] %s39
      %42 = dma.hbm_to_vmem [thread:$0]  %s2, 16, %s40, [#allocation6]
    $region13: #{_lambda_.30} parent=1 // pred_fallthru
      _
    // Predicated region
    $region14: #{_lambda_.30} parent=1 // pred_check
      _
    $region15: #{_lambda_.30} parent=1 // pred_check_branch
      %44 = sbr.rel (0) target = $region17
    $region16: #{_lambda_.30} parent=1 // pred_region
      %45 = dma.done [#allocation3], 256
    $region17: #{_lambda_.30} parent=1 // pred_fallthru
      _
    // Predicated region
    $region18: #{_lambda_.30} parent=1 // pred_check
      _
    $region19: #{_lambda_.30} parent=1 // pred_check_branch
      %47 = sbr.rel (0) target = $region21
    $region20: #{_lambda_.30} parent=1 // pred_region
      %48 = dma.done [#allocation6], 64
    $region21: #{_lambda_.30} parent=1 // pred_fallthru
      _
    // Predicated region
    $region22: #{_lambda_.30} parent=1 // pred_check
      _
    $region23: #{_lambda_.30} parent=1 // pred_check_branch
      %50 = sbr.rel (0) target = $region25
    $region24: #{_lambda_.30} parent=1 // pred_region
      %51 = dma.done [#allocation6], 16
    $region25: #{_lambda_.30} parent=1 // pred_fallthru
      _
    %v53 = vld [vmem:[#allocation2] sm:$0xf]
    %v54 = vld [vmem:[#allocation2 + $0x4] sm:$0xf]
    %v55 = vld [vmem:[#allocation2 + $0x8] sm:$0xf]
    %v56 = vld [vmem:[#allocation2 + $0xc] sm:$0xf]
    %v57 = vld [vmem:[#allocation5] sm:$0xf]
    %v58 = vld [vmem:[#allocation7] sm:$0x1]
    %v60 = vlaneseq
    %v61 = vshrl.u32 %v60, 7
    %v62 = vsub.s32 0, %v61
    %v63 = vrot.slane %v58, %v62
    %v69 = vunpack.c.l.b16 %v53
    %v70 = vunpack.c.l.b16 %v54
    %v71 = vunpack.c.l.b16 %v55
    %v72 = vunpack.c.l.b16 %v56
    %v73 = vpack.c.b16 %v70, %v69
    %v74 = vpack.c.b16 %v72, %v71
    %vm75 = vcmask 64512
    %v77 = vsel %vm75, %v73, 0
    %v80 = vsel %vm75, %v74, 0
    %vm82 = vcmask 1043456
    %v84 = vsel %vm82, %v57, 0
    %86 = vmatprep.subr.bf16.mxu0 0
    %87 = vmatpush1.bf16.msra.mxu0 %v84
    %88 = vmatprep.subr.bf16.mxu0 0
    %89 = vmatpush1.bf16.msra.mxu0 0
    %90 = vmatprep.subr.bf16.mxu0 0
    %91 = vmatpush1.bf16.msra.mxu0 0
    %92 = vmatprep.subr.bf16.mxu0 0
    %93 = vmatpush1.bf16.msra.mxu0 0
    %94 = vmatprep.subr.bf16.mxu0 0
    %95 = vmatpush1.bf16.msra.mxu0 0
    %96 = vmatprep.subr.bf16.mxu0 0
    %97 = vmatpush1.bf16.msra.mxu0 0
    %98 = vmatprep.subr.bf16.mxu0 0
    %99 = vmatpush1.bf16.msra.mxu0 0
    %100 = vmatprep.subr.bf16.mxu0 0
    %101 = vmatpush1.bf16.msra.mxu0 0
    %102 = vmatprep.subr.bf16.mxu0 0
    %103 = vmatpush1.bf16.msra.mxu0 0
    %104 = vmatprep.subr.bf16.mxu0 0
    %105 = vmatpush1.bf16.msra.mxu0 0
    %106 = vmatprep.subr.bf16.mxu0 0
    %107 = vmatpush1.bf16.msra.mxu0 0
    %108 = vmatprep.subr.bf16.mxu0 0
    %109 = vmatpush1.bf16.msra.mxu0 0
    %110 = vmatprep.subr.bf16.mxu0 0
    %111 = vmatpush1.bf16.msra.mxu0 0
    %112 = vmatprep.subr.bf16.mxu0 0
    %113 = vmatpush1.bf16.msra.mxu0 0
    %114 = vmatprep.subr.bf16.mxu0 0
    %115 = vmatpush1.bf16.msra.mxu0 0
    %116 = vmatprep.subr.bf16.mxu0 0
    %117 = vmatpush1.bf16.msra.mxu0 0
    %118 = vmatprep.mubr.bf16.mxu0 0
    %119 = vmatmul.mubr.bf16.gmra.mrb[0].mxu0 %v77
    %v120 = vpop.f32.mrb[0].mxu0
    %v121 = vadd.f32 %v63, %v120
    %v122 = vpop.f32.mrb[0].mxu0
    %v123 = vpop.f32.mrb[0].mxu0
    %v124 = vadd.f32 %v63, %v123
    %v125 = vpop.f32.mrb[0].mxu0
    %126 = vmatprep.mubr.bf16.mxu0 0
    %127 = vmatmul.mubr.bf16.gmra.mrb[0].mxu0 %v80
    %v128 = vpop.f32.mrb[0].mxu0
    %v129 = vadd.f32 %v63, %v128
    %v130 = vpop.f32.mrb[0].mxu0
    %v131 = vpop.f32.mrb[0].mxu0
    %v132 = vadd.f32 %v63, %v131
    %v133 = vpop.f32.mrb[0].mxu0
    %134 = vdwg.mxu0
    %v135 = vpack.c.bf16 %v124, %v121
    %v136 = vpack.c.bf16 %v132, %v129
    %v139 = vunpack.c.l.b16 %v135
    %v140 = vunpack.c.h.b16 %v135
    %v141 = vunpack.c.l.b16 %v136
    %v142 = vunpack.c.h.b16 %v136
    %v143 = vpack.c.b16 %v139, %v139
    %v144 = vpack.c.b16 %v140, %v140
    %v145 = vpack.c.b16 %v141, %v141
    %v146 = vpack.c.b16 %v142, %v142
    %vm151 = vcmask 388096
    %152 = vst.msk [vmem:[#allocation8] sm:$0xf] %vm151, %v143
    %153 = vst.msk [vmem:[#allocation8 + $0x4] sm:$0xf] %vm151, %v144
    %154 = vst.msk [vmem:[#allocation8 + $0x8] sm:$0xf] %vm151, %v145
    %155 = vst.msk [vmem:[#allocation8 + $0xc] sm:$0xf] %vm151, %v146
    // Predicated region
    $region26: #{_lambda_.30} parent=1 // pred_check
      _
    $region27: #{_lambda_.30} parent=1 // pred_check_branch
      %157 = sbr.rel (0) target = $region29
    $region28: #{_lambda_.30} parent=1 // pred_region
      %s159 = ssub.s32 256, 256
      %160 = vsyncadd [#allocation4], %s159
      %s161 = sshll.u32 [#allocation8], 4
      %s162 = int_to_ptr.vmem [resolvable:$true] %s161
      %167 = dma.vmem_to_hbm [thread:$0]  %s162, 256, %s3, [#allocation4], 64, 64, 4
    $region29: #{_lambda_.30} parent=1 // pred_fallthru
      _
    // Predicated region
    $region30: #{_lambda_.30} parent=1 // pred_check
      _
    $region31: #{_lambda_.30} parent=1 // pred_check_branch
      %169 = sbr.rel (0) target = $region33
    $region32: #{_lambda_.30} parent=1 // pred_region
      %170 = dma.done [#allocation4], 256
    $region33: #{_lambda_.30} parent=1 // pred_fallthru
      _
    %171 = vsyncpa [#allocation3], 1
    %172 = vsyncpa [#allocation6], 1
    %173 = vsyncpa [#allocation4], 1

// kernel: _lambda_.31
$region0: #{_lambda_.31}
  #allocation0 [shape = 'u32[]', space=smem, size = 0x4, offset = 0x4, fixed_abs, tag = 'smem constant byte address 0x4 - core index']
  #allocation1 [shape = 'u32[144,128]{1,0:T(1,128)}', space=vmem, size = 0x12000, scoped, tag = 'internal scratch']
  %s0 = inlined_call_operand.hbm [shape: bf16[16,6,2,8], index: 0, kind: input, shape index: {}]
  %s1 = inlined_call_operand.hbm [shape: bf16[6,8,8], index: 1, kind: input, shape index: {}]
  %s2 = inlined_call_operand.hbm [shape: f32[6,1,8], index: 2, kind: input, shape index: {}]
  %s3 = inlined_call_operand.hbm [shape: bf16[16,2,8], index: 3, kind: output, shape index: {0}]
  %s4 = inlined_call_operand.hbm [shape: bf16[16,2,8], index: 4, kind: output, shape index: {1}]
  %5 = xla_tuple %s3, %s4
  %s6 = sld [smem:[#allocation0]]
  $region49: #{_lambda_.31} parent=0
    _
  %s8 = ssub.s32 1, %s6
  %s9 = scalar_select 0, %s8, %s6
  $region1: #{_lambda_.31} parent=0
    #allocation2 [shape = 'u8[49152]{0}', space=vmem, size = 0xc000, scoped, tag = 'input window, operand 0, single buffered']
    #allocation3 [shape = 's32[1]{0}', space=sflag, size = 0x4, scoped, tag = 'scoped memory for _lambda_.31']
    #allocation4 [shape = 's32[1]{0}', space=sflag, size = 0x4, scoped, tag = 'scoped memory for _lambda_.31']
    #allocation5 [shape = 'u8[12288]{0}', space=vmem, size = 0x3000, scoped, tag = 'input window, operand 1, single buffered']
    #allocation6 [shape = 's32[1]{0}', space=sflag, size = 0x4, scoped, tag = 'scoped memory for _lambda_.31']
    #allocation7 [shape = 'u8[3072]{0}', space=vmem, size = 0xc00, scoped, tag = 'input window, operand 2, single buffered']
    #allocation8 [shape = 'u8[8192]{0}', space=vmem, size = 0x2000, scoped, tag = 'output window, operand 0, single buffered']
    #allocation9 [shape = 'u8[8192]{0}', space=vmem, size = 0x2000, scoped, tag = 'output window, operand 1, single buffered']
    #allocation10 [shape = 's32[1]{0}', space=sflag, size = 0x4, scoped, tag = 'scoped memory for _lambda_.31']
    %10 = vsyncpa [#allocation3], 0
    %11 = vsyncpa [#allocation6], 0
    %12 = vsyncpa [#allocation4], 0
    %13 = vsyncpa [#allocation10], 0
    // Predicated region
    $region2: #{_lambda_.31} parent=1 // pred_check
      _
    $region3: #{_lambda_.31} parent=1 // pred_check_branch
      %15 = sbr.rel (0) target = $region5
    $region4: #{_lambda_.31} parent=1 // pred_region
      %s17 = ssub.s32 1536, 1536
      %18 = vsyncadd [#allocation3], %s17
      %s19 = sshll.u32 [#allocation2], 4
      %s20 = int_to_ptr.vmem [resolvable:$true] %s19
      %25 = dma.hbm_to_vmem [thread:$0]  %s0, 1536, %s20, [#allocation3], 16, 16, 1
    $region5: #{_lambda_.31} parent=1 // pred_fallthru
      _
    // Predicated region
    $region6: #{_lambda_.31} parent=1 // pred_check
      _
    $region7: #{_lambda_.31} parent=1 // pred_check_branch
      %27 = sbr.rel (0) target = $region9
    $region8: #{_lambda_.31} parent=1 // pred_region
      %s29 = ssub.s32 384, 384
      %30 = vsyncadd [#allocation6], %s29
      %s31 = sshll.u32 [#allocation5], 4
      %s32 = int_to_ptr.vmem [resolvable:$true] %s31
      %37 = dma.hbm_to_vmem [thread:$0]  %s1, 384, %s32, [#allocation6], 64, 64, 4
    $region9: #{_lambda_.31} parent=1 // pred_fallthru
      _
    // Predicated region
    $region10: #{_lambda_.31} parent=1 // pred_check
      _
    $region11: #{_lambda_.31} parent=1 // pred_check_branch
      %39 = sbr.rel (0) target = $region13
    $region12: #{_lambda_.31} parent=1 // pred_region
      %s41 = ssub.s32 96, 96
      %42 = vsyncadd [#allocation6], %s41
      %s43 = sshll.u32 [#allocation7], 4
      %s44 = int_to_ptr.vmem [resolvable:$true] %s43
      %49 = dma.hbm_to_vmem [thread:$0]  %s2, 96, %s44, [#allocation6], 16, 16, 1
    $region13: #{_lambda_.31} parent=1 // pred_fallthru
      _
    // Predicated region
    $region14: #{_lambda_.31} parent=1 // pred_check
      _
    $region15: #{_lambda_.31} parent=1 // pred_check_branch
      %51 = sbr.rel (0) target = $region17
    $region16: #{_lambda_.31} parent=1 // pred_region
      %52 = dma.done [#allocation3], 1536
    $region17: #{_lambda_.31} parent=1 // pred_fallthru
      _
    // Predicated region
    $region18: #{_lambda_.31} parent=1 // pred_check
      _
    $region19: #{_lambda_.31} parent=1 // pred_check_branch
      %54 = sbr.rel (0) target = $region21
    $region20: #{_lambda_.31} parent=1 // pred_region
      %55 = dma.done [#allocation6], 384
    $region21: #{_lambda_.31} parent=1 // pred_fallthru
      _
    // Predicated region
    $region22: #{_lambda_.31} parent=1 // pred_check
      _
    $region23: #{_lambda_.31} parent=1 // pred_check_branch
      %57 = sbr.rel (0) target = $region25
    $region24: #{_lambda_.31} parent=1 // pred_region
      %58 = dma.done [#allocation6], 96
    $region25: #{_lambda_.31} parent=1 // pred_fallthru
      _
    %v60 = vld [vmem:[#allocation5] sm:$0xf]
    %s61 = scalar_lea.vmem [#allocation5], 4
    %v62 = vld [vmem:[%s61] sm:$0xf]
    %s63 = scalar_lea.vmem [#allocation5], 8
    %v64 = vld [vmem:[%s63] sm:$0xf]
    %s65 = scalar_lea.vmem [#allocation5], 12
    %v66 = vld [vmem:[%s65] sm:$0xf]
    %s67 = scalar_lea.vmem [#allocation5], 16
    %v68 = vld [vmem:[%s67] sm:$0xf]
    %s69 = scalar_lea.vmem [#allocation5], 20
    %v70 = vld [vmem:[%s69] sm:$0xf]
    %v71 = vld [vmem:[#allocation7] sm:$0x1]
    %s72 = scalar_lea.vmem [#allocation7], 1
    %v73 = vld [vmem:[%s72] sm:$0x1]
    %s74 = scalar_lea.vmem [#allocation7], 2
    %v75 = vld [vmem:[%s74] sm:$0x1]
    %s76 = scalar_lea.vmem [#allocation7], 3
    %v77 = vld [vmem:[%s76] sm:$0x1]
    %s78 = scalar_lea.vmem [#allocation7], 4
    %v79 = vld [vmem:[%s78] sm:$0x1]
    %s80 = scalar_lea.vmem [#allocation7], 5
    %v81 = vld [vmem:[%s80] sm:$0x1]
    loop: start=0, step=1, limit=16
    $region26: #{_lambda_.31} parent=1 // loop_pre_header
      _
    $region27: #{_lambda_.31} parent=1 // loop_header
      %s83 = sphi 0, %s87
      %p84 = scmp.ge.s32.totalorder %s83, 16
      %v88 = vphi 0.0, %v272
      %v89 = vphi 0.0, %v452
    $region28: #{_lambda_.31} parent=1 // loop_header_branch
      %86 = sbr.rel (%p84) target = $region32
    $region29: #{_lambda_.31} parent=1 // loop_body
      %s90 = ssub.s32 15, %s83
      %s91 = smul.u32 %s83, 6
      %s92 = scalar_lea.vmem [#allocation2], %s91
      %v93 = vld [vmem:[%s92] sm:$0x1]
      %v94 = vld [vmem:[%s92 + $0x1] sm:$0x1]
      %v95 = vld [vmem:[%s92 + $0x2] sm:$0x1]
      %v96 = vpack.c.bf16 %v88, %v88
      %v98 = vlaneseq
      %v99 = vshrl.u32 %v98, 7
      %v100 = vsub.s32 0, %v99
      %v101 = vrot.slane %v71, %v100
      %vm103 = vcmask 64512
      %v105 = vsel %vm103, %v96, 0
      %vm107 = vcmask 1043456
      %v109 = vsel %vm107, %v60, 0
      %111 = vmatprep.subr.bf16.mxu0 0
      %112 = vmatpush1.bf16.msra.mxu0 %v109
      %113 = vmatprep.subr.bf16.mxu0 0
      %114 = vmatpush1.bf16.msra.mxu0 0
      %115 = vmatprep.subr.bf16.mxu0 0
      %116 = vmatpush1.bf16.msra.mxu0 0
      %117 = vmatprep.subr.bf16.mxu0 0
      %118 = vmatpush1.bf16.msra.mxu0 0
      %119 = vmatprep.subr.bf16.mxu0 0
      %120 = vmatpush1.bf16.msra.mxu0 0
      %121 = vmatprep.subr.bf16.mxu0 0
      %122 = vmatpush1.bf16.msra.mxu0 0
      %123 = vmatprep.subr.bf16.mxu0 0
      %124 = vmatpush1.bf16.msra.mxu0 0
      %125 = vmatprep.subr.bf16.mxu0 0
      %126 = vmatpush1.bf16.msra.mxu0 0
      %127 = vmatprep.subr.bf16.mxu0 0
      %128 = vmatpush1.bf16.msra.mxu0 0
      %129 = vmatprep.subr.bf16.mxu0 0
      %130 = vmatpush1.bf16.msra.mxu0 0
      %131 = vmatprep.subr.bf16.mxu0 0
      %132 = vmatpush1.bf16.msra.mxu0 0
      %133 = vmatprep.subr.bf16.mxu0 0
      %134 = vmatpush1.bf16.msra.mxu0 0
      %135 = vmatprep.subr.bf16.mxu0 0
      %136 = vmatpush1.bf16.msra.mxu0 0
      %137 = vmatprep.subr.bf16.mxu0 0
      %138 = vmatpush1.bf16.msra.mxu0 0
      %139 = vmatprep.subr.bf16.mxu0 0
      %140 = vmatpush1.bf16.msra.mxu0 0
      %141 = vmatprep.subr.bf16.mxu0 0
      %142 = vmatpush1.bf16.msra.mxu0 0
      %143 = vmatprep.mubr.bf16.mxu0 0
      %144 = vmatmul.mubr.bf16.gmra.mrb[0].mxu0 %v105
      %v145 = vpop.f32.mrb[0].mxu0
      %v146 = vadd.f32 %v101, %v145
      %v147 = vpop.f32.mrb[0].mxu0
      %v148 = vpop.f32.mrb[0].mxu0
      %v149 = vpop.f32.mrb[0].mxu0
      %150 = vdwg.mxu0
      %v152 = vlaneseq
      %v153 = vshrl.u32 %v152, 7
      %v154 = vsub.s32 0, %v153
      %v155 = vrot.slane %v73, %v154
      %v158 = vsel %vm107, %v62, 0
      %160 = vmatprep.subr.bf16.mxu0 0
      %161 = vmatpush1.bf16.msra.mxu0 %v158
      %162 = vmatprep.subr.bf16.mxu0 0
      %163 = vmatpush1.bf16.msra.mxu0 0
      %164 = vmatprep.subr.bf16.mxu0 0
      %165 = vmatpush1.bf16.msra.mxu0 0
      %166 = vmatprep.subr.bf16.mxu0 0
      %167 = vmatpush1.bf16.msra.mxu0 0
      %168 = vmatprep.subr.bf16.mxu0 0
      %169 = vmatpush1.bf16.msra.mxu0 0
      %170 = vmatprep.subr.bf16.mxu0 0
      %171 = vmatpush1.bf16.msra.mxu0 0
      %172 = vmatprep.subr.bf16.mxu0 0
      %173 = vmatpush1.bf16.msra.mxu0 0
      %174 = vmatprep.subr.bf16.mxu0 0
      %175 = vmatpush1.bf16.msra.mxu0 0
      %176 = vmatprep.subr.bf16.mxu0 0
      %177 = vmatpush1.bf16.msra.mxu0 0
      %178 = vmatprep.subr.bf16.mxu0 0
      %179 = vmatpush1.bf16.msra.mxu0 0
      %180 = vmatprep.subr.bf16.mxu0 0
      %181 = vmatpush1.bf16.msra.mxu0 0
      %182 = vmatprep.subr.bf16.mxu0 0
      %183 = vmatpush1.bf16.msra.mxu0 0
      %184 = vmatprep.subr.bf16.mxu0 0
      %185 = vmatpush1.bf16.msra.mxu0 0
      %186 = vmatprep.subr.bf16.mxu0 0
      %187 = vmatpush1.bf16.msra.mxu0 0
      %188 = vmatprep.subr.bf16.mxu0 0
      %189 = vmatpush1.bf16.msra.mxu0 0
      %190 = vmatprep.subr.bf16.mxu0 0
      %191 = vmatpush1.bf16.msra.mxu0 0
      %192 = vmatprep.mubr.bf16.mxu0 0
      %193 = vmatmul.mubr.bf16.gmra.mrb[0].mxu0 %v105
      %v194 = vpop.f32.mrb[0].mxu0
      %v195 = vadd.f32 %v155, %v194
      %v196 = vpop.f32.mrb[0].mxu0
      %v197 = vpop.f32.mrb[0].mxu0
      %v198 = vpop.f32.mrb[0].mxu0
      %199 = vdwg.mxu0
      %v201 = vlaneseq
      %v202 = vshrl.u32 %v201, 7
      %v203 = vsub.s32 0, %v202
      %v204 = vrot.slane %v75, %v203
      %v207 = vsel %vm107, %v64, 0
      %209 = vmatprep.subr.bf16.mxu0 0
      %210 = vmatpush1.bf16.msra.mxu0 %v207
      %211 = vmatprep.subr.bf16.mxu0 0
      %212 = vmatpush1.bf16.msra.mxu0 0
      %213 = vmatprep.subr.bf16.mxu0 0
      %214 = vmatpush1.bf16.msra.mxu0 0
      %215 = vmatprep.subr.bf16.mxu0 0
      %216 = vmatpush1.bf16.msra.mxu0 0
      %217 = vmatprep.subr.bf16.mxu0 0
      %218 = vmatpush1.bf16.msra.mxu0 0
      %219 = vmatprep.subr.bf16.mxu0 0
      %220 = vmatpush1.bf16.msra.mxu0 0
      %221 = vmatprep.subr.bf16.mxu0 0
      %222 = vmatpush1.bf16.msra.mxu0 0
      %223 = vmatprep.subr.bf16.mxu0 0
      %224 = vmatpush1.bf16.msra.mxu0 0
      %225 = vmatprep.subr.bf16.mxu0 0
      %226 = vmatpush1.bf16.msra.mxu0 0
      %227 = vmatprep.subr.bf16.mxu0 0
      %228 = vmatpush1.bf16.msra.mxu0 0
      %229 = vmatprep.subr.bf16.mxu0 0
      %230 = vmatpush1.bf16.msra.mxu0 0
      %231 = vmatprep.subr.bf16.mxu0 0
      %232 = vmatpush1.bf16.msra.mxu0 0
      %233 = vmatprep.subr.bf16.mxu0 0
      %234 = vmatpush1.bf16.msra.mxu0 0
      %235 = vmatprep.subr.bf16.mxu0 0
      %236 = vmatpush1.bf16.msra.mxu0 0
      %237 = vmatprep.subr.bf16.mxu0 0
      %238 = vmatpush1.bf16.msra.mxu0 0
      %239 = vmatprep.subr.bf16.mxu0 0
      %240 = vmatpush1.bf16.msra.mxu0 0
      %241 = vmatprep.mubr.bf16.mxu0 0
      %242 = vmatmul.mubr.bf16.gmra.mrb[0].mxu0 %v105
      %v243 = vpop.f32.mrb[0].mxu0
      %v244 = vadd.f32 %v204, %v243
      %v245 = vpop.f32.mrb[0].mxu0
      %v246 = vpop.f32.mrb[0].mxu0
      %v247 = vpop.f32.mrb[0].mxu0
      %248 = vdwg.mxu0
      %v249 = vunpack.c.l.bf16 %v93
      %v250 = vadd.f32 %v249, %v146
      %v251 = vxor.u32 %v250, 2147483648
      %v252 = vmul.f32 %v251, 1.442695
      %v253 = vpow.pop %v252
      %v254 = vadd.f32 %v253, 1.0
      %v255 = vrcp.pop %v254
      %v256 = vmul.f32 1.0, %v255
      %v257 = vunpack.c.l.bf16 %v94
      %v258 = vadd.f32 %v257, %v195
      %v259 = vxor.u32 %v258, 2147483648
      %v260 = vmul.f32 %v259, 1.442695
      %v261 = vpow.pop %v260
      %v262 = vadd.f32 %v261, 1.0
      %v263 = vrcp.pop %v262
      %v264 = vmul.f32 1.0, %v263
      %v265 = vunpack.c.l.bf16 %v95
      %v266 = vmul.f32 %v256, %v244
      %v267 = vadd.f32 %v265, %v266
      %v268 = vtanh.pop %v267
      %v269 = vsub.f32 1.0, %v264
      %v270 = vmul.f32 %v269, %v268
      %v271 = vmul.f32 %v264, %v88
      %v272 = vadd.f32 %v270, %v271
      %s273 = smul.u32 %s90, 6
      %s274 = scalar_lea.vmem [#allocation2], %s273
      %v275 = vld [vmem:[%s274 + $0x3] sm:$0x1]
      %v276 = vld [vmem:[%s274 + $0x4] sm:$0x1]
      %v277 = vld [vmem:[%s274 + $0x5] sm:$0x1]
      %v278 = vpack.c.bf16 %v89, %v89
      %v280 = vlaneseq
      %v281 = vshrl.u32 %v280, 7
      %v282 = vsub.s32 0, %v281
      %v283 = vrot.slane %v77, %v282
      %v286 = vsel %vm103, %v278, 0
      %v289 = vsel %vm107, %v66, 0
      %291 = vmatprep.subr.bf16.mxu0 0
      %292 = vmatpush1.bf16.msra.mxu0 %v289
      %293 = vmatprep.subr.bf16.mxu0 0
      %294 = vmatpush1.bf16.msra.mxu0 0
      %295 = vmatprep.subr.bf16.mxu0 0
      %296 = vmatpush1.bf16.msra.mxu0 0
      %297 = vmatprep.subr.bf16.mxu0 0
      %298 = vmatpush1.bf16.msra.mxu0 0
      %299 = vmatprep.subr.bf16.mxu0 0
      %300 = vmatpush1.bf16.msra.mxu0 0
      %301 = vmatprep.subr.bf16.mxu0 0
      %302 = vmatpush1.bf16.msra.mxu0 0
      %303 = vmatprep.subr.bf16.mxu0 0
      %304 = vmatpush1.bf16.msra.mxu0 0
      %305 = vmatprep.subr.bf16.mxu0 0
      %306 = vmatpush1.bf16.msra.mxu0 0
      %307 = vmatprep.subr.bf16.mxu0 0
      %308 = vmatpush1.bf16.msra.mxu0 0
      %309 = vmatprep.subr.bf16.mxu0 0
      %310 = vmatpush1.bf16.msra.mxu0 0
      %311 = vmatprep.subr.bf16.mxu0 0
      %312 = vmatpush1.bf16.msra.mxu0 0
      %313 = vmatprep.subr.bf16.mxu0 0
      %314 = vmatpush1.bf16.msra.mxu0 0
      %315 = vmatprep.subr.bf16.mxu0 0
      %316 = vmatpush1.bf16.msra.mxu0 0
      %317 = vmatprep.subr.bf16.mxu0 0
      %318 = vmatpush1.bf16.msra.mxu0 0
      %319 = vmatprep.subr.bf16.mxu0 0
      %320 = vmatpush1.bf16.msra.mxu0 0
      %321 = vmatprep.subr.bf16.mxu0 0
      %322 = vmatpush1.bf16.msra.mxu0 0
      %323 = vmatprep.mubr.bf16.mxu0 0
      %324 = vmatmul.mubr.bf16.gmra.mrb[0].mxu0 %v286
      %v325 = vpop.f32.mrb[0].mxu0
      %v326 = vadd.f32 %v283, %v325
      %v327 = vpop.f32.mrb[0].mxu0
      %v328 = vpop.f32.mrb[0].mxu0
      %v329 = vpop.f32.mrb[0].mxu0
      %330 = vdwg.mxu0
      %v332 = vlaneseq
      %v333 = vshrl.u32 %v332, 7
      %v334 = vsub.s32 0, %v333
      %v335 = vrot.slane %v79, %v334
      %v338 = vsel %vm107, %v68, 0
      %340 = vmatprep.subr.bf16.mxu0 0
      %341 = vmatpush1.bf16.msra.mxu0 %v338
      %342 = vmatprep.subr.bf16.mxu0 0
      %343 = vmatpush1.bf16.msra.mxu0 0
      %344 = vmatprep.subr.bf16.mxu0 0
      %345 = vmatpush1.bf16.msra.mxu0 0
      %346 = vmatprep.subr.bf16.mxu0 0
      %347 = vmatpush1.bf16.msra.mxu0 0
      %348 = vmatprep.subr.bf16.mxu0 0
      %349 = vmatpush1.bf16.msra.mxu0 0
      %350 = vmatprep.subr.bf16.mxu0 0
      %351 = vmatpush1.bf16.msra.mxu0 0
      %352 = vmatprep.subr.bf16.mxu0 0
      %353 = vmatpush1.bf16.msra.mxu0 0
      %354 = vmatprep.subr.bf16.mxu0 0
      %355 = vmatpush1.bf16.msra.mxu0 0
      %356 = vmatprep.subr.bf16.mxu0 0
      %357 = vmatpush1.bf16.msra.mxu0 0
      %358 = vmatprep.subr.bf16.mxu0 0
      %359 = vmatpush1.bf16.msra.mxu0 0
      %360 = vmatprep.subr.bf16.mxu0 0
      %361 = vmatpush1.bf16.msra.mxu0 0
      %362 = vmatprep.subr.bf16.mxu0 0
      %363 = vmatpush1.bf16.msra.mxu0 0
      %364 = vmatprep.subr.bf16.mxu0 0
      %365 = vmatpush1.bf16.msra.mxu0 0
      %366 = vmatprep.subr.bf16.mxu0 0
      %367 = vmatpush1.bf16.msra.mxu0 0
      %368 = vmatprep.subr.bf16.mxu0 0
      %369 = vmatpush1.bf16.msra.mxu0 0
      %370 = vmatprep.subr.bf16.mxu0 0
      %371 = vmatpush1.bf16.msra.mxu0 0
      %372 = vmatprep.mubr.bf16.mxu0 0
      %373 = vmatmul.mubr.bf16.gmra.mrb[0].mxu0 %v286
      %v374 = vpop.f32.mrb[0].mxu0
      %v375 = vadd.f32 %v335, %v374
      %v376 = vpop.f32.mrb[0].mxu0
      %v377 = vpop.f32.mrb[0].mxu0
      %v378 = vpop.f32.mrb[0].mxu0
      %379 = vdwg.mxu0
      %v381 = vlaneseq
      %v382 = vshrl.u32 %v381, 7
      %v383 = vsub.s32 0, %v382
      %v384 = vrot.slane %v81, %v383
      %v387 = vsel %vm107, %v70, 0
      %389 = vmatprep.subr.bf16.mxu0 0
      %390 = vmatpush1.bf16.msra.mxu0 %v387
      %391 = vmatprep.subr.bf16.mxu0 0
      %392 = vmatpush1.bf16.msra.mxu0 0
      %393 = vmatprep.subr.bf16.mxu0 0
      %394 = vmatpush1.bf16.msra.mxu0 0
      %395 = vmatprep.subr.bf16.mxu0 0
      %396 = vmatpush1.bf16.msra.mxu0 0
      %397 = vmatprep.subr.bf16.mxu0 0
      %398 = vmatpush1.bf16.msra.mxu0 0
      %399 = vmatprep.subr.bf16.mxu0 0
      %400 = vmatpush1.bf16.msra.mxu0 0
      %401 = vmatprep.subr.bf16.mxu0 0
      %402 = vmatpush1.bf16.msra.mxu0 0
      %403 = vmatprep.subr.bf16.mxu0 0
      %404 = vmatpush1.bf16.msra.mxu0 0
      %405 = vmatprep.subr.bf16.mxu0 0
      %406 = vmatpush1.bf16.msra.mxu0 0
      %407 = vmatprep.subr.bf16.mxu0 0
      %408 = vmatpush1.bf16.msra.mxu0 0
      %409 = vmatprep.subr.bf16.mxu0 0
      %410 = vmatpush1.bf16.msra.mxu0 0
      %411 = vmatprep.subr.bf16.mxu0 0
      %412 = vmatpush1.bf16.msra.mxu0 0
      %413 = vmatprep.subr.bf16.mxu0 0
      %414 = vmatpush1.bf16.msra.mxu0 0
      %415 = vmatprep.subr.bf16.mxu0 0
      %416 = vmatpush1.bf16.msra.mxu0 0
      %417 = vmatprep.subr.bf16.mxu0 0
      %418 = vmatpush1.bf16.msra.mxu0 0
      %419 = vmatprep.subr.bf16.mxu0 0
      %420 = vmatpush1.bf16.msra.mxu0 0
      %421 = vmatprep.mubr.bf16.mxu0 0
      %422 = vmatmul.mubr.bf16.gmra.mrb[0].mxu0 %v286
      %v423 = vpop.f32.mrb[0].mxu0
      %v424 = vadd.f32 %v384, %v423
      %v425 = vpop.f32.mrb[0].mxu0
      %v426 = vpop.f32.mrb[0].mxu0
      %v427 = vpop.f32.mrb[0].mxu0
      %428 = vdwg.mxu0
      %v429 = vunpack.c.l.bf16 %v275
      %v430 = vadd.f32 %v429, %v326
      %v431 = vxor.u32 %v430, 2147483648
      %v432 = vmul.f32 %v431, 1.442695
      %v433 = vpow.pop %v432
      %v434 = vadd.f32 %v433, 1.0
      %v435 = vrcp.pop %v434
      %v436 = vmul.f32 1.0, %v435
      %v437 = vunpack.c.l.bf16 %v276
      %v438 = vadd.f32 %v437, %v375
      %v439 = vxor.u32 %v438, 2147483648
      %v440 = vmul.f32 %v439, 1.442695
      %v441 = vpow.pop %v440
      %v442 = vadd.f32 %v441, 1.0
      %v443 = vrcp.pop %v442
      %v444 = vmul.f32 1.0, %v443
      %v445 = vunpack.c.l.bf16 %v277
      %v446 = vmul.f32 %v436, %v424
      %v447 = vadd.f32 %v445, %v446
      %v448 = vtanh.pop %v447
      %v449 = vsub.f32 1.0, %v444
      %v450 = vmul.f32 %v449, %v448
      %v451 = vmul.f32 %v444, %v89
      %v452 = vadd.f32 %v450, %v451
      %v453 = vpack.c.bf16 %v272, %v272
      %s454 = scalar_lea.vmem [#allocation8], %s83
      %vm455 = vcmask 57344
      %456 = vst.msk [vmem:[%s454] sm:$0x1] %vm455, %v453
      %v457 = vpack.c.bf16 %v452, %v452
      %s458 = scalar_lea.vmem [#allocation9], %s90
      %459 = vst.msk [vmem:[%s458] sm:$0x1] %vm455, %v457
    $region30: #{_lambda_.31} parent=1 // loop_footer
      %s87 = sadd.s32 1, %s83
    $region31: #{_lambda_.31} parent=1 // loop_footer_branch
      %82 = sbr.rel target = $region27
    $region32: #{_lambda_.31} parent=1 // loop_exit
      _
    // Predicated region
    $region33: #{_lambda_.31} parent=1 // pred_check
      _
    $region34: #{_lambda_.31} parent=1 // pred_check_branch
      %461 = sbr.rel (0) target = $region36
    $region35: #{_lambda_.31} parent=1 // pred_region
      %s463 = ssub.s32 256, 256
      %464 = vsyncadd [#allocation4], %s463
      %s465 = sshll.u32 [#allocation8], 4
      %s466 = int_to_ptr.vmem [resolvable:$true] %s465
      %471 = dma.vmem_to_hbm [thread:$0]  %s466, 256, %s3, [#allocation4], 16, 16, 1
    $region36: #{_lambda_.31} parent=1 // pred_fallthru
      _
    // Predicated region
    $region37: #{_lambda_.31} parent=1 // pred_check
      _
    $region38: #{_lambda_.31} parent=1 // pred_check_branch
      %473 = sbr.rel (0) target = $region40
    $region39: #{_lambda_.31} parent=1 // pred_region
      %s475 = ssub.s32 256, 256
      %476 = vsyncadd [#allocation10], %s475
      %s477 = sshll.u32 [#allocation9], 4
      %s478 = int_to_ptr.vmem [resolvable:$true] %s477
      %483 = dma.vmem_to_hbm [thread:$0]  %s478, 256, %s4, [#allocation10], 16, 16, 1
    $region40: #{_lambda_.31} parent=1 // pred_fallthru
      _
    // Predicated region
    $region41: #{_lambda_.31} parent=1 // pred_check
      _
    $region42: #{_lambda_.31} parent=1 // pred_check_branch
      %485 = sbr.rel (0) target = $region44
    $region43: #{_lambda_.31} parent=1 // pred_region
      %486 = dma.done [#allocation4], 256
    $region44: #{_lambda_.31} parent=1 // pred_fallthru
      _
    // Predicated region
    $region45: #{_lambda_.31} parent=1 // pred_check
      _
    $region46: #{_lambda_.31} parent=1 // pred_check_branch
      %488 = sbr.rel (0) target = $region48
    $region47: #{_lambda_.31} parent=1 // pred_region
      %489 = dma.done [#allocation10], 256
    $region48: #{_lambda_.31} parent=1 // pred_fallthru
      _
    %490 = vsyncpa [#allocation3], 1
    %491 = vsyncpa [#allocation6], 1
    %492 = vsyncpa [#allocation4], 1
    %493 = vsyncpa [#allocation10], 1

// kernel: _lambda_.32
$region0: #{_lambda_.32}
  #allocation0 [shape = 'u32[]', space=smem, size = 0x4, offset = 0x4, fixed_abs, tag = 'smem constant byte address 0x4 - core index']
  #allocation1 [shape = 'u32[144,128]{1,0:T(1,128)}', space=vmem, size = 0x12000, scoped, tag = 'internal scratch']
  %s0 = inlined_call_operand.hbm [shape: bf16[32,16], index: 0, kind: input, shape index: {}]
  %s1 = inlined_call_operand.hbm [shape: bf16[16,48], index: 1, kind: input, shape index: {}]
  %s2 = inlined_call_operand.hbm [shape: f32[1,48], index: 2, kind: input, shape index: {}]
  %s3 = inlined_call_operand.hbm [shape: bf16[32,48], index: 3, kind: output, shape index: {}]
  %s4 = sld [smem:[#allocation0]]
  $region34: #{_lambda_.32} parent=0
    _
  %s6 = ssub.s32 1, %s4
  %s7 = scalar_select 0, %s6, %s4
  $region1: #{_lambda_.32} parent=0
    #allocation2 [shape = 'u8[8192]{0}', space=vmem, size = 0x2000, scoped, tag = 'input window, operand 0, single buffered']
    #allocation3 [shape = 's32[1]{0}', space=sflag, size = 0x4, scoped, tag = 'scoped memory for _lambda_.32']
    #allocation4 [shape = 's32[1]{0}', space=sflag, size = 0x4, scoped, tag = 'scoped memory for _lambda_.32']
    #allocation5 [shape = 'u8[4096]{0}', space=vmem, size = 0x1000, scoped, tag = 'input window, operand 1, single buffered']
    #allocation6 [shape = 's32[1]{0}', space=sflag, size = 0x4, scoped, tag = 'scoped memory for _lambda_.32']
    #allocation7 [shape = 'u8[512]{0}', space=vmem, size = 0x400, scoped, tag = 'input window, operand 2, single buffered']
    #allocation8 [shape = 'u8[8192]{0}', space=vmem, size = 0x2000, scoped, tag = 'output window, operand 0, single buffered']
    %8 = vsyncpa [#allocation3], 0
    %9 = vsyncpa [#allocation6], 0
    %10 = vsyncpa [#allocation4], 0
    // Predicated region
    $region2: #{_lambda_.32} parent=1 // pred_check
      _
    $region3: #{_lambda_.32} parent=1 // pred_check_branch
      %12 = sbr.rel (0) target = $region5
    $region4: #{_lambda_.32} parent=1 // pred_region
      %s14 = ssub.s32 256, 256
      %15 = vsyncadd [#allocation3], %s14
      %s16 = sshll.u32 [#allocation2], 4
      %s17 = int_to_ptr.vmem [resolvable:$true] %s16
      %22 = dma.hbm_to_vmem [thread:$0]  %s0, 256, %s17, [#allocation3], 64, 64, 4
    $region5: #{_lambda_.32} parent=1 // pred_fallthru
      _
    // Predicated region
    $region6: #{_lambda_.32} parent=1 // pred_check
      _
    $region7: #{_lambda_.32} parent=1 // pred_check_branch
      %24 = sbr.rel (0) target = $region9
    $region8: #{_lambda_.32} parent=1 // pred_region
      %s26 = ssub.s32 128, 128
      %27 = vsyncadd [#allocation6], %s26
      %s28 = sshll.u32 [#allocation5], 4
      %s29 = int_to_ptr.vmem [resolvable:$true] %s28
      %34 = dma.hbm_to_vmem [thread:$0]  %s1, 128, %s29, [#allocation6], 64, 64, 4
    $region9: #{_lambda_.32} parent=1 // pred_fallthru
      _
    // Predicated region
    $region10: #{_lambda_.32} parent=1 // pred_check
      _
    $region11: #{_lambda_.32} parent=1 // pred_check_branch
      %36 = sbr.rel (0) target = $region13
    $region12: #{_lambda_.32} parent=1 // pred_region
      %s38 = ssub.s32 16, 16
      %39 = vsyncadd [#allocation6], %s38
      %s41 = sshll.u32 [#allocation7], 4
      %s42 = int_to_ptr.vmem [resolvable:$true] %s41
      %44 = dma.hbm_to_vmem [thread:$0]  %s2, 16, %s42, [#allocation6]
    $region13: #{_lambda_.32} parent=1 // pred_fallthru
      _
    // Predicated region
    $region14: #{_lambda_.32} parent=1 // pred_check
      _
    $region15: #{_lambda_.32} parent=1 // pred_check_branch
      %46 = sbr.rel (0) target = $region17
    $region16: #{_lambda_.32} parent=1 // pred_region
      %47 = dma.done [#allocation3], 256
    $region17: #{_lambda_.32} parent=1 // pred_fallthru
      _
    // Predicated region
    $region18: #{_lambda_.32} parent=1 // pred_check
      _
    $region19: #{_lambda_.32} parent=1 // pred_check_branch
      %49 = sbr.rel (0) target = $region21
    $region20: #{_lambda_.32} parent=1 // pred_region
      %50 = dma.done [#allocation6], 128
    $region21: #{_lambda_.32} parent=1 // pred_fallthru
      _
    // Predicated region
    $region22: #{_lambda_.32} parent=1 // pred_check
      _
    $region23: #{_lambda_.32} parent=1 // pred_check_branch
      %52 = sbr.rel (0) target = $region25
    $region24: #{_lambda_.32} parent=1 // pred_region
      %53 = dma.done [#allocation6], 16
    $region25: #{_lambda_.32} parent=1 // pred_fallthru
      _
    %v55 = vld [vmem:[#allocation2] sm:$0xf]
    %v56 = vld [vmem:[#allocation2 + $0x4] sm:$0xf]
    %v57 = vld [vmem:[#allocation2 + $0x8] sm:$0xf]
    %v58 = vld [vmem:[#allocation2 + $0xc] sm:$0xf]
    %v59 = vld [vmem:[#allocation5] sm:$0xf]
    %v60 = vld [vmem:[#allocation5 + $0x4] sm:$0xf]
    %v61 = vld [vmem:[#allocation7] sm:$0x1]
    %v63 = vlaneseq
    %v64 = vshrl.u32 %v63, 7
    %v65 = vsub.s32 0, %v64
    %v66 = vrot.slane %v61, %v65
    %v72 = vunpack.c.l.b16 %v55
    %v73 = vunpack.c.l.b16 %v56
    %v74 = vunpack.c.l.b16 %v57
    %v75 = vunpack.c.l.b16 %v58
    %v76 = vpack.c.b16 %v73, %v72
    %v77 = vpack.c.b16 %v75, %v74
    %v80 = vunpack.c.l.b16 %v59
    %v81 = vunpack.c.l.b16 %v60
    %v82 = vpack.c.b16 %v81, %v80
    %vm84 = vcmask 130048
    %v86 = vsel %vm84, %v76, 0
    %v89 = vsel %vm84, %v77, 0
    %91 = vmatprep.subr.bf16.mxu0 0
    %92 = vmatpush1.bf16.msra.mxu0 %v82
    %93 = vmatprep.subr.bf16.mxu0 0
    %94 = vmatpush1.bf16.msra.mxu0 0
    %95 = vmatprep.subr.bf16.mxu0 0
    %96 = vmatpush1.bf16.msra.mxu0 0
    %97 = vmatprep.subr.bf16.mxu0 0
    %98 = vmatpush1.bf16.msra.mxu0 0
    %99 = vmatprep.subr.bf16.mxu0 0
    %100 = vmatpush1.bf16.msra.mxu0 0
    %101 = vmatprep.subr.bf16.mxu0 0
    %102 = vmatpush1.bf16.msra.mxu0 0
    %103 = vmatprep.subr.bf16.mxu0 0
    %104 = vmatpush1.bf16.msra.mxu0 0
    %105 = vmatprep.subr.bf16.mxu0 0
    %106 = vmatpush1.bf16.msra.mxu0 0
    %107 = vmatprep.subr.bf16.mxu0 0
    %108 = vmatpush1.bf16.msra.mxu0 0
    %109 = vmatprep.subr.bf16.mxu0 0
    %110 = vmatpush1.bf16.msra.mxu0 0
    %111 = vmatprep.subr.bf16.mxu0 0
    %112 = vmatpush1.bf16.msra.mxu0 0
    %113 = vmatprep.subr.bf16.mxu0 0
    %114 = vmatpush1.bf16.msra.mxu0 0
    %115 = vmatprep.subr.bf16.mxu0 0
    %116 = vmatpush1.bf16.msra.mxu0 0
    %117 = vmatprep.subr.bf16.mxu0 0
    %118 = vmatpush1.bf16.msra.mxu0 0
    %119 = vmatprep.subr.bf16.mxu0 0
    %120 = vmatpush1.bf16.msra.mxu0 0
    %121 = vmatprep.subr.bf16.mxu0 0
    %122 = vmatpush1.bf16.msra.mxu0 0
    %123 = vmatprep.mubr.bf16.mxu0 0
    %124 = vmatmul.mubr.bf16.gmra.mrb[0].mxu0 %v86
    %v125 = vpop.f32.mrb[0].mxu0
    %v126 = vadd.f32 %v66, %v125
    %v127 = vpop.f32.mrb[0].mxu0
    %v128 = vpop.f32.mrb[0].mxu0
    %v129 = vadd.f32 %v66, %v128
    %v130 = vpop.f32.mrb[0].mxu0
    %131 = vmatprep.mubr.bf16.mxu0 0
    %132 = vmatmul.mubr.bf16.gmra.mrb[0].mxu0 %v89
    %v133 = vpop.f32.mrb[0].mxu0
    %v134 = vadd.f32 %v66, %v133
    %v135 = vpop.f32.mrb[0].mxu0
    %v136 = vpop.f32.mrb[0].mxu0
    %v137 = vadd.f32 %v66, %v136
    %v138 = vpop.f32.mrb[0].mxu0
    %139 = vdwg.mxu0
    %v140 = vpack.c.bf16 %v129, %v126
    %v141 = vpack.c.bf16 %v137, %v134
    %v144 = vunpack.c.l.b16 %v140
    %v145 = vunpack.c.h.b16 %v140
    %v146 = vunpack.c.l.b16 %v141
    %v147 = vunpack.c.h.b16 %v141
    %v148 = vpack.c.b16 %v144, %v144
    %v149 = vpack.c.b16 %v145, %v145
    %v150 = vpack.c.b16 %v146, %v146
    %v151 = vpack.c.b16 %v147, %v147
    %vm156 = vcmask 388096
    %157 = vst.msk [vmem:[#allocation8] sm:$0xf] %vm156, %v148
    %158 = vst.msk [vmem:[#allocation8 + $0x4] sm:$0xf] %vm156, %v149
    %159 = vst.msk [vmem:[#allocation8 + $0x8] sm:$0xf] %vm156, %v150
    %160 = vst.msk [vmem:[#allocation8 + $0xc] sm:$0xf] %vm156, %v151
    // Predicated region
    $region26: #{_lambda_.32} parent=1 // pred_check
      _
    $region27: #{_lambda_.32} parent=1 // pred_check_branch
      %162 = sbr.rel (0) target = $region29
    $region28: #{_lambda_.32} parent=1 // pred_region
      %s164 = ssub.s32 256, 256
      %165 = vsyncadd [#allocation4], %s164
      %s166 = sshll.u32 [#allocation8], 4
      %s167 = int_to_ptr.vmem [resolvable:$true] %s166
      %172 = dma.vmem_to_hbm [thread:$0]  %s167, 256, %s3, [#allocation4], 64, 64, 4
    $region29: #{_lambda_.32} parent=1 // pred_fallthru
      _
    // Predicated region
    $region30: #{_lambda_.32} parent=1 // pred_check
      _
    $region31: #{_lambda_.32} parent=1 // pred_check_branch
      %174 = sbr.rel (0) target = $region33
    $region32: #{_lambda_.32} parent=1 // pred_region
      %175 = dma.done [#allocation4], 256
    $region33: #{_lambda_.32} parent=1 // pred_fallthru
      _
    %176 = vsyncpa [#allocation3], 1
    %177 = vsyncpa [#allocation6], 1
    %178 = vsyncpa [#allocation4], 1

// kernel: _lambda_.34
$region0: #{_lambda_.34}
  #allocation0 [shape = 'u32[]', space=smem, size = 0x4, offset = 0x4, fixed_abs, tag = 'smem constant byte address 0x4 - core index']
  #allocation1 [shape = 'u32[144,128]{1,0:T(1,128)}', space=vmem, size = 0x12000, scoped, tag = 'internal scratch']
  %s0 = inlined_call_operand.hbm [shape: bf16[32,16], index: 0, kind: input, shape index: {}]
  %s1 = inlined_call_operand.hbm [shape: bf16[16,16], index: 1, kind: input, shape index: {}]
  %s2 = inlined_call_operand.hbm [shape: f32[1,16], index: 2, kind: input, shape index: {}]
  %s3 = inlined_call_operand.hbm [shape: bf16[32,16], index: 3, kind: output, shape index: {}]
  %s4 = sld [smem:[#allocation0]]
  $region34: #{_lambda_.34} parent=0
    _
  %s6 = ssub.s32 1, %s4
  %s7 = scalar_select 0, %s6, %s4
  $region1: #{_lambda_.34} parent=0
    #allocation2 [shape = 'u8[8192]{0}', space=vmem, size = 0x2000, scoped, tag = 'input window, operand 0, single buffered']
    #allocation3 [shape = 's32[1]{0}', space=sflag, size = 0x4, scoped, tag = 'scoped memory for _lambda_.34']
    #allocation4 [shape = 's32[1]{0}', space=sflag, size = 0x4, scoped, tag = 'scoped memory for _lambda_.34']
    #allocation5 [shape = 'u8[4096]{0}', space=vmem, size = 0x1000, scoped, tag = 'input window, operand 1, single buffered']
    #allocation6 [shape = 's32[1]{0}', space=sflag, size = 0x4, scoped, tag = 'scoped memory for _lambda_.34']
    #allocation7 [shape = 'u8[512]{0}', space=vmem, size = 0x400, scoped, tag = 'input window, operand 2, single buffered']
    #allocation8 [shape = 'u8[8192]{0}', space=vmem, size = 0x2000, scoped, tag = 'output window, operand 0, single buffered']
    %8 = vsyncpa [#allocation3], 0
    %9 = vsyncpa [#allocation6], 0
    %10 = vsyncpa [#allocation4], 0
    // Predicated region
    $region2: #{_lambda_.34} parent=1 // pred_check
      _
    $region3: #{_lambda_.34} parent=1 // pred_check_branch
      %12 = sbr.rel (0) target = $region5
    $region4: #{_lambda_.34} parent=1 // pred_region
      %s14 = ssub.s32 256, 256
      %15 = vsyncadd [#allocation3], %s14
      %s16 = sshll.u32 [#allocation2], 4
      %s17 = int_to_ptr.vmem [resolvable:$true] %s16
      %22 = dma.hbm_to_vmem [thread:$0]  %s0, 256, %s17, [#allocation3], 64, 64, 4
    $region5: #{_lambda_.34} parent=1 // pred_fallthru
      _
    // Predicated region
    $region6: #{_lambda_.34} parent=1 // pred_check
      _
    $region7: #{_lambda_.34} parent=1 // pred_check_branch
      %24 = sbr.rel (0) target = $region9
    $region8: #{_lambda_.34} parent=1 // pred_region
      %s26 = ssub.s32 128, 128
      %27 = vsyncadd [#allocation6], %s26
      %s28 = sshll.u32 [#allocation5], 4
      %s29 = int_to_ptr.vmem [resolvable:$true] %s28
      %34 = dma.hbm_to_vmem [thread:$0]  %s1, 128, %s29, [#allocation6], 64, 64, 4
    $region9: #{_lambda_.34} parent=1 // pred_fallthru
      _
    // Predicated region
    $region10: #{_lambda_.34} parent=1 // pred_check
      _
    $region11: #{_lambda_.34} parent=1 // pred_check_branch
      %36 = sbr.rel (0) target = $region13
    $region12: #{_lambda_.34} parent=1 // pred_region
      %s38 = ssub.s32 16, 16
      %39 = vsyncadd [#allocation6], %s38
      %s41 = sshll.u32 [#allocation7], 4
      %s42 = int_to_ptr.vmem [resolvable:$true] %s41
      %44 = dma.hbm_to_vmem [thread:$0]  %s2, 16, %s42, [#allocation6]
    $region13: #{_lambda_.34} parent=1 // pred_fallthru
      _
    // Predicated region
    $region14: #{_lambda_.34} parent=1 // pred_check
      _
    $region15: #{_lambda_.34} parent=1 // pred_check_branch
      %46 = sbr.rel (0) target = $region17
    $region16: #{_lambda_.34} parent=1 // pred_region
      %47 = dma.done [#allocation3], 256
    $region17: #{_lambda_.34} parent=1 // pred_fallthru
      _
    // Predicated region
    $region18: #{_lambda_.34} parent=1 // pred_check
      _
    $region19: #{_lambda_.34} parent=1 // pred_check_branch
      %49 = sbr.rel (0) target = $region21
    $region20: #{_lambda_.34} parent=1 // pred_region
      %50 = dma.done [#allocation6], 128
    $region21: #{_lambda_.34} parent=1 // pred_fallthru
      _
    // Predicated region
    $region22: #{_lambda_.34} parent=1 // pred_check
      _
    $region23: #{_lambda_.34} parent=1 // pred_check_branch
      %52 = sbr.rel (0) target = $region25
    $region24: #{_lambda_.34} parent=1 // pred_region
      %53 = dma.done [#allocation6], 16
    $region25: #{_lambda_.34} parent=1 // pred_fallthru
      _
    %v55 = vld [vmem:[#allocation2] sm:$0xf]
    %v56 = vld [vmem:[#allocation2 + $0x4] sm:$0xf]
    %v57 = vld [vmem:[#allocation2 + $0x8] sm:$0xf]
    %v58 = vld [vmem:[#allocation2 + $0xc] sm:$0xf]
    %v59 = vld [vmem:[#allocation5] sm:$0xf]
    %v60 = vld [vmem:[#allocation5 + $0x4] sm:$0xf]
    %v61 = vld [vmem:[#allocation7] sm:$0x1]
    %v63 = vlaneseq
    %v64 = vshrl.u32 %v63, 7
    %v65 = vsub.s32 0, %v64
    %v66 = vrot.slane %v61, %v65
    %v72 = vunpack.c.l.b16 %v55
    %v73 = vunpack.c.l.b16 %v56
    %v74 = vunpack.c.l.b16 %v57
    %v75 = vunpack.c.l.b16 %v58
    %v76 = vpack.c.b16 %v73, %v72
    %v77 = vpack.c.b16 %v75, %v74
    %v80 = vunpack.c.l.b16 %v59
    %v81 = vunpack.c.l.b16 %v60
    %v82 = vpack.c.b16 %v81, %v80
    %vm84 = vcmask 130048
    %v86 = vsel %vm84, %v76, 0
    %v89 = vsel %vm84, %v77, 0
    %91 = vmatprep.subr.bf16.mxu0 0
    %92 = vmatpush1.bf16.msra.mxu0 %v82
    %93 = vmatprep.subr.bf16.mxu0 0
    %94 = vmatpush1.bf16.msra.mxu0 0
    %95 = vmatprep.subr.bf16.mxu0 0
    %96 = vmatpush1.bf16.msra.mxu0 0
    %97 = vmatprep.subr.bf16.mxu0 0
    %98 = vmatpush1.bf16.msra.mxu0 0
    %99 = vmatprep.subr.bf16.mxu0 0
    %100 = vmatpush1.bf16.msra.mxu0 0
    %101 = vmatprep.subr.bf16.mxu0 0
    %102 = vmatpush1.bf16.msra.mxu0 0
    %103 = vmatprep.subr.bf16.mxu0 0
    %104 = vmatpush1.bf16.msra.mxu0 0
    %105 = vmatprep.subr.bf16.mxu0 0
    %106 = vmatpush1.bf16.msra.mxu0 0
    %107 = vmatprep.subr.bf16.mxu0 0
    %108 = vmatpush1.bf16.msra.mxu0 0
    %109 = vmatprep.subr.bf16.mxu0 0
    %110 = vmatpush1.bf16.msra.mxu0 0
    %111 = vmatprep.subr.bf16.mxu0 0
    %112 = vmatpush1.bf16.msra.mxu0 0
    %113 = vmatprep.subr.bf16.mxu0 0
    %114 = vmatpush1.bf16.msra.mxu0 0
    %115 = vmatprep.subr.bf16.mxu0 0
    %116 = vmatpush1.bf16.msra.mxu0 0
    %117 = vmatprep.subr.bf16.mxu0 0
    %118 = vmatpush1.bf16.msra.mxu0 0
    %119 = vmatprep.subr.bf16.mxu0 0
    %120 = vmatpush1.bf16.msra.mxu0 0
    %121 = vmatprep.subr.bf16.mxu0 0
    %122 = vmatpush1.bf16.msra.mxu0 0
    %123 = vmatprep.mubr.bf16.mxu0 0
    %124 = vmatmul.mubr.bf16.gmra.mrb[0].mxu0 %v86
    %v125 = vpop.f32.mrb[0].mxu0
    %v126 = vadd.f32 %v66, %v125
    %v127 = vpop.f32.mrb[0].mxu0
    %v128 = vpop.f32.mrb[0].mxu0
    %v129 = vadd.f32 %v66, %v128
    %v130 = vpop.f32.mrb[0].mxu0
    %131 = vmatprep.mubr.bf16.mxu0 0
    %132 = vmatmul.mubr.bf16.gmra.mrb[0].mxu0 %v89
    %v133 = vpop.f32.mrb[0].mxu0
    %v134 = vadd.f32 %v66, %v133
    %v135 = vpop.f32.mrb[0].mxu0
    %v136 = vpop.f32.mrb[0].mxu0
    %v137 = vadd.f32 %v66, %v136
    %v138 = vpop.f32.mrb[0].mxu0
    %139 = vdwg.mxu0
    %v140 = vpack.c.bf16 %v129, %v126
    %v141 = vpack.c.bf16 %v137, %v134
    %v144 = vunpack.c.l.b16 %v140
    %v145 = vunpack.c.h.b16 %v140
    %v146 = vunpack.c.l.b16 %v141
    %v147 = vunpack.c.h.b16 %v141
    %v148 = vpack.c.b16 %v144, %v144
    %v149 = vpack.c.b16 %v145, %v145
    %v150 = vpack.c.b16 %v146, %v146
    %v151 = vpack.c.b16 %v147, %v147
    %vm156 = vcmask 125952
    %157 = vst.msk [vmem:[#allocation8] sm:$0xf] %vm156, %v148
    %158 = vst.msk [vmem:[#allocation8 + $0x4] sm:$0xf] %vm156, %v149
    %159 = vst.msk [vmem:[#allocation8 + $0x8] sm:$0xf] %vm156, %v150
    %160 = vst.msk [vmem:[#allocation8 + $0xc] sm:$0xf] %vm156, %v151
    // Predicated region
    $region26: #{_lambda_.34} parent=1 // pred_check
      _
    $region27: #{_lambda_.34} parent=1 // pred_check_branch
      %162 = sbr.rel (0) target = $region29
    $region28: #{_lambda_.34} parent=1 // pred_region
      %s164 = ssub.s32 256, 256
      %165 = vsyncadd [#allocation4], %s164
      %s166 = sshll.u32 [#allocation8], 4
      %s167 = int_to_ptr.vmem [resolvable:$true] %s166
      %172 = dma.vmem_to_hbm [thread:$0]  %s167, 256, %s3, [#allocation4], 64, 64, 4
    $region29: #{_lambda_.34} parent=1 // pred_fallthru
      _
    // Predicated region
    $region30: #{_lambda_.34} parent=1 // pred_check
      _
    $region31: #{_lambda_.34} parent=1 // pred_check_branch
      %174 = sbr.rel (0) target = $region33
    $region32: #{_lambda_.34} parent=1 // pred_region
      %175 = dma.done [#allocation4], 256
    $region33: #{_lambda_.34} parent=1 // pred_fallthru
      _
    %176 = vsyncpa [#allocation3], 1
    %177 = vsyncpa [#allocation6], 1
    %178 = vsyncpa [#allocation4], 1

// kernel: _lambda_.35
$region0: #{_lambda_.35}
  #allocation0 [shape = 'u32[]', space=smem, size = 0x4, offset = 0x4, fixed_abs, tag = 'smem constant byte address 0x4 - core index']
  #allocation1 [shape = 'u32[144,128]{1,0:T(1,128)}', space=vmem, size = 0x12000, scoped, tag = 'internal scratch']
  %s0 = inlined_call_operand.hbm [shape: bf16[32,16], index: 0, kind: input, shape index: {}]
  %s1 = inlined_call_operand.hbm [shape: bf16[32,16], index: 1, kind: input, shape index: {}]
  %s2 = inlined_call_operand.hbm [shape: f32[1,16], index: 2, kind: input, shape index: {}]
  %s3 = inlined_call_operand.hbm [shape: f32[1,16], index: 3, kind: input, shape index: {}]
  %s4 = inlined_call_operand.hbm [shape: bf16[32,16], index: 4, kind: output, shape index: {}]
  %s5 = sld [smem:[#allocation0]]
  $region42: #{_lambda_.35} parent=0
    _
  %s7 = ssub.s32 1, %s5
  %s8 = scalar_select 0, %s7, %s5
  $region1: #{_lambda_.35} parent=0
    #allocation2 [shape = 'u8[8192]{0}', space=vmem, size = 0x2000, scoped, tag = 'input window, operand 0, single buffered']
    #allocation3 [shape = 's32[1]{0}', space=sflag, size = 0x4, scoped, tag = 'scoped memory for _lambda_.35']
    #allocation4 [shape = 's32[1]{0}', space=sflag, size = 0x4, scoped, tag = 'scoped memory for _lambda_.35']
    #allocation5 [shape = 'u8[8192]{0}', space=vmem, size = 0x2000, scoped, tag = 'input window, operand 1, single buffered']
    #allocation6 [shape = 's32[1]{0}', space=sflag, size = 0x4, scoped, tag = 'scoped memory for _lambda_.35']
    #allocation7 [shape = 'u8[512]{0}', space=vmem, size = 0x400, scoped, tag = 'input window, operand 2, single buffered']
    #allocation8 [shape = 'u8[512]{0}', space=vmem, size = 0x400, scoped, tag = 'input window, operand 3, single buffered']
    #allocation9 [shape = 's32[1]{0}', space=sflag, size = 0x4, scoped, tag = 'scoped memory for _lambda_.35']
    #allocation10 [shape = 'u8[8192]{0}', space=vmem, size = 0x2000, scoped, tag = 'output window, operand 0, single buffered']
    %9 = vsyncpa [#allocation3], 0
    %10 = vsyncpa [#allocation6], 0
    %11 = vsyncpa [#allocation9], 0
    %12 = vsyncpa [#allocation4], 0
    // Predicated region
    $region2: #{_lambda_.35} parent=1 // pred_check
      _
    $region3: #{_lambda_.35} parent=1 // pred_check_branch
      %14 = sbr.rel (0) target = $region5
    $region4: #{_lambda_.35} parent=1 // pred_region
      %s16 = ssub.s32 256, 256
      %17 = vsyncadd [#allocation3], %s16
      %s18 = sshll.u32 [#allocation2], 4
      %s19 = int_to_ptr.vmem [resolvable:$true] %s18
      %24 = dma.hbm_to_vmem [thread:$0]  %s0, 256, %s19, [#allocation3], 64, 64, 4
    $region5: #{_lambda_.35} parent=1 // pred_fallthru
      _
    // Predicated region
    $region6: #{_lambda_.35} parent=1 // pred_check
      _
    $region7: #{_lambda_.35} parent=1 // pred_check_branch
      %26 = sbr.rel (0) target = $region9
    $region8: #{_lambda_.35} parent=1 // pred_region
      %s28 = ssub.s32 256, 256
      %29 = vsyncadd [#allocation6], %s28
      %s30 = sshll.u32 [#allocation5], 4
      %s31 = int_to_ptr.vmem [resolvable:$true] %s30
      %36 = dma.hbm_to_vmem [thread:$0]  %s1, 256, %s31, [#allocation6], 64, 64, 4
    $region9: #{_lambda_.35} parent=1 // pred_fallthru
      _
    // Predicated region
    $region10: #{_lambda_.35} parent=1 // pred_check
      _
    $region11: #{_lambda_.35} parent=1 // pred_check_branch
      %38 = sbr.rel (0) target = $region13
    $region12: #{_lambda_.35} parent=1 // pred_region
      %s40 = ssub.s32 16, 16
      %41 = vsyncadd [#allocation6], %s40
      %s43 = sshll.u32 [#allocation7], 4
      %s44 = int_to_ptr.vmem [resolvable:$true] %s43
      %46 = dma.hbm_to_vmem [thread:$0]  %s2, 16, %s44, [#allocation6]
    $region13: #{_lambda_.35} parent=1 // pred_fallthru
      _
    // Predicated region
    $region14: #{_lambda_.35} parent=1 // pred_check
      _
    $region15: #{_lambda_.35} parent=1 // pred_check_branch
      %48 = sbr.rel (0) target = $region17
    $region16: #{_lambda_.35} parent=1 // pred_region
      %s50 = ssub.s32 16, 16
      %51 = vsyncadd [#allocation9], %s50
      %s53 = sshll.u32 [#allocation8], 4
      %s54 = int_to_ptr.vmem [resolvable:$true] %s53
      %56 = dma.hbm_to_vmem [thread:$0]  %s3, 16, %s54, [#allocation9]
    $region17: #{_lambda_.35} parent=1 // pred_fallthru
      _
    // Predicated region
    $region18: #{_lambda_.35} parent=1 // pred_check
      _
    $region19: #{_lambda_.35} parent=1 // pred_check_branch
      %58 = sbr.rel (0) target = $region21
    $region20: #{_lambda_.35} parent=1 // pred_region
      %59 = dma.done [#allocation3], 256
    $region21: #{_lambda_.35} parent=1 // pred_fallthru
      _
    // Predicated region
    $region22: #{_lambda_.35} parent=1 // pred_check
      _
    $region23: #{_lambda_.35} parent=1 // pred_check_branch
      %61 = sbr.rel (0) target = $region25
    $region24: #{_lambda_.35} parent=1 // pred_region
      %62 = dma.done [#allocation6], 256
    $region25: #{_lambda_.35} parent=1 // pred_fallthru
      _
    // Predicated region
    $region26: #{_lambda_.35} parent=1 // pred_check
      _
    $region27: #{_lambda_.35} parent=1 // pred_check_branch
      %64 = sbr.rel (0) target = $region29
    $region28: #{_lambda_.35} parent=1 // pred_region
      %65 = dma.done [#allocation6], 16
    $region29: #{_lambda_.35} parent=1 // pred_fallthru
      _
    // Predicated region
    $region30: #{_lambda_.35} parent=1 // pred_check
      _
    $region31: #{_lambda_.35} parent=1 // pred_check_branch
      %67 = sbr.rel (0) target = $region33
    $region32: #{_lambda_.35} parent=1 // pred_region
      %68 = dma.done [#allocation9], 16
    $region33: #{_lambda_.35} parent=1 // pred_fallthru
      _
    %v69 = vld [vmem:[#allocation2] sm:$0xf]
    %v70 = vld [vmem:[#allocation2 + $0x4] sm:$0xf]
    %v71 = vld [vmem:[#allocation2 + $0x8] sm:$0xf]
    %v72 = vld [vmem:[#allocation2 + $0xc] sm:$0xf]
    %v73 = vunpack.c.l.bf16 %v69
    %v74 = vunpack.c.l.bf16 %v70
    %v75 = vunpack.c.l.bf16 %v71
    %v76 = vunpack.c.l.bf16 %v72
    %v77 = vld [vmem:[#allocation5] sm:$0xf]
    %v78 = vld [vmem:[#allocation5 + $0x4] sm:$0xf]
    %v79 = vld [vmem:[#allocation5 + $0x8] sm:$0xf]
    %v80 = vld [vmem:[#allocation5 + $0xc] sm:$0xf]
    %v81 = vunpack.c.l.bf16 %v77
    %v82 = vunpack.c.l.bf16 %v78
    %v83 = vunpack.c.l.bf16 %v79
    %v84 = vunpack.c.l.bf16 %v80
    %v85 = vadd.f32 %v73, %v81
    %v86 = vadd.f32 %v74, %v82
    %v87 = vadd.f32 %v75, %v83
    %v88 = vadd.f32 %v76, %v84
    %vm89 = vcmask 130048
    %v90 = vsel %vm89, %v85, 0.0
    %91 = vadd.xlane.f32.xlu0 %v90
    %v92 = vpop.xlane.xlu0 %91
    %v93 = vsel %vm89, %v86, 0.0
    %94 = vadd.xlane.f32.xlu0 %v93
    %v95 = vpop.xlane.xlu0 %94
    %v96 = vsel %vm89, %v87, 0.0
    %97 = vadd.xlane.f32.xlu0 %v96
    %v98 = vpop.xlane.xlu0 %97
    %v99 = vsel %vm89, %v88, 0.0
    %100 = vadd.xlane.f32.xlu0 %v99
    %v101 = vpop.xlane.xlu0 %100
    %v102 = vrcp.pop 16.0
    %v103 = vmul.f32 %v92, %v102
    %v104 = vmul.f32 %v95, %v102
    %v105 = vmul.f32 %v98, %v102
    %v106 = vmul.f32 %v101, %v102
    %v107 = vsub.f32 %v85, %v103
    %v108 = vsub.f32 %v86, %v104
    %v109 = vsub.f32 %v87, %v105
    %v110 = vsub.f32 %v88, %v106
    %v111 = vmul.f32 %v107, %v107
    %v112 = vmul.f32 %v108, %v108
    %v113 = vmul.f32 %v109, %v109
    %v114 = vmul.f32 %v110, %v110
    %v115 = vsel %vm89, %v111, 0.0
    %116 = vadd.xlane.f32.xlu0 %v115
    %v117 = vpop.xlane.xlu0 %116
    %v118 = vsel %vm89, %v112, 0.0
    %119 = vadd.xlane.f32.xlu0 %v118
    %v120 = vpop.xlane.xlu0 %119
    %v121 = vsel %vm89, %v113, 0.0
    %122 = vadd.xlane.f32.xlu0 %v121
    %v123 = vpop.xlane.xlu0 %122
    %v124 = vsel %vm89, %v114, 0.0
    %125 = vadd.xlane.f32.xlu0 %v124
    %v126 = vpop.xlane.xlu0 %125
    %v127 = vmul.f32 %v117, %v102
    %v128 = vmul.f32 %v120, %v102
    %v129 = vmul.f32 %v123, %v102
    %v130 = vmul.f32 %v126, %v102
    %v131 = vadd.f32 %v127, 1e-05
    %v132 = vadd.f32 %v128, 1e-05
    %v133 = vadd.f32 %v129, 1e-05
    %v134 = vadd.f32 %v130, 1e-05
    %v135 = vrsqrt.pop %v131
    %v136 = vrsqrt.pop %v132
    %v137 = vrsqrt.pop %v133
    %v138 = vrsqrt.pop %v134
    %v139 = vmul.f32 %v107, %v135
    %v140 = vmul.f32 %v108, %v136
    %v141 = vmul.f32 %v109, %v137
    %v142 = vmul.f32 %v110, %v138
    %v143 = vld [vmem:[#allocation7] sm:$0x1]
    %v145 = vlaneseq
    %v146 = vshrl.u32 %v145, 7
    %v147 = vsub.s32 0, %v146
    %v148 = vrot.slane %v143, %v147
    %v150 = vmul.f32 %v139, %v148
    %v151 = vmul.f32 %v140, %v148
    %v152 = vmul.f32 %v141, %v148
    %v153 = vmul.f32 %v142, %v148
    %v154 = vld [vmem:[#allocation8] sm:$0x1]
    %v156 = vlaneseq
    %v157 = vshrl.u32 %v156, 7
    %v158 = vsub.s32 0, %v157
    %v159 = vrot.slane %v154, %v158
    %v161 = vadd.f32 %v150, %v159
    %v162 = vadd.f32 %v151, %v159
    %v163 = vadd.f32 %v152, %v159
    %v164 = vadd.f32 %v153, %v159
    %v165 = vpack.c.bf16 %v162, %v161
    %v166 = vpack.c.bf16 %v164, %v163
    %v169 = vunpack.c.l.b16 %v165
    %v170 = vunpack.c.h.b16 %v165
    %v171 = vunpack.c.l.b16 %v166
    %v172 = vunpack.c.h.b16 %v166
    %v173 = vpack.c.b16 %v169, %v169
    %v174 = vpack.c.b16 %v170, %v170
    %v175 = vpack.c.b16 %v171, %v171
    %v176 = vpack.c.b16 %v172, %v172
    %vm181 = vcmask 125952
    %182 = vst.msk [vmem:[#allocation10] sm:$0xf] %vm181, %v173
    %183 = vst.msk [vmem:[#allocation10 + $0x4] sm:$0xf] %vm181, %v174
    %184 = vst.msk [vmem:[#allocation10 + $0x8] sm:$0xf] %vm181, %v175
    %185 = vst.msk [vmem:[#allocation10 + $0xc] sm:$0xf] %vm181, %v176
    // Predicated region
    $region34: #{_lambda_.35} parent=1 // pred_check
      _
    $region35: #{_lambda_.35} parent=1 // pred_check_branch
      %187 = sbr.rel (0) target = $region37
    $region36: #{_lambda_.35} parent=1 // pred_region
      %s189 = ssub.s32 256, 256
      %190 = vsyncadd [#allocation4], %s189
      %s191 = sshll.u32 [#allocation10], 4
      %s192 = int_to_ptr.vmem [resolvable:$true] %s191
      %197 = dma.vmem_to_hbm [thread:$0]  %s192, 256, %s4, [#allocation4], 64, 64, 4
    $region37: #{_lambda_.35} parent=1 // pred_fallthru
      _
    // Predicated region
    $region38: #{_lambda_.35} parent=1 // pred_check
      _
    $region39: #{_lambda_.35} parent=1 // pred_check_branch
      %199 = sbr.rel (0) target = $region41
    $region40: #{_lambda_.35} parent=1 // pred_region
      %200 = dma.done [#allocation4], 256
    $region41: #{_lambda_.35} parent=1 // pred_fallthru
      _
    %201 = vsyncpa [#allocation3], 1
    %202 = vsyncpa [#allocation6], 1
    %203 = vsyncpa [#allocation9], 1
    %204 = vsyncpa [#allocation4], 1

// kernel: _lambda_.36
$region0: #{_lambda_.36}
  #allocation0 [shape = 'u32[]', space=smem, size = 0x4, offset = 0x4, fixed_abs, tag = 'smem constant byte address 0x4 - core index']
  #allocation1 [shape = 'u32[144,128]{1,0:T(1,128)}', space=vmem, size = 0x12000, scoped, tag = 'internal scratch']
  %s0 = inlined_call_operand.hbm [shape: bf16[32,16], index: 0, kind: input, shape index: {}]
  %s1 = inlined_call_operand.hbm [shape: bf16[16,64], index: 1, kind: input, shape index: {}]
  %s2 = inlined_call_operand.hbm [shape: f32[1,64], index: 2, kind: input, shape index: {}]
  %s3 = inlined_call_operand.hbm [shape: bf16[64,16], index: 3, kind: input, shape index: {}]
  %s4 = inlined_call_operand.hbm [shape: f32[1,16], index: 4, kind: input, shape index: {}]
  %s5 = inlined_call_operand.hbm [shape: bf16[32,16], index: 5, kind: output, shape index: {}]
  %s6 = sld [smem:[#allocation0]]
  $region50: #{_lambda_.36} parent=0
    _
  %s8 = ssub.s32 1, %s6
  %s9 = scalar_select 0, %s8, %s6
  $region1: #{_lambda_.36} parent=0
    #allocation2 [shape = 'u8[8192]{0}', space=vmem, size = 0x2000, scoped, tag = 'input window, operand 0, single buffered']
    #allocation3 [shape = 's32[1]{0}', space=sflag, size = 0x4, scoped, tag = 'scoped memory for _lambda_.36']
    #allocation4 [shape = 's32[1]{0}', space=sflag, size = 0x4, scoped, tag = 'scoped memory for _lambda_.36']
    #allocation5 [shape = 'u8[4096]{0}', space=vmem, size = 0x1000, scoped, tag = 'input window, operand 1, single buffered']
    #allocation6 [shape = 's32[1]{0}', space=sflag, size = 0x4, scoped, tag = 'scoped memory for _lambda_.36']
    #allocation7 [shape = 'u8[512]{0}', space=vmem, size = 0x400, scoped, tag = 'input window, operand 2, single buffered']
    #allocation8 [shape = 'u8[16384]{0}', space=vmem, size = 0x4000, scoped, tag = 'input window, operand 3, single buffered']
    #allocation9 [shape = 's32[1]{0}', space=sflag, size = 0x4, scoped, tag = 'scoped memory for _lambda_.36']
    #allocation10 [shape = 'u8[512]{0}', space=vmem, size = 0x400, scoped, tag = 'input window, operand 4, single buffered']
    #allocation11 [shape = 'u8[8192]{0}', space=vmem, size = 0x2000, scoped, tag = 'output window, operand 0, single buffered']
    %10 = vsyncpa [#allocation3], 0
    %11 = vsyncpa [#allocation6], 0
    %12 = vsyncpa [#allocation9], 0
    %13 = vsyncpa [#allocation4], 0
    // Predicated region
    $region2: #{_lambda_.36} parent=1 // pred_check
      _
    $region3: #{_lambda_.36} parent=1 // pred_check_branch
      %15 = sbr.rel (0) target = $region5
    $region4: #{_lambda_.36} parent=1 // pred_region
      %s17 = ssub.s32 256, 256
      %18 = vsyncadd [#allocation3], %s17
      %s19 = sshll.u32 [#allocation2], 4
      %s20 = int_to_ptr.vmem [resolvable:$true] %s19
      %25 = dma.hbm_to_vmem [thread:$0]  %s0, 256, %s20, [#allocation3], 64, 64, 4
    $region5: #{_lambda_.36} parent=1 // pred_fallthru
      _
    // Predicated region
    $region6: #{_lambda_.36} parent=1 // pred_check
      _
    $region7: #{_lambda_.36} parent=1 // pred_check_branch
      %27 = sbr.rel (0) target = $region9
    $region8: #{_lambda_.36} parent=1 // pred_region
      %s29 = ssub.s32 128, 128
      %30 = vsyncadd [#allocation6], %s29
      %s31 = sshll.u32 [#allocation5], 4
      %s32 = int_to_ptr.vmem [resolvable:$true] %s31
      %37 = dma.hbm_to_vmem [thread:$0]  %s1, 128, %s32, [#allocation6], 64, 64, 4
    $region9: #{_lambda_.36} parent=1 // pred_fallthru
      _
    // Predicated region
    $region10: #{_lambda_.36} parent=1 // pred_check
      _
    $region11: #{_lambda_.36} parent=1 // pred_check_branch
      %39 = sbr.rel (0) target = $region13
    $region12: #{_lambda_.36} parent=1 // pred_region
      %s41 = ssub.s32 16, 16
      %42 = vsyncadd [#allocation6], %s41
      %s44 = sshll.u32 [#allocation7], 4
      %s45 = int_to_ptr.vmem [resolvable:$true] %s44
      %47 = dma.hbm_to_vmem [thread:$0]  %s2, 16, %s45, [#allocation6]
    $region13: #{_lambda_.36} parent=1 // pred_fallthru
      _
    // Predicated region
    $region14: #{_lambda_.36} parent=1 // pred_check
      _
    $region15: #{_lambda_.36} parent=1 // pred_check_branch
      %49 = sbr.rel (0) target = $region17
    $region16: #{_lambda_.36} parent=1 // pred_region
      %s51 = ssub.s32 512, 512
      %52 = vsyncadd [#allocation9], %s51
      %s53 = sshll.u32 [#allocation8], 4
      %s54 = int_to_ptr.vmem [resolvable:$true] %s53
      %59 = dma.hbm_to_vmem [thread:$0]  %s3, 512, %s54, [#allocation9], 64, 64, 4
    $region17: #{_lambda_.36} parent=1 // pred_fallthru
      _
    // Predicated region
    $region18: #{_lambda_.36} parent=1 // pred_check
      _
    $region19: #{_lambda_.36} parent=1 // pred_check_branch
      %61 = sbr.rel (0) target = $region21
    $region20: #{_lambda_.36} parent=1 // pred_region
      %s63 = ssub.s32 16, 16
      %64 = vsyncadd [#allocation9], %s63
      %s66 = sshll.u32 [#allocation10], 4
      %s67 = int_to_ptr.vmem [resolvable:$true] %s66
      %69 = dma.hbm_to_vmem [thread:$0]  %s4, 16, %s67, [#allocation9]
    $region21: #{_lambda_.36} parent=1 // pred_fallthru
      _
    // Predicated region
    $region22: #{_lambda_.36} parent=1 // pred_check
      _
    $region23: #{_lambda_.36} parent=1 // pred_check_branch
      %71 = sbr.rel (0) target = $region25
    $region24: #{_lambda_.36} parent=1 // pred_region
      %72 = dma.done [#allocation3], 256
    $region25: #{_lambda_.36} parent=1 // pred_fallthru
      _
    // Predicated region
    $region26: #{_lambda_.36} parent=1 // pred_check
      _
    $region27: #{_lambda_.36} parent=1 // pred_check_branch
      %74 = sbr.rel (0) target = $region29
    $region28: #{_lambda_.36} parent=1 // pred_region
      %75 = dma.done [#allocation6], 128
    $region29: #{_lambda_.36} parent=1 // pred_fallthru
      _
    // Predicated region
    $region30: #{_lambda_.36} parent=1 // pred_check
      _
    $region31: #{_lambda_.36} parent=1 // pred_check_branch
      %77 = sbr.rel (0) target = $region33
    $region32: #{_lambda_.36} parent=1 // pred_region
      %78 = dma.done [#allocation6], 16
    $region33: #{_lambda_.36} parent=1 // pred_fallthru
      _
    // Predicated region
    $region34: #{_lambda_.36} parent=1 // pred_check
      _
    $region35: #{_lambda_.36} parent=1 // pred_check_branch
      %80 = sbr.rel (0) target = $region37
    $region36: #{_lambda_.36} parent=1 // pred_region
      %81 = dma.done [#allocation9], 512
    $region37: #{_lambda_.36} parent=1 // pred_fallthru
      _
    // Predicated region
    $region38: #{_lambda_.36} parent=1 // pred_check
      _
    $region39: #{_lambda_.36} parent=1 // pred_check_branch
      %83 = sbr.rel (0) target = $region41
    $region40: #{_lambda_.36} parent=1 // pred_region
      %84 = dma.done [#allocation9], 16
    $region41: #{_lambda_.36} parent=1 // pred_fallthru
      _
    %v86 = vld [vmem:[#allocation2] sm:$0xf]
    %v87 = vld [vmem:[#allocation2 + $0x4] sm:$0xf]
    %v88 = vld [vmem:[#allocation2 + $0x8] sm:$0xf]
    %v89 = vld [vmem:[#allocation2 + $0xc] sm:$0xf]
    %v90 = vld [vmem:[#allocation5] sm:$0xf]
    %v91 = vld [vmem:[#allocation5 + $0x4] sm:$0xf]
    %v92 = vld [vmem:[#allocation7] sm:$0x1]
    %v94 = vlaneseq
    %v95 = vshrl.u32 %v94, 7
    %v96 = vsub.s32 0, %v95
    %v97 = vrot.slane %v92, %v96
    %v103 = vunpack.c.l.b16 %v86
    %v104 = vunpack.c.l.b16 %v87
    %v105 = vunpack.c.l.b16 %v88
    %v106 = vunpack.c.l.b16 %v89
    %v107 = vpack.c.b16 %v104, %v103
    %v108 = vpack.c.b16 %v106, %v105
    %v111 = vunpack.c.l.b16 %v90
    %v112 = vunpack.c.l.b16 %v91
    %v113 = vpack.c.b16 %v112, %v111
    %vm115 = vcmask 130048
    %v117 = vsel %vm115, %v107, 0
    %v120 = vsel %vm115, %v108, 0
    %122 = vmatprep.subr.bf16.mxu0 0
    %123 = vmatpush1.bf16.msra.mxu0 %v113
    %124 = vmatprep.subr.bf16.mxu0 0
    %125 = vmatpush1.bf16.msra.mxu0 0
    %126 = vmatprep.subr.bf16.mxu0 0
    %127 = vmatpush1.bf16.msra.mxu0 0
    %128 = vmatprep.subr.bf16.mxu0 0
    %129 = vmatpush1.bf16.msra.mxu0 0
    %130 = vmatprep.subr.bf16.mxu0 0
    %131 = vmatpush1.bf16.msra.mxu0 0
    %132 = vmatprep.subr.bf16.mxu0 0
    %133 = vmatpush1.bf16.msra.mxu0 0
    %134 = vmatprep.subr.bf16.mxu0 0
    %135 = vmatpush1.bf16.msra.mxu0 0
    %136 = vmatprep.subr.bf16.mxu0 0
    %137 = vmatpush1.bf16.msra.mxu0 0
    %138 = vmatprep.subr.bf16.mxu0 0
    %139 = vmatpush1.bf16.msra.mxu0 0
    %140 = vmatprep.subr.bf16.mxu0 0
    %141 = vmatpush1.bf16.msra.mxu0 0
    %142 = vmatprep.subr.bf16.mxu0 0
    %143 = vmatpush1.bf16.msra.mxu0 0
    %144 = vmatprep.subr.bf16.mxu0 0
    %145 = vmatpush1.bf16.msra.mxu0 0
    %146 = vmatprep.subr.bf16.mxu0 0
    %147 = vmatpush1.bf16.msra.mxu0 0
    %148 = vmatprep.subr.bf16.mxu0 0
    %149 = vmatpush1.bf16.msra.mxu0 0
    %150 = vmatprep.subr.bf16.mxu0 0
    %151 = vmatpush1.bf16.msra.mxu0 0
    %152 = vmatprep.subr.bf16.mxu0 0
    %153 = vmatpush1.bf16.msra.mxu0 0
    %154 = vmatprep.mubr.bf16.mxu0 0
    %155 = vmatmul.mubr.bf16.gmra.mrb[0].mxu0 %v117
    %v156 = vpop.f32.mrb[0].mxu0
    %v157 = vadd.f32 %v97, %v156
    %v158 = vpop.f32.mrb[0].mxu0
    %v159 = vpop.f32.mrb[0].mxu0
    %v160 = vadd.f32 %v97, %v159
    %v161 = vpop.f32.mrb[0].mxu0
    %162 = vmatprep.mubr.bf16.mxu0 0
    %163 = vmatmul.mubr.bf16.gmra.mrb[0].mxu0 %v120
    %v164 = vpop.f32.mrb[0].mxu0
    %v165 = vadd.f32 %v97, %v164
    %v166 = vpop.f32.mrb[0].mxu0
    %v167 = vpop.f32.mrb[0].mxu0
    %v168 = vadd.f32 %v97, %v167
    %v169 = vpop.f32.mrb[0].mxu0
    %170 = vdwg.mxu0
    %v171 = vmul.f32 %v157, %v157
    %v172 = vmul.f32 %v160, %v160
    %v173 = vmul.f32 %v165, %v165
    %v174 = vmul.f32 %v168, %v168
    %v175 = vmul.f32 %v157, %v171
    %v176 = vmul.f32 %v160, %v172
    %v177 = vmul.f32 %v165, %v173
    %v178 = vmul.f32 %v168, %v174
    %v179 = vmul.f32 %v175, 0.044715
    %v180 = vmul.f32 %v176, 0.044715
    %v181 = vmul.f32 %v177, 0.044715
    %v182 = vmul.f32 %v178, 0.044715
    %v183 = vadd.f32 %v157, %v179
    %v184 = vadd.f32 %v160, %v180
    %v185 = vadd.f32 %v165, %v181
    %v186 = vadd.f32 %v168, %v182
    %v187 = vmul.f32 %v183, 0.7978846
    %v188 = vmul.f32 %v184, 0.7978846
    %v189 = vmul.f32 %v185, 0.7978846
    %v190 = vmul.f32 %v186, 0.7978846
    %v191 = vtanh.pop %v187
    %v192 = vtanh.pop %v188
    %v193 = vtanh.pop %v189
    %v194 = vtanh.pop %v190
    %v195 = vadd.f32 %v191, 1.0
    %v196 = vadd.f32 %v192, 1.0
    %v197 = vadd.f32 %v193, 1.0
    %v198 = vadd.f32 %v194, 1.0
    %v199 = vmul.f32 %v195, 0.5
    %v200 = vmul.f32 %v196, 0.5
    %v201 = vmul.f32 %v197, 0.5
    %v202 = vmul.f32 %v198, 0.5
    %v203 = vmul.f32 %v157, %v199
    %v204 = vmul.f32 %v160, %v200
    %v205 = vmul.f32 %v165, %v201
    %v206 = vmul.f32 %v168, %v202
    %v207 = vpack.c.bf16 %v204, %v203
    %v208 = vpack.c.bf16 %v206, %v205
    %v209 = vld [vmem:[#allocation8] sm:$0xf]
    %v210 = vld [vmem:[#allocation8 + $0x4] sm:$0xf]
    %v211 = vld [vmem:[#allocation8 + $0x8] sm:$0xf]
    %v212 = vld [vmem:[#allocation8 + $0xc] sm:$0xf]
    %v213 = vld [vmem:[#allocation8 + $0x10] sm:$0xf]
    %v214 = vld [vmem:[#allocation8 + $0x14] sm:$0xf]
    %v215 = vld [vmem:[#allocation8 + $0x18] sm:$0xf]
    %v216 = vld [vmem:[#allocation8 + $0x1c] sm:$0xf]
    %v217 = vld [vmem:[#allocation10] sm:$0x1]
    %v219 = vlaneseq
    %v220 = vshrl.u32 %v219, 7
    %v221 = vsub.s32 0, %v220
    %v222 = vrot.slane %v217, %v221
    %v232 = vunpack.c.l.b16 %v209
    %v233 = vunpack.c.l.b16 %v210
    %v234 = vunpack.c.l.b16 %v211
    %v235 = vunpack.c.l.b16 %v212
    %v236 = vunpack.c.l.b16 %v213
    %v237 = vunpack.c.l.b16 %v214
    %v238 = vunpack.c.l.b16 %v215
    %v239 = vunpack.c.l.b16 %v216
    %v240 = vpack.c.b16 %v233, %v232
    %v241 = vpack.c.b16 %v235, %v234
    %v242 = vpack.c.b16 %v237, %v236
    %v243 = vpack.c.b16 %v239, %v238
    %vm248 = vcmask 523264
    %v250 = vsel %vm248, %v207, 0
    %v253 = vsel %vm248, %v208, 0
    %255 = vmatprep.subr.bf16.mxu0 0
    %256 = vmatpush1.bf16.msra.mxu0 %v240
    %257 = vmatprep.subr.bf16.mxu0 0
    %258 = vmatpush1.bf16.msra.mxu0 %v241
    %259 = vmatprep.subr.bf16.mxu0 0
    %260 = vmatpush1.bf16.msra.mxu0 %v242
    %261 = vmatprep.subr.bf16.mxu0 0
    %262 = vmatpush1.bf16.msra.mxu0 %v243
    %263 = vmatprep.subr.bf16.mxu0 0
    %264 = vmatpush1.bf16.msra.mxu0 0
    %265 = vmatprep.subr.bf16.mxu0 0
    %266 = vmatpush1.bf16.msra.mxu0 0
    %267 = vmatprep.subr.bf16.mxu0 0
    %268 = vmatpush1.bf16.msra.mxu0 0
    %269 = vmatprep.subr.bf16.mxu0 0
    %270 = vmatpush1.bf16.msra.mxu0 0
    %271 = vmatprep.subr.bf16.mxu0 0
    %272 = vmatpush1.bf16.msra.mxu0 0
    %273 = vmatprep.subr.bf16.mxu0 0
    %274 = vmatpush1.bf16.msra.mxu0 0
    %275 = vmatprep.subr.bf16.mxu0 0
    %276 = vmatpush1.bf16.msra.mxu0 0
    %277 = vmatprep.subr.bf16.mxu0 0
    %278 = vmatpush1.bf16.msra.mxu0 0
    %279 = vmatprep.subr.bf16.mxu0 0
    %280 = vmatpush1.bf16.msra.mxu0 0
    %281 = vmatprep.subr.bf16.mxu0 0
    %282 = vmatpush1.bf16.msra.mxu0 0
    %283 = vmatprep.subr.bf16.mxu0 0
    %284 = vmatpush1.bf16.msra.mxu0 0
    %285 = vmatprep.subr.bf16.mxu0 0
    %286 = vmatpush1.bf16.msra.mxu0 0
    %287 = vmatprep.mubr.bf16.mxu0 0
    %288 = vmatmul.mubr.bf16.gmra.mrb[0].mxu0 %v250
    %v289 = vpop.f32.mrb[0].mxu0
    %v290 = vadd.f32 %v222, %v289
    %v291 = vpop.f32.mrb[0].mxu0
    %v292 = vpop.f32.mrb[0].mxu0
    %v293 = vadd.f32 %v222, %v292
    %v294 = vpop.f32.mrb[0].mxu0
    %295 = vmatprep.mubr.bf16.mxu0 0
    %296 = vmatmul.mubr.bf16.gmra.mrb[0].mxu0 %v253
    %v297 = vpop.f32.mrb[0].mxu0
    %v298 = vadd.f32 %v222, %v297
    %v299 = vpop.f32.mrb[0].mxu0
    %v300 = vpop.f32.mrb[0].mxu0
    %v301 = vadd.f32 %v222, %v300
    %v302 = vpop.f32.mrb[0].mxu0
    %303 = vdwg.mxu0
    %v304 = vpack.c.bf16 %v293, %v290
    %v305 = vpack.c.bf16 %v301, %v298
    %v308 = vunpack.c.l.b16 %v304
    %v309 = vunpack.c.h.b16 %v304
    %v310 = vunpack.c.l.b16 %v305
    %v311 = vunpack.c.h.b16 %v305
    %v312 = vpack.c.b16 %v308, %v308
    %v313 = vpack.c.b16 %v309, %v309
    %v314 = vpack.c.b16 %v310, %v310
    %v315 = vpack.c.b16 %v311, %v311
    %vm320 = vcmask 125952
    %321 = vst.msk [vmem:[#allocation11] sm:$0xf] %vm320, %v312
    %322 = vst.msk [vmem:[#allocation11 + $0x4] sm:$0xf] %vm320, %v313
    %323 = vst.msk [vmem:[#allocation11 + $0x8] sm:$0xf] %vm320, %v314
    %324 = vst.msk [vmem:[#allocation11 + $0xc] sm:$0xf] %vm320, %v315
    // Predicated region
    $region42: #{_lambda_.36} parent=1 // pred_check
      _
    $region43: #{_lambda_.36} parent=1 // pred_check_branch
      %326 = sbr.rel (0) target = $region45
    $region44: #{_lambda_.36} parent=1 // pred_region
      %s328 = ssub.s32 256, 256
      %329 = vsyncadd [#allocation4], %s328
      %s330 = sshll.u32 [#allocation11], 4
      %s331 = int_to_ptr.vmem [resolvable:$true] %s330
      %336 = dma.vmem_to_hbm [thread:$0]  %s331, 256, %s5, [#allocation4], 64, 64, 4
    $region45: #{_lambda_.36} parent=1 // pred_fallthru
      _
    // Predicated region
    $region46: #{_lambda_.36} parent=1 // pred_check
      _
    $region47: #{_lambda_.36} parent=1 // pred_check_branch
      %338 = sbr.rel (0) target = $region49
    $region48: #{_lambda_.36} parent=1 // pred_region
      %339 = dma.done [#allocation4], 256
    $region49: #{_lambda_.36} parent=1 // pred_fallthru
      _
    %340 = vsyncpa [#allocation3], 1
    %341 = vsyncpa [#allocation6], 1
    %342 = vsyncpa [#allocation9], 1
    %343 = vsyncpa [#allocation4], 1

// kernel: _lambda_.38
$region0: #{_lambda_.38}
  #allocation0 [shape = 'u32[]', space=smem, size = 0x4, offset = 0x4, fixed_abs, tag = 'smem constant byte address 0x4 - core index']
  #allocation1 [shape = 'u32[144,128]{1,0:T(1,128)}', space=vmem, size = 0x12000, scoped, tag = 'internal scratch']
  %s0 = inlined_call_operand.hbm [shape: bf16[16,32], index: 0, kind: input, shape index: {}]
  %s1 = inlined_call_operand.hbm [shape: bf16[32,32], index: 1, kind: input, shape index: {}]
  %s2 = inlined_call_operand.hbm [shape: f32[1,32], index: 2, kind: input, shape index: {}]
  %s3 = inlined_call_operand.hbm [shape: bf16[16,32], index: 3, kind: output, shape index: {}]
  %s4 = sld [smem:[#allocation0]]
  $region34: #{_lambda_.38} parent=0
    _
  %s6 = ssub.s32 1, %s4
  %s7 = scalar_select 0, %s6, %s4
  $region1: #{_lambda_.38} parent=0
    #allocation2 [shape = 'u8[4096]{0}', space=vmem, size = 0x1000, scoped, tag = 'input window, operand 0, single buffered']
    #allocation3 [shape = 's32[1]{0}', space=sflag, size = 0x4, scoped, tag = 'scoped memory for _lambda_.38']
    #allocation4 [shape = 's32[1]{0}', space=sflag, size = 0x4, scoped, tag = 'scoped memory for _lambda_.38']
    #allocation5 [shape = 'u8[8192]{0}', space=vmem, size = 0x2000, scoped, tag = 'input window, operand 1, single buffered']
    #allocation6 [shape = 's32[1]{0}', space=sflag, size = 0x4, scoped, tag = 'scoped memory for _lambda_.38']
    #allocation7 [shape = 'u8[512]{0}', space=vmem, size = 0x400, scoped, tag = 'input window, operand 2, single buffered']
    #allocation8 [shape = 'u8[4096]{0}', space=vmem, size = 0x1000, scoped, tag = 'output window, operand 0, single buffered']
    %8 = vsyncpa [#allocation3], 0
    %9 = vsyncpa [#allocation6], 0
    %10 = vsyncpa [#allocation4], 0
    // Predicated region
    $region2: #{_lambda_.38} parent=1 // pred_check
      _
    $region3: #{_lambda_.38} parent=1 // pred_check_branch
      %12 = sbr.rel (0) target = $region5
    $region4: #{_lambda_.38} parent=1 // pred_region
      %s14 = ssub.s32 128, 128
      %15 = vsyncadd [#allocation3], %s14
      %s16 = sshll.u32 [#allocation2], 4
      %s17 = int_to_ptr.vmem [resolvable:$true] %s16
      %22 = dma.hbm_to_vmem [thread:$0]  %s0, 128, %s17, [#allocation3], 64, 64, 4
    $region5: #{_lambda_.38} parent=1 // pred_fallthru
      _
    // Predicated region
    $region6: #{_lambda_.38} parent=1 // pred_check
      _
    $region7: #{_lambda_.38} parent=1 // pred_check_branch
      %24 = sbr.rel (0) target = $region9
    $region8: #{_lambda_.38} parent=1 // pred_region
      %s26 = ssub.s32 256, 256
      %27 = vsyncadd [#allocation6], %s26
      %s28 = sshll.u32 [#allocation5], 4
      %s29 = int_to_ptr.vmem [resolvable:$true] %s28
      %34 = dma.hbm_to_vmem [thread:$0]  %s1, 256, %s29, [#allocation6], 64, 64, 4
    $region9: #{_lambda_.38} parent=1 // pred_fallthru
      _
    // Predicated region
    $region10: #{_lambda_.38} parent=1 // pred_check
      _
    $region11: #{_lambda_.38} parent=1 // pred_check_branch
      %36 = sbr.rel (0) target = $region13
    $region12: #{_lambda_.38} parent=1 // pred_region
      %s38 = ssub.s32 16, 16
      %39 = vsyncadd [#allocation6], %s38
      %s41 = sshll.u32 [#allocation7], 4
      %s42 = int_to_ptr.vmem [resolvable:$true] %s41
      %44 = dma.hbm_to_vmem [thread:$0]  %s2, 16, %s42, [#allocation6]
    $region13: #{_lambda_.38} parent=1 // pred_fallthru
      _
    // Predicated region
    $region14: #{_lambda_.38} parent=1 // pred_check
      _
    $region15: #{_lambda_.38} parent=1 // pred_check_branch
      %46 = sbr.rel (0) target = $region17
    $region16: #{_lambda_.38} parent=1 // pred_region
      %47 = dma.done [#allocation3], 128
    $region17: #{_lambda_.38} parent=1 // pred_fallthru
      _
    // Predicated region
    $region18: #{_lambda_.38} parent=1 // pred_check
      _
    $region19: #{_lambda_.38} parent=1 // pred_check_branch
      %49 = sbr.rel (0) target = $region21
    $region20: #{_lambda_.38} parent=1 // pred_region
      %50 = dma.done [#allocation6], 256
    $region21: #{_lambda_.38} parent=1 // pred_fallthru
      _
    // Predicated region
    $region22: #{_lambda_.38} parent=1 // pred_check
      _
    $region23: #{_lambda_.38} parent=1 // pred_check_branch
      %52 = sbr.rel (0) target = $region25
    $region24: #{_lambda_.38} parent=1 // pred_region
      %53 = dma.done [#allocation6], 16
    $region25: #{_lambda_.38} parent=1 // pred_fallthru
      _
    %v55 = vld [vmem:[#allocation2] sm:$0xf]
    %v56 = vld [vmem:[#allocation2 + $0x4] sm:$0xf]
    %v57 = vld [vmem:[#allocation5] sm:$0xf]
    %v58 = vld [vmem:[#allocation5 + $0x4] sm:$0xf]
    %v59 = vld [vmem:[#allocation5 + $0x8] sm:$0xf]
    %v60 = vld [vmem:[#allocation5 + $0xc] sm:$0xf]
    %v61 = vld [vmem:[#allocation7] sm:$0x1]
    %v63 = vlaneseq
    %v64 = vshrl.u32 %v63, 7
    %v65 = vsub.s32 0, %v64
    %v66 = vrot.slane %v61, %v65
    %v70 = vunpack.c.l.b16 %v55
    %v71 = vunpack.c.l.b16 %v56
    %v72 = vpack.c.b16 %v71, %v70
    %v77 = vunpack.c.l.b16 %v57
    %v78 = vunpack.c.l.b16 %v58
    %v79 = vunpack.c.l.b16 %v59
    %v80 = vunpack.c.l.b16 %v60
    %v81 = vpack.c.b16 %v78, %v77
    %v82 = vpack.c.b16 %v80, %v79
    %vm85 = vcmask 261120
    %v87 = vsel %vm85, %v72, 0
    %89 = vmatprep.subr.bf16.mxu0 0
    %90 = vmatpush1.bf16.msra.mxu0 %v81
    %91 = vmatprep.subr.bf16.mxu0 0
    %92 = vmatpush1.bf16.msra.mxu0 %v82
    %93 = vmatprep.subr.bf16.mxu0 0
    %94 = vmatpush1.bf16.msra.mxu0 0
    %95 = vmatprep.subr.bf16.mxu0 0
    %96 = vmatpush1.bf16.msra.mxu0 0
    %97 = vmatprep.subr.bf16.mxu0 0
    %98 = vmatpush1.bf16.msra.mxu0 0
    %99 = vmatprep.subr.bf16.mxu0 0
    %100 = vmatpush1.bf16.msra.mxu0 0
    %101 = vmatprep.subr.bf16.mxu0 0
    %102 = vmatpush1.bf16.msra.mxu0 0
    %103 = vmatprep.subr.bf16.mxu0 0
    %104 = vmatpush1.bf16.msra.mxu0 0
    %105 = vmatprep.subr.bf16.mxu0 0
    %106 = vmatpush1.bf16.msra.mxu0 0
    %107 = vmatprep.subr.bf16.mxu0 0
    %108 = vmatpush1.bf16.msra.mxu0 0
    %109 = vmatprep.subr.bf16.mxu0 0
    %110 = vmatpush1.bf16.msra.mxu0 0
    %111 = vmatprep.subr.bf16.mxu0 0
    %112 = vmatpush1.bf16.msra.mxu0 0
    %113 = vmatprep.subr.bf16.mxu0 0
    %114 = vmatpush1.bf16.msra.mxu0 0
    %115 = vmatprep.subr.bf16.mxu0 0
    %116 = vmatpush1.bf16.msra.mxu0 0
    %117 = vmatprep.subr.bf16.mxu0 0
    %118 = vmatpush1.bf16.msra.mxu0 0
    %119 = vmatprep.subr.bf16.mxu0 0
    %120 = vmatpush1.bf16.msra.mxu0 0
    %121 = vmatprep.mubr.bf16.mxu0 0
    %122 = vmatmul.mubr.bf16.gmra.mrb[0].mxu0 %v87
    %v123 = vpop.f32.mrb[0].mxu0
    %v124 = vadd.f32 %v66, %v123
    %v125 = vpop.f32.mrb[0].mxu0
    %v126 = vpop.f32.mrb[0].mxu0
    %v127 = vadd.f32 %v66, %v126
    %v128 = vpop.f32.mrb[0].mxu0
    %129 = vdwg.mxu0
    %v130 = vpack.c.bf16 %v127, %v124
    %v132 = vunpack.c.l.b16 %v130
    %v133 = vunpack.c.h.b16 %v130
    %v134 = vpack.c.b16 %v132, %v132
    %v135 = vpack.c.b16 %v133, %v133
    %vm138 = vcmask 257024
    %139 = vst.msk [vmem:[#allocation8] sm:$0xf] %vm138, %v134
    %140 = vst.msk [vmem:[#allocation8 + $0x4] sm:$0xf] %vm138, %v135
    // Predicated region
    $region26: #{_lambda_.38} parent=1 // pred_check
      _
    $region27: #{_lambda_.38} parent=1 // pred_check_branch
      %142 = sbr.rel (0) target = $region29
    $region28: #{_lambda_.38} parent=1 // pred_region
      %s144 = ssub.s32 128, 128
      %145 = vsyncadd [#allocation4], %s144
      %s146 = sshll.u32 [#allocation8], 4
      %s147 = int_to_ptr.vmem [resolvable:$true] %s146
      %152 = dma.vmem_to_hbm [thread:$0]  %s147, 128, %s3, [#allocation4], 64, 64, 4
    $region29: #{_lambda_.38} parent=1 // pred_fallthru
      _
    // Predicated region
    $region30: #{_lambda_.38} parent=1 // pred_check
      _
    $region31: #{_lambda_.38} parent=1 // pred_check_branch
      %154 = sbr.rel (0) target = $region33
    $region32: #{_lambda_.38} parent=1 // pred_region
      %155 = dma.done [#allocation4], 128
    $region33: #{_lambda_.38} parent=1 // pred_fallthru
      _
    %156 = vsyncpa [#allocation3], 1
    %157 = vsyncpa [#allocation6], 1
    %158 = vsyncpa [#allocation4], 1

// kernel: _lambda_.39
$region0: #{_lambda_.39}
  #allocation0 [shape = 'u32[]', space=smem, size = 0x4, offset = 0x4, fixed_abs, tag = 'smem constant byte address 0x4 - core index']
  #allocation1 [shape = 'u32[144,128]{1,0:T(1,128)}', space=vmem, size = 0x12000, scoped, tag = 'internal scratch']
  %s0 = inlined_call_operand.hbm [shape: bf16[16,32], index: 0, kind: input, shape index: {}]
  %s1 = inlined_call_operand.hbm [shape: bf16[32,96], index: 1, kind: input, shape index: {}]
  %s2 = inlined_call_operand.hbm [shape: f32[1,96], index: 2, kind: input, shape index: {}]
  %s3 = inlined_call_operand.hbm [shape: bf16[16,96], index: 3, kind: output, shape index: {}]
  %s4 = sld [smem:[#allocation0]]
  $region34: #{_lambda_.39} parent=0
    _
  %s6 = ssub.s32 1, %s4
  %s7 = scalar_select 0, %s6, %s4
  $region1: #{_lambda_.39} parent=0
    #allocation2 [shape = 'u8[4096]{0}', space=vmem, size = 0x1000, scoped, tag = 'input window, operand 0, single buffered']
    #allocation3 [shape = 's32[1]{0}', space=sflag, size = 0x4, scoped, tag = 'scoped memory for _lambda_.39']
    #allocation4 [shape = 's32[1]{0}', space=sflag, size = 0x4, scoped, tag = 'scoped memory for _lambda_.39']
    #allocation5 [shape = 'u8[8192]{0}', space=vmem, size = 0x2000, scoped, tag = 'input window, operand 1, single buffered']
    #allocation6 [shape = 's32[1]{0}', space=sflag, size = 0x4, scoped, tag = 'scoped memory for _lambda_.39']
    #allocation7 [shape = 'u8[512]{0}', space=vmem, size = 0x400, scoped, tag = 'input window, operand 2, single buffered']
    #allocation8 [shape = 'u8[4096]{0}', space=vmem, size = 0x1000, scoped, tag = 'output window, operand 0, single buffered']
    %8 = vsyncpa [#allocation3], 0
    %9 = vsyncpa [#allocation6], 0
    %10 = vsyncpa [#allocation4], 0
    // Predicated region
    $region2: #{_lambda_.39} parent=1 // pred_check
      _
    $region3: #{_lambda_.39} parent=1 // pred_check_branch
      %12 = sbr.rel (0) target = $region5
    $region4: #{_lambda_.39} parent=1 // pred_region
      %s14 = ssub.s32 128, 128
      %15 = vsyncadd [#allocation3], %s14
      %s16 = sshll.u32 [#allocation2], 4
      %s17 = int_to_ptr.vmem [resolvable:$true] %s16
      %22 = dma.hbm_to_vmem [thread:$0]  %s0, 128, %s17, [#allocation3], 64, 64, 4
    $region5: #{_lambda_.39} parent=1 // pred_fallthru
      _
    // Predicated region
    $region6: #{_lambda_.39} parent=1 // pred_check
      _
    $region7: #{_lambda_.39} parent=1 // pred_check_branch
      %24 = sbr.rel (0) target = $region9
    $region8: #{_lambda_.39} parent=1 // pred_region
      %s26 = ssub.s32 256, 256
      %27 = vsyncadd [#allocation6], %s26
      %s28 = sshll.u32 [#allocation5], 4
      %s29 = int_to_ptr.vmem [resolvable:$true] %s28
      %34 = dma.hbm_to_vmem [thread:$0]  %s1, 256, %s29, [#allocation6], 64, 64, 4
    $region9: #{_lambda_.39} parent=1 // pred_fallthru
      _
    // Predicated region
    $region10: #{_lambda_.39} parent=1 // pred_check
      _
    $region11: #{_lambda_.39} parent=1 // pred_check_branch
      %36 = sbr.rel (0) target = $region13
    $region12: #{_lambda_.39} parent=1 // pred_region
      %s38 = ssub.s32 16, 16
      %39 = vsyncadd [#allocation6], %s38
      %s41 = sshll.u32 [#allocation7], 4
      %s42 = int_to_ptr.vmem [resolvable:$true] %s41
      %44 = dma.hbm_to_vmem [thread:$0]  %s2, 16, %s42, [#allocation6]
    $region13: #{_lambda_.39} parent=1 // pred_fallthru
      _
    // Predicated region
    $region14: #{_lambda_.39} parent=1 // pred_check
      _
    $region15: #{_lambda_.39} parent=1 // pred_check_branch
      %46 = sbr.rel (0) target = $region17
    $region16: #{_lambda_.39} parent=1 // pred_region
      %47 = dma.done [#allocation3], 128
    $region17: #{_lambda_.39} parent=1 // pred_fallthru
      _
    // Predicated region
    $region18: #{_lambda_.39} parent=1 // pred_check
      _
    $region19: #{_lambda_.39} parent=1 // pred_check_branch
      %49 = sbr.rel (0) target = $region21
    $region20: #{_lambda_.39} parent=1 // pred_region
      %50 = dma.done [#allocation6], 256
    $region21: #{_lambda_.39} parent=1 // pred_fallthru
      _
    // Predicated region
    $region22: #{_lambda_.39} parent=1 // pred_check
      _
    $region23: #{_lambda_.39} parent=1 // pred_check_branch
      %52 = sbr.rel (0) target = $region25
    $region24: #{_lambda_.39} parent=1 // pred_region
      %53 = dma.done [#allocation6], 16
    $region25: #{_lambda_.39} parent=1 // pred_fallthru
      _
    %v55 = vld [vmem:[#allocation2] sm:$0xf]
    %v56 = vld [vmem:[#allocation2 + $0x4] sm:$0xf]
    %v57 = vld [vmem:[#allocation5] sm:$0xf]
    %v58 = vld [vmem:[#allocation5 + $0x4] sm:$0xf]
    %v59 = vld [vmem:[#allocation5 + $0x8] sm:$0xf]
    %v60 = vld [vmem:[#allocation5 + $0xc] sm:$0xf]
    %v61 = vld [vmem:[#allocation7] sm:$0x1]
    %v63 = vlaneseq
    %v64 = vshrl.u32 %v63, 7
    %v65 = vsub.s32 0, %v64
    %v66 = vrot.slane %v61, %v65
    %v70 = vunpack.c.l.b16 %v55
    %v71 = vunpack.c.l.b16 %v56
    %v72 = vpack.c.b16 %v71, %v70
    %v77 = vunpack.c.l.b16 %v57
    %v78 = vunpack.c.l.b16 %v58
    %v79 = vunpack.c.l.b16 %v59
    %v80 = vunpack.c.l.b16 %v60
    %v81 = vpack.c.b16 %v78, %v77
    %v82 = vpack.c.b16 %v80, %v79
    %vm85 = vcmask 261120
    %v87 = vsel %vm85, %v72, 0
    %89 = vmatprep.subr.bf16.mxu0 0
    %90 = vmatpush1.bf16.msra.mxu0 %v81
    %91 = vmatprep.subr.bf16.mxu0 0
    %92 = vmatpush1.bf16.msra.mxu0 %v82
    %93 = vmatprep.subr.bf16.mxu0 0
    %94 = vmatpush1.bf16.msra.mxu0 0
    %95 = vmatprep.subr.bf16.mxu0 0
    %96 = vmatpush1.bf16.msra.mxu0 0
    %97 = vmatprep.subr.bf16.mxu0 0
    %98 = vmatpush1.bf16.msra.mxu0 0
    %99 = vmatprep.subr.bf16.mxu0 0
    %100 = vmatpush1.bf16.msra.mxu0 0
    %101 = vmatprep.subr.bf16.mxu0 0
    %102 = vmatpush1.bf16.msra.mxu0 0
    %103 = vmatprep.subr.bf16.mxu0 0
    %104 = vmatpush1.bf16.msra.mxu0 0
    %105 = vmatprep.subr.bf16.mxu0 0
    %106 = vmatpush1.bf16.msra.mxu0 0
    %107 = vmatprep.subr.bf16.mxu0 0
    %108 = vmatpush1.bf16.msra.mxu0 0
    %109 = vmatprep.subr.bf16.mxu0 0
    %110 = vmatpush1.bf16.msra.mxu0 0
    %111 = vmatprep.subr.bf16.mxu0 0
    %112 = vmatpush1.bf16.msra.mxu0 0
    %113 = vmatprep.subr.bf16.mxu0 0
    %114 = vmatpush1.bf16.msra.mxu0 0
    %115 = vmatprep.subr.bf16.mxu0 0
    %116 = vmatpush1.bf16.msra.mxu0 0
    %117 = vmatprep.subr.bf16.mxu0 0
    %118 = vmatpush1.bf16.msra.mxu0 0
    %119 = vmatprep.subr.bf16.mxu0 0
    %120 = vmatpush1.bf16.msra.mxu0 0
    %121 = vmatprep.mubr.bf16.mxu0 0
    %122 = vmatmul.mubr.bf16.gmra.mrb[0].mxu0 %v87
    %v123 = vpop.f32.mrb[0].mxu0
    %v124 = vadd.f32 %v66, %v123
    %v125 = vpop.f32.mrb[0].mxu0
    %v126 = vpop.f32.mrb[0].mxu0
    %v127 = vadd.f32 %v66, %v126
    %v128 = vpop.f32.mrb[0].mxu0
    %129 = vdwg.mxu0
    %v130 = vpack.c.bf16 %v127, %v124
    %v132 = vunpack.c.l.b16 %v130
    %v133 = vunpack.c.h.b16 %v130
    %v134 = vpack.c.b16 %v132, %v132
    %v135 = vpack.c.b16 %v133, %v133
    %vm138 = vcmask 781312
    %139 = vst.msk [vmem:[#allocation8] sm:$0xf] %vm138, %v134
    %140 = vst.msk [vmem:[#allocation8 + $0x4] sm:$0xf] %vm138, %v135
    // Predicated region
    $region26: #{_lambda_.39} parent=1 // pred_check
      _
    $region27: #{_lambda_.39} parent=1 // pred_check_branch
      %142 = sbr.rel (0) target = $region29
    $region28: #{_lambda_.39} parent=1 // pred_region
      %s144 = ssub.s32 128, 128
      %145 = vsyncadd [#allocation4], %s144
      %s146 = sshll.u32 [#allocation8], 4
      %s147 = int_to_ptr.vmem [resolvable:$true] %s146
      %152 = dma.vmem_to_hbm [thread:$0]  %s147, 128, %s3, [#allocation4], 64, 64, 4
    $region29: #{_lambda_.39} parent=1 // pred_fallthru
      _
    // Predicated region
    $region30: #{_lambda_.39} parent=1 // pred_check
      _
    $region31: #{_lambda_.39} parent=1 // pred_check_branch
      %154 = sbr.rel (0) target = $region33
    $region32: #{_lambda_.39} parent=1 // pred_region
      %155 = dma.done [#allocation4], 128
    $region33: #{_lambda_.39} parent=1 // pred_fallthru
      _
    %156 = vsyncpa [#allocation3], 1
    %157 = vsyncpa [#allocation6], 1
    %158 = vsyncpa [#allocation4], 1

// kernel: _lambda_.33
$region0: #{_lambda_.33}
  #allocation0 [shape = 'u32[]', space=smem, size = 0x4, offset = 0x4, fixed_abs, tag = 'smem constant byte address 0x4 - core index']
  #allocation1 [shape = 'u32[144,128]{1,0:T(1,128)}', space=vmem, size = 0x12000, scoped, tag = 'internal scratch']
  #allocation2 [shape = 'f32[16,4,1]{2,1,0:T(4,128)}', space=vmem, size = 0x8000, scoped, tag = 'scratch operand']
  #allocation3 [shape = 'f32[16,4,1]{2,1,0:T(4,128)}', space=vmem, size = 0x8000, scoped, tag = 'scratch operand']
  #allocation4 [shape = 'f32[16,4,8]{2,1,0:T(4,128)}', space=vmem, size = 0x8000, scoped, tag = 'scratch operand']
  %s0 = inlined_call_operand.hbm [shape: bf16[16,4,8], index: 0, kind: input, shape index: {}]
  %s1 = inlined_call_operand.hbm [shape: bf16[16,4,8], index: 1, kind: input, shape index: {}]
  %s2 = inlined_call_operand.hbm [shape: bf16[16,4,8], index: 2, kind: input, shape index: {}]
  %s3 = inlined_call_operand.hbm [shape: bf16[16,4,8], index: 3, kind: output, shape index: {}]
  %s4 = sld [smem:[#allocation0]]
  $region42: #{_lambda_.33} parent=0
    _
  %s6 = ssub.s32 1, %s4
  %s7 = scalar_select 0, %s6, %s4
  $region1: #{_lambda_.33} parent=0
    #allocation5 [shape = 'u8[16384]{0}', space=vmem, size = 0x4000, scoped, tag = 'input window, operand 0, single buffered']
    #allocation6 [shape = 's32[1]{0}', space=sflag, size = 0x4, scoped, tag = 'scoped memory for _lambda_.33']
    #allocation7 [shape = 's32[1]{0}', space=sflag, size = 0x4, scoped, tag = 'scoped memory for _lambda_.33']
    #allocation8 [shape = 'u8[16384]{0}', space=vmem, size = 0x4000, scoped, tag = 'input window, operand 1, single buffered']
    #allocation9 [shape = 's32[1]{0}', space=sflag, size = 0x4, scoped, tag = 'scoped memory for _lambda_.33']
    #allocation10 [shape = 'u8[16384]{0}', space=vmem, size = 0x4000, scoped, tag = 'input window, operand 2, single buffered']
    #allocation11 [shape = 'u8[16384]{0}', space=vmem, size = 0x4000, scoped, tag = 'output window, operand 0, single buffered']
    %8 = vsyncpa [#allocation6], 0
    %9 = vsyncpa [#allocation9], 0
    %10 = vsyncpa [#allocation7], 0
    // Predicated region
    $region2: #{_lambda_.33} parent=1 // pred_check
      _
    $region3: #{_lambda_.33} parent=1 // pred_check_branch
      %12 = sbr.rel (0) target = $region5
    $region4: #{_lambda_.33} parent=1 // pred_region
      %s14 = ssub.s32 512, 512
      %15 = vsyncadd [#allocation6], %s14
      %s16 = sshll.u32 [#allocation5], 4
      %s17 = int_to_ptr.vmem [resolvable:$true] %s16
      %22 = dma.hbm_to_vmem [thread:$0]  %s0, 512, %s17, [#allocation6], 32, 32, 2
    $region5: #{_lambda_.33} parent=1 // pred_fallthru
      _
    // Predicated region
    $region6: #{_lambda_.33} parent=1 // pred_check
      _
    $region7: #{_lambda_.33} parent=1 // pred_check_branch
      %24 = sbr.rel (0) target = $region9
    $region8: #{_lambda_.33} parent=1 // pred_region
      %s26 = ssub.s32 512, 512
      %27 = vsyncadd [#allocation9], %s26
      %s28 = sshll.u32 [#allocation8], 4
      %s29 = int_to_ptr.vmem [resolvable:$true] %s28
      %34 = dma.hbm_to_vmem [thread:$0]  %s1, 512, %s29, [#allocation9], 32, 32, 2
    $region9: #{_lambda_.33} parent=1 // pred_fallthru
      _
    // Predicated region
    $region10: #{_lambda_.33} parent=1 // pred_check
      _
    $region11: #{_lambda_.33} parent=1 // pred_check_branch
      %36 = sbr.rel (0) target = $region13
    $region12: #{_lambda_.33} parent=1 // pred_region
      %s38 = ssub.s32 512, 512
      %39 = vsyncadd [#allocation9], %s38
      %s40 = sshll.u32 [#allocation10], 4
      %s41 = int_to_ptr.vmem [resolvable:$true] %s40
      %46 = dma.hbm_to_vmem [thread:$0]  %s2, 512, %s41, [#allocation9], 32, 32, 2
    $region13: #{_lambda_.33} parent=1 // pred_fallthru
      _
    // Predicated region
    $region14: #{_lambda_.33} parent=1 // pred_check
      _
    $region15: #{_lambda_.33} parent=1 // pred_check_branch
      %48 = sbr.rel (0) target = $region17
    $region16: #{_lambda_.33} parent=1 // pred_region
      %49 = dma.done [#allocation6], 512
    $region17: #{_lambda_.33} parent=1 // pred_fallthru
      _
    // Predicated region
    $region18: #{_lambda_.33} parent=1 // pred_check
      _
    $region19: #{_lambda_.33} parent=1 // pred_check_branch
      %51 = sbr.rel (0) target = $region21
    $region20: #{_lambda_.33} parent=1 // pred_region
      %52 = dma.done [#allocation9], 512
    $region21: #{_lambda_.33} parent=1 // pred_fallthru
      _
    // Predicated region
    $region22: #{_lambda_.33} parent=1 // pred_check
      _
    $region23: #{_lambda_.33} parent=1 // pred_check_branch
      %54 = sbr.rel (0) target = $region25
    $region24: #{_lambda_.33} parent=1 // pred_region
      %55 = dma.done [#allocation9], 512
    $region25: #{_lambda_.33} parent=1 // pred_fallthru
      _
    %p58 = scmp.eq.s32.totalorder 0, 0
    // Predicated region
    $region26: #{_lambda_.33} parent=1 // pred_check
      %p59 = pneg %p58
    $region27: #{_lambda_.33} parent=1 // pred_check_branch
      %61 = sbr.rel (%p59) target = $region29
    $region28: #{_lambda_.33} parent=1 // pred_region
      %vm62 = vcmask 3072
      %63 = vst.msk [vmem:[#allocation2] sm:$0xf] %vm62, -inf
      %64 = vst.msk [vmem:[#allocation2 + $0x4] sm:$0xf] %vm62, -inf
      %65 = vst.msk [vmem:[#allocation2 + $0x8] sm:$0xf] %vm62, -inf
      %66 = vst.msk [vmem:[#allocation2 + $0xc] sm:$0xf] %vm62, -inf
      %67 = vst.msk [vmem:[#allocation2 + $0x10] sm:$0xf] %vm62, -inf
      %68 = vst.msk [vmem:[#allocation2 + $0x14] sm:$0xf] %vm62, -inf
      %69 = vst.msk [vmem:[#allocation2 + $0x18] sm:$0xf] %vm62, -inf
      %70 = vst.msk [vmem:[#allocation2 + $0x1c] sm:$0xf] %vm62, -inf
      %71 = vst.msk [vmem:[#allocation2 + $0x20] sm:$0xf] %vm62, -inf
      %72 = vst.msk [vmem:[#allocation2 + $0x24] sm:$0xf] %vm62, -inf
      %73 = vst.msk [vmem:[#allocation2 + $0x28] sm:$0xf] %vm62, -inf
      %74 = vst.msk [vmem:[#allocation2 + $0x2c] sm:$0xf] %vm62, -inf
      %75 = vst.msk [vmem:[#allocation2 + $0x30] sm:$0xf] %vm62, -inf
      %76 = vst.msk [vmem:[#allocation2 + $0x34] sm:$0xf] %vm62, -inf
      %77 = vst.msk [vmem:[#allocation2 + $0x38] sm:$0xf] %vm62, -inf
      %78 = vst.msk [vmem:[#allocation2 + $0x3c] sm:$0xf] %vm62, -inf
      %79 = vst.msk [vmem:[#allocation3] sm:$0xf] %vm62, 0.0
      %80 = vst.msk [vmem:[#allocation3 + $0x4] sm:$0xf] %vm62, 0.0
      %81 = vst.msk [vmem:[#allocation3 + $0x8] sm:$0xf] %vm62, 0.0
      %82 = vst.msk [vmem:[#allocation3 + $0xc] sm:$0xf] %vm62, 0.0
      %83 = vst.msk [vmem:[#allocation3 + $0x10] sm:$0xf] %vm62, 0.0
      %84 = vst.msk [vmem:[#allocation3 + $0x14] sm:$0xf] %vm62, 0.0
      %85 = vst.msk [vmem:[#allocation3 + $0x18] sm:$0xf] %vm62, 0.0
      %86 = vst.msk [vmem:[#allocation3 + $0x1c] sm:$0xf] %vm62, 0.0
      %87 = vst.msk [vmem:[#allocation3 + $0x20] sm:$0xf] %vm62, 0.0
      %88 = vst.msk [vmem:[#allocation3 + $0x24] sm:$0xf] %vm62, 0.0
      %89 = vst.msk [vmem:[#allocation3 + $0x28] sm:$0xf] %vm62, 0.0
      %90 = vst.msk [vmem:[#allocation3 + $0x2c] sm:$0xf] %vm62, 0.0
      %91 = vst.msk [vmem:[#allocation3 + $0x30] sm:$0xf] %vm62, 0.0
      %92 = vst.msk [vmem:[#allocation3 + $0x34] sm:$0xf] %vm62, 0.0
      %93 = vst.msk [vmem:[#allocation3 + $0x38] sm:$0xf] %vm62, 0.0
      %94 = vst.msk [vmem:[#allocation3 + $0x3c] sm:$0xf] %vm62, 0.0
      %vm95 = vcmask 60416
      %96 = vst.msk [vmem:[#allocation4] sm:$0xf] %vm95, 0.0
      %97 = vst.msk [vmem:[#allocation4 + $0x4] sm:$0xf] %vm95, 0.0
      %98 = vst.msk [vmem:[#allocation4 + $0x8] sm:$0xf] %vm95, 0.0
      %99 = vst.msk [vmem:[#allocation4 + $0xc] sm:$0xf] %vm95, 0.0
      %100 = vst.msk [vmem:[#allocation4 + $0x10] sm:$0xf] %vm95, 0.0
      %101 = vst.msk [vmem:[#allocation4 + $0x14] sm:$0xf] %vm95, 0.0
      %102 = vst.msk [vmem:[#allocation4 + $0x18] sm:$0xf] %vm95, 0.0
      %103 = vst.msk [vmem:[#allocation4 + $0x1c] sm:$0xf] %vm95, 0.0
      %104 = vst.msk [vmem:[#allocation4 + $0x20] sm:$0xf] %vm95, 0.0
      %105 = vst.msk [vmem:[#allocation4 + $0x24] sm:$0xf] %vm95, 0.0
      %106 = vst.msk [vmem:[#allocation4 + $0x28] sm:$0xf] %vm95, 0.0
      %107 = vst.msk [vmem:[#allocation4 + $0x2c] sm:$0xf] %vm95, 0.0
      %108 = vst.msk [vmem:[#allocation4 + $0x30] sm:$0xf] %vm95, 0.0
      %109 = vst.msk [vmem:[#allocation4 + $0x34] sm:$0xf] %vm95, 0.0
      %110 = vst.msk [vmem:[#allocation4 + $0x38] sm:$0xf] %vm95, 0.0
      %111 = vst.msk [vmem:[#allocation4 + $0x3c] sm:$0xf] %vm95, 0.0
    $region29: #{_lambda_.33} parent=1 // pred_fallthru
      _
    %v112 = vld [vmem:[#allocation5] sm:$0x3]
    %v113 = vld [vmem:[#allocation5 + $0x2] sm:$0x3]
    %v114 = vld [vmem:[#allocation5 + $0x4] sm:$0x3]
    %v115 = vld [vmem:[#allocation5 + $0x6] sm:$0x3]
    %v116 = vld [vmem:[#allocation5 + $0x8] sm:$0x3]
    %v117 = vld [vmem:[#allocation5 + $0xa] sm:$0x3]
    %v118 = vld [vmem:[#allocation5 + $0xc] sm:$0x3]
    %v119 = vld [vmem:[#allocation5 + $0xe] sm:$0x3]
    %v120 = vld [vmem:[#allocation5 + $0x10] sm:$0x3]
    %v121 = vld [vmem:[#allocation5 + $0x12] sm:$0x3]
    %v122 = vld [vmem:[#allocation5 + $0x14] sm:$0x3]
    %v123 = vld [vmem:[#allocation5 + $0x16] sm:$0x3]
    %v124 = vld [vmem:[#allocation5 + $0x18] sm:$0x3]
    %v125 = vld [vmem:[#allocation5 + $0x1a] sm:$0x3]
    %v126 = vld [vmem:[#allocation5 + $0x1c] sm:$0x3]
    %v127 = vld [vmem:[#allocation5 + $0x1e] sm:$0x3]
    %v128 = vmul.bf16 %v112, 1052065461
    %v129 = vmul.bf16 %v113, 1052065461
    %v130 = vmul.bf16 %v114, 1052065461
    %v131 = vmul.bf16 %v115, 1052065461
    %v132 = vmul.bf16 %v116, 1052065461
    %v133 = vmul.bf16 %v117, 1052065461
    %v134 = vmul.bf16 %v118, 1052065461
    %v135 = vmul.bf16 %v119, 1052065461
    %v136 = vmul.bf16 %v120, 1052065461
    %v137 = vmul.bf16 %v121, 1052065461
    %v138 = vmul.bf16 %v122, 1052065461
    %v139 = vmul.bf16 %v123, 1052065461
    %v140 = vmul.bf16 %v124, 1052065461
    %v141 = vmul.bf16 %v125, 1052065461
    %v142 = vmul.bf16 %v126, 1052065461
    %v143 = vmul.bf16 %v127, 1052065461
    %v144 = vld [vmem:[#allocation8] sm:$0x3]
    %v145 = vld [vmem:[#allocation8 + $0x2] sm:$0x3]
    %v146 = vld [vmem:[#allocation8 + $0x4] sm:$0x3]
    %v147 = vld [vmem:[#allocation8 + $0x6] sm:$0x3]
    %v148 = vld [vmem:[#allocation8 + $0x8] sm:$0x3]
    %v149 = vld [vmem:[#allocation8 + $0xa] sm:$0x3]
    %v150 = vld [vmem:[#allocation8 + $0xc] sm:$0x3]
    %v151 = vld [vmem:[#allocation8 + $0xe] sm:$0x3]
    %v152 = vld [vmem:[#allocation8 + $0x10] sm:$0x3]
    %v153 = vld [vmem:[#allocation8 + $0x12] sm:$0x3]
    %v154 = vld [vmem:[#allocation8 + $0x14] sm:$0x3]
    %v155 = vld [vmem:[#allocation8 + $0x16] sm:$0x3]
    %v156 = vld [vmem:[#allocation8 + $0x18] sm:$0x3]
    %v157 = vld [vmem:[#allocation8 + $0x1a] sm:$0x3]
    %v158 = vld [vmem:[#allocation8 + $0x1c] sm:$0x3]
    %v159 = vld [vmem:[#allocation8 + $0x1e] sm:$0x3]
    %vm160 = vcmask 64512
    %v162 = vsel %vm160, %v128, 0
    %v165 = vsel %vm160, %v144, 0
    %167 = vmatprep.subr.bf16.mxu0 0
    %168 = vmatpush1.bf16.xpose.msra.mxu0 %v165
    %169 = vmatprep.subr.bf16.mxu0 0
    %170 = vmatpush1.bf16.xpose.msra.mxu0 0
    %171 = vmatprep.subr.bf16.mxu0 0
    %172 = vmatpush1.bf16.xpose.msra.mxu0 0
    %173 = vmatprep.subr.bf16.mxu0 0
    %174 = vmatpush1.bf16.xpose.msra.mxu0 0
    %175 = vmatprep.subr.bf16.mxu0 0
    %176 = vmatpush1.bf16.xpose.msra.mxu0 0
    %177 = vmatprep.subr.bf16.mxu0 0
    %178 = vmatpush1.bf16.xpose.msra.mxu0 0
    %179 = vmatprep.subr.bf16.mxu0 0
    %180 = vmatpush1.bf16.xpose.msra.mxu0 0
    %181 = vmatprep.subr.bf16.mxu0 0
    %182 = vmatpush1.bf16.xpose.msra.mxu0 0
    %183 = vmatprep.subr.bf16.mxu0 0
    %184 = vmatpush1.bf16.xpose.msra.mxu0 0
    %185 = vmatprep.subr.bf16.mxu0 0
    %186 = vmatpush1.bf16.xpose.msra.mxu0 0
    %187 = vmatprep.subr.bf16.mxu0 0
    %188 = vmatpush1.bf16.xpose.msra.mxu0 0
    %189 = vmatprep.subr.bf16.mxu0 0
    %190 = vmatpush1.bf16.xpose.msra.mxu0 0
    %191 = vmatprep.subr.bf16.mxu0 0
    %192 = vmatpush1.bf16.xpose.msra.mxu0 0
    %193 = vmatprep.subr.bf16.mxu0 0
    %194 = vmatpush1.bf16.xpose.msra.mxu0 0
    %195 = vmatprep.subr.bf16.mxu0 0
    %196 = vmatpush1.bf16.xpose.msra.mxu0 0
    %197 = vmatprep.subr.bf16.mxu0 0
    %198 = vmatpush1.bf16.xpose.msra.mxu0 0
    %199 = vmatprep.mubr.bf16.mxu0 0
    %200 = vmatmul.mubr.bf16.gmra.mrb[0].mxu0 %v162
    %v201 = vpop.f32.mrb[0].mxu0
    %v202 = vadd.f32 0.0, %v201
    %v203 = vpop.f32.mrb[0].mxu0
    %v204 = vpop.f32.mrb[0].mxu0
    %v205 = vpop.f32.mrb[0].mxu0
    %206 = vdwg.mxu0
    %v208 = vsel %vm160, %v129, 0
    %v211 = vsel %vm160, %v145, 0
    %213 = vmatprep.subr.bf16.mxu0 0
    %214 = vmatpush1.bf16.xpose.msra.mxu0 %v211
    %215 = vmatprep.subr.bf16.mxu0 0
    %216 = vmatpush1.bf16.xpose.msra.mxu0 0
    %217 = vmatprep.subr.bf16.mxu0 0
    %218 = vmatpush1.bf16.xpose.msra.mxu0 0
    %219 = vmatprep.subr.bf16.mxu0 0
    %220 = vmatpush1.bf16.xpose.msra.mxu0 0
    %221 = vmatprep.subr.bf16.mxu0 0
    %222 = vmatpush1.bf16.xpose.msra.mxu0 0
    %223 = vmatprep.subr.bf16.mxu0 0
    %224 = vmatpush1.bf16.xpose.msra.mxu0 0
    %225 = vmatprep.subr.bf16.mxu0 0
    %226 = vmatpush1.bf16.xpose.msra.mxu0 0
    %227 = vmatprep.subr.bf16.mxu0 0
    %228 = vmatpush1.bf16.xpose.msra.mxu0 0
    %229 = vmatprep.subr.bf16.mxu0 0
    %230 = vmatpush1.bf16.xpose.msra.mxu0 0
    %231 = vmatprep.subr.bf16.mxu0 0
    %232 = vmatpush1.bf16.xpose.msra.mxu0 0
    %233 = vmatprep.subr.bf16.mxu0 0
    %234 = vmatpush1.bf16.xpose.msra.mxu0 0
    %235 = vmatprep.subr.bf16.mxu0 0
    %236 = vmatpush1.bf16.xpose.msra.mxu0 0
    %237 = vmatprep.subr.bf16.mxu0 0
    %238 = vmatpush1.bf16.xpose.msra.mxu0 0
    %239 = vmatprep.subr.bf16.mxu0 0
    %240 = vmatpush1.bf16.xpose.msra.mxu0 0
    %241 = vmatprep.subr.bf16.mxu0 0
    %242 = vmatpush1.bf16.xpose.msra.mxu0 0
    %243 = vmatprep.subr.bf16.mxu0 0
    %244 = vmatpush1.bf16.xpose.msra.mxu0 0
    %245 = vmatprep.mubr.bf16.mxu0 0
    %246 = vmatmul.mubr.bf16.gmra.mrb[0].mxu0 %v208
    %v247 = vpop.f32.mrb[0].mxu0
    %v248 = vadd.f32 0.0, %v247
    %v249 = vpop.f32.mrb[0].mxu0
    %v250 = vpop.f32.mrb[0].mxu0
    %v251 = vpop.f32.mrb[0].mxu0
    %252 = vdwg.mxu0
    %v254 = vsel %vm160, %v130, 0
    %v257 = vsel %vm160, %v146, 0
    %259 = vmatprep.subr.bf16.mxu0 0
    %260 = vmatpush1.bf16.xpose.msra.mxu0 %v257
    %261 = vmatprep.subr.bf16.mxu0 0
    %262 = vmatpush1.bf16.xpose.msra.mxu0 0
    %263 = vmatprep.subr.bf16.mxu0 0
    %264 = vmatpush1.bf16.xpose.msra.mxu0 0
    %265 = vmatprep.subr.bf16.mxu0 0
    %266 = vmatpush1.bf16.xpose.msra.mxu0 0
    %267 = vmatprep.subr.bf16.mxu0 0
    %268 = vmatpush1.bf16.xpose.msra.mxu0 0
    %269 = vmatprep.subr.bf16.mxu0 0
    %270 = vmatpush1.bf16.xpose.msra.mxu0 0
    %271 = vmatprep.subr.bf16.mxu0 0
    %272 = vmatpush1.bf16.xpose.msra.mxu0 0
    %273 = vmatprep.subr.bf16.mxu0 0
    %274 = vmatpush1.bf16.xpose.msra.mxu0 0
    %275 = vmatprep.subr.bf16.mxu0 0
    %276 = vmatpush1.bf16.xpose.msra.mxu0 0
    %277 = vmatprep.subr.bf16.mxu0 0
    %278 = vmatpush1.bf16.xpose.msra.mxu0 0
    %279 = vmatprep.subr.bf16.mxu0 0
    %280 = vmatpush1.bf16.xpose.msra.mxu0 0
    %281 = vmatprep.subr.bf16.mxu0 0
    %282 = vmatpush1.bf16.xpose.msra.mxu0 0
    %283 = vmatprep.subr.bf16.mxu0 0
    %284 = vmatpush1.bf16.xpose.msra.mxu0 0
    %285 = vmatprep.subr.bf16.mxu0 0
    %286 = vmatpush1.bf16.xpose.msra.mxu0 0
    %287 = vmatprep.subr.bf16.mxu0 0
    %288 = vmatpush1.bf16.xpose.msra.mxu0 0
    %289 = vmatprep.subr.bf16.mxu0 0
    %290 = vmatpush1.bf16.xpose.msra.mxu0 0
    %291 = vmatprep.mubr.bf16.mxu0 0
    %292 = vmatmul.mubr.bf16.gmra.mrb[0].mxu0 %v254
    %v293 = vpop.f32.mrb[0].mxu0
    %v294 = vadd.f32 0.0, %v293
    %v295 = vpop.f32.mrb[0].mxu0
    %v296 = vpop.f32.mrb[0].mxu0
    %v297 = vpop.f32.mrb[0].mxu0
    %298 = vdwg.mxu0
    %v300 = vsel %vm160, %v131, 0
    %v303 = vsel %vm160, %v147, 0
    %305 = vmatprep.subr.bf16.mxu0 0
    %306 = vmatpush1.bf16.xpose.msra.mxu0 %v303
    %307 = vmatprep.subr.bf16.mxu0 0
    %308 = vmatpush1.bf16.xpose.msra.mxu0 0
    %309 = vmatprep.subr.bf16.mxu0 0
    %310 = vmatpush1.bf16.xpose.msra.mxu0 0
    %311 = vmatprep.subr.bf16.mxu0 0
    %312 = vmatpush1.bf16.xpose.msra.mxu0 0
    %313 = vmatprep.subr.bf16.mxu0 0
    %314 = vmatpush1.bf16.xpose.msra.mxu0 0
    %315 = vmatprep.subr.bf16.mxu0 0
    %316 = vmatpush1.bf16.xpose.msra.mxu0 0
    %317 = vmatprep.subr.bf16.mxu0 0
    %318 = vmatpush1.bf16.xpose.msra.mxu0 0
    %319 = vmatprep.subr.bf16.mxu0 0
    %320 = vmatpush1.bf16.xpose.msra.mxu0 0
    %321 = vmatprep.subr.bf16.mxu0 0
    %322 = vmatpush1.bf16.xpose.msra.mxu0 0
    %323 = vmatprep.subr.bf16.mxu0 0
    %324 = vmatpush1.bf16.xpose.msra.mxu0 0
    %325 = vmatprep.subr.bf16.mxu0 0
    %326 = vmatpush1.bf16.xpose.msra.mxu0 0
    %327 = vmatprep.subr.bf16.mxu0 0
    %328 = vmatpush1.bf16.xpose.msra.mxu0 0
    %329 = vmatprep.subr.bf16.mxu0 0
    %330 = vmatpush1.bf16.xpose.msra.mxu0 0
    %331 = vmatprep.subr.bf16.mxu0 0
    %332 = vmatpush1.bf16.xpose.msra.mxu0 0
    %333 = vmatprep.subr.bf16.mxu0 0
    %334 = vmatpush1.bf16.xpose.msra.mxu0 0
    %335 = vmatprep.subr.bf16.mxu0 0
    %336 = vmatpush1.bf16.xpose.msra.mxu0 0
    %337 = vmatprep.mubr.bf16.mxu0 0
    %338 = vmatmul.mubr.bf16.gmra.mrb[0].mxu0 %v300
    %v339 = vpop.f32.mrb[0].mxu0
    %v340 = vadd.f32 0.0, %v339
    %v341 = vpop.f32.mrb[0].mxu0
    %v342 = vpop.f32.mrb[0].mxu0
    %v343 = vpop.f32.mrb[0].mxu0
    %344 = vdwg.mxu0
    %v346 = vsel %vm160, %v132, 0
    %v349 = vsel %vm160, %v148, 0
    %351 = vmatprep.subr.bf16.mxu0 0
    %352 = vmatpush1.bf16.xpose.msra.mxu0 %v349
    %353 = vmatprep.subr.bf16.mxu0 0
    %354 = vmatpush1.bf16.xpose.msra.mxu0 0
    %355 = vmatprep.subr.bf16.mxu0 0
    %356 = vmatpush1.bf16.xpose.msra.mxu0 0
    %357 = vmatprep.subr.bf16.mxu0 0
    %358 = vmatpush1.bf16.xpose.msra.mxu0 0
    %359 = vmatprep.subr.bf16.mxu0 0
    %360 = vmatpush1.bf16.xpose.msra.mxu0 0
    %361 = vmatprep.subr.bf16.mxu0 0
    %362 = vmatpush1.bf16.xpose.msra.mxu0 0
    %363 = vmatprep.subr.bf16.mxu0 0
    %364 = vmatpush1.bf16.xpose.msra.mxu0 0
    %365 = vmatprep.subr.bf16.mxu0 0
    %366 = vmatpush1.bf16.xpose.msra.mxu0 0
    %367 = vmatprep.subr.bf16.mxu0 0
    %368 = vmatpush1.bf16.xpose.msra.mxu0 0
    %369 = vmatprep.subr.bf16.mxu0 0
    %370 = vmatpush1.bf16.xpose.msra.mxu0 0
    %371 = vmatprep.subr.bf16.mxu0 0
    %372 = vmatpush1.bf16.xpose.msra.mxu0 0
    %373 = vmatprep.subr.bf16.mxu0 0
    %374 = vmatpush1.bf16.xpose.msra.mxu0 0
    %375 = vmatprep.subr.bf16.mxu0 0
    %376 = vmatpush1.bf16.xpose.msra.mxu0 0
    %377 = vmatprep.subr.bf16.mxu0 0
    %378 = vmatpush1.bf16.xpose.msra.mxu0 0
    %379 = vmatprep.subr.bf16.mxu0 0
    %380 = vmatpush1.bf16.xpose.msra.mxu0 0
    %381 = vmatprep.subr.bf16.mxu0 0
    %382 = vmatpush1.bf16.xpose.msra.mxu0 0
    %383 = vmatprep.mubr.bf16.mxu0 0
    %384 = vmatmul.mubr.bf16.gmra.mrb[0].mxu0 %v346
    %v385 = vpop.f32.mrb[0].mxu0
    %v386 = vadd.f32 0.0, %v385
    %v387 = vpop.f32.mrb[0].mxu0
    %v388 = vpop.f32.mrb[0].mxu0
    %v389 = vpop.f32.mrb[0].mxu0
    %390 = vdwg.mxu0
    %v392 = vsel %vm160, %v133, 0
    %v395 = vsel %vm160, %v149, 0
    %397 = vmatprep.subr.bf16.mxu0 0
    %398 = vmatpush1.bf16.xpose.msra.mxu0 %v395
    %399 = vmatprep.subr.bf16.mxu0 0
    %400 = vmatpush1.bf16.xpose.msra.mxu0 0
    %401 = vmatprep.subr.bf16.mxu0 0
    %402 = vmatpush1.bf16.xpose.msra.mxu0 0
    %403 = vmatprep.subr.bf16.mxu0 0
    %404 = vmatpush1.bf16.xpose.msra.mxu0 0
    %405 = vmatprep.subr.bf16.mxu0 0
    %406 = vmatpush1.bf16.xpose.msra.mxu0 0
    %407 = vmatprep.subr.bf16.mxu0 0
    %408 = vmatpush1.bf16.xpose.msra.mxu0 0
    %409 = vmatprep.subr.bf16.mxu0 0
    %410 = vmatpush1.bf16.xpose.msra.mxu0 0
    %411 = vmatprep.subr.bf16.mxu0 0
    %412 = vmatpush1.bf16.xpose.msra.mxu0 0
    %413 = vmatprep.subr.bf16.mxu0 0
    %414 = vmatpush1.bf16.xpose.msra.mxu0 0
    %415 = vmatprep.subr.bf16.mxu0 0
    %416 = vmatpush1.bf16.xpose.msra.mxu0 0
    %417 = vmatprep.subr.bf16.mxu0 0
    %418 = vmatpush1.bf16.xpose.msra.mxu0 0
    %419 = vmatprep.subr.bf16.mxu0 0
    %420 = vmatpush1.bf16.xpose.msra.mxu0 0
    %421 = vmatprep.subr.bf16.mxu0 0
    %422 = vmatpush1.bf16.xpose.msra.mxu0 0
    %423 = vmatprep.subr.bf16.mxu0 0
    %424 = vmatpush1.bf16.xpose.msra.mxu0 0
    %425 = vmatprep.subr.bf16.mxu0 0
    %426 = vmatpush1.bf16.xpose.msra.mxu0 0
    %427 = vmatprep.subr.bf16.mxu0 0
    %428 = vmatpush1.bf16.xpose.msra.mxu0 0
    %429 = vmatprep.mubr.bf16.mxu0 0
    %430 = vmatmul.mubr.bf16.gmra.mrb[0].mxu0 %v392
    %v431 = vpop.f32.mrb[0].mxu0
    %v432 = vadd.f32 0.0, %v431
    %v433 = vpop.f32.mrb[0].mxu0
    %v434 = vpop.f32.mrb[0].mxu0
    %v435 = vpop.f32.mrb[0].mxu0
    %436 = vdwg.mxu0
    %v438 = vsel %vm160, %v134, 0
    %v441 = vsel %vm160, %v150, 0
    %443 = vmatprep.subr.bf16.mxu0 0
    %444 = vmatpush1.bf16.xpose.msra.mxu0 %v441
    %445 = vmatprep.subr.bf16.mxu0 0
    %446 = vmatpush1.bf16.xpose.msra.mxu0 0
    %447 = vmatprep.subr.bf16.mxu0 0
    %448 = vmatpush1.bf16.xpose.msra.mxu0 0
    %449 = vmatprep.subr.bf16.mxu0 0
    %450 = vmatpush1.bf16.xpose.msra.mxu0 0
    %451 = vmatprep.subr.bf16.mxu0 0
    %452 = vmatpush1.bf16.xpose.msra.mxu0 0
    %453 = vmatprep.subr.bf16.mxu0 0
    %454 = vmatpush1.bf16.xpose.msra.mxu0 0
    %455 = vmatprep.subr.bf16.mxu0 0
    %456 = vmatpush1.bf16.xpose.msra.mxu0 0
    %457 = vmatprep.subr.bf16.mxu0 0
    %458 = vmatpush1.bf16.xpose.msra.mxu0 0
    %459 = vmatprep.subr.bf16.mxu0 0
    %460 = vmatpush1.bf16.xpose.msra.mxu0 0
    %461 = vmatprep.subr.bf16.mxu0 0
    %462 = vmatpush1.bf16.xpose.msra.mxu0 0
    %463 = vmatprep.subr.bf16.mxu0 0
    %464 = vmatpush1.bf16.xpose.msra.mxu0 0
    %465 = vmatprep.subr.bf16.mxu0 0
    %466 = vmatpush1.bf16.xpose.msra.mxu0 0
    %467 = vmatprep.subr.bf16.mxu0 0
    %468 = vmatpush1.bf16.xpose.msra.mxu0 0
    %469 = vmatprep.subr.bf16.mxu0 0
    %470 = vmatpush1.bf16.xpose.msra.mxu0 0
    %471 = vmatprep.subr.bf16.mxu0 0
    %472 = vmatpush1.bf16.xpose.msra.mxu0 0
    %473 = vmatprep.subr.bf16.mxu0 0
    %474 = vmatpush1.bf16.xpose.msra.mxu0 0
    %475 = vmatprep.mubr.bf16.mxu0 0
    %476 = vmatmul.mubr.bf16.gmra.mrb[0].mxu0 %v438
    %v477 = vpop.f32.mrb[0].mxu0
    %v478 = vadd.f32 0.0, %v477
    %v479 = vpop.f32.mrb[0].mxu0
    %v480 = vpop.f32.mrb[0].mxu0
    %v481 = vpop.f32.mrb[0].mxu0
    %482 = vdwg.mxu0
    %v484 = vsel %vm160, %v135, 0
    %v487 = vsel %vm160, %v151, 0
    %489 = vmatprep.subr.bf16.mxu0 0
    %490 = vmatpush1.bf16.xpose.msra.mxu0 %v487
    %491 = vmatprep.subr.bf16.mxu0 0
    %492 = vmatpush1.bf16.xpose.msra.mxu0 0
    %493 = vmatprep.subr.bf16.mxu0 0
    %494 = vmatpush1.bf16.xpose.msra.mxu0 0
    %495 = vmatprep.subr.bf16.mxu0 0
    %496 = vmatpush1.bf16.xpose.msra.mxu0 0
    %497 = vmatprep.subr.bf16.mxu0 0
    %498 = vmatpush1.bf16.xpose.msra.mxu0 0
    %499 = vmatprep.subr.bf16.mxu0 0
    %500 = vmatpush1.bf16.xpose.msra.mxu0 0
    %501 = vmatprep.subr.bf16.mxu0 0
    %502 = vmatpush1.bf16.xpose.msra.mxu0 0
    %503 = vmatprep.subr.bf16.mxu0 0
    %504 = vmatpush1.bf16.xpose.msra.mxu0 0
    %505 = vmatprep.subr.bf16.mxu0 0
    %506 = vmatpush1.bf16.xpose.msra.mxu0 0
    %507 = vmatprep.subr.bf16.mxu0 0
    %508 = vmatpush1.bf16.xpose.msra.mxu0 0
    %509 = vmatprep.subr.bf16.mxu0 0
    %510 = vmatpush1.bf16.xpose.msra.mxu0 0
    %511 = vmatprep.subr.bf16.mxu0 0
    %512 = vmatpush1.bf16.xpose.msra.mxu0 0
    %513 = vmatprep.subr.bf16.mxu0 0
    %514 = vmatpush1.bf16.xpose.msra.mxu0 0
    %515 = vmatprep.subr.bf16.mxu0 0
    %516 = vmatpush1.bf16.xpose.msra.mxu0 0
    %517 = vmatprep.subr.bf16.mxu0 0
    %518 = vmatpush1.bf16.xpose.msra.mxu0 0
    %519 = vmatprep.subr.bf16.mxu0 0
    %520 = vmatpush1.bf16.xpose.msra.mxu0 0
    %521 = vmatprep.mubr.bf16.mxu0 0
    %522 = vmatmul.mubr.bf16.gmra.mrb[0].mxu0 %v484
    %v523 = vpop.f32.mrb[0].mxu0
    %v524 = vadd.f32 0.0, %v523
    %v525 = vpop.f32.mrb[0].mxu0
    %v526 = vpop.f32.mrb[0].mxu0
    %v527 = vpop.f32.mrb[0].mxu0
    %528 = vdwg.mxu0
    %v530 = vsel %vm160, %v136, 0
    %v533 = vsel %vm160, %v152, 0
    %535 = vmatprep.subr.bf16.mxu0 0
    %536 = vmatpush1.bf16.xpose.msra.mxu0 %v533
    %537 = vmatprep.subr.bf16.mxu0 0
    %538 = vmatpush1.bf16.xpose.msra.mxu0 0
    %539 = vmatprep.subr.bf16.mxu0 0
    %540 = vmatpush1.bf16.xpose.msra.mxu0 0
    %541 = vmatprep.subr.bf16.mxu0 0
    %542 = vmatpush1.bf16.xpose.msra.mxu0 0
    %543 = vmatprep.subr.bf16.mxu0 0
    %544 = vmatpush1.bf16.xpose.msra.mxu0 0
    %545 = vmatprep.subr.bf16.mxu0 0
    %546 = vmatpush1.bf16.xpose.msra.mxu0 0
    %547 = vmatprep.subr.bf16.mxu0 0
    %548 = vmatpush1.bf16.xpose.msra.mxu0 0
    %549 = vmatprep.subr.bf16.mxu0 0
    %550 = vmatpush1.bf16.xpose.msra.mxu0 0
    %551 = vmatprep.subr.bf16.mxu0 0
    %552 = vmatpush1.bf16.xpose.msra.mxu0 0
    %553 = vmatprep.subr.bf16.mxu0 0
    %554 = vmatpush1.bf16.xpose.msra.mxu0 0
    %555 = vmatprep.subr.bf16.mxu0 0
    %556 = vmatpush1.bf16.xpose.msra.mxu0 0
    %557 = vmatprep.subr.bf16.mxu0 0
    %558 = vmatpush1.bf16.xpose.msra.mxu0 0
    %559 = vmatprep.subr.bf16.mxu0 0
    %560 = vmatpush1.bf16.xpose.msra.mxu0 0
    %561 = vmatprep.subr.bf16.mxu0 0
    %562 = vmatpush1.bf16.xpose.msra.mxu0 0
    %563 = vmatprep.subr.bf16.mxu0 0
    %564 = vmatpush1.bf16.xpose.msra.mxu0 0
    %565 = vmatprep.subr.bf16.mxu0 0
    %566 = vmatpush1.bf16.xpose.msra.mxu0 0
    %567 = vmatprep.mubr.bf16.mxu0 0
    %568 = vmatmul.mubr.bf16.gmra.mrb[0].mxu0 %v530
    %v569 = vpop.f32.mrb[0].mxu0
    %v570 = vadd.f32 0.0, %v569
    %v571 = vpop.f32.mrb[0].mxu0
    %v572 = vpop.f32.mrb[0].mxu0
    %v573 = vpop.f32.mrb[0].mxu0
    %574 = vdwg.mxu0
    %v576 = vsel %vm160, %v137, 0
    %v579 = vsel %vm160, %v153, 0
    %581 = vmatprep.subr.bf16.mxu0 0
    %582 = vmatpush1.bf16.xpose.msra.mxu0 %v579
    %583 = vmatprep.subr.bf16.mxu0 0
    %584 = vmatpush1.bf16.xpose.msra.mxu0 0
    %585 = vmatprep.subr.bf16.mxu0 0
    %586 = vmatpush1.bf16.xpose.msra.mxu0 0
    %587 = vmatprep.subr.bf16.mxu0 0
    %588 = vmatpush1.bf16.xpose.msra.mxu0 0
    %589 = vmatprep.subr.bf16.mxu0 0
    %590 = vmatpush1.bf16.xpose.msra.mxu0 0
    %591 = vmatprep.subr.bf16.mxu0 0
    %592 = vmatpush1.bf16.xpose.msra.mxu0 0
    %593 = vmatprep.subr.bf16.mxu0 0
    %594 = vmatpush1.bf16.xpose.msra.mxu0 0
    %595 = vmatprep.subr.bf16.mxu0 0
    %596 = vmatpush1.bf16.xpose.msra.mxu0 0
    %597 = vmatprep.subr.bf16.mxu0 0
    %598 = vmatpush1.bf16.xpose.msra.mxu0 0
    %599 = vmatprep.subr.bf16.mxu0 0
    %600 = vmatpush1.bf16.xpose.msra.mxu0 0
    %601 = vmatprep.subr.bf16.mxu0 0
    %602 = vmatpush1.bf16.xpose.msra.mxu0 0
    %603 = vmatprep.subr.bf16.mxu0 0
    %604 = vmatpush1.bf16.xpose.msra.mxu0 0
    %605 = vmatprep.subr.bf16.mxu0 0
    %606 = vmatpush1.bf16.xpose.msra.mxu0 0
    %607 = vmatprep.subr.bf16.mxu0 0
    %608 = vmatpush1.bf16.xpose.msra.mxu0 0
    %609 = vmatprep.subr.bf16.mxu0 0
    %610 = vmatpush1.bf16.xpose.msra.mxu0 0
    %611 = vmatprep.subr.bf16.mxu0 0
    %612 = vmatpush1.bf16.xpose.msra.mxu0 0
    %613 = vmatprep.mubr.bf16.mxu0 0
    %614 = vmatmul.mubr.bf16.gmra.mrb[0].mxu0 %v576
    %v615 = vpop.f32.mrb[0].mxu0
    %v616 = vadd.f32 0.0, %v615
    %v617 = vpop.f32.mrb[0].mxu0
    %v618 = vpop.f32.mrb[0].mxu0
    %v619 = vpop.f32.mrb[0].mxu0
    %620 = vdwg.mxu0
    %v622 = vsel %vm160, %v138, 0
    %v625 = vsel %vm160, %v154, 0
    %627 = vmatprep.subr.bf16.mxu0 0
    %628 = vmatpush1.bf16.xpose.msra.mxu0 %v625
    %629 = vmatprep.subr.bf16.mxu0 0
    %630 = vmatpush1.bf16.xpose.msra.mxu0 0
    %631 = vmatprep.subr.bf16.mxu0 0
    %632 = vmatpush1.bf16.xpose.msra.mxu0 0
    %633 = vmatprep.subr.bf16.mxu0 0
    %634 = vmatpush1.bf16.xpose.msra.mxu0 0
    %635 = vmatprep.subr.bf16.mxu0 0
    %636 = vmatpush1.bf16.xpose.msra.mxu0 0
    %637 = vmatprep.subr.bf16.mxu0 0
    %638 = vmatpush1.bf16.xpose.msra.mxu0 0
    %639 = vmatprep.subr.bf16.mxu0 0
    %640 = vmatpush1.bf16.xpose.msra.mxu0 0
    %641 = vmatprep.subr.bf16.mxu0 0
    %642 = vmatpush1.bf16.xpose.msra.mxu0 0
    %643 = vmatprep.subr.bf16.mxu0 0
    %644 = vmatpush1.bf16.xpose.msra.mxu0 0
    %645 = vmatprep.subr.bf16.mxu0 0
    %646 = vmatpush1.bf16.xpose.msra.mxu0 0
    %647 = vmatprep.subr.bf16.mxu0 0
    %648 = vmatpush1.bf16.xpose.msra.mxu0 0
    %649 = vmatprep.subr.bf16.mxu0 0
    %650 = vmatpush1.bf16.xpose.msra.mxu0 0
    %651 = vmatprep.subr.bf16.mxu0 0
    %652 = vmatpush1.bf16.xpose.msra.mxu0 0
    %653 = vmatprep.subr.bf16.mxu0 0
    %654 = vmatpush1.bf16.xpose.msra.mxu0 0
    %655 = vmatprep.subr.bf16.mxu0 0
    %656 = vmatpush1.bf16.xpose.msra.mxu0 0
    %657 = vmatprep.subr.bf16.mxu0 0
    %658 = vmatpush1.bf16.xpose.msra.mxu0 0
    %659 = vmatprep.mubr.bf16.mxu0 0
    %660 = vmatmul.mubr.bf16.gmra.mrb[0].mxu0 %v622
    %v661 = vpop.f32.mrb[0].mxu0
    %v662 = vadd.f32 0.0, %v661
    %v663 = vpop.f32.mrb[0].mxu0
    %v664 = vpop.f32.mrb[0].mxu0
    %v665 = vpop.f32.mrb[0].mxu0
    %666 = vdwg.mxu0
    %v668 = vsel %vm160, %v139, 0
    %v671 = vsel %vm160, %v155, 0
    %673 = vmatprep.subr.bf16.mxu0 0
    %674 = vmatpush1.bf16.xpose.msra.mxu0 %v671
    %675 = vmatprep.subr.bf16.mxu0 0
    %676 = vmatpush1.bf16.xpose.msra.mxu0 0
    %677 = vmatprep.subr.bf16.mxu0 0
    %678 = vmatpush1.bf16.xpose.msra.mxu0 0
    %679 = vmatprep.subr.bf16.mxu0 0
    %680 = vmatpush1.bf16.xpose.msra.mxu0 0
    %681 = vmatprep.subr.bf16.mxu0 0
    %682 = vmatpush1.bf16.xpose.msra.mxu0 0
    %683 = vmatprep.subr.bf16.mxu0 0
    %684 = vmatpush1.bf16.xpose.msra.mxu0 0
    %685 = vmatprep.subr.bf16.mxu0 0
    %686 = vmatpush1.bf16.xpose.msra.mxu0 0
    %687 = vmatprep.subr.bf16.mxu0 0
    %688 = vmatpush1.bf16.xpose.msra.mxu0 0
    %689 = vmatprep.subr.bf16.mxu0 0
    %690 = vmatpush1.bf16.xpose.msra.mxu0 0
    %691 = vmatprep.subr.bf16.mxu0 0
    %692 = vmatpush1.bf16.xpose.msra.mxu0 0
    %693 = vmatprep.subr.bf16.mxu0 0
    %694 = vmatpush1.bf16.xpose.msra.mxu0 0
    %695 = vmatprep.subr.bf16.mxu0 0
    %696 = vmatpush1.bf16.xpose.msra.mxu0 0
    %697 = vmatprep.subr.bf16.mxu0 0
    %698 = vmatpush1.bf16.xpose.msra.mxu0 0
    %699 = vmatprep.subr.bf16.mxu0 0
    %700 = vmatpush1.bf16.xpose.msra.mxu0 0
    %701 = vmatprep.subr.bf16.mxu0 0
    %702 = vmatpush1.bf16.xpose.msra.mxu0 0
    %703 = vmatprep.subr.bf16.mxu0 0
    %704 = vmatpush1.bf16.xpose.msra.mxu0 0
    %705 = vmatprep.mubr.bf16.mxu0 0
    %706 = vmatmul.mubr.bf16.gmra.mrb[0].mxu0 %v668
    %v707 = vpop.f32.mrb[0].mxu0
    %v708 = vadd.f32 0.0, %v707
    %v709 = vpop.f32.mrb[0].mxu0
    %v710 = vpop.f32.mrb[0].mxu0
    %v711 = vpop.f32.mrb[0].mxu0
    %712 = vdwg.mxu0
    %v714 = vsel %vm160, %v140, 0
    %v717 = vsel %vm160, %v156, 0
    %719 = vmatprep.subr.bf16.mxu0 0
    %720 = vmatpush1.bf16.xpose.msra.mxu0 %v717
    %721 = vmatprep.subr.bf16.mxu0 0
    %722 = vmatpush1.bf16.xpose.msra.mxu0 0
    %723 = vmatprep.subr.bf16.mxu0 0
    %724 = vmatpush1.bf16.xpose.msra.mxu0 0
    %725 = vmatprep.subr.bf16.mxu0 0
    %726 = vmatpush1.bf16.xpose.msra.mxu0 0
    %727 = vmatprep.subr.bf16.mxu0 0
    %728 = vmatpush1.bf16.xpose.msra.mxu0 0
    %729 = vmatprep.subr.bf16.mxu0 0
    %730 = vmatpush1.bf16.xpose.msra.mxu0 0
    %731 = vmatprep.subr.bf16.mxu0 0
    %732 = vmatpush1.bf16.xpose.msra.mxu0 0
    %733 = vmatprep.subr.bf16.mxu0 0
    %734 = vmatpush1.bf16.xpose.msra.mxu0 0
    %735 = vmatprep.subr.bf16.mxu0 0
    %736 = vmatpush1.bf16.xpose.msra.mxu0 0
    %737 = vmatprep.subr.bf16.mxu0 0
    %738 = vmatpush1.bf16.xpose.msra.mxu0 0
    %739 = vmatprep.subr.bf16.mxu0 0
    %740 = vmatpush1.bf16.xpose.msra.mxu0 0
    %741 = vmatprep.subr.bf16.mxu0 0
    %742 = vmatpush1.bf16.xpose.msra.mxu0 0
    %743 = vmatprep.subr.bf16.mxu0 0
    %744 = vmatpush1.bf16.xpose.msra.mxu0 0
    %745 = vmatprep.subr.bf16.mxu0 0
    %746 = vmatpush1.bf16.xpose.msra.mxu0 0
    %747 = vmatprep.subr.bf16.mxu0 0
    %748 = vmatpush1.bf16.xpose.msra.mxu0 0
    %749 = vmatprep.subr.bf16.mxu0 0
    %750 = vmatpush1.bf16.xpose.msra.mxu0 0
    %751 = vmatprep.mubr.bf16.mxu0 0
    %752 = vmatmul.mubr.bf16.gmra.mrb[0].mxu0 %v714
    %v753 = vpop.f32.mrb[0].mxu0
    %v754 = vadd.f32 0.0, %v753
    %v755 = vpop.f32.mrb[0].mxu0
    %v756 = vpop.f32.mrb[0].mxu0
    %v757 = vpop.f32.mrb[0].mxu0
    %758 = vdwg.mxu0
    %v760 = vsel %vm160, %v141, 0
    %v763 = vsel %vm160, %v157, 0
    %765 = vmatprep.subr.bf16.mxu0 0
    %766 = vmatpush1.bf16.xpose.msra.mxu0 %v763
    %767 = vmatprep.subr.bf16.mxu0 0
    %768 = vmatpush1.bf16.xpose.msra.mxu0 0
    %769 = vmatprep.subr.bf16.mxu0 0
    %770 = vmatpush1.bf16.xpose.msra.mxu0 0
    %771 = vmatprep.subr.bf16.mxu0 0
    %772 = vmatpush1.bf16.xpose.msra.mxu0 0
    %773 = vmatprep.subr.bf16.mxu0 0
    %774 = vmatpush1.bf16.xpose.msra.mxu0 0
    %775 = vmatprep.subr.bf16.mxu0 0
    %776 = vmatpush1.bf16.xpose.msra.mxu0 0
    %777 = vmatprep.subr.bf16.mxu0 0
    %778 = vmatpush1.bf16.xpose.msra.mxu0 0
    %779 = vmatprep.subr.bf16.mxu0 0
    %780 = vmatpush1.bf16.xpose.msra.mxu0 0
    %781 = vmatprep.subr.bf16.mxu0 0
    %782 = vmatpush1.bf16.xpose.msra.mxu0 0
    %783 = vmatprep.subr.bf16.mxu0 0
    %784 = vmatpush1.bf16.xpose.msra.mxu0 0
    %785 = vmatprep.subr.bf16.mxu0 0
    %786 = vmatpush1.bf16.xpose.msra.mxu0 0
    %787 = vmatprep.subr.bf16.mxu0 0
    %788 = vmatpush1.bf16.xpose.msra.mxu0 0
    %789 = vmatprep.subr.bf16.mxu0 0
    %790 = vmatpush1.bf16.xpose.msra.mxu0 0
    %791 = vmatprep.subr.bf16.mxu0 0
    %792 = vmatpush1.bf16.xpose.msra.mxu0 0
    %793 = vmatprep.subr.bf16.mxu0 0
    %794 = vmatpush1.bf16.xpose.msra.mxu0 0
    %795 = vmatprep.subr.bf16.mxu0 0
    %796 = vmatpush1.bf16.xpose.msra.mxu0 0
    %797 = vmatprep.mubr.bf16.mxu0 0
    %798 = vmatmul.mubr.bf16.gmra.mrb[0].mxu0 %v760
    %v799 = vpop.f32.mrb[0].mxu0
    %v800 = vadd.f32 0.0, %v799
    %v801 = vpop.f32.mrb[0].mxu0
    %v802 = vpop.f32.mrb[0].mxu0
    %v803 = vpop.f32.mrb[0].mxu0
    %804 = vdwg.mxu0
    %v806 = vsel %vm160, %v142, 0
    %v809 = vsel %vm160, %v158, 0
    %811 = vmatprep.subr.bf16.mxu0 0
    %812 = vmatpush1.bf16.xpose.msra.mxu0 %v809
    %813 = vmatprep.subr.bf16.mxu0 0
    %814 = vmatpush1.bf16.xpose.msra.mxu0 0
    %815 = vmatprep.subr.bf16.mxu0 0
    %816 = vmatpush1.bf16.xpose.msra.mxu0 0
    %817 = vmatprep.subr.bf16.mxu0 0
    %818 = vmatpush1.bf16.xpose.msra.mxu0 0
    %819 = vmatprep.subr.bf16.mxu0 0
    %820 = vmatpush1.bf16.xpose.msra.mxu0 0
    %821 = vmatprep.subr.bf16.mxu0 0
    %822 = vmatpush1.bf16.xpose.msra.mxu0 0
    %823 = vmatprep.subr.bf16.mxu0 0
    %824 = vmatpush1.bf16.xpose.msra.mxu0 0
    %825 = vmatprep.subr.bf16.mxu0 0
    %826 = vmatpush1.bf16.xpose.msra.mxu0 0
    %827 = vmatprep.subr.bf16.mxu0 0
    %828 = vmatpush1.bf16.xpose.msra.mxu0 0
    %829 = vmatprep.subr.bf16.mxu0 0
    %830 = vmatpush1.bf16.xpose.msra.mxu0 0
    %831 = vmatprep.subr.bf16.mxu0 0
    %832 = vmatpush1.bf16.xpose.msra.mxu0 0
    %833 = vmatprep.subr.bf16.mxu0 0
    %834 = vmatpush1.bf16.xpose.msra.mxu0 0
    %835 = vmatprep.subr.bf16.mxu0 0
    %836 = vmatpush1.bf16.xpose.msra.mxu0 0
    %837 = vmatprep.subr.bf16.mxu0 0
    %838 = vmatpush1.bf16.xpose.msra.mxu0 0
    %839 = vmatprep.subr.bf16.mxu0 0
    %840 = vmatpush1.bf16.xpose.msra.mxu0 0
    %841 = vmatprep.subr.bf16.mxu0 0
    %842 = vmatpush1.bf16.xpose.msra.mxu0 0
    %843 = vmatprep.mubr.bf16.mxu0 0
    %844 = vmatmul.mubr.bf16.gmra.mrb[0].mxu0 %v806
    %v845 = vpop.f32.mrb[0].mxu0
    %v846 = vadd.f32 0.0, %v845
    %v847 = vpop.f32.mrb[0].mxu0
    %v848 = vpop.f32.mrb[0].mxu0
    %v849 = vpop.f32.mrb[0].mxu0
    %850 = vdwg.mxu0
    %v852 = vsel %vm160, %v143, 0
    %v855 = vsel %vm160, %v159, 0
    %857 = vmatprep.subr.bf16.mxu0 0
    %858 = vmatpush1.bf16.xpose.msra.mxu0 %v855
    %859 = vmatprep.subr.bf16.mxu0 0
    %860 = vmatpush1.bf16.xpose.msra.mxu0 0
    %861 = vmatprep.subr.bf16.mxu0 0
    %862 = vmatpush1.bf16.xpose.msra.mxu0 0
    %863 = vmatprep.subr.bf16.mxu0 0
    %864 = vmatpush1.bf16.xpose.msra.mxu0 0
    %865 = vmatprep.subr.bf16.mxu0 0
    %866 = vmatpush1.bf16.xpose.msra.mxu0 0
    %867 = vmatprep.subr.bf16.mxu0 0
    %868 = vmatpush1.bf16.xpose.msra.mxu0 0
    %869 = vmatprep.subr.bf16.mxu0 0
    %870 = vmatpush1.bf16.xpose.msra.mxu0 0
    %871 = vmatprep.subr.bf16.mxu0 0
    %872 = vmatpush1.bf16.xpose.msra.mxu0 0
    %873 = vmatprep.subr.bf16.mxu0 0
    %874 = vmatpush1.bf16.xpose.msra.mxu0 0
    %875 = vmatprep.subr.bf16.mxu0 0
    %876 = vmatpush1.bf16.xpose.msra.mxu0 0
    %877 = vmatprep.subr.bf16.mxu0 0
    %878 = vmatpush1.bf16.xpose.msra.mxu0 0
    %879 = vmatprep.subr.bf16.mxu0 0
    %880 = vmatpush1.bf16.xpose.msra.mxu0 0
    %881 = vmatprep.subr.bf16.mxu0 0
    %882 = vmatpush1.bf16.xpose.msra.mxu0 0
    %883 = vmatprep.subr.bf16.mxu0 0
    %884 = vmatpush1.bf16.xpose.msra.mxu0 0
    %885 = vmatprep.subr.bf16.mxu0 0
    %886 = vmatpush1.bf16.xpose.msra.mxu0 0
    %887 = vmatprep.subr.bf16.mxu0 0
    %888 = vmatpush1.bf16.xpose.msra.mxu0 0
    %889 = vmatprep.mubr.bf16.mxu0 0
    %890 = vmatmul.mubr.bf16.gmra.mrb[0].mxu0 %v852
    %v891 = vpop.f32.mrb[0].mxu0
    %v892 = vadd.f32 0.0, %v891
    %v893 = vpop.f32.mrb[0].mxu0
    %v894 = vpop.f32.mrb[0].mxu0
    %v895 = vpop.f32.mrb[0].mxu0
    %896 = vdwg.mxu0
    %v897 = vld [vmem:[#allocation2] sm:$0xf]
    %v898 = vld [vmem:[#allocation2 + $0x4] sm:$0xf]
    %v899 = vld [vmem:[#allocation2 + $0x8] sm:$0xf]
    %v900 = vld [vmem:[#allocation2 + $0xc] sm:$0xf]
    %v901 = vld [vmem:[#allocation2 + $0x10] sm:$0xf]
    %v902 = vld [vmem:[#allocation2 + $0x14] sm:$0xf]
    %v903 = vld [vmem:[#allocation2 + $0x18] sm:$0xf]
    %v904 = vld [vmem:[#allocation2 + $0x1c] sm:$0xf]
    %v905 = vld [vmem:[#allocation2 + $0x20] sm:$0xf]
    %v906 = vld [vmem:[#allocation2 + $0x24] sm:$0xf]
    %v907 = vld [vmem:[#allocation2 + $0x28] sm:$0xf]
    %v908 = vld [vmem:[#allocation2 + $0x2c] sm:$0xf]
    %v909 = vld [vmem:[#allocation2 + $0x30] sm:$0xf]
    %v910 = vld [vmem:[#allocation2 + $0x34] sm:$0xf]
    %v911 = vld [vmem:[#allocation2 + $0x38] sm:$0xf]
    %v912 = vld [vmem:[#allocation2 + $0x3c] sm:$0xf]
    %vm913 = vcmask 27648
    %v914 = vsel %vm913, %v202, -inf
    %915 = vmax.xlane.f32.xlu0 %v914
    %v916 = vpop.xlane.xlu0 %915
    %v917 = vsel %vm913, %v248, -inf
    %918 = vmax.xlane.f32.xlu0 %v917
    %v919 = vpop.xlane.xlu0 %918
    %v920 = vsel %vm913, %v294, -inf
    %921 = vmax.xlane.f32.xlu0 %v920
    %v922 = vpop.xlane.xlu0 %921
    %v923 = vsel %vm913, %v340, -inf
    %924 = vmax.xlane.f32.xlu0 %v923
    %v925 = vpop.xlane.xlu0 %924
    %v926 = vsel %vm913, %v386, -inf
    %927 = vmax.xlane.f32.xlu0 %v926
    %v928 = vpop.xlane.xlu0 %927
    %v929 = vsel %vm913, %v432, -inf
    %930 = vmax.xlane.f32.xlu0 %v929
    %v931 = vpop.xlane.xlu0 %930
    %v932 = vsel %vm913, %v478, -inf
    %933 = vmax.xlane.f32.xlu0 %v932
    %v934 = vpop.xlane.xlu0 %933
    %v935 = vsel %vm913, %v524, -inf
    %936 = vmax.xlane.f32.xlu0 %v935
    %v937 = vpop.xlane.xlu0 %936
    %v938 = vsel %vm913, %v570, -inf
    %939 = vmax.xlane.f32.xlu0 %v938
    %v940 = vpop.xlane.xlu0 %939
    %v941 = vsel %vm913, %v616, -inf
    %942 = vmax.xlane.f32.xlu0 %v941
    %v943 = vpop.xlane.xlu0 %942
    %v944 = vsel %vm913, %v662, -inf
    %945 = vmax.xlane.f32.xlu0 %v944
    %v946 = vpop.xlane.xlu0 %945
    %v947 = vsel %vm913, %v708, -inf
    %948 = vmax.xlane.f32.xlu0 %v947
    %v949 = vpop.xlane.xlu0 %948
    %v950 = vsel %vm913, %v754, -inf
    %951 = vmax.xlane.f32.xlu0 %v950
    %v952 = vpop.xlane.xlu0 %951
    %v953 = vsel %vm913, %v800, -inf
    %954 = vmax.xlane.f32.xlu0 %v953
    %v955 = vpop.xlane.xlu0 %954
    %v956 = vsel %vm913, %v846, -inf
    %957 = vmax.xlane.f32.xlu0 %v956
    %v958 = vpop.xlane.xlu0 %957
    %v959 = vsel %vm913, %v892, -inf
    %960 = vmax.xlane.f32.xlu0 %v959
    %v961 = vpop.xlane.xlu0 %960
    %v962 = vmax.f32 %v897, %v916
    %v963 = vmax.f32 %v898, %v919
    %v964 = vmax.f32 %v899, %v922
    %v965 = vmax.f32 %v900, %v925
    %v966 = vmax.f32 %v901, %v928
    %v967 = vmax.f32 %v902, %v931
    %v968 = vmax.f32 %v903, %v934
    %v969 = vmax.f32 %v904, %v937
    %v970 = vmax.f32 %v905, %v940
    %v971 = vmax.f32 %v906, %v943
    %v972 = vmax.f32 %v907, %v946
    %v973 = vmax.f32 %v908, %v949
    %v974 = vmax.f32 %v909, %v952
    %v975 = vmax.f32 %v910, %v955
    %v976 = vmax.f32 %v911, %v958
    %v977 = vmax.f32 %v912, %v961
    %v978 = vsub.f32 %v897, %v962
    %v979 = vsub.f32 %v898, %v963
    %v980 = vsub.f32 %v899, %v964
    %v981 = vsub.f32 %v900, %v965
    %v982 = vsub.f32 %v901, %v966
    %v983 = vsub.f32 %v902, %v967
    %v984 = vsub.f32 %v903, %v968
    %v985 = vsub.f32 %v904, %v969
    %v986 = vsub.f32 %v905, %v970
    %v987 = vsub.f32 %v906, %v971
    %v988 = vsub.f32 %v907, %v972
    %v989 = vsub.f32 %v908, %v973
    %v990 = vsub.f32 %v909, %v974
    %v991 = vsub.f32 %v910, %v975
    %v992 = vsub.f32 %v911, %v976
    %v993 = vsub.f32 %v912, %v977
    %v994 = vmul.f32 %v978, 1.442695
    %v995 = vpow.pop %v994
    %v996 = vmul.f32 %v979, 1.442695
    %v997 = vpow.pop %v996
    %v998 = vmul.f32 %v980, 1.442695
    %v999 = vpow.pop %v998
    %v1000 = vmul.f32 %v981, 1.442695
    %v1001 = vpow.pop %v1000
    %v1002 = vmul.f32 %v982, 1.442695
    %v1003 = vpow.pop %v1002
    %v1004 = vmul.f32 %v983, 1.442695
    %v1005 = vpow.pop %v1004
    %v1006 = vmul.f32 %v984, 1.442695
    %v1007 = vpow.pop %v1006
    %v1008 = vmul.f32 %v985, 1.442695
    %v1009 = vpow.pop %v1008
    %v1010 = vmul.f32 %v986, 1.442695
    %v1011 = vpow.pop %v1010
    %v1012 = vmul.f32 %v987, 1.442695
    %v1013 = vpow.pop %v1012
    %v1014 = vmul.f32 %v988, 1.442695
    %v1015 = vpow.pop %v1014
    %v1016 = vmul.f32 %v989, 1.442695
    %v1017 = vpow.pop %v1016
    %v1018 = vmul.f32 %v990, 1.442695
    %v1019 = vpow.pop %v1018
    %v1020 = vmul.f32 %v991, 1.442695
    %v1021 = vpow.pop %v1020
    %v1022 = vmul.f32 %v992, 1.442695
    %v1023 = vpow.pop %v1022
    %v1024 = vmul.f32 %v993, 1.442695
    %v1025 = vpow.pop %v1024
    %1027 = vset.pattern.permute.xlu0 0
    %1028 = vperm.xlu0 %1027, %v962
    %v1029 = vpop.permute.xlu0 %1028
    %1032 = vset.pattern.permute.xlu0 0
    %1033 = vperm.xlu0 %1032, %v963
    %v1034 = vpop.permute.xlu0 %1033
    %1037 = vset.pattern.permute.xlu0 0
    %1038 = vperm.xlu0 %1037, %v964
    %v1039 = vpop.permute.xlu0 %1038
    %1042 = vset.pattern.permute.xlu0 0
    %1043 = vperm.xlu0 %1042, %v965
    %v1044 = vpop.permute.xlu0 %1043
    %1047 = vset.pattern.permute.xlu0 0
    %1048 = vperm.xlu0 %1047, %v966
    %v1049 = vpop.permute.xlu0 %1048
    %1052 = vset.pattern.permute.xlu0 0
    %1053 = vperm.xlu0 %1052, %v967
    %v1054 = vpop.permute.xlu0 %1053
    %1057 = vset.pattern.permute.xlu0 0
    %1058 = vperm.xlu0 %1057, %v968
    %v1059 = vpop.permute.xlu0 %1058
    %1062 = vset.pattern.permute.xlu0 0
    %1063 = vperm.xlu0 %1062, %v969
    %v1064 = vpop.permute.xlu0 %1063
    %1067 = vset.pattern.permute.xlu0 0
    %1068 = vperm.xlu0 %1067, %v970
    %v1069 = vpop.permute.xlu0 %1068
    %1072 = vset.pattern.permute.xlu0 0
    %1073 = vperm.xlu0 %1072, %v971
    %v1074 = vpop.permute.xlu0 %1073
    %1077 = vset.pattern.permute.xlu0 0
    %1078 = vperm.xlu0 %1077, %v972
    %v1079 = vpop.permute.xlu0 %1078
    %1082 = vset.pattern.permute.xlu0 0
    %1083 = vperm.xlu0 %1082, %v973
    %v1084 = vpop.permute.xlu0 %1083
    %1087 = vset.pattern.permute.xlu0 0
    %1088 = vperm.xlu0 %1087, %v974
    %v1089 = vpop.permute.xlu0 %1088
    %1092 = vset.pattern.permute.xlu0 0
    %1093 = vperm.xlu0 %1092, %v975
    %v1094 = vpop.permute.xlu0 %1093
    %1097 = vset.pattern.permute.xlu0 0
    %1098 = vperm.xlu0 %1097, %v976
    %v1099 = vpop.permute.xlu0 %1098
    %1102 = vset.pattern.permute.xlu0 0
    %1103 = vperm.xlu0 %1102, %v977
    %v1104 = vpop.permute.xlu0 %1103
    %v1106 = vsub.f32 %v202, %v1029
    %v1107 = vsub.f32 %v248, %v1034
    %v1108 = vsub.f32 %v294, %v1039
    %v1109 = vsub.f32 %v340, %v1044
    %v1110 = vsub.f32 %v386, %v1049
    %v1111 = vsub.f32 %v432, %v1054
    %v1112 = vsub.f32 %v478, %v1059
    %v1113 = vsub.f32 %v524, %v1064
    %v1114 = vsub.f32 %v570, %v1069
    %v1115 = vsub.f32 %v616, %v1074
    %v1116 = vsub.f32 %v662, %v1079
    %v1117 = vsub.f32 %v708, %v1084
    %v1118 = vsub.f32 %v754, %v1089
    %v1119 = vsub.f32 %v800, %v1094
    %v1120 = vsub.f32 %v846, %v1099
    %v1121 = vsub.f32 %v892, %v1104
    %v1122 = vmul.f32 %v1106, 1.442695
    %v1123 = vpow.pop %v1122
    %v1124 = vmul.f32 %v1107, 1.442695
    %v1125 = vpow.pop %v1124
    %v1126 = vmul.f32 %v1108, 1.442695
    %v1127 = vpow.pop %v1126
    %v1128 = vmul.f32 %v1109, 1.442695
    %v1129 = vpow.pop %v1128
    %v1130 = vmul.f32 %v1110, 1.442695
    %v1131 = vpow.pop %v1130
    %v1132 = vmul.f32 %v1111, 1.442695
    %v1133 = vpow.pop %v1132
    %v1134 = vmul.f32 %v1112, 1.442695
    %v1135 = vpow.pop %v1134
    %v1136 = vmul.f32 %v1113, 1.442695
    %v1137 = vpow.pop %v1136
    %v1138 = vmul.f32 %v1114, 1.442695
    %v1139 = vpow.pop %v1138
    %v1140 = vmul.f32 %v1115, 1.442695
    %v1141 = vpow.pop %v1140
    %v1142 = vmul.f32 %v1116, 1.442695
    %v1143 = vpow.pop %v1142
    %v1144 = vmul.f32 %v1117, 1.442695
    %v1145 = vpow.pop %v1144
    %v1146 = vmul.f32 %v1118, 1.442695
    %v1147 = vpow.pop %v1146
    %v1148 = vmul.f32 %v1119, 1.442695
    %v1149 = vpow.pop %v1148
    %v1150 = vmul.f32 %v1120, 1.442695
    %v1151 = vpow.pop %v1150
    %v1152 = vmul.f32 %v1121, 1.442695
    %v1153 = vpow.pop %v1152
    %v1154 = vld [vmem:[#allocation3] sm:$0xf]
    %v1155 = vld [vmem:[#allocation3 + $0x4] sm:$0xf]
    %v1156 = vld [vmem:[#allocation3 + $0x8] sm:$0xf]
    %v1157 = vld [vmem:[#allocation3 + $0xc] sm:$0xf]
    %v1158 = vld [vmem:[#allocation3 + $0x10] sm:$0xf]
    %v1159 = vld [vmem:[#allocation3 + $0x14] sm:$0xf]
    %v1160 = vld [vmem:[#allocation3 + $0x18] sm:$0xf]
    %v1161 = vld [vmem:[#allocation3 + $0x1c] sm:$0xf]
    %v1162 = vld [vmem:[#allocation3 + $0x20] sm:$0xf]
    %v1163 = vld [vmem:[#allocation3 + $0x24] sm:$0xf]
    %v1164 = vld [vmem:[#allocation3 + $0x28] sm:$0xf]
    %v1165 = vld [vmem:[#allocation3 + $0x2c] sm:$0xf]
    %v1166 = vld [vmem:[#allocation3 + $0x30] sm:$0xf]
    %v1167 = vld [vmem:[#allocation3 + $0x34] sm:$0xf]
    %v1168 = vld [vmem:[#allocation3 + $0x38] sm:$0xf]
    %v1169 = vld [vmem:[#allocation3 + $0x3c] sm:$0xf]
    %v1170 = vmul.f32 %v995, %v1154
    %v1171 = vmul.f32 %v997, %v1155
    %v1172 = vmul.f32 %v999, %v1156
    %v1173 = vmul.f32 %v1001, %v1157
    %v1174 = vmul.f32 %v1003, %v1158
    %v1175 = vmul.f32 %v1005, %v1159
    %v1176 = vmul.f32 %v1007, %v1160
    %v1177 = vmul.f32 %v1009, %v1161
    %v1178 = vmul.f32 %v1011, %v1162
    %v1179 = vmul.f32 %v1013, %v1163
    %v1180 = vmul.f32 %v1015, %v1164
    %v1181 = vmul.f32 %v1017, %v1165
    %v1182 = vmul.f32 %v1019, %v1166
    %v1183 = vmul.f32 %v1021, %v1167
    %v1184 = vmul.f32 %v1023, %v1168
    %v1185 = vmul.f32 %v1025, %v1169
    %v1186 = vsel %vm913, %v1123, 0.0
    %1187 = vadd.xlane.f32.xlu0 %v1186
    %v1188 = vpop.xlane.xlu0 %1187
    %v1189 = vsel %vm913, %v1125, 0.0
    %1190 = vadd.xlane.f32.xlu0 %v1189
    %v1191 = vpop.xlane.xlu0 %1190
    %v1192 = vsel %vm913, %v1127, 0.0
    %1193 = vadd.xlane.f32.xlu0 %v1192
    %v1194 = vpop.xlane.xlu0 %1193
    %v1195 = vsel %vm913, %v1129, 0.0
    %1196 = vadd.xlane.f32.xlu0 %v1195
    %v1197 = vpop.xlane.xlu0 %1196
    %v1198 = vsel %vm913, %v1131, 0.0
    %1199 = vadd.xlane.f32.xlu0 %v1198
    %v1200 = vpop.xlane.xlu0 %1199
    %v1201 = vsel %vm913, %v1133, 0.0
    %1202 = vadd.xlane.f32.xlu0 %v1201
    %v1203 = vpop.xlane.xlu0 %1202
    %v1204 = vsel %vm913, %v1135, 0.0
    %1205 = vadd.xlane.f32.xlu0 %v1204
    %v1206 = vpop.xlane.xlu0 %1205
    %v1207 = vsel %vm913, %v1137, 0.0
    %1208 = vadd.xlane.f32.xlu0 %v1207
    %v1209 = vpop.xlane.xlu0 %1208
    %v1210 = vsel %vm913, %v1139, 0.0
    %1211 = vadd.xlane.f32.xlu0 %v1210
    %v1212 = vpop.xlane.xlu0 %1211
    %v1213 = vsel %vm913, %v1141, 0.0
    %1214 = vadd.xlane.f32.xlu0 %v1213
    %v1215 = vpop.xlane.xlu0 %1214
    %v1216 = vsel %vm913, %v1143, 0.0
    %1217 = vadd.xlane.f32.xlu0 %v1216
    %v1218 = vpop.xlane.xlu0 %1217
    %v1219 = vsel %vm913, %v1145, 0.0
    %1220 = vadd.xlane.f32.xlu0 %v1219
    %v1221 = vpop.xlane.xlu0 %1220
    %v1222 = vsel %vm913, %v1147, 0.0
    %1223 = vadd.xlane.f32.xlu0 %v1222
    %v1224 = vpop.xlane.xlu0 %1223
    %v1225 = vsel %vm913, %v1149, 0.0
    %1226 = vadd.xlane.f32.xlu0 %v1225
    %v1227 = vpop.xlane.xlu0 %1226
    %v1228 = vsel %vm913, %v1151, 0.0
    %1229 = vadd.xlane.f32.xlu0 %v1228
    %v1230 = vpop.xlane.xlu0 %1229
    %v1231 = vsel %vm913, %v1153, 0.0
    %1232 = vadd.xlane.f32.xlu0 %v1231
    %v1233 = vpop.xlane.xlu0 %1232
    %v1234 = vadd.f32 %v1170, %v1188
    %v1235 = vadd.f32 %v1171, %v1191
    %v1236 = vadd.f32 %v1172, %v1194
    %v1237 = vadd.f32 %v1173, %v1197
    %v1238 = vadd.f32 %v1174, %v1200
    %v1239 = vadd.f32 %v1175, %v1203
    %v1240 = vadd.f32 %v1176, %v1206
    %v1241 = vadd.f32 %v1177, %v1209
    %v1242 = vadd.f32 %v1178, %v1212
    %v1243 = vadd.f32 %v1179, %v1215
    %v1244 = vadd.f32 %v1180, %v1218
    %v1245 = vadd.f32 %v1181, %v1221
    %v1246 = vadd.f32 %v1182, %v1224
    %v1247 = vadd.f32 %v1183, %v1227
    %v1248 = vadd.f32 %v1184, %v1230
    %v1249 = vadd.f32 %v1185, %v1233
    %vm1250 = vcmask 3072
    %1251 = vst.msk [vmem:[#allocation3] sm:$0xf] %vm1250, %v1234
    %1252 = vst.msk [vmem:[#allocation3 + $0x4] sm:$0xf] %vm1250, %v1235
    %1253 = vst.msk [vmem:[#allocation3 + $0x8] sm:$0xf] %vm1250, %v1236
    %1254 = vst.msk [vmem:[#allocation3 + $0xc] sm:$0xf] %vm1250, %v1237
    %1255 = vst.msk [vmem:[#allocation3 + $0x10] sm:$0xf] %vm1250, %v1238
    %1256 = vst.msk [vmem:[#allocation3 + $0x14] sm:$0xf] %vm1250, %v1239
    %1257 = vst.msk [vmem:[#allocation3 + $0x18] sm:$0xf] %vm1250, %v1240
    %1258 = vst.msk [vmem:[#allocation3 + $0x1c] sm:$0xf] %vm1250, %v1241
    %1259 = vst.msk [vmem:[#allocation3 + $0x20] sm:$0xf] %vm1250, %v1242
    %1260 = vst.msk [vmem:[#allocation3 + $0x24] sm:$0xf] %vm1250, %v1243
    %1261 = vst.msk [vmem:[#allocation3 + $0x28] sm:$0xf] %vm1250, %v1244
    %1262 = vst.msk [vmem:[#allocation3 + $0x2c] sm:$0xf] %vm1250, %v1245
    %1263 = vst.msk [vmem:[#allocation3 + $0x30] sm:$0xf] %vm1250, %v1246
    %1264 = vst.msk [vmem:[#allocation3 + $0x34] sm:$0xf] %vm1250, %v1247
    %1265 = vst.msk [vmem:[#allocation3 + $0x38] sm:$0xf] %vm1250, %v1248
    %1266 = vst.msk [vmem:[#allocation3 + $0x3c] sm:$0xf] %vm1250, %v1249
    %v1267 = vld [vmem:[#allocation4] sm:$0xf]
    %v1268 = vld [vmem:[#allocation4 + $0x4] sm:$0xf]
    %v1269 = vld [vmem:[#allocation4 + $0x8] sm:$0xf]
    %v1270 = vld [vmem:[#allocation4 + $0xc] sm:$0xf]
    %v1271 = vld [vmem:[#allocation4 + $0x10] sm:$0xf]
    %v1272 = vld [vmem:[#allocation4 + $0x14] sm:$0xf]
    %v1273 = vld [vmem:[#allocation4 + $0x18] sm:$0xf]
    %v1274 = vld [vmem:[#allocation4 + $0x1c] sm:$0xf]
    %v1275 = vld [vmem:[#allocation4 + $0x20] sm:$0xf]
    %v1276 = vld [vmem:[#allocation4 + $0x24] sm:$0xf]
    %v1277 = vld [vmem:[#allocation4 + $0x28] sm:$0xf]
    %v1278 = vld [vmem:[#allocation4 + $0x2c] sm:$0xf]
    %v1279 = vld [vmem:[#allocation4 + $0x30] sm:$0xf]
    %v1280 = vld [vmem:[#allocation4 + $0x34] sm:$0xf]
    %v1281 = vld [vmem:[#allocation4 + $0x38] sm:$0xf]
    %v1282 = vld [vmem:[#allocation4 + $0x3c] sm:$0xf]
    %1284 = vset.pattern.permute.xlu0 0
    %1285 = vperm.xlu0 %1284, %v995
    %v1286 = vpop.permute.xlu0 %1285
    %1289 = vset.pattern.permute.xlu0 0
    %1290 = vperm.xlu0 %1289, %v997
    %v1291 = vpop.permute.xlu0 %1290
    %1294 = vset.pattern.permute.xlu0 0
    %1295 = vperm.xlu0 %1294, %v999
    %v1296 = vpop.permute.xlu0 %1295
    %1299 = vset.pattern.permute.xlu0 0
    %1300 = vperm.xlu0 %1299, %v1001
    %v1301 = vpop.permute.xlu0 %1300
    %1304 = vset.pattern.permute.xlu0 0
    %1305 = vperm.xlu0 %1304, %v1003
    %v1306 = vpop.permute.xlu0 %1305
    %1309 = vset.pattern.permute.xlu0 0
    %1310 = vperm.xlu0 %1309, %v1005
    %v1311 = vpop.permute.xlu0 %1310
    %1314 = vset.pattern.permute.xlu0 0
    %1315 = vperm.xlu0 %1314, %v1007
    %v1316 = vpop.permute.xlu0 %1315
    %1319 = vset.pattern.permute.xlu0 0
    %1320 = vperm.xlu0 %1319, %v1009
    %v1321 = vpop.permute.xlu0 %1320
    %1324 = vset.pattern.permute.xlu0 0
    %1325 = vperm.xlu0 %1324, %v1011
    %v1326 = vpop.permute.xlu0 %1325
    %1329 = vset.pattern.permute.xlu0 0
    %1330 = vperm.xlu0 %1329, %v1013
    %v1331 = vpop.permute.xlu0 %1330
    %1334 = vset.pattern.permute.xlu0 0
    %1335 = vperm.xlu0 %1334, %v1015
    %v1336 = vpop.permute.xlu0 %1335
    %1339 = vset.pattern.permute.xlu0 0
    %1340 = vperm.xlu0 %1339, %v1017
    %v1341 = vpop.permute.xlu0 %1340
    %1344 = vset.pattern.permute.xlu0 0
    %1345 = vperm.xlu0 %1344, %v1019
    %v1346 = vpop.permute.xlu0 %1345
    %1349 = vset.pattern.permute.xlu0 0
    %1350 = vperm.xlu0 %1349, %v1021
    %v1351 = vpop.permute.xlu0 %1350
    %1354 = vset.pattern.permute.xlu0 0
    %1355 = vperm.xlu0 %1354, %v1023
    %v1356 = vpop.permute.xlu0 %1355
    %1359 = vset.pattern.permute.xlu0 0
    %1360 = vperm.xlu0 %1359, %v1025
    %v1361 = vpop.permute.xlu0 %1360
    %v1363 = vmul.f32 %v1286, %v1267
    %v1364 = vmul.f32 %v1291, %v1268
    %v1365 = vmul.f32 %v1296, %v1269
    %v1366 = vmul.f32 %v1301, %v1270
    %v1367 = vmul.f32 %v1306, %v1271
    %v1368 = vmul.f32 %v1311, %v1272
    %v1369 = vmul.f32 %v1316, %v1273
    %v1370 = vmul.f32 %v1321, %v1274
    %v1371 = vmul.f32 %v1326, %v1275
    %v1372 = vmul.f32 %v1331, %v1276
    %v1373 = vmul.f32 %v1336, %v1277
    %v1374 = vmul.f32 %v1341, %v1278
    %v1375 = vmul.f32 %v1346, %v1279
    %v1376 = vmul.f32 %v1351, %v1280
    %v1377 = vmul.f32 %v1356, %v1281
    %v1378 = vmul.f32 %v1361, %v1282
    %v1379 = vpack.c.bf16 %v1123, %v1123
    %v1380 = vpack.c.bf16 %v1125, %v1125
    %v1381 = vpack.c.bf16 %v1127, %v1127
    %v1382 = vpack.c.bf16 %v1129, %v1129
    %v1383 = vpack.c.bf16 %v1131, %v1131
    %v1384 = vpack.c.bf16 %v1133, %v1133
    %v1385 = vpack.c.bf16 %v1135, %v1135
    %v1386 = vpack.c.bf16 %v1137, %v1137
    %v1387 = vpack.c.bf16 %v1139, %v1139
    %v1388 = vpack.c.bf16 %v1141, %v1141
    %v1389 = vpack.c.bf16 %v1143, %v1143
    %v1390 = vpack.c.bf16 %v1145, %v1145
    %v1391 = vpack.c.bf16 %v1147, %v1147
    %v1392 = vpack.c.bf16 %v1149, %v1149
    %v1393 = vpack.c.bf16 %v1151, %v1151
    %v1394 = vpack.c.bf16 %v1153, %v1153
    %v1395 = vld [vmem:[#allocation10] sm:$0x3]
    %v1396 = vld [vmem:[#allocation10 + $0x2] sm:$0x3]
    %v1397 = vld [vmem:[#allocation10 + $0x4] sm:$0x3]
    %v1398 = vld [vmem:[#allocation10 + $0x6] sm:$0x3]
    %v1399 = vld [vmem:[#allocation10 + $0x8] sm:$0x3]
    %v1400 = vld [vmem:[#allocation10 + $0xa] sm:$0x3]
    %v1401 = vld [vmem:[#allocation10 + $0xc] sm:$0x3]
    %v1402 = vld [vmem:[#allocation10 + $0xe] sm:$0x3]
    %v1403 = vld [vmem:[#allocation10 + $0x10] sm:$0x3]
    %v1404 = vld [vmem:[#allocation10 + $0x12] sm:$0x3]
    %v1405 = vld [vmem:[#allocation10 + $0x14] sm:$0x3]
    %v1406 = vld [vmem:[#allocation10 + $0x16] sm:$0x3]
    %v1407 = vld [vmem:[#allocation10 + $0x18] sm:$0x3]
    %v1408 = vld [vmem:[#allocation10 + $0x1a] sm:$0x3]
    %v1409 = vld [vmem:[#allocation10 + $0x1c] sm:$0x3]
    %v1410 = vld [vmem:[#allocation10 + $0x1e] sm:$0x3]
    %vm1411 = vcmask 31744
    %v1413 = vsel %vm1411, %v1379, 0
    %vm1415 = vcmask 1041408
    %v1417 = vsel %vm1415, %v1395, 0
    %1419 = vmatprep.subr.bf16.mxu0 0
    %1420 = vmatpush1.bf16.msra.mxu0 %v1417
    %1421 = vmatprep.subr.bf16.mxu0 0
    %1422 = vmatpush1.bf16.msra.mxu0 0
    %1423 = vmatprep.subr.bf16.mxu0 0
    %1424 = vmatpush1.bf16.msra.mxu0 0
    %1425 = vmatprep.subr.bf16.mxu0 0
    %1426 = vmatpush1.bf16.msra.mxu0 0
    %1427 = vmatprep.subr.bf16.mxu0 0
    %1428 = vmatpush1.bf16.msra.mxu0 0
    %1429 = vmatprep.subr.bf16.mxu0 0
    %1430 = vmatpush1.bf16.msra.mxu0 0
    %1431 = vmatprep.subr.bf16.mxu0 0
    %1432 = vmatpush1.bf16.msra.mxu0 0
    %1433 = vmatprep.subr.bf16.mxu0 0
    %1434 = vmatpush1.bf16.msra.mxu0 0
    %1435 = vmatprep.subr.bf16.mxu0 0
    %1436 = vmatpush1.bf16.msra.mxu0 0
    %1437 = vmatprep.subr.bf16.mxu0 0
    %1438 = vmatpush1.bf16.msra.mxu0 0
    %1439 = vmatprep.subr.bf16.mxu0 0
    %1440 = vmatpush1.bf16.msra.mxu0 0
    %1441 = vmatprep.subr.bf16.mxu0 0
    %1442 = vmatpush1.bf16.msra.mxu0 0
    %1443 = vmatprep.subr.bf16.mxu0 0
    %1444 = vmatpush1.bf16.msra.mxu0 0
    %1445 = vmatprep.subr.bf16.mxu0 0
    %1446 = vmatpush1.bf16.msra.mxu0 0
    %1447 = vmatprep.subr.bf16.mxu0 0
    %1448 = vmatpush1.bf16.msra.mxu0 0
    %1449 = vmatprep.subr.bf16.mxu0 0
    %1450 = vmatpush1.bf16.msra.mxu0 0
    %1451 = vmatprep.mubr.bf16.mxu0 0
    %1452 = vmatmul.mubr.bf16.gmra.mrb[0].mxu0 %v1413
    %v1453 = vpop.f32.mrb[0].mxu0
    %v1454 = vadd.f32 0.0, %v1453
    %v1455 = vpop.f32.mrb[0].mxu0
    %v1456 = vpop.f32.mrb[0].mxu0
    %v1457 = vpop.f32.mrb[0].mxu0
    %1458 = vdwg.mxu0
    %v1460 = vsel %vm1411, %v1380, 0
    %v1463 = vsel %vm1415, %v1396, 0
    %1465 = vmatprep.subr.bf16.mxu0 0
    %1466 = vmatpush1.bf16.msra.mxu0 %v1463
    %1467 = vmatprep.subr.bf16.mxu0 0
    %1468 = vmatpush1.bf16.msra.mxu0 0
    %1469 = vmatprep.subr.bf16.mxu0 0
    %1470 = vmatpush1.bf16.msra.mxu0 0
    %1471 = vmatprep.subr.bf16.mxu0 0
    %1472 = vmatpush1.bf16.msra.mxu0 0
    %1473 = vmatprep.subr.bf16.mxu0 0
    %1474 = vmatpush1.bf16.msra.mxu0 0
    %1475 = vmatprep.subr.bf16.mxu0 0
    %1476 = vmatpush1.bf16.msra.mxu0 0
    %1477 = vmatprep.subr.bf16.mxu0 0
    %1478 = vmatpush1.bf16.msra.mxu0 0
    %1479 = vmatprep.subr.bf16.mxu0 0
    %1480 = vmatpush1.bf16.msra.mxu0 0
    %1481 = vmatprep.subr.bf16.mxu0 0
    %1482 = vmatpush1.bf16.msra.mxu0 0
    %1483 = vmatprep.subr.bf16.mxu0 0
    %1484 = vmatpush1.bf16.msra.mxu0 0
    %1485 = vmatprep.subr.bf16.mxu0 0
    %1486 = vmatpush1.bf16.msra.mxu0 0
    %1487 = vmatprep.subr.bf16.mxu0 0
    %1488 = vmatpush1.bf16.msra.mxu0 0
    %1489 = vmatprep.subr.bf16.mxu0 0
    %1490 = vmatpush1.bf16.msra.mxu0 0
    %1491 = vmatprep.subr.bf16.mxu0 0
    %1492 = vmatpush1.bf16.msra.mxu0 0
    %1493 = vmatprep.subr.bf16.mxu0 0
    %1494 = vmatpush1.bf16.msra.mxu0 0
    %1495 = vmatprep.subr.bf16.mxu0 0
    %1496 = vmatpush1.bf16.msra.mxu0 0
    %1497 = vmatprep.mubr.bf16.mxu0 0
    %1498 = vmatmul.mubr.bf16.gmra.mrb[0].mxu0 %v1460
    %v1499 = vpop.f32.mrb[0].mxu0
    %v1500 = vadd.f32 0.0, %v1499
    %v1501 = vpop.f32.mrb[0].mxu0
    %v1502 = vpop.f32.mrb[0].mxu0
    %v1503 = vpop.f32.mrb[0].mxu0
    %1504 = vdwg.mxu0
    %v1506 = vsel %vm1411, %v1381, 0
    %v1509 = vsel %vm1415, %v1397, 0
    %1511 = vmatprep.subr.bf16.mxu0 0
    %1512 = vmatpush1.bf16.msra.mxu0 %v1509
    %1513 = vmatprep.subr.bf16.mxu0 0
    %1514 = vmatpush1.bf16.msra.mxu0 0
    %1515 = vmatprep.subr.bf16.mxu0 0
    %1516 = vmatpush1.bf16.msra.mxu0 0
    %1517 = vmatprep.subr.bf16.mxu0 0
    %1518 = vmatpush1.bf16.msra.mxu0 0
    %1519 = vmatprep.subr.bf16.mxu0 0
    %1520 = vmatpush1.bf16.msra.mxu0 0
    %1521 = vmatprep.subr.bf16.mxu0 0
    %1522 = vmatpush1.bf16.msra.mxu0 0
    %1523 = vmatprep.subr.bf16.mxu0 0
    %1524 = vmatpush1.bf16.msra.mxu0 0
    %1525 = vmatprep.subr.bf16.mxu0 0
    %1526 = vmatpush1.bf16.msra.mxu0 0
    %1527 = vmatprep.subr.bf16.mxu0 0
    %1528 = vmatpush1.bf16.msra.mxu0 0
    %1529 = vmatprep.subr.bf16.mxu0 0
    %1530 = vmatpush1.bf16.msra.mxu0 0
    %1531 = vmatprep.subr.bf16.mxu0 0
    %1532 = vmatpush1.bf16.msra.mxu0 0
    %1533 = vmatprep.subr.bf16.mxu0 0
    %1534 = vmatpush1.bf16.msra.mxu0 0
    %1535 = vmatprep.subr.bf16.mxu0 0
    %1536 = vmatpush1.bf16.msra.mxu0 0
    %1537 = vmatprep.subr.bf16.mxu0 0
    %1538 = vmatpush1.bf16.msra.mxu0 0
    %1539 = vmatprep.subr.bf16.mxu0 0
    %1540 = vmatpush1.bf16.msra.mxu0 0
    %1541 = vmatprep.subr.bf16.mxu0 0
    %1542 = vmatpush1.bf16.msra.mxu0 0
    %1543 = vmatprep.mubr.bf16.mxu0 0
    %1544 = vmatmul.mubr.bf16.gmra.mrb[0].mxu0 %v1506
    %v1545 = vpop.f32.mrb[0].mxu0
    %v1546 = vadd.f32 0.0, %v1545
    %v1547 = vpop.f32.mrb[0].mxu0
    %v1548 = vpop.f32.mrb[0].mxu0
    %v1549 = vpop.f32.mrb[0].mxu0
    %1550 = vdwg.mxu0
    %v1552 = vsel %vm1411, %v1382, 0
    %v1555 = vsel %vm1415, %v1398, 0
    %1557 = vmatprep.subr.bf16.mxu0 0
    %1558 = vmatpush1.bf16.msra.mxu0 %v1555
    %1559 = vmatprep.subr.bf16.mxu0 0
    %1560 = vmatpush1.bf16.msra.mxu0 0
    %1561 = vmatprep.subr.bf16.mxu0 0
    %1562 = vmatpush1.bf16.msra.mxu0 0
    %1563 = vmatprep.subr.bf16.mxu0 0
    %1564 = vmatpush1.bf16.msra.mxu0 0
    %1565 = vmatprep.subr.bf16.mxu0 0
    %1566 = vmatpush1.bf16.msra.mxu0 0
    %1567 = vmatprep.subr.bf16.mxu0 0
    %1568 = vmatpush1.bf16.msra.mxu0 0
    %1569 = vmatprep.subr.bf16.mxu0 0
    %1570 = vmatpush1.bf16.msra.mxu0 0
    %1571 = vmatprep.subr.bf16.mxu0 0
    %1572 = vmatpush1.bf16.msra.mxu0 0
    %1573 = vmatprep.subr.bf16.mxu0 0
    %1574 = vmatpush1.bf16.msra.mxu0 0
    %1575 = vmatprep.subr.bf16.mxu0 0
    %1576 = vmatpush1.bf16.msra.mxu0 0
    %1577 = vmatprep.subr.bf16.mxu0 0
    %1578 = vmatpush1.bf16.msra.mxu0 0
    %1579 = vmatprep.subr.bf16.mxu0 0
    %1580 = vmatpush1.bf16.msra.mxu0 0
    %1581 = vmatprep.subr.bf16.mxu0 0
    %1582 = vmatpush1.bf16.msra.mxu0 0
    %1583 = vmatprep.subr.bf16.mxu0 0
    %1584 = vmatpush1.bf16.msra.mxu0 0
    %1585 = vmatprep.subr.bf16.mxu0 0
    %1586 = vmatpush1.bf16.msra.mxu0 0
    %1587 = vmatprep.subr.bf16.mxu0 0
    %1588 = vmatpush1.bf16.msra.mxu0 0
    %1589 = vmatprep.mubr.bf16.mxu0 0
    %1590 = vmatmul.mubr.bf16.gmra.mrb[0].mxu0 %v1552
    %v1591 = vpop.f32.mrb[0].mxu0
    %v1592 = vadd.f32 0.0, %v1591
    %v1593 = vpop.f32.mrb[0].mxu0
    %v1594 = vpop.f32.mrb[0].mxu0
    %v1595 = vpop.f32.mrb[0].mxu0
    %1596 = vdwg.mxu0
    %v1598 = vsel %vm1411, %v1383, 0
    %v1601 = vsel %vm1415, %v1399, 0
    %1603 = vmatprep.subr.bf16.mxu0 0
    %1604 = vmatpush1.bf16.msra.mxu0 %v1601
    %1605 = vmatprep.subr.bf16.mxu0 0
    %1606 = vmatpush1.bf16.msra.mxu0 0
    %1607 = vmatprep.subr.bf16.mxu0 0
    %1608 = vmatpush1.bf16.msra.mxu0 0
    %1609 = vmatprep.subr.bf16.mxu0 0
    %1610 = vmatpush1.bf16.msra.mxu0 0
    %1611 = vmatprep.subr.bf16.mxu0 0
    %1612 = vmatpush1.bf16.msra.mxu0 0
    %1613 = vmatprep.subr.bf16.mxu0 0
    %1614 = vmatpush1.bf16.msra.mxu0 0
    %1615 = vmatprep.subr.bf16.mxu0 0
    %1616 = vmatpush1.bf16.msra.mxu0 0
    %1617 = vmatprep.subr.bf16.mxu0 0
    %1618 = vmatpush1.bf16.msra.mxu0 0
    %1619 = vmatprep.subr.bf16.mxu0 0
    %1620 = vmatpush1.bf16.msra.mxu0 0
    %1621 = vmatprep.subr.bf16.mxu0 0
    %1622 = vmatpush1.bf16.msra.mxu0 0
    %1623 = vmatprep.subr.bf16.mxu0 0
    %1624 = vmatpush1.bf16.msra.mxu0 0
    %1625 = vmatprep.subr.bf16.mxu0 0
    %1626 = vmatpush1.bf16.msra.mxu0 0
    %1627 = vmatprep.subr.bf16.mxu0 0
    %1628 = vmatpush1.bf16.msra.mxu0 0
    %1629 = vmatprep.subr.bf16.mxu0 0
    %1630 = vmatpush1.bf16.msra.mxu0 0
    %1631 = vmatprep.subr.bf16.mxu0 0
    %1632 = vmatpush1.bf16.msra.mxu0 0
    %1633 = vmatprep.subr.bf16.mxu0 0
    %1634 = vmatpush1.bf16.msra.mxu0 0
    %1635 = vmatprep.mubr.bf16.mxu0 0
    %1636 = vmatmul.mubr.bf16.gmra.mrb[0].mxu0 %v1598
    %v1637 = vpop.f32.mrb[0].mxu0
    %v1638 = vadd.f32 0.0, %v1637
    %v1639 = vpop.f32.mrb[0].mxu0
    %v1640 = vpop.f32.mrb[0].mxu0
    %v1641 = vpop.f32.mrb[0].mxu0
    %1642 = vdwg.mxu0
    %v1644 = vsel %vm1411, %v1384, 0
    %v1647 = vsel %vm1415, %v1400, 0
    %1649 = vmatprep.subr.bf16.mxu0 0
    %1650 = vmatpush1.bf16.msra.mxu0 %v1647
    %1651 = vmatprep.subr.bf16.mxu0 0
    %1652 = vmatpush1.bf16.msra.mxu0 0
    %1653 = vmatprep.subr.bf16.mxu0 0
    %1654 = vmatpush1.bf16.msra.mxu0 0
    %1655 = vmatprep.subr.bf16.mxu0 0
    %1656 = vmatpush1.bf16.msra.mxu0 0
    %1657 = vmatprep.subr.bf16.mxu0 0
    %1658 = vmatpush1.bf16.msra.mxu0 0
    %1659 = vmatprep.subr.bf16.mxu0 0
    %1660 = vmatpush1.bf16.msra.mxu0 0
    %1661 = vmatprep.subr.bf16.mxu0 0
    %1662 = vmatpush1.bf16.msra.mxu0 0
    %1663 = vmatprep.subr.bf16.mxu0 0
    %1664 = vmatpush1.bf16.msra.mxu0 0
    %1665 = vmatprep.subr.bf16.mxu0 0
    %1666 = vmatpush1.bf16.msra.mxu0 0
    %1667 = vmatprep.subr.bf16.mxu0 0
    %1668 = vmatpush1.bf16.msra.mxu0 0
    %1669 = vmatprep.subr.bf16.mxu0 0
    %1670 = vmatpush1.bf16.msra.mxu0 0
    %1671 = vmatprep.subr.bf16.mxu0 0
    %1672 = vmatpush1.bf16.msra.mxu0 0
    %1673 = vmatprep.subr.bf16.mxu0 0
    %1674 = vmatpush1.bf16.msra.mxu0 0
    %1675 = vmatprep.subr.bf16.mxu0 0
    %1676 = vmatpush1.bf16.msra.mxu0 0
    %1677 = vmatprep.subr.bf16.mxu0 0
    %1678 = vmatpush1.bf16.msra.mxu0 0
    %1679 = vmatprep.subr.bf16.mxu0 0
    %1680 = vmatpush1.bf16.msra.mxu0 0
    %1681 = vmatprep.mubr.bf16.mxu0 0
    %1682 = vmatmul.mubr.bf16.gmra.mrb[0].mxu0 %v1644
    %v1683 = vpop.f32.mrb[0].mxu0
    %v1684 = vadd.f32 0.0, %v1683
    %v1685 = vpop.f32.mrb[0].mxu0
    %v1686 = vpop.f32.mrb[0].mxu0
    %v1687 = vpop.f32.mrb[0].mxu0
    %1688 = vdwg.mxu0
    %v1690 = vsel %vm1411, %v1385, 0
    %v1693 = vsel %vm1415, %v1401, 0
    %1695 = vmatprep.subr.bf16.mxu0 0
    %1696 = vmatpush1.bf16.msra.mxu0 %v1693
    %1697 = vmatprep.subr.bf16.mxu0 0
    %1698 = vmatpush1.bf16.msra.mxu0 0
    %1699 = vmatprep.subr.bf16.mxu0 0
    %1700 = vmatpush1.bf16.msra.mxu0 0
    %1701 = vmatprep.subr.bf16.mxu0 0
    %1702 = vmatpush1.bf16.msra.mxu0 0
    %1703 = vmatprep.subr.bf16.mxu0 0
    %1704 = vmatpush1.bf16.msra.mxu0 0
    %1705 = vmatprep.subr.bf16.mxu0 0
    %1706 = vmatpush1.bf16.msra.mxu0 0
    %1707 = vmatprep.subr.bf16.mxu0 0
    %1708 = vmatpush1.bf16.msra.mxu0 0
    %1709 = vmatprep.subr.bf16.mxu0 0
    %1710 = vmatpush1.bf16.msra.mxu0 0
    %1711 = vmatprep.subr.bf16.mxu0 0
    %1712 = vmatpush1.bf16.msra.mxu0 0
    %1713 = vmatprep.subr.bf16.mxu0 0
    %1714 = vmatpush1.bf16.msra.mxu0 0
    %1715 = vmatprep.subr.bf16.mxu0 0
    %1716 = vmatpush1.bf16.msra.mxu0 0
    %1717 = vmatprep.subr.bf16.mxu0 0
    %1718 = vmatpush1.bf16.msra.mxu0 0
    %1719 = vmatprep.subr.bf16.mxu0 0
    %1720 = vmatpush1.bf16.msra.mxu0 0
    %1721 = vmatprep.subr.bf16.mxu0 0
    %1722 = vmatpush1.bf16.msra.mxu0 0
    %1723 = vmatprep.subr.bf16.mxu0 0
    %1724 = vmatpush1.bf16.msra.mxu0 0
    %1725 = vmatprep.subr.bf16.mxu0 0
    %1726 = vmatpush1.bf16.msra.mxu0 0
    %1727 = vmatprep.mubr.bf16.mxu0 0
    %1728 = vmatmul.mubr.bf16.gmra.mrb[0].mxu0 %v1690
    %v1729 = vpop.f32.mrb[0].mxu0
    %v1730 = vadd.f32 0.0, %v1729
    %v1731 = vpop.f32.mrb[0].mxu0
    %v1732 = vpop.f32.mrb[0].mxu0
    %v1733 = vpop.f32.mrb[0].mxu0
    %1734 = vdwg.mxu0
    %v1736 = vsel %vm1411, %v1386, 0
    %v1739 = vsel %vm1415, %v1402, 0
    %1741 = vmatprep.subr.bf16.mxu0 0
    %1742 = vmatpush1.bf16.msra.mxu0 %v1739
    %1743 = vmatprep.subr.bf16.mxu0 0
    %1744 = vmatpush1.bf16.msra.mxu0 0
    %1745 = vmatprep.subr.bf16.mxu0 0
    %1746 = vmatpush1.bf16.msra.mxu0 0
    %1747 = vmatprep.subr.bf16.mxu0 0
    %1748 = vmatpush1.bf16.msra.mxu0 0
    %1749 = vmatprep.subr.bf16.mxu0 0
    %1750 = vmatpush1.bf16.msra.mxu0 0
    %1751 = vmatprep.subr.bf16.mxu0 0
    %1752 = vmatpush1.bf16.msra.mxu0 0
    %1753 = vmatprep.subr.bf16.mxu0 0
    %1754 = vmatpush1.bf16.msra.mxu0 0
    %1755 = vmatprep.subr.bf16.mxu0 0
    %1756 = vmatpush1.bf16.msra.mxu0 0
    %1757 = vmatprep.subr.bf16.mxu0 0
    %1758 = vmatpush1.bf16.msra.mxu0 0
    %1759 = vmatprep.subr.bf16.mxu0 0
    %1760 = vmatpush1.bf16.msra.mxu0 0
    %1761 = vmatprep.subr.bf16.mxu0 0
    %1762 = vmatpush1.bf16.msra.mxu0 0
    %1763 = vmatprep.subr.bf16.mxu0 0
    %1764 = vmatpush1.bf16.msra.mxu0 0
    %1765 = vmatprep.subr.bf16.mxu0 0
    %1766 = vmatpush1.bf16.msra.mxu0 0
    %1767 = vmatprep.subr.bf16.mxu0 0
    %1768 = vmatpush1.bf16.msra.mxu0 0
    %1769 = vmatprep.subr.bf16.mxu0 0
    %1770 = vmatpush1.bf16.msra.mxu0 0
    %1771 = vmatprep.subr.bf16.mxu0 0
    %1772 = vmatpush1.bf16.msra.mxu0 0
    %1773 = vmatprep.mubr.bf16.mxu0 0
    %1774 = vmatmul.mubr.bf16.gmra.mrb[0].mxu0 %v1736
    %v1775 = vpop.f32.mrb[0].mxu0
    %v1776 = vadd.f32 0.0, %v1775
    %v1777 = vpop.f32.mrb[0].mxu0
    %v1778 = vpop.f32.mrb[0].mxu0
    %v1779 = vpop.f32.mrb[0].mxu0
    %1780 = vdwg.mxu0
    %v1782 = vsel %vm1411, %v1387, 0
    %v1785 = vsel %vm1415, %v1403, 0
    %1787 = vmatprep.subr.bf16.mxu0 0
    %1788 = vmatpush1.bf16.msra.mxu0 %v1785
    %1789 = vmatprep.subr.bf16.mxu0 0
    %1790 = vmatpush1.bf16.msra.mxu0 0
    %1791 = vmatprep.subr.bf16.mxu0 0
    %1792 = vmatpush1.bf16.msra.mxu0 0
    %1793 = vmatprep.subr.bf16.mxu0 0
    %1794 = vmatpush1.bf16.msra.mxu0 0
    %1795 = vmatprep.subr.bf16.mxu0 0
    %1796 = vmatpush1.bf16.msra.mxu0 0
    %1797 = vmatprep.subr.bf16.mxu0 0
    %1798 = vmatpush1.bf16.msra.mxu0 0
    %1799 = vmatprep.subr.bf16.mxu0 0
    %1800 = vmatpush1.bf16.msra.mxu0 0
    %1801 = vmatprep.subr.bf16.mxu0 0
    %1802 = vmatpush1.bf16.msra.mxu0 0
    %1803 = vmatprep.subr.bf16.mxu0 0
    %1804 = vmatpush1.bf16.msra.mxu0 0
    %1805 = vmatprep.subr.bf16.mxu0 0
    %1806 = vmatpush1.bf16.msra.mxu0 0
    %1807 = vmatprep.subr.bf16.mxu0 0
    %1808 = vmatpush1.bf16.msra.mxu0 0
    %1809 = vmatprep.subr.bf16.mxu0 0
    %1810 = vmatpush1.bf16.msra.mxu0 0
    %1811 = vmatprep.subr.bf16.mxu0 0
    %1812 = vmatpush1.bf16.msra.mxu0 0
    %1813 = vmatprep.subr.bf16.mxu0 0
    %1814 = vmatpush1.bf16.msra.mxu0 0
    %1815 = vmatprep.subr.bf16.mxu0 0
    %1816 = vmatpush1.bf16.msra.mxu0 0
    %1817 = vmatprep.subr.bf16.mxu0 0
    %1818 = vmatpush1.bf16.msra.mxu0 0
    %1819 = vmatprep.mubr.bf16.mxu0 0
    %1820 = vmatmul.mubr.bf16.gmra.mrb[0].mxu0 %v1782
    %v1821 = vpop.f32.mrb[0].mxu0
    %v1822 = vadd.f32 0.0, %v1821
    %v1823 = vpop.f32.mrb[0].mxu0
    %v1824 = vpop.f32.mrb[0].mxu0
    %v1825 = vpop.f32.mrb[0].mxu0
    %1826 = vdwg.mxu0
    %v1828 = vsel %vm1411, %v1388, 0
    %v1831 = vsel %vm1415, %v1404, 0
    %1833 = vmatprep.subr.bf16.mxu0 0
    %1834 = vmatpush1.bf16.msra.mxu0 %v1831
    %1835 = vmatprep.subr.bf16.mxu0 0
    %1836 = vmatpush1.bf16.msra.mxu0 0
    %1837 = vmatprep.subr.bf16.mxu0 0
    %1838 = vmatpush1.bf16.msra.mxu0 0
    %1839 = vmatprep.subr.bf16.mxu0 0
    %1840 = vmatpush1.bf16.msra.mxu0 0
    %1841 = vmatprep.subr.bf16.mxu0 0
    %1842 = vmatpush1.bf16.msra.mxu0 0
    %1843 = vmatprep.subr.bf16.mxu0 0
    %1844 = vmatpush1.bf16.msra.mxu0 0
    %1845 = vmatprep.subr.bf16.mxu0 0
    %1846 = vmatpush1.bf16.msra.mxu0 0
    %1847 = vmatprep.subr.bf16.mxu0 0
    %1848 = vmatpush1.bf16.msra.mxu0 0
    %1849 = vmatprep.subr.bf16.mxu0 0
    %1850 = vmatpush1.bf16.msra.mxu0 0
    %1851 = vmatprep.subr.bf16.mxu0 0
    %1852 = vmatpush1.bf16.msra.mxu0 0
    %1853 = vmatprep.subr.bf16.mxu0 0
    %1854 = vmatpush1.bf16.msra.mxu0 0
    %1855 = vmatprep.subr.bf16.mxu0 0
    %1856 = vmatpush1.bf16.msra.mxu0 0
    %1857 = vmatprep.subr.bf16.mxu0 0
    %1858 = vmatpush1.bf16.msra.mxu0 0
    %1859 = vmatprep.subr.bf16.mxu0 0
    %1860 = vmatpush1.bf16.msra.mxu0 0
    %1861 = vmatprep.subr.bf16.mxu0 0
    %1862 = vmatpush1.bf16.msra.mxu0 0
    %1863 = vmatprep.subr.bf16.mxu0 0
    %1864 = vmatpush1.bf16.msra.mxu0 0
    %1865 = vmatprep.mubr.bf16.mxu0 0
    %1866 = vmatmul.mubr.bf16.gmra.mrb[0].mxu0 %v1828
    %v1867 = vpop.f32.mrb[0].mxu0
    %v1868 = vadd.f32 0.0, %v1867
    %v1869 = vpop.f32.mrb[0].mxu0
    %v1870 = vpop.f32.mrb[0].mxu0
    %v1871 = vpop.f32.mrb[0].mxu0
    %1872 = vdwg.mxu0
    %v1874 = vsel %vm1411, %v1389, 0
    %v1877 = vsel %vm1415, %v1405, 0
    %1879 = vmatprep.subr.bf16.mxu0 0
    %1880 = vmatpush1.bf16.msra.mxu0 %v1877
    %1881 = vmatprep.subr.bf16.mxu0 0
    %1882 = vmatpush1.bf16.msra.mxu0 0
    %1883 = vmatprep.subr.bf16.mxu0 0
    %1884 = vmatpush1.bf16.msra.mxu0 0
    %1885 = vmatprep.subr.bf16.mxu0 0
    %1886 = vmatpush1.bf16.msra.mxu0 0
    %1887 = vmatprep.subr.bf16.mxu0 0
    %1888 = vmatpush1.bf16.msra.mxu0 0
    %1889 = vmatprep.subr.bf16.mxu0 0
    %1890 = vmatpush1.bf16.msra.mxu0 0
    %1891 = vmatprep.subr.bf16.mxu0 0
    %1892 = vmatpush1.bf16.msra.mxu0 0
    %1893 = vmatprep.subr.bf16.mxu0 0
    %1894 = vmatpush1.bf16.msra.mxu0 0
    %1895 = vmatprep.subr.bf16.mxu0 0
    %1896 = vmatpush1.bf16.msra.mxu0 0
    %1897 = vmatprep.subr.bf16.mxu0 0
    %1898 = vmatpush1.bf16.msra.mxu0 0
    %1899 = vmatprep.subr.bf16.mxu0 0
    %1900 = vmatpush1.bf16.msra.mxu0 0
    %1901 = vmatprep.subr.bf16.mxu0 0
    %1902 = vmatpush1.bf16.msra.mxu0 0
    %1903 = vmatprep.subr.bf16.mxu0 0
    %1904 = vmatpush1.bf16.msra.mxu0 0
    %1905 = vmatprep.subr.bf16.mxu0 0
    %1906 = vmatpush1.bf16.msra.mxu0 0
    %1907 = vmatprep.subr.bf16.mxu0 0
    %1908 = vmatpush1.bf16.msra.mxu0 0
    %1909 = vmatprep.subr.bf16.mxu0 0
    %1910 = vmatpush1.bf16.msra.mxu0 0
    %1911 = vmatprep.mubr.bf16.mxu0 0
    %1912 = vmatmul.mubr.bf16.gmra.mrb[0].mxu0 %v1874
    %v1913 = vpop.f32.mrb[0].mxu0
    %v1914 = vadd.f32 0.0, %v1913
    %v1915 = vpop.f32.mrb[0].mxu0
    %v1916 = vpop.f32.mrb[0].mxu0
    %v1917 = vpop.f32.mrb[0].mxu0
    %1918 = vdwg.mxu0
    %v1920 = vsel %vm1411, %v1390, 0
    %v1923 = vsel %vm1415, %v1406, 0
    %1925 = vmatprep.subr.bf16.mxu0 0
    %1926 = vmatpush1.bf16.msra.mxu0 %v1923
    %1927 = vmatprep.subr.bf16.mxu0 0
    %1928 = vmatpush1.bf16.msra.mxu0 0
    %1929 = vmatprep.subr.bf16.mxu0 0
    %1930 = vmatpush1.bf16.msra.mxu0 0
    %1931 = vmatprep.subr.bf16.mxu0 0
    %1932 = vmatpush1.bf16.msra.mxu0 0
    %1933 = vmatprep.subr.bf16.mxu0 0
    %1934 = vmatpush1.bf16.msra.mxu0 0
    %1935 = vmatprep.subr.bf16.mxu0 0
    %1936 = vmatpush1.bf16.msra.mxu0 0
    %1937 = vmatprep.subr.bf16.mxu0 0
    %1938 = vmatpush1.bf16.msra.mxu0 0
    %1939 = vmatprep.subr.bf16.mxu0 0
    %1940 = vmatpush1.bf16.msra.mxu0 0
    %1941 = vmatprep.subr.bf16.mxu0 0
    %1942 = vmatpush1.bf16.msra.mxu0 0
    %1943 = vmatprep.subr.bf16.mxu0 0
    %1944 = vmatpush1.bf16.msra.mxu0 0
    %1945 = vmatprep.subr.bf16.mxu0 0
    %1946 = vmatpush1.bf16.msra.mxu0 0
    %1947 = vmatprep.subr.bf16.mxu0 0
    %1948 = vmatpush1.bf16.msra.mxu0 0
    %1949 = vmatprep.subr.bf16.mxu0 0
    %1950 = vmatpush1.bf16.msra.mxu0 0
    %1951 = vmatprep.subr.bf16.mxu0 0
    %1952 = vmatpush1.bf16.msra.mxu0 0
    %1953 = vmatprep.subr.bf16.mxu0 0
    %1954 = vmatpush1.bf16.msra.mxu0 0
    %1955 = vmatprep.subr.bf16.mxu0 0
    %1956 = vmatpush1.bf16.msra.mxu0 0
    %1957 = vmatprep.mubr.bf16.mxu0 0
    %1958 = vmatmul.mubr.bf16.gmra.mrb[0].mxu0 %v1920
    %v1959 = vpop.f32.mrb[0].mxu0
    %v1960 = vadd.f32 0.0, %v1959
    %v1961 = vpop.f32.mrb[0].mxu0
    %v1962 = vpop.f32.mrb[0].mxu0
    %v1963 = vpop.f32.mrb[0].mxu0
    %1964 = vdwg.mxu0
    %v1966 = vsel %vm1411, %v1391, 0
    %v1969 = vsel %vm1415, %v1407, 0
    %1971 = vmatprep.subr.bf16.mxu0 0
    %1972 = vmatpush1.bf16.msra.mxu0 %v1969
    %1973 = vmatprep.subr.bf16.mxu0 0
    %1974 = vmatpush1.bf16.msra.mxu0 0
    %1975 = vmatprep.subr.bf16.mxu0 0
    %1976 = vmatpush1.bf16.msra.mxu0 0
    %1977 = vmatprep.subr.bf16.mxu0 0
    %1978 = vmatpush1.bf16.msra.mxu0 0
    %1979 = vmatprep.subr.bf16.mxu0 0
    %1980 = vmatpush1.bf16.msra.mxu0 0
    %1981 = vmatprep.subr.bf16.mxu0 0
    %1982 = vmatpush1.bf16.msra.mxu0 0
    %1983 = vmatprep.subr.bf16.mxu0 0
    %1984 = vmatpush1.bf16.msra.mxu0 0
    %1985 = vmatprep.subr.bf16.mxu0 0
    %1986 = vmatpush1.bf16.msra.mxu0 0
    %1987 = vmatprep.subr.bf16.mxu0 0
    %1988 = vmatpush1.bf16.msra.mxu0 0
    %1989 = vmatprep.subr.bf16.mxu0 0
    %1990 = vmatpush1.bf16.msra.mxu0 0
    %1991 = vmatprep.subr.bf16.mxu0 0
    %1992 = vmatpush1.bf16.msra.mxu0 0
    %1993 = vmatprep.subr.bf16.mxu0 0
    %1994 = vmatpush1.bf16.msra.mxu0 0
    %1995 = vmatprep.subr.bf16.mxu0 0
    %1996 = vmatpush1.bf16.msra.mxu0 0
    %1997 = vmatprep.subr.bf16.mxu0 0
    %1998 = vmatpush1.bf16.msra.mxu0 0
    %1999 = vmatprep.subr.bf16.mxu0 0
    %2000 = vmatpush1.bf16.msra.mxu0 0
    %2001 = vmatprep.subr.bf16.mxu0 0
    %2002 = vmatpush1.bf16.msra.mxu0 0
    %2003 = vmatprep.mubr.bf16.mxu0 0
    %2004 = vmatmul.mubr.bf16.gmra.mrb[0].mxu0 %v1966
    %v2005 = vpop.f32.mrb[0].mxu0
    %v2006 = vadd.f32 0.0, %v2005
    %v2007 = vpop.f32.mrb[0].mxu0
    %v2008 = vpop.f32.mrb[0].mxu0
    %v2009 = vpop.f32.mrb[0].mxu0
    %2010 = vdwg.mxu0
    %v2012 = vsel %vm1411, %v1392, 0
    %v2015 = vsel %vm1415, %v1408, 0
    %2017 = vmatprep.subr.bf16.mxu0 0
    %2018 = vmatpush1.bf16.msra.mxu0 %v2015
    %2019 = vmatprep.subr.bf16.mxu0 0
    %2020 = vmatpush1.bf16.msra.mxu0 0
    %2021 = vmatprep.subr.bf16.mxu0 0
    %2022 = vmatpush1.bf16.msra.mxu0 0
    %2023 = vmatprep.subr.bf16.mxu0 0
    %2024 = vmatpush1.bf16.msra.mxu0 0
    %2025 = vmatprep.subr.bf16.mxu0 0
    %2026 = vmatpush1.bf16.msra.mxu0 0
    %2027 = vmatprep.subr.bf16.mxu0 0
    %2028 = vmatpush1.bf16.msra.mxu0 0
    %2029 = vmatprep.subr.bf16.mxu0 0
    %2030 = vmatpush1.bf16.msra.mxu0 0
    %2031 = vmatprep.subr.bf16.mxu0 0
    %2032 = vmatpush1.bf16.msra.mxu0 0
    %2033 = vmatprep.subr.bf16.mxu0 0
    %2034 = vmatpush1.bf16.msra.mxu0 0
    %2035 = vmatprep.subr.bf16.mxu0 0
    %2036 = vmatpush1.bf16.msra.mxu0 0
    %2037 = vmatprep.subr.bf16.mxu0 0
    %2038 = vmatpush1.bf16.msra.mxu0 0
    %2039 = vmatprep.subr.bf16.mxu0 0
    %2040 = vmatpush1.bf16.msra.mxu0 0
    %2041 = vmatprep.subr.bf16.mxu0 0
    %2042 = vmatpush1.bf16.msra.mxu0 0
    %2043 = vmatprep.subr.bf16.mxu0 0
    %2044 = vmatpush1.bf16.msra.mxu0 0
    %2045 = vmatprep.subr.bf16.mxu0 0
    %2046 = vmatpush1.bf16.msra.mxu0 0
    %2047 = vmatprep.subr.bf16.mxu0 0
    %2048 = vmatpush1.bf16.msra.mxu0 0
    %2049 = vmatprep.mubr.bf16.mxu0 0
    %2050 = vmatmul.mubr.bf16.gmra.mrb[0].mxu0 %v2012
    %v2051 = vpop.f32.mrb[0].mxu0
    %v2052 = vadd.f32 0.0, %v2051
    %v2053 = vpop.f32.mrb[0].mxu0
    %v2054 = vpop.f32.mrb[0].mxu0
    %v2055 = vpop.f32.mrb[0].mxu0
    %2056 = vdwg.mxu0
    %v2058 = vsel %vm1411, %v1393, 0
    %v2061 = vsel %vm1415, %v1409, 0
    %2063 = vmatprep.subr.bf16.mxu0 0
    %2064 = vmatpush1.bf16.msra.mxu0 %v2061
    %2065 = vmatprep.subr.bf16.mxu0 0
    %2066 = vmatpush1.bf16.msra.mxu0 0
    %2067 = vmatprep.subr.bf16.mxu0 0
    %2068 = vmatpush1.bf16.msra.mxu0 0
    %2069 = vmatprep.subr.bf16.mxu0 0
    %2070 = vmatpush1.bf16.msra.mxu0 0
    %2071 = vmatprep.subr.bf16.mxu0 0
    %2072 = vmatpush1.bf16.msra.mxu0 0
    %2073 = vmatprep.subr.bf16.mxu0 0
    %2074 = vmatpush1.bf16.msra.mxu0 0
    %2075 = vmatprep.subr.bf16.mxu0 0
    %2076 = vmatpush1.bf16.msra.mxu0 0
    %2077 = vmatprep.subr.bf16.mxu0 0
    %2078 = vmatpush1.bf16.msra.mxu0 0
    %2079 = vmatprep.subr.bf16.mxu0 0
    %2080 = vmatpush1.bf16.msra.mxu0 0
    %2081 = vmatprep.subr.bf16.mxu0 0
    %2082 = vmatpush1.bf16.msra.mxu0 0
    %2083 = vmatprep.subr.bf16.mxu0 0
    %2084 = vmatpush1.bf16.msra.mxu0 0
    %2085 = vmatprep.subr.bf16.mxu0 0
    %2086 = vmatpush1.bf16.msra.mxu0 0
    %2087 = vmatprep.subr.bf16.mxu0 0
    %2088 = vmatpush1.bf16.msra.mxu0 0
    %2089 = vmatprep.subr.bf16.mxu0 0
    %2090 = vmatpush1.bf16.msra.mxu0 0
    %2091 = vmatprep.subr.bf16.mxu0 0
    %2092 = vmatpush1.bf16.msra.mxu0 0
    %2093 = vmatprep.subr.bf16.mxu0 0
    %2094 = vmatpush1.bf16.msra.mxu0 0
    %2095 = vmatprep.mubr.bf16.mxu0 0
    %2096 = vmatmul.mubr.bf16.gmra.mrb[0].mxu0 %v2058
    %v2097 = vpop.f32.mrb[0].mxu0
    %v2098 = vadd.f32 0.0, %v2097
    %v2099 = vpop.f32.mrb[0].mxu0
    %v2100 = vpop.f32.mrb[0].mxu0
    %v2101 = vpop.f32.mrb[0].mxu0
    %2102 = vdwg.mxu0
    %v2104 = vsel %vm1411, %v1394, 0
    %v2107 = vsel %vm1415, %v1410, 0
    %2109 = vmatprep.subr.bf16.mxu0 0
    %2110 = vmatpush1.bf16.msra.mxu0 %v2107
    %2111 = vmatprep.subr.bf16.mxu0 0
    %2112 = vmatpush1.bf16.msra.mxu0 0
    %2113 = vmatprep.subr.bf16.mxu0 0
    %2114 = vmatpush1.bf16.msra.mxu0 0
    %2115 = vmatprep.subr.bf16.mxu0 0
    %2116 = vmatpush1.bf16.msra.mxu0 0
    %2117 = vmatprep.subr.bf16.mxu0 0
    %2118 = vmatpush1.bf16.msra.mxu0 0
    %2119 = vmatprep.subr.bf16.mxu0 0
    %2120 = vmatpush1.bf16.msra.mxu0 0
    %2121 = vmatprep.subr.bf16.mxu0 0
    %2122 = vmatpush1.bf16.msra.mxu0 0
    %2123 = vmatprep.subr.bf16.mxu0 0
    %2124 = vmatpush1.bf16.msra.mxu0 0
    %2125 = vmatprep.subr.bf16.mxu0 0
    %2126 = vmatpush1.bf16.msra.mxu0 0
    %2127 = vmatprep.subr.bf16.mxu0 0
    %2128 = vmatpush1.bf16.msra.mxu0 0
    %2129 = vmatprep.subr.bf16.mxu0 0
    %2130 = vmatpush1.bf16.msra.mxu0 0
    %2131 = vmatprep.subr.bf16.mxu0 0
    %2132 = vmatpush1.bf16.msra.mxu0 0
    %2133 = vmatprep.subr.bf16.mxu0 0
    %2134 = vmatpush1.bf16.msra.mxu0 0
    %2135 = vmatprep.subr.bf16.mxu0 0
    %2136 = vmatpush1.bf16.msra.mxu0 0
    %2137 = vmatprep.subr.bf16.mxu0 0
    %2138 = vmatpush1.bf16.msra.mxu0 0
    %2139 = vmatprep.subr.bf16.mxu0 0
    %2140 = vmatpush1.bf16.msra.mxu0 0
    %2141 = vmatprep.mubr.bf16.mxu0 0
    %2142 = vmatmul.mubr.bf16.gmra.mrb[0].mxu0 %v2104
    %v2143 = vpop.f32.mrb[0].mxu0
    %v2144 = vadd.f32 0.0, %v2143
    %v2145 = vpop.f32.mrb[0].mxu0
    %v2146 = vpop.f32.mrb[0].mxu0
    %v2147 = vpop.f32.mrb[0].mxu0
    %2148 = vdwg.mxu0
    %v2149 = vadd.f32 %v1363, %v1454
    %v2150 = vadd.f32 %v1364, %v1500
    %v2151 = vadd.f32 %v1365, %v1546
    %v2152 = vadd.f32 %v1366, %v1592
    %v2153 = vadd.f32 %v1367, %v1638
    %v2154 = vadd.f32 %v1368, %v1684
    %v2155 = vadd.f32 %v1369, %v1730
    %v2156 = vadd.f32 %v1370, %v1776
    %v2157 = vadd.f32 %v1371, %v1822
    %v2158 = vadd.f32 %v1372, %v1868
    %v2159 = vadd.f32 %v1373, %v1914
    %v2160 = vadd.f32 %v1374, %v1960
    %v2161 = vadd.f32 %v1375, %v2006
    %v2162 = vadd.f32 %v1376, %v2052
    %v2163 = vadd.f32 %v1377, %v2098
    %v2164 = vadd.f32 %v1378, %v2144
    %vm2165 = vcmask 60416
    %2166 = vst.msk [vmem:[#allocation4] sm:$0xf] %vm2165, %v2149
    %2167 = vst.msk [vmem:[#allocation4 + $0x4] sm:$0xf] %vm2165, %v2150
    %2168 = vst.msk [vmem:[#allocation4 + $0x8] sm:$0xf] %vm2165, %v2151
    %2169 = vst.msk [vmem:[#allocation4 + $0xc] sm:$0xf] %vm2165, %v2152
    %2170 = vst.msk [vmem:[#allocation4 + $0x10] sm:$0xf] %vm2165, %v2153
    %2171 = vst.msk [vmem:[#allocation4 + $0x14] sm:$0xf] %vm2165, %v2154
    %2172 = vst.msk [vmem:[#allocation4 + $0x18] sm:$0xf] %vm2165, %v2155
    %2173 = vst.msk [vmem:[#allocation4 + $0x1c] sm:$0xf] %vm2165, %v2156
    %2174 = vst.msk [vmem:[#allocation4 + $0x20] sm:$0xf] %vm2165, %v2157
    %2175 = vst.msk [vmem:[#allocation4 + $0x24] sm:$0xf] %vm2165, %v2158
    %2176 = vst.msk [vmem:[#allocation4 + $0x28] sm:$0xf] %vm2165, %v2159
    %2177 = vst.msk [vmem:[#allocation4 + $0x2c] sm:$0xf] %vm2165, %v2160
    %2178 = vst.msk [vmem:[#allocation4 + $0x30] sm:$0xf] %vm2165, %v2161
    %2179 = vst.msk [vmem:[#allocation4 + $0x34] sm:$0xf] %vm2165, %v2162
    %2180 = vst.msk [vmem:[#allocation4 + $0x38] sm:$0xf] %vm2165, %v2163
    %2181 = vst.msk [vmem:[#allocation4 + $0x3c] sm:$0xf] %vm2165, %v2164
    %2182 = vst.msk [vmem:[#allocation2] sm:$0xf] %vm1250, %v962
    %2183 = vst.msk [vmem:[#allocation2 + $0x4] sm:$0xf] %vm1250, %v963
    %2184 = vst.msk [vmem:[#allocation2 + $0x8] sm:$0xf] %vm1250, %v964
    %2185 = vst.msk [vmem:[#allocation2 + $0xc] sm:$0xf] %vm1250, %v965
    %2186 = vst.msk [vmem:[#allocation2 + $0x10] sm:$0xf] %vm1250, %v966
    %2187 = vst.msk [vmem:[#allocation2 + $0x14] sm:$0xf] %vm1250, %v967
    %2188 = vst.msk [vmem:[#allocation2 + $0x18] sm:$0xf] %vm1250, %v968
    %2189 = vst.msk [vmem:[#allocation2 + $0x1c] sm:$0xf] %vm1250, %v969
    %2190 = vst.msk [vmem:[#allocation2 + $0x20] sm:$0xf] %vm1250, %v970
    %2191 = vst.msk [vmem:[#allocation2 + $0x24] sm:$0xf] %vm1250, %v971
    %2192 = vst.msk [vmem:[#allocation2 + $0x28] sm:$0xf] %vm1250, %v972
    %2193 = vst.msk [vmem:[#allocation2 + $0x2c] sm:$0xf] %vm1250, %v973
    %2194 = vst.msk [vmem:[#allocation2 + $0x30] sm:$0xf] %vm1250, %v974
    %2195 = vst.msk [vmem:[#allocation2 + $0x34] sm:$0xf] %vm1250, %v975
    %2196 = vst.msk [vmem:[#allocation2 + $0x38] sm:$0xf] %vm1250, %v976
    %2197 = vst.msk [vmem:[#allocation2 + $0x3c] sm:$0xf] %vm1250, %v977
    // Predicated region
    $region30: #{_lambda_.33} parent=1 // pred_check
      %p2198 = pneg %p58
    $region31: #{_lambda_.33} parent=1 // pred_check_branch
      %2200 = sbr.rel (%p2198) target = $region33
    $region32: #{_lambda_.33} parent=1 // pred_region
      %v2201 = vld [vmem:[#allocation4] sm:$0xf]
      %v2202 = vld [vmem:[#allocation4 + $0x4] sm:$0xf]
      %v2203 = vld [vmem:[#allocation4 + $0x8] sm:$0xf]
      %v2204 = vld [vmem:[#allocation4 + $0xc] sm:$0xf]
      %v2205 = vld [vmem:[#allocation4 + $0x10] sm:$0xf]
      %v2206 = vld [vmem:[#allocation4 + $0x14] sm:$0xf]
      %v2207 = vld [vmem:[#allocation4 + $0x18] sm:$0xf]
      %v2208 = vld [vmem:[#allocation4 + $0x1c] sm:$0xf]
      %v2209 = vld [vmem:[#allocation4 + $0x20] sm:$0xf]
      %v2210 = vld [vmem:[#allocation4 + $0x24] sm:$0xf]
      %v2211 = vld [vmem:[#allocation4 + $0x28] sm:$0xf]
      %v2212 = vld [vmem:[#allocation4 + $0x2c] sm:$0xf]
      %v2213 = vld [vmem:[#allocation4 + $0x30] sm:$0xf]
      %v2214 = vld [vmem:[#allocation4 + $0x34] sm:$0xf]
      %v2215 = vld [vmem:[#allocation4 + $0x38] sm:$0xf]
      %v2216 = vld [vmem:[#allocation4 + $0x3c] sm:$0xf]
      %v2217 = vld [vmem:[#allocation3] sm:$0xf]
      %v2218 = vld [vmem:[#allocation3 + $0x4] sm:$0xf]
      %v2219 = vld [vmem:[#allocation3 + $0x8] sm:$0xf]
      %v2220 = vld [vmem:[#allocation3 + $0xc] sm:$0xf]
      %v2221 = vld [vmem:[#allocation3 + $0x10] sm:$0xf]
      %v2222 = vld [vmem:[#allocation3 + $0x14] sm:$0xf]
      %v2223 = vld [vmem:[#allocation3 + $0x18] sm:$0xf]
      %v2224 = vld [vmem:[#allocation3 + $0x1c] sm:$0xf]
      %v2225 = vld [vmem:[#allocation3 + $0x20] sm:$0xf]
      %v2226 = vld [vmem:[#allocation3 + $0x24] sm:$0xf]
      %v2227 = vld [vmem:[#allocation3 + $0x28] sm:$0xf]
      %v2228 = vld [vmem:[#allocation3 + $0x2c] sm:$0xf]
      %v2229 = vld [vmem:[#allocation3 + $0x30] sm:$0xf]
      %v2230 = vld [vmem:[#allocation3 + $0x34] sm:$0xf]
      %v2231 = vld [vmem:[#allocation3 + $0x38] sm:$0xf]
      %v2232 = vld [vmem:[#allocation3 + $0x3c] sm:$0xf]
      %v2233 = vrcp.pop %v2217
      %v2234 = vrcp.pop %v2218
      %v2235 = vrcp.pop %v2219
      %v2236 = vrcp.pop %v2220
      %v2237 = vrcp.pop %v2221
      %v2238 = vrcp.pop %v2222
      %v2239 = vrcp.pop %v2223
      %v2240 = vrcp.pop %v2224
      %v2241 = vrcp.pop %v2225
      %v2242 = vrcp.pop %v2226
      %v2243 = vrcp.pop %v2227
      %v2244 = vrcp.pop %v2228
      %v2245 = vrcp.pop %v2229
      %v2246 = vrcp.pop %v2230
      %v2247 = vrcp.pop %v2231
      %v2248 = vrcp.pop %v2232
      %2250 = vset.pattern.permute.xlu0 0
      %2251 = vperm.xlu0 %2250, %v2233
      %v2252 = vpop.permute.xlu0 %2251
      %2255 = vset.pattern.permute.xlu0 0
      %2256 = vperm.xlu0 %2255, %v2234
      %v2257 = vpop.permute.xlu0 %2256
      %2260 = vset.pattern.permute.xlu0 0
      %2261 = vperm.xlu0 %2260, %v2235
      %v2262 = vpop.permute.xlu0 %2261
      %2265 = vset.pattern.permute.xlu0 0
      %2266 = vperm.xlu0 %2265, %v2236
      %v2267 = vpop.permute.xlu0 %2266
      %2270 = vset.pattern.permute.xlu0 0
      %2271 = vperm.xlu0 %2270, %v2237
      %v2272 = vpop.permute.xlu0 %2271
      %2275 = vset.pattern.permute.xlu0 0
      %2276 = vperm.xlu0 %2275, %v2238
      %v2277 = vpop.permute.xlu0 %2276
      %2280 = vset.pattern.permute.xlu0 0
      %2281 = vperm.xlu0 %2280, %v2239
      %v2282 = vpop.permute.xlu0 %2281
      %2285 = vset.pattern.permute.xlu0 0
      %2286 = vperm.xlu0 %2285, %v2240
      %v2287 = vpop.permute.xlu0 %2286
      %2290 = vset.pattern.permute.xlu0 0
      %2291 = vperm.xlu0 %2290, %v2241
      %v2292 = vpop.permute.xlu0 %2291
      %2295 = vset.pattern.permute.xlu0 0
      %2296 = vperm.xlu0 %2295, %v2242
      %v2297 = vpop.permute.xlu0 %2296
      %2300 = vset.pattern.permute.xlu0 0
      %2301 = vperm.xlu0 %2300, %v2243
      %v2302 = vpop.permute.xlu0 %2301
      %2305 = vset.pattern.permute.xlu0 0
      %2306 = vperm.xlu0 %2305, %v2244
      %v2307 = vpop.permute.xlu0 %2306
      %2310 = vset.pattern.permute.xlu0 0
      %2311 = vperm.xlu0 %2310, %v2245
      %v2312 = vpop.permute.xlu0 %2311
      %2315 = vset.pattern.permute.xlu0 0
      %2316 = vperm.xlu0 %2315, %v2246
      %v2317 = vpop.permute.xlu0 %2316
      %2320 = vset.pattern.permute.xlu0 0
      %2321 = vperm.xlu0 %2320, %v2247
      %v2322 = vpop.permute.xlu0 %2321
      %2325 = vset.pattern.permute.xlu0 0
      %2326 = vperm.xlu0 %2325, %v2248
      %v2327 = vpop.permute.xlu0 %2326
      %v2329 = vmul.f32 %v2201, %v2252
      %v2330 = vmul.f32 %v2202, %v2257
      %v2331 = vmul.f32 %v2203, %v2262
      %v2332 = vmul.f32 %v2204, %v2267
      %v2333 = vmul.f32 %v2205, %v2272
      %v2334 = vmul.f32 %v2206, %v2277
      %v2335 = vmul.f32 %v2207, %v2282
      %v2336 = vmul.f32 %v2208, %v2287
      %v2337 = vmul.f32 %v2209, %v2292
      %v2338 = vmul.f32 %v2210, %v2297
      %v2339 = vmul.f32 %v2211, %v2302
      %v2340 = vmul.f32 %v2212, %v2307
      %v2341 = vmul.f32 %v2213, %v2312
      %v2342 = vmul.f32 %v2214, %v2317
      %v2343 = vmul.f32 %v2215, %v2322
      %v2344 = vmul.f32 %v2216, %v2327
      %v2345 = vpack.c.bf16 %v2329, %v2329
      %v2346 = vpack.c.bf16 %v2330, %v2330
      %v2347 = vpack.c.bf16 %v2331, %v2331
      %v2348 = vpack.c.bf16 %v2332, %v2332
      %v2349 = vpack.c.bf16 %v2333, %v2333
      %v2350 = vpack.c.bf16 %v2334, %v2334
      %v2351 = vpack.c.bf16 %v2335, %v2335
      %v2352 = vpack.c.bf16 %v2336, %v2336
      %v2353 = vpack.c.bf16 %v2337, %v2337
      %v2354 = vpack.c.bf16 %v2338, %v2338
      %v2355 = vpack.c.bf16 %v2339, %v2339
      %v2356 = vpack.c.bf16 %v2340, %v2340
      %v2357 = vpack.c.bf16 %v2341, %v2341
      %v2358 = vpack.c.bf16 %v2342, %v2342
      %v2359 = vpack.c.bf16 %v2343, %v2343
      %v2360 = vpack.c.bf16 %v2344, %v2344
      %vm2361 = vcmask 58368
      %2362 = vst.msk [vmem:[#allocation11] sm:$0x3] %vm2361, %v2345
      %2363 = vst.msk [vmem:[#allocation11 + $0x2] sm:$0x3] %vm2361, %v2346
      %2364 = vst.msk [vmem:[#allocation11 + $0x4] sm:$0x3] %vm2361, %v2347
      %2365 = vst.msk [vmem:[#allocation11 + $0x6] sm:$0x3] %vm2361, %v2348
      %2366 = vst.msk [vmem:[#allocation11 + $0x8] sm:$0x3] %vm2361, %v2349
      %2367 = vst.msk [vmem:[#allocation11 + $0xa] sm:$0x3] %vm2361, %v2350
      %2368 = vst.msk [vmem:[#allocation11 + $0xc] sm:$0x3] %vm2361, %v2351
      %2369 = vst.msk [vmem:[#allocation11 + $0xe] sm:$0x3] %vm2361, %v2352
      %2370 = vst.msk [vmem:[#allocation11 + $0x10] sm:$0x3] %vm2361, %v2353
      %2371 = vst.msk [vmem:[#allocation11 + $0x12] sm:$0x3] %vm2361, %v2354
      %2372 = vst.msk [vmem:[#allocation11 + $0x14] sm:$0x3] %vm2361, %v2355
      %2373 = vst.msk [vmem:[#allocation11 + $0x16] sm:$0x3] %vm2361, %v2356
      %2374 = vst.msk [vmem:[#allocation11 + $0x18] sm:$0x3] %vm2361, %v2357
      %2375 = vst.msk [vmem:[#allocation11 + $0x1a] sm:$0x3] %vm2361, %v2358
      %2376 = vst.msk [vmem:[#allocation11 + $0x1c] sm:$0x3] %vm2361, %v2359
      %2377 = vst.msk [vmem:[#allocation11 + $0x1e] sm:$0x3] %vm2361, %v2360
    $region33: #{_lambda_.33} parent=1 // pred_fallthru
      _
    // Predicated region
    $region34: #{_lambda_.33} parent=1 // pred_check
      _
    $region35: #{_lambda_.33} parent=1 // pred_check_branch
      %2379 = sbr.rel (0) target = $region37
    $region36: #{_lambda_.33} parent=1 // pred_region
      %s2381 = ssub.s32 512, 512
      %2382 = vsyncadd [#allocation7], %s2381
      %s2383 = sshll.u32 [#allocation11], 4
      %s2384 = int_to_ptr.vmem [resolvable:$true] %s2383
      %2389 = dma.vmem_to_hbm [thread:$0]  %s2384, 512, %s3, [#allocation7], 32, 32, 2
    $region37: #{_lambda_.33} parent=1 // pred_fallthru
      _
    // Predicated region
    $region38: #{_lambda_.33} parent=1 // pred_check
      _
    $region39: #{_lambda_.33} parent=1 // pred_check_branch
      %2391 = sbr.rel (0) target = $region41
    $region40: #{_lambda_.33} parent=1 // pred_region
      %2392 = dma.done [#allocation7], 512
    $region41: #{_lambda_.33} parent=1 // pred_fallthru
      _
    %2393 = vsyncpa [#allocation6], 1
    %2394 = vsyncpa [#allocation9], 1
    %2395 = vsyncpa [#allocation7], 1

// kernel: _lambda_.42
$region0: #{_lambda_.42}
  #allocation0 [shape = 'u32[]', space=smem, size = 0x4, offset = 0x4, fixed_abs, tag = 'smem constant byte address 0x4 - core index']
  #allocation1 [shape = 'u32[144,128]{1,0:T(1,128)}', space=vmem, size = 0x12000, scoped, tag = 'internal scratch']
  %s0 = inlined_call_operand.hbm [shape: bf16[16,32], index: 0, kind: input, shape index: {}]
  %s1 = inlined_call_operand.hbm [shape: bf16[16,32], index: 1, kind: input, shape index: {}]
  %s2 = inlined_call_operand.hbm [shape: f32[1,32], index: 2, kind: input, shape index: {}]
  %s3 = inlined_call_operand.hbm [shape: f32[1,32], index: 3, kind: input, shape index: {}]
  %s4 = inlined_call_operand.hbm [shape: bf16[16,32], index: 4, kind: output, shape index: {}]
  %s5 = sld [smem:[#allocation0]]
  $region42: #{_lambda_.42} parent=0
    _
  %s7 = ssub.s32 1, %s5
  %s8 = scalar_select 0, %s7, %s5
  $region1: #{_lambda_.42} parent=0
    #allocation2 [shape = 'u8[4096]{0}', space=vmem, size = 0x1000, scoped, tag = 'input window, operand 0, single buffered']
    #allocation3 [shape = 's32[1]{0}', space=sflag, size = 0x4, scoped, tag = 'scoped memory for _lambda_.42']
    #allocation4 [shape = 's32[1]{0}', space=sflag, size = 0x4, scoped, tag = 'scoped memory for _lambda_.42']
    #allocation5 [shape = 'u8[4096]{0}', space=vmem, size = 0x1000, scoped, tag = 'input window, operand 1, single buffered']
    #allocation6 [shape = 's32[1]{0}', space=sflag, size = 0x4, scoped, tag = 'scoped memory for _lambda_.42']
    #allocation7 [shape = 'u8[512]{0}', space=vmem, size = 0x400, scoped, tag = 'input window, operand 2, single buffered']
    #allocation8 [shape = 'u8[512]{0}', space=vmem, size = 0x400, scoped, tag = 'input window, operand 3, single buffered']
    #allocation9 [shape = 's32[1]{0}', space=sflag, size = 0x4, scoped, tag = 'scoped memory for _lambda_.42']
    #allocation10 [shape = 'u8[4096]{0}', space=vmem, size = 0x1000, scoped, tag = 'output window, operand 0, single buffered']
    %9 = vsyncpa [#allocation3], 0
    %10 = vsyncpa [#allocation6], 0
    %11 = vsyncpa [#allocation9], 0
    %12 = vsyncpa [#allocation4], 0
    // Predicated region
    $region2: #{_lambda_.42} parent=1 // pred_check
      _
    $region3: #{_lambda_.42} parent=1 // pred_check_branch
      %14 = sbr.rel (0) target = $region5
    $region4: #{_lambda_.42} parent=1 // pred_region
      %s16 = ssub.s32 128, 128
      %17 = vsyncadd [#allocation3], %s16
      %s18 = sshll.u32 [#allocation2], 4
      %s19 = int_to_ptr.vmem [resolvable:$true] %s18
      %24 = dma.hbm_to_vmem [thread:$0]  %s0, 128, %s19, [#allocation3], 64, 64, 4
    $region5: #{_lambda_.42} parent=1 // pred_fallthru
      _
    // Predicated region
    $region6: #{_lambda_.42} parent=1 // pred_check
      _
    $region7: #{_lambda_.42} parent=1 // pred_check_branch
      %26 = sbr.rel (0) target = $region9
    $region8: #{_lambda_.42} parent=1 // pred_region
      %s28 = ssub.s32 128, 128
      %29 = vsyncadd [#allocation6], %s28
      %s30 = sshll.u32 [#allocation5], 4
      %s31 = int_to_ptr.vmem [resolvable:$true] %s30
      %36 = dma.hbm_to_vmem [thread:$0]  %s1, 128, %s31, [#allocation6], 64, 64, 4
    $region9: #{_lambda_.42} parent=1 // pred_fallthru
      _
    // Predicated region
    $region10: #{_lambda_.42} parent=1 // pred_check
      _
    $region11: #{_lambda_.42} parent=1 // pred_check_branch
      %38 = sbr.rel (0) target = $region13
    $region12: #{_lambda_.42} parent=1 // pred_region
      %s40 = ssub.s32 16, 16
      %41 = vsyncadd [#allocation6], %s40
      %s43 = sshll.u32 [#allocation7], 4
      %s44 = int_to_ptr.vmem [resolvable:$true] %s43
      %46 = dma.hbm_to_vmem [thread:$0]  %s2, 16, %s44, [#allocation6]
    $region13: #{_lambda_.42} parent=1 // pred_fallthru
      _
    // Predicated region
    $region14: #{_lambda_.42} parent=1 // pred_check
      _
    $region15: #{_lambda_.42} parent=1 // pred_check_branch
      %48 = sbr.rel (0) target = $region17
    $region16: #{_lambda_.42} parent=1 // pred_region
      %s50 = ssub.s32 16, 16
      %51 = vsyncadd [#allocation9], %s50
      %s53 = sshll.u32 [#allocation8], 4
      %s54 = int_to_ptr.vmem [resolvable:$true] %s53
      %56 = dma.hbm_to_vmem [thread:$0]  %s3, 16, %s54, [#allocation9]
    $region17: #{_lambda_.42} parent=1 // pred_fallthru
      _
    // Predicated region
    $region18: #{_lambda_.42} parent=1 // pred_check
      _
    $region19: #{_lambda_.42} parent=1 // pred_check_branch
      %58 = sbr.rel (0) target = $region21
    $region20: #{_lambda_.42} parent=1 // pred_region
      %59 = dma.done [#allocation3], 128
    $region21: #{_lambda_.42} parent=1 // pred_fallthru
      _
    // Predicated region
    $region22: #{_lambda_.42} parent=1 // pred_check
      _
    $region23: #{_lambda_.42} parent=1 // pred_check_branch
      %61 = sbr.rel (0) target = $region25
    $region24: #{_lambda_.42} parent=1 // pred_region
      %62 = dma.done [#allocation6], 128
    $region25: #{_lambda_.42} parent=1 // pred_fallthru
      _
    // Predicated region
    $region26: #{_lambda_.42} parent=1 // pred_check
      _
    $region27: #{_lambda_.42} parent=1 // pred_check_branch
      %64 = sbr.rel (0) target = $region29
    $region28: #{_lambda_.42} parent=1 // pred_region
      %65 = dma.done [#allocation6], 16
    $region29: #{_lambda_.42} parent=1 // pred_fallthru
      _
    // Predicated region
    $region30: #{_lambda_.42} parent=1 // pred_check
      _
    $region31: #{_lambda_.42} parent=1 // pred_check_branch
      %67 = sbr.rel (0) target = $region33
    $region32: #{_lambda_.42} parent=1 // pred_region
      %68 = dma.done [#allocation9], 16
    $region33: #{_lambda_.42} parent=1 // pred_fallthru
      _
    %v69 = vld [vmem:[#allocation2] sm:$0xf]
    %v70 = vld [vmem:[#allocation2 + $0x4] sm:$0xf]
    %v71 = vunpack.c.l.bf16 %v69
    %v72 = vunpack.c.l.bf16 %v70
    %v73 = vld [vmem:[#allocation5] sm:$0xf]
    %v74 = vld [vmem:[#allocation5 + $0x4] sm:$0xf]
    %v75 = vunpack.c.l.bf16 %v73
    %v76 = vunpack.c.l.bf16 %v74
    %v77 = vadd.f32 %v71, %v75
    %v78 = vadd.f32 %v72, %v76
    %vm79 = vcmask 261120
    %v80 = vsel %vm79, %v77, 0.0
    %81 = vadd.xlane.f32.xlu0 %v80
    %v82 = vpop.xlane.xlu0 %81
    %v83 = vsel %vm79, %v78, 0.0
    %84 = vadd.xlane.f32.xlu0 %v83
    %v85 = vpop.xlane.xlu0 %84
    %v86 = vrcp.pop 32.0
    %v87 = vmul.f32 %v82, %v86
    %v88 = vmul.f32 %v85, %v86
    %v89 = vsub.f32 %v77, %v87
    %v90 = vsub.f32 %v78, %v88
    %v91 = vmul.f32 %v89, %v89
    %v92 = vmul.f32 %v90, %v90
    %v93 = vsel %vm79, %v91, 0.0
    %94 = vadd.xlane.f32.xlu0 %v93
    %v95 = vpop.xlane.xlu0 %94
    %v96 = vsel %vm79, %v92, 0.0
    %97 = vadd.xlane.f32.xlu0 %v96
    %v98 = vpop.xlane.xlu0 %97
    %v99 = vmul.f32 %v95, %v86
    %v100 = vmul.f32 %v98, %v86
    %v101 = vadd.f32 %v99, 1e-05
    %v102 = vadd.f32 %v100, 1e-05
    %v103 = vrsqrt.pop %v101
    %v104 = vrsqrt.pop %v102
    %v105 = vmul.f32 %v89, %v103
    %v106 = vmul.f32 %v90, %v104
    %v107 = vld [vmem:[#allocation7] sm:$0x1]
    %v109 = vlaneseq
    %v110 = vshrl.u32 %v109, 7
    %v111 = vsub.s32 0, %v110
    %v112 = vrot.slane %v107, %v111
    %v114 = vmul.f32 %v105, %v112
    %v115 = vmul.f32 %v106, %v112
    %v116 = vld [vmem:[#allocation8] sm:$0x1]
    %v118 = vlaneseq
    %v119 = vshrl.u32 %v118, 7
    %v120 = vsub.s32 0, %v119
    %v121 = vrot.slane %v116, %v120
    %v123 = vadd.f32 %v114, %v121
    %v124 = vadd.f32 %v115, %v121
    %v125 = vpack.c.bf16 %v124, %v123
    %v127 = vunpack.c.l.b16 %v125
    %v128 = vunpack.c.h.b16 %v125
    %v129 = vpack.c.b16 %v127, %v127
    %v130 = vpack.c.b16 %v128, %v128
    %vm133 = vcmask 257024
    %134 = vst.msk [vmem:[#allocation10] sm:$0xf] %vm133, %v129
    %135 = vst.msk [vmem:[#allocation10 + $0x4] sm:$0xf] %vm133, %v130
    // Predicated region
    $region34: #{_lambda_.42} parent=1 // pred_check
      _
    $region35: #{_lambda_.42} parent=1 // pred_check_branch
      %137 = sbr.rel (0) target = $region37
    $region36: #{_lambda_.42} parent=1 // pred_region
      %s139 = ssub.s32 128, 128
      %140 = vsyncadd [#allocation4], %s139
      %s141 = sshll.u32 [#allocation10], 4
      %s142 = int_to_ptr.vmem [resolvable:$true] %s141
      %147 = dma.vmem_to_hbm [thread:$0]  %s142, 128, %s4, [#allocation4], 64, 64, 4
    $region37: #{_lambda_.42} parent=1 // pred_fallthru
      _
    // Predicated region
    $region38: #{_lambda_.42} parent=1 // pred_check
      _
    $region39: #{_lambda_.42} parent=1 // pred_check_branch
      %149 = sbr.rel (0) target = $region41
    $region40: #{_lambda_.42} parent=1 // pred_region
      %150 = dma.done [#allocation4], 128
    $region41: #{_lambda_.42} parent=1 // pred_fallthru
      _
    %151 = vsyncpa [#allocation3], 1
    %152 = vsyncpa [#allocation6], 1
    %153 = vsyncpa [#allocation9], 1
    %154 = vsyncpa [#allocation4], 1

// kernel: _lambda_.43
$region0: #{_lambda_.43}
  #allocation0 [shape = 'u32[]', space=smem, size = 0x4, offset = 0x4, fixed_abs, tag = 'smem constant byte address 0x4 - core index']
  #allocation1 [shape = 'u32[144,128]{1,0:T(1,128)}', space=vmem, size = 0x12000, scoped, tag = 'internal scratch']
  %s0 = inlined_call_operand.hbm [shape: bf16[16,32], index: 0, kind: input, shape index: {}]
  %s1 = inlined_call_operand.hbm [shape: bf16[32,128], index: 1, kind: input, shape index: {}]
  %s2 = inlined_call_operand.hbm [shape: f32[1,128], index: 2, kind: input, shape index: {}]
  %s3 = inlined_call_operand.hbm [shape: bf16[128,32], index: 3, kind: input, shape index: {}]
  %s4 = inlined_call_operand.hbm [shape: f32[1,32], index: 4, kind: input, shape index: {}]
  %s5 = inlined_call_operand.hbm [shape: bf16[16,32], index: 5, kind: output, shape index: {}]
  %s6 = sld [smem:[#allocation0]]
  $region50: #{_lambda_.43} parent=0
    _
  %s8 = ssub.s32 1, %s6
  %s9 = scalar_select 0, %s8, %s6
  $region1: #{_lambda_.43} parent=0
    #allocation2 [shape = 'u8[4096]{0}', space=vmem, size = 0x1000, scoped, tag = 'input window, operand 0, single buffered']
    #allocation3 [shape = 's32[1]{0}', space=sflag, size = 0x4, scoped, tag = 'scoped memory for _lambda_.43']
    #allocation4 [shape = 's32[1]{0}', space=sflag, size = 0x4, scoped, tag = 'scoped memory for _lambda_.43']
    #allocation5 [shape = 'u8[8192]{0}', space=vmem, size = 0x2000, scoped, tag = 'input window, operand 1, single buffered']
    #allocation6 [shape = 's32[1]{0}', space=sflag, size = 0x4, scoped, tag = 'scoped memory for _lambda_.43']
    #allocation7 [shape = 'u8[512]{0}', space=vmem, size = 0x400, scoped, tag = 'input window, operand 2, single buffered']
    #allocation8 [shape = 'u8[32768]{0}', space=vmem, size = 0x8000, scoped, tag = 'input window, operand 3, single buffered']
    #allocation9 [shape = 's32[1]{0}', space=sflag, size = 0x4, scoped, tag = 'scoped memory for _lambda_.43']
    #allocation10 [shape = 'u8[512]{0}', space=vmem, size = 0x400, scoped, tag = 'input window, operand 4, single buffered']
    #allocation11 [shape = 'u8[4096]{0}', space=vmem, size = 0x1000, scoped, tag = 'output window, operand 0, single buffered']
    %10 = vsyncpa [#allocation3], 0
    %11 = vsyncpa [#allocation6], 0
    %12 = vsyncpa [#allocation9], 0
    %13 = vsyncpa [#allocation4], 0
    // Predicated region
    $region2: #{_lambda_.43} parent=1 // pred_check
      _
    $region3: #{_lambda_.43} parent=1 // pred_check_branch
      %15 = sbr.rel (0) target = $region5
    $region4: #{_lambda_.43} parent=1 // pred_region
      %s17 = ssub.s32 128, 128
      %18 = vsyncadd [#allocation3], %s17
      %s19 = sshll.u32 [#allocation2], 4
      %s20 = int_to_ptr.vmem [resolvable:$true] %s19
      %25 = dma.hbm_to_vmem [thread:$0]  %s0, 128, %s20, [#allocation3], 64, 64, 4
    $region5: #{_lambda_.43} parent=1 // pred_fallthru
      _
    // Predicated region
    $region6: #{_lambda_.43} parent=1 // pred_check
      _
    $region7: #{_lambda_.43} parent=1 // pred_check_branch
      %27 = sbr.rel (0) target = $region9
    $region8: #{_lambda_.43} parent=1 // pred_region
      %s29 = ssub.s32 256, 256
      %30 = vsyncadd [#allocation6], %s29
      %s31 = sshll.u32 [#allocation5], 4
      %s32 = int_to_ptr.vmem [resolvable:$true] %s31
      %37 = dma.hbm_to_vmem [thread:$0]  %s1, 256, %s32, [#allocation6], 64, 64, 4
    $region9: #{_lambda_.43} parent=1 // pred_fallthru
      _
    // Predicated region
    $region10: #{_lambda_.43} parent=1 // pred_check
      _
    $region11: #{_lambda_.43} parent=1 // pred_check_branch
      %39 = sbr.rel (0) target = $region13
    $region12: #{_lambda_.43} parent=1 // pred_region
      %s41 = ssub.s32 16, 16
      %42 = vsyncadd [#allocation6], %s41
      %s44 = sshll.u32 [#allocation7], 4
      %s45 = int_to_ptr.vmem [resolvable:$true] %s44
      %47 = dma.hbm_to_vmem [thread:$0]  %s2, 16, %s45, [#allocation6]
    $region13: #{_lambda_.43} parent=1 // pred_fallthru
      _
    // Predicated region
    $region14: #{_lambda_.43} parent=1 // pred_check
      _
    $region15: #{_lambda_.43} parent=1 // pred_check_branch
      %49 = sbr.rel (0) target = $region17
    $region16: #{_lambda_.43} parent=1 // pred_region
      %s51 = ssub.s32 1024, 1024
      %52 = vsyncadd [#allocation9], %s51
      %s53 = sshll.u32 [#allocation8], 4
      %s54 = int_to_ptr.vmem [resolvable:$true] %s53
      %59 = dma.hbm_to_vmem [thread:$0]  %s3, 1024, %s54, [#allocation9], 64, 64, 4
    $region17: #{_lambda_.43} parent=1 // pred_fallthru
      _
    // Predicated region
    $region18: #{_lambda_.43} parent=1 // pred_check
      _
    $region19: #{_lambda_.43} parent=1 // pred_check_branch
      %61 = sbr.rel (0) target = $region21
    $region20: #{_lambda_.43} parent=1 // pred_region
      %s63 = ssub.s32 16, 16
      %64 = vsyncadd [#allocation9], %s63
      %s66 = sshll.u32 [#allocation10], 4
      %s67 = int_to_ptr.vmem [resolvable:$true] %s66
      %69 = dma.hbm_to_vmem [thread:$0]  %s4, 16, %s67, [#allocation9]
    $region21: #{_lambda_.43} parent=1 // pred_fallthru
      _
    // Predicated region
    $region22: #{_lambda_.43} parent=1 // pred_check
      _
    $region23: #{_lambda_.43} parent=1 // pred_check_branch
      %71 = sbr.rel (0) target = $region25
    $region24: #{_lambda_.43} parent=1 // pred_region
      %72 = dma.done [#allocation3], 128
    $region25: #{_lambda_.43} parent=1 // pred_fallthru
      _
    // Predicated region
    $region26: #{_lambda_.43} parent=1 // pred_check
      _
    $region27: #{_lambda_.43} parent=1 // pred_check_branch
      %74 = sbr.rel (0) target = $region29
    $region28: #{_lambda_.43} parent=1 // pred_region
      %75 = dma.done [#allocation6], 256
    $region29: #{_lambda_.43} parent=1 // pred_fallthru
      _
    // Predicated region
    $region30: #{_lambda_.43} parent=1 // pred_check
      _
    $region31: #{_lambda_.43} parent=1 // pred_check_branch
      %77 = sbr.rel (0) target = $region33
    $region32: #{_lambda_.43} parent=1 // pred_region
      %78 = dma.done [#allocation6], 16
    $region33: #{_lambda_.43} parent=1 // pred_fallthru
      _
    // Predicated region
    $region34: #{_lambda_.43} parent=1 // pred_check
      _
    $region35: #{_lambda_.43} parent=1 // pred_check_branch
      %80 = sbr.rel (0) target = $region37
    $region36: #{_lambda_.43} parent=1 // pred_region
      %81 = dma.done [#allocation9], 1024
    $region37: #{_lambda_.43} parent=1 // pred_fallthru
      _
    // Predicated region
    $region38: #{_lambda_.43} parent=1 // pred_check
      _
    $region39: #{_lambda_.43} parent=1 // pred_check_branch
      %83 = sbr.rel (0) target = $region41
    $region40: #{_lambda_.43} parent=1 // pred_region
      %84 = dma.done [#allocation9], 16
    $region41: #{_lambda_.43} parent=1 // pred_fallthru
      _
    %v86 = vld [vmem:[#allocation2] sm:$0xf]
    %v87 = vld [vmem:[#allocation2 + $0x4] sm:$0xf]
    %v88 = vld [vmem:[#allocation5] sm:$0xf]
    %v89 = vld [vmem:[#allocation5 + $0x4] sm:$0xf]
    %v90 = vld [vmem:[#allocation5 + $0x8] sm:$0xf]
    %v91 = vld [vmem:[#allocation5 + $0xc] sm:$0xf]
    %v92 = vld [vmem:[#allocation7] sm:$0x1]
    %v94 = vlaneseq
    %v95 = vshrl.u32 %v94, 7
    %v96 = vsub.s32 0, %v95
    %v97 = vrot.slane %v92, %v96
    %v101 = vunpack.c.l.b16 %v86
    %v102 = vunpack.c.l.b16 %v87
    %v103 = vpack.c.b16 %v102, %v101
    %v108 = vunpack.c.l.b16 %v88
    %v109 = vunpack.c.l.b16 %v89
    %v110 = vunpack.c.l.b16 %v90
    %v111 = vunpack.c.l.b16 %v91
    %v112 = vpack.c.b16 %v109, %v108
    %v113 = vpack.c.b16 %v111, %v110
    %vm116 = vcmask 261120
    %v118 = vsel %vm116, %v103, 0
    %120 = vmatprep.subr.bf16.mxu0 0
    %121 = vmatpush1.bf16.msra.mxu0 %v112
    %122 = vmatprep.subr.bf16.mxu0 0
    %123 = vmatpush1.bf16.msra.mxu0 %v113
    %124 = vmatprep.subr.bf16.mxu0 0
    %125 = vmatpush1.bf16.msra.mxu0 0
    %126 = vmatprep.subr.bf16.mxu0 0
    %127 = vmatpush1.bf16.msra.mxu0 0
    %128 = vmatprep.subr.bf16.mxu0 0
    %129 = vmatpush1.bf16.msra.mxu0 0
    %130 = vmatprep.subr.bf16.mxu0 0
    %131 = vmatpush1.bf16.msra.mxu0 0
    %132 = vmatprep.subr.bf16.mxu0 0
    %133 = vmatpush1.bf16.msra.mxu0 0
    %134 = vmatprep.subr.bf16.mxu0 0
    %135 = vmatpush1.bf16.msra.mxu0 0
    %136 = vmatprep.subr.bf16.mxu0 0
    %137 = vmatpush1.bf16.msra.mxu0 0
    %138 = vmatprep.subr.bf16.mxu0 0
    %139 = vmatpush1.bf16.msra.mxu0 0
    %140 = vmatprep.subr.bf16.mxu0 0
    %141 = vmatpush1.bf16.msra.mxu0 0
    %142 = vmatprep.subr.bf16.mxu0 0
    %143 = vmatpush1.bf16.msra.mxu0 0
    %144 = vmatprep.subr.bf16.mxu0 0
    %145 = vmatpush1.bf16.msra.mxu0 0
    %146 = vmatprep.subr.bf16.mxu0 0
    %147 = vmatpush1.bf16.msra.mxu0 0
    %148 = vmatprep.subr.bf16.mxu0 0
    %149 = vmatpush1.bf16.msra.mxu0 0
    %150 = vmatprep.subr.bf16.mxu0 0
    %151 = vmatpush1.bf16.msra.mxu0 0
    %152 = vmatprep.mubr.bf16.mxu0 0
    %153 = vmatmul.mubr.bf16.gmra.mrb[0].mxu0 %v118
    %v154 = vpop.f32.mrb[0].mxu0
    %v155 = vadd.f32 %v97, %v154
    %v156 = vpop.f32.mrb[0].mxu0
    %v157 = vpop.f32.mrb[0].mxu0
    %v158 = vadd.f32 %v97, %v157
    %v159 = vpop.f32.mrb[0].mxu0
    %160 = vdwg.mxu0
    %v161 = vmul.f32 %v155, %v155
    %v162 = vmul.f32 %v158, %v158
    %v163 = vmul.f32 %v155, %v161
    %v164 = vmul.f32 %v158, %v162
    %v165 = vmul.f32 %v163, 0.044715
    %v166 = vmul.f32 %v164, 0.044715
    %v167 = vadd.f32 %v155, %v165
    %v168 = vadd.f32 %v158, %v166
    %v169 = vmul.f32 %v167, 0.7978846
    %v170 = vmul.f32 %v168, 0.7978846
    %v171 = vtanh.pop %v169
    %v172 = vtanh.pop %v170
    %v173 = vadd.f32 %v171, 1.0
    %v174 = vadd.f32 %v172, 1.0
    %v175 = vmul.f32 %v173, 0.5
    %v176 = vmul.f32 %v174, 0.5
    %v177 = vmul.f32 %v155, %v175
    %v178 = vmul.f32 %v158, %v176
    %v179 = vpack.c.bf16 %v178, %v177
    %v180 = vld [vmem:[#allocation8] sm:$0xf]
    %v181 = vld [vmem:[#allocation8 + $0x4] sm:$0xf]
    %v182 = vld [vmem:[#allocation8 + $0x8] sm:$0xf]
    %v183 = vld [vmem:[#allocation8 + $0xc] sm:$0xf]
    %v184 = vld [vmem:[#allocation8 + $0x10] sm:$0xf]
    %v185 = vld [vmem:[#allocation8 + $0x14] sm:$0xf]
    %v186 = vld [vmem:[#allocation8 + $0x18] sm:$0xf]
    %v187 = vld [vmem:[#allocation8 + $0x1c] sm:$0xf]
    %v188 = vld [vmem:[#allocation8 + $0x20] sm:$0xf]
    %v189 = vld [vmem:[#allocation8 + $0x24] sm:$0xf]
    %v190 = vld [vmem:[#allocation8 + $0x28] sm:$0xf]
    %v191 = vld [vmem:[#allocation8 + $0x2c] sm:$0xf]
    %v192 = vld [vmem:[#allocation8 + $0x30] sm:$0xf]
    %v193 = vld [vmem:[#allocation8 + $0x34] sm:$0xf]
    %v194 = vld [vmem:[#allocation8 + $0x38] sm:$0xf]
    %v195 = vld [vmem:[#allocation8 + $0x3c] sm:$0xf]
    %v196 = vld [vmem:[#allocation10] sm:$0x1]
    %v198 = vlaneseq
    %v199 = vshrl.u32 %v198, 7
    %v200 = vsub.s32 0, %v199
    %v201 = vrot.slane %v196, %v200
    %v219 = vunpack.c.l.b16 %v180
    %v220 = vunpack.c.l.b16 %v181
    %v221 = vunpack.c.l.b16 %v182
    %v222 = vunpack.c.l.b16 %v183
    %v223 = vunpack.c.l.b16 %v184
    %v224 = vunpack.c.l.b16 %v185
    %v225 = vunpack.c.l.b16 %v186
    %v226 = vunpack.c.l.b16 %v187
    %v227 = vunpack.c.l.b16 %v188
    %v228 = vunpack.c.l.b16 %v189
    %v229 = vunpack.c.l.b16 %v190
    %v230 = vunpack.c.l.b16 %v191
    %v231 = vunpack.c.l.b16 %v192
    %v232 = vunpack.c.l.b16 %v193
    %v233 = vunpack.c.l.b16 %v194
    %v234 = vunpack.c.l.b16 %v195
    %v235 = vpack.c.b16 %v220, %v219
    %v236 = vpack.c.b16 %v222, %v221
    %v237 = vpack.c.b16 %v224, %v223
    %v238 = vpack.c.b16 %v226, %v225
    %v239 = vpack.c.b16 %v228, %v227
    %v240 = vpack.c.b16 %v230, %v229
    %v241 = vpack.c.b16 %v232, %v231
    %v242 = vpack.c.b16 %v234, %v233
    %251 = vmatprep.subr.bf16.mxu0 0
    %252 = vmatpush1.bf16.msra.mxu0 %v235
    %253 = vmatprep.subr.bf16.mxu0 0
    %254 = vmatpush1.bf16.msra.mxu0 %v236
    %255 = vmatprep.subr.bf16.mxu0 0
    %256 = vmatpush1.bf16.msra.mxu0 %v237
    %257 = vmatprep.subr.bf16.mxu0 0
    %258 = vmatpush1.bf16.msra.mxu0 %v238
    %259 = vmatprep.subr.bf16.mxu0 0
    %260 = vmatpush1.bf16.msra.mxu0 %v239
    %261 = vmatprep.subr.bf16.mxu0 0
    %262 = vmatpush1.bf16.msra.mxu0 %v240
    %263 = vmatprep.subr.bf16.mxu0 0
    %264 = vmatpush1.bf16.msra.mxu0 %v241
    %265 = vmatprep.subr.bf16.mxu0 0
    %266 = vmatpush1.bf16.msra.mxu0 %v242
    %267 = vmatprep.subr.bf16.mxu0 0
    %268 = vmatpush1.bf16.msra.mxu0 0
    %269 = vmatprep.subr.bf16.mxu0 0
    %270 = vmatpush1.bf16.msra.mxu0 0
    %271 = vmatprep.subr.bf16.mxu0 0
    %272 = vmatpush1.bf16.msra.mxu0 0
    %273 = vmatprep.subr.bf16.mxu0 0
    %274 = vmatpush1.bf16.msra.mxu0 0
    %275 = vmatprep.subr.bf16.mxu0 0
    %276 = vmatpush1.bf16.msra.mxu0 0
    %277 = vmatprep.subr.bf16.mxu0 0
    %278 = vmatpush1.bf16.msra.mxu0 0
    %279 = vmatprep.subr.bf16.mxu0 0
    %280 = vmatpush1.bf16.msra.mxu0 0
    %281 = vmatprep.subr.bf16.mxu0 0
    %282 = vmatpush1.bf16.msra.mxu0 0
    %283 = vmatprep.mubr.bf16.mxu0 0
    %284 = vmatmul.mubr.bf16.gmra.mrb[0].mxu0 %v179
    %v285 = vpop.f32.mrb[0].mxu0
    %v286 = vadd.f32 %v201, %v285
    %v287 = vpop.f32.mrb[0].mxu0
    %v288 = vpop.f32.mrb[0].mxu0
    %v289 = vadd.f32 %v201, %v288
    %v290 = vpop.f32.mrb[0].mxu0
    %291 = vdwg.mxu0
    %v292 = vpack.c.bf16 %v289, %v286
    %v294 = vunpack.c.l.b16 %v292
    %v295 = vunpack.c.h.b16 %v292
    %v296 = vpack.c.b16 %v294, %v294
    %v297 = vpack.c.b16 %v295, %v295
    %vm300 = vcmask 257024
    %301 = vst.msk [vmem:[#allocation11] sm:$0xf] %vm300, %v296
    %302 = vst.msk [vmem:[#allocation11 + $0x4] sm:$0xf] %vm300, %v297
    // Predicated region
    $region42: #{_lambda_.43} parent=1 // pred_check
      _
    $region43: #{_lambda_.43} parent=1 // pred_check_branch
      %304 = sbr.rel (0) target = $region45
    $region44: #{_lambda_.43} parent=1 // pred_region
      %s306 = ssub.s32 128, 128
      %307 = vsyncadd [#allocation4], %s306
      %s308 = sshll.u32 [#allocation11], 4
      %s309 = int_to_ptr.vmem [resolvable:$true] %s308
      %314 = dma.vmem_to_hbm [thread:$0]  %s309, 128, %s5, [#allocation4], 64, 64, 4
    $region45: #{_lambda_.43} parent=1 // pred_fallthru
      _
    // Predicated region
    $region46: #{_lambda_.43} parent=1 // pred_check
      _
    $region47: #{_lambda_.43} parent=1 // pred_check_branch
      %316 = sbr.rel (0) target = $region49
    $region48: #{_lambda_.43} parent=1 // pred_region
      %317 = dma.done [#allocation4], 128
    $region49: #{_lambda_.43} parent=1 // pred_fallthru
      _
    %318 = vsyncpa [#allocation3], 1
    %319 = vsyncpa [#allocation6], 1
    %320 = vsyncpa [#allocation9], 1
    %321 = vsyncpa [#allocation4], 1

// kernel: _lambda_.45
$region0: #{_lambda_.45}
  #allocation0 [shape = 'u32[]', space=smem, size = 0x4, offset = 0x4, fixed_abs, tag = 'smem constant byte address 0x4 - core index']
  #allocation1 [shape = 'u32[144,128]{1,0:T(1,128)}', space=vmem, size = 0x12000, scoped, tag = 'internal scratch']
  %s0 = inlined_call_operand.hbm [shape: bf16[16,32], index: 0, kind: input, shape index: {}]
  %s1 = inlined_call_operand.hbm [shape: bf16[32,64], index: 1, kind: input, shape index: {}]
  %s2 = inlined_call_operand.hbm [shape: f32[1,64], index: 2, kind: input, shape index: {}]
  %s3 = inlined_call_operand.hbm [shape: bf16[16,64], index: 3, kind: output, shape index: {}]
  %s4 = sld [smem:[#allocation0]]
  $region34: #{_lambda_.45} parent=0
    _
  %s6 = ssub.s32 1, %s4
  %s7 = scalar_select 0, %s6, %s4
  $region1: #{_lambda_.45} parent=0
    #allocation2 [shape = 'u8[4096]{0}', space=vmem, size = 0x1000, scoped, tag = 'input window, operand 0, single buffered']
    #allocation3 [shape = 's32[1]{0}', space=sflag, size = 0x4, scoped, tag = 'scoped memory for _lambda_.45']
    #allocation4 [shape = 's32[1]{0}', space=sflag, size = 0x4, scoped, tag = 'scoped memory for _lambda_.45']
    #allocation5 [shape = 'u8[8192]{0}', space=vmem, size = 0x2000, scoped, tag = 'input window, operand 1, single buffered']
    #allocation6 [shape = 's32[1]{0}', space=sflag, size = 0x4, scoped, tag = 'scoped memory for _lambda_.45']
    #allocation7 [shape = 'u8[512]{0}', space=vmem, size = 0x400, scoped, tag = 'input window, operand 2, single buffered']
    #allocation8 [shape = 'u8[4096]{0}', space=vmem, size = 0x1000, scoped, tag = 'output window, operand 0, single buffered']
    %8 = vsyncpa [#allocation3], 0
    %9 = vsyncpa [#allocation6], 0
    %10 = vsyncpa [#allocation4], 0
    // Predicated region
    $region2: #{_lambda_.45} parent=1 // pred_check
      _
    $region3: #{_lambda_.45} parent=1 // pred_check_branch
      %12 = sbr.rel (0) target = $region5
    $region4: #{_lambda_.45} parent=1 // pred_region
      %s14 = ssub.s32 128, 128
      %15 = vsyncadd [#allocation3], %s14
      %s16 = sshll.u32 [#allocation2], 4
      %s17 = int_to_ptr.vmem [resolvable:$true] %s16
      %22 = dma.hbm_to_vmem [thread:$0]  %s0, 128, %s17, [#allocation3], 64, 64, 4
    $region5: #{_lambda_.45} parent=1 // pred_fallthru
      _
    // Predicated region
    $region6: #{_lambda_.45} parent=1 // pred_check
      _
    $region7: #{_lambda_.45} parent=1 // pred_check_branch
      %24 = sbr.rel (0) target = $region9
    $region8: #{_lambda_.45} parent=1 // pred_region
      %s26 = ssub.s32 256, 256
      %27 = vsyncadd [#allocation6], %s26
      %s28 = sshll.u32 [#allocation5], 4
      %s29 = int_to_ptr.vmem [resolvable:$true] %s28
      %34 = dma.hbm_to_vmem [thread:$0]  %s1, 256, %s29, [#allocation6], 64, 64, 4
    $region9: #{_lambda_.45} parent=1 // pred_fallthru
      _
    // Predicated region
    $region10: #{_lambda_.45} parent=1 // pred_check
      _
    $region11: #{_lambda_.45} parent=1 // pred_check_branch
      %36 = sbr.rel (0) target = $region13
    $region12: #{_lambda_.45} parent=1 // pred_region
      %s38 = ssub.s32 16, 16
      %39 = vsyncadd [#allocation6], %s38
      %s41 = sshll.u32 [#allocation7], 4
      %s42 = int_to_ptr.vmem [resolvable:$true] %s41
      %44 = dma.hbm_to_vmem [thread:$0]  %s2, 16, %s42, [#allocation6]
    $region13: #{_lambda_.45} parent=1 // pred_fallthru
      _
    // Predicated region
    $region14: #{_lambda_.45} parent=1 // pred_check
      _
    $region15: #{_lambda_.45} parent=1 // pred_check_branch
      %46 = sbr.rel (0) target = $region17
    $region16: #{_lambda_.45} parent=1 // pred_region
      %47 = dma.done [#allocation3], 128
    $region17: #{_lambda_.45} parent=1 // pred_fallthru
      _
    // Predicated region
    $region18: #{_lambda_.45} parent=1 // pred_check
      _
    $region19: #{_lambda_.45} parent=1 // pred_check_branch
      %49 = sbr.rel (0) target = $region21
    $region20: #{_lambda_.45} parent=1 // pred_region
      %50 = dma.done [#allocation6], 256
    $region21: #{_lambda_.45} parent=1 // pred_fallthru
      _
    // Predicated region
    $region22: #{_lambda_.45} parent=1 // pred_check
      _
    $region23: #{_lambda_.45} parent=1 // pred_check_branch
      %52 = sbr.rel (0) target = $region25
    $region24: #{_lambda_.45} parent=1 // pred_region
      %53 = dma.done [#allocation6], 16
    $region25: #{_lambda_.45} parent=1 // pred_fallthru
      _
    %v55 = vld [vmem:[#allocation2] sm:$0xf]
    %v56 = vld [vmem:[#allocation2 + $0x4] sm:$0xf]
    %v57 = vld [vmem:[#allocation5] sm:$0xf]
    %v58 = vld [vmem:[#allocation5 + $0x4] sm:$0xf]
    %v59 = vld [vmem:[#allocation5 + $0x8] sm:$0xf]
    %v60 = vld [vmem:[#allocation5 + $0xc] sm:$0xf]
    %v61 = vld [vmem:[#allocation7] sm:$0x1]
    %v63 = vlaneseq
    %v64 = vshrl.u32 %v63, 7
    %v65 = vsub.s32 0, %v64
    %v66 = vrot.slane %v61, %v65
    %v70 = vunpack.c.l.b16 %v55
    %v71 = vunpack.c.l.b16 %v56
    %v72 = vpack.c.b16 %v71, %v70
    %v77 = vunpack.c.l.b16 %v57
    %v78 = vunpack.c.l.b16 %v58
    %v79 = vunpack.c.l.b16 %v59
    %v80 = vunpack.c.l.b16 %v60
    %v81 = vpack.c.b16 %v78, %v77
    %v82 = vpack.c.b16 %v80, %v79
    %vm85 = vcmask 261120
    %v87 = vsel %vm85, %v72, 0
    %89 = vmatprep.subr.bf16.mxu0 0
    %90 = vmatpush1.bf16.msra.mxu0 %v81
    %91 = vmatprep.subr.bf16.mxu0 0
    %92 = vmatpush1.bf16.msra.mxu0 %v82
    %93 = vmatprep.subr.bf16.mxu0 0
    %94 = vmatpush1.bf16.msra.mxu0 0
    %95 = vmatprep.subr.bf16.mxu0 0
    %96 = vmatpush1.bf16.msra.mxu0 0
    %97 = vmatprep.subr.bf16.mxu0 0
    %98 = vmatpush1.bf16.msra.mxu0 0
    %99 = vmatprep.subr.bf16.mxu0 0
    %100 = vmatpush1.bf16.msra.mxu0 0
    %101 = vmatprep.subr.bf16.mxu0 0
    %102 = vmatpush1.bf16.msra.mxu0 0
    %103 = vmatprep.subr.bf16.mxu0 0
    %104 = vmatpush1.bf16.msra.mxu0 0
    %105 = vmatprep.subr.bf16.mxu0 0
    %106 = vmatpush1.bf16.msra.mxu0 0
    %107 = vmatprep.subr.bf16.mxu0 0
    %108 = vmatpush1.bf16.msra.mxu0 0
    %109 = vmatprep.subr.bf16.mxu0 0
    %110 = vmatpush1.bf16.msra.mxu0 0
    %111 = vmatprep.subr.bf16.mxu0 0
    %112 = vmatpush1.bf16.msra.mxu0 0
    %113 = vmatprep.subr.bf16.mxu0 0
    %114 = vmatpush1.bf16.msra.mxu0 0
    %115 = vmatprep.subr.bf16.mxu0 0
    %116 = vmatpush1.bf16.msra.mxu0 0
    %117 = vmatprep.subr.bf16.mxu0 0
    %118 = vmatpush1.bf16.msra.mxu0 0
    %119 = vmatprep.subr.bf16.mxu0 0
    %120 = vmatpush1.bf16.msra.mxu0 0
    %121 = vmatprep.mubr.bf16.mxu0 0
    %122 = vmatmul.mubr.bf16.gmra.mrb[0].mxu0 %v87
    %v123 = vpop.f32.mrb[0].mxu0
    %v124 = vadd.f32 %v66, %v123
    %v125 = vpop.f32.mrb[0].mxu0
    %v126 = vpop.f32.mrb[0].mxu0
    %v127 = vadd.f32 %v66, %v126
    %v128 = vpop.f32.mrb[0].mxu0
    %129 = vdwg.mxu0
    %v130 = vpack.c.bf16 %v127, %v124
    %v132 = vunpack.c.l.b16 %v130
    %v133 = vunpack.c.h.b16 %v130
    %v134 = vpack.c.b16 %v132, %v132
    %v135 = vpack.c.b16 %v133, %v133
    %vm138 = vcmask 519168
    %139 = vst.msk [vmem:[#allocation8] sm:$0xf] %vm138, %v134
    %140 = vst.msk [vmem:[#allocation8 + $0x4] sm:$0xf] %vm138, %v135
    // Predicated region
    $region26: #{_lambda_.45} parent=1 // pred_check
      _
    $region27: #{_lambda_.45} parent=1 // pred_check_branch
      %142 = sbr.rel (0) target = $region29
    $region28: #{_lambda_.45} parent=1 // pred_region
      %s144 = ssub.s32 128, 128
      %145 = vsyncadd [#allocation4], %s144
      %s146 = sshll.u32 [#allocation8], 4
      %s147 = int_to_ptr.vmem [resolvable:$true] %s146
      %152 = dma.vmem_to_hbm [thread:$0]  %s147, 128, %s3, [#allocation4], 64, 64, 4
    $region29: #{_lambda_.45} parent=1 // pred_fallthru
      _
    // Predicated region
    $region30: #{_lambda_.45} parent=1 // pred_check
      _
    $region31: #{_lambda_.45} parent=1 // pred_check_branch
      %154 = sbr.rel (0) target = $region33
    $region32: #{_lambda_.45} parent=1 // pred_region
      %155 = dma.done [#allocation4], 128
    $region33: #{_lambda_.45} parent=1 // pred_fallthru
      _
    %156 = vsyncpa [#allocation3], 1
    %157 = vsyncpa [#allocation6], 1
    %158 = vsyncpa [#allocation4], 1

// kernel: _lambda_.40
$region0: #{_lambda_.40}
  #allocation0 [shape = 'u32[]', space=smem, size = 0x4, offset = 0x4, fixed_abs, tag = 'smem constant byte address 0x4 - core index']
  #allocation1 [shape = 'u32[144,128]{1,0:T(1,128)}', space=vmem, size = 0x12000, scoped, tag = 'internal scratch']
  #allocation2 [shape = 'f32[4,8,1]{2,1,0:T(8,128)}', space=vmem, size = 0x4000, scoped, tag = 'scratch operand']
  #allocation3 [shape = 'f32[4,8,1]{2,1,0:T(8,128)}', space=vmem, size = 0x4000, scoped, tag = 'scratch operand']
  #allocation4 [shape = 'f32[4,8,16]{2,1,0:T(8,128)}', space=vmem, size = 0x4000, scoped, tag = 'scratch operand']
  %s0 = inlined_call_operand.hbm [shape: bf16[4,8,16], index: 0, kind: input, shape index: {}]
  %s1 = inlined_call_operand.hbm [shape: bf16[4,8,16], index: 1, kind: input, shape index: {}]
  %s2 = inlined_call_operand.hbm [shape: bf16[4,8,16], index: 2, kind: input, shape index: {}]
  %s3 = inlined_call_operand.hbm [shape: bf16[4,8,16], index: 3, kind: output, shape index: {}]
  %s4 = sld [smem:[#allocation0]]
  $region42: #{_lambda_.40} parent=0
    _
  %s6 = ssub.s32 1, %s4
  %s7 = scalar_select 0, %s6, %s4
  $region1: #{_lambda_.40} parent=0
    #allocation5 [shape = 'u8[8192]{0}', space=vmem, size = 0x2000, scoped, tag = 'input window, operand 0, single buffered']
    #allocation6 [shape = 's32[1]{0}', space=sflag, size = 0x4, scoped, tag = 'scoped memory for _lambda_.40']
    #allocation7 [shape = 's32[1]{0}', space=sflag, size = 0x4, scoped, tag = 'scoped memory for _lambda_.40']
    #allocation8 [shape = 'u8[8192]{0}', space=vmem, size = 0x2000, scoped, tag = 'input window, operand 1, single buffered']
    #allocation9 [shape = 's32[1]{0}', space=sflag, size = 0x4, scoped, tag = 'scoped memory for _lambda_.40']
    #allocation10 [shape = 'u8[8192]{0}', space=vmem, size = 0x2000, scoped, tag = 'input window, operand 2, single buffered']
    #allocation11 [shape = 'u8[8192]{0}', space=vmem, size = 0x2000, scoped, tag = 'output window, operand 0, single buffered']
    %8 = vsyncpa [#allocation6], 0
    %9 = vsyncpa [#allocation9], 0
    %10 = vsyncpa [#allocation7], 0
    // Predicated region
    $region2: #{_lambda_.40} parent=1 // pred_check
      _
    $region3: #{_lambda_.40} parent=1 // pred_check_branch
      %12 = sbr.rel (0) target = $region5
    $region4: #{_lambda_.40} parent=1 // pred_region
      %s14 = ssub.s32 256, 256
      %15 = vsyncadd [#allocation6], %s14
      %s16 = sshll.u32 [#allocation5], 4
      %s17 = int_to_ptr.vmem [resolvable:$true] %s16
      %22 = dma.hbm_to_vmem [thread:$0]  %s0, 256, %s17, [#allocation6], 64, 64, 4
    $region5: #{_lambda_.40} parent=1 // pred_fallthru
      _
    // Predicated region
    $region6: #{_lambda_.40} parent=1 // pred_check
      _
    $region7: #{_lambda_.40} parent=1 // pred_check_branch
      %24 = sbr.rel (0) target = $region9
    $region8: #{_lambda_.40} parent=1 // pred_region
      %s26 = ssub.s32 256, 256
      %27 = vsyncadd [#allocation9], %s26
      %s28 = sshll.u32 [#allocation8], 4
      %s29 = int_to_ptr.vmem [resolvable:$true] %s28
      %34 = dma.hbm_to_vmem [thread:$0]  %s1, 256, %s29, [#allocation9], 64, 64, 4
    $region9: #{_lambda_.40} parent=1 // pred_fallthru
      _
    // Predicated region
    $region10: #{_lambda_.40} parent=1 // pred_check
      _
    $region11: #{_lambda_.40} parent=1 // pred_check_branch
      %36 = sbr.rel (0) target = $region13
    $region12: #{_lambda_.40} parent=1 // pred_region
      %s38 = ssub.s32 256, 256
      %39 = vsyncadd [#allocation9], %s38
      %s40 = sshll.u32 [#allocation10], 4
      %s41 = int_to_ptr.vmem [resolvable:$true] %s40
      %46 = dma.hbm_to_vmem [thread:$0]  %s2, 256, %s41, [#allocation9], 64, 64, 4
    $region13: #{_lambda_.40} parent=1 // pred_fallthru
      _
    // Predicated region
    $region14: #{_lambda_.40} parent=1 // pred_check
      _
    $region15: #{_lambda_.40} parent=1 // pred_check_branch
      %48 = sbr.rel (0) target = $region17
    $region16: #{_lambda_.40} parent=1 // pred_region
      %49 = dma.done [#allocation6], 256
    $region17: #{_lambda_.40} parent=1 // pred_fallthru
      _
    // Predicated region
    $region18: #{_lambda_.40} parent=1 // pred_check
      _
    $region19: #{_lambda_.40} parent=1 // pred_check_branch
      %51 = sbr.rel (0) target = $region21
    $region20: #{_lambda_.40} parent=1 // pred_region
      %52 = dma.done [#allocation9], 256
    $region21: #{_lambda_.40} parent=1 // pred_fallthru
      _
    // Predicated region
    $region22: #{_lambda_.40} parent=1 // pred_check
      _
    $region23: #{_lambda_.40} parent=1 // pred_check_branch
      %54 = sbr.rel (0) target = $region25
    $region24: #{_lambda_.40} parent=1 // pred_region
      %55 = dma.done [#allocation9], 256
    $region25: #{_lambda_.40} parent=1 // pred_fallthru
      _
    %p58 = scmp.eq.s32.totalorder 0, 0
    // Predicated region
    $region26: #{_lambda_.40} parent=1 // pred_check
      %p59 = pneg %p58
    $region27: #{_lambda_.40} parent=1 // pred_check_branch
      %61 = sbr.rel (%p59) target = $region29
    $region28: #{_lambda_.40} parent=1 // pred_region
      %vm62 = vcmask 7168
      %63 = vst.msk [vmem:[#allocation2] sm:$0xff] %vm62, -inf
      %64 = vst.msk [vmem:[#allocation2 + $0x8] sm:$0xff] %vm62, -inf
      %65 = vst.msk [vmem:[#allocation2 + $0x10] sm:$0xff] %vm62, -inf
      %66 = vst.msk [vmem:[#allocation2 + $0x18] sm:$0xff] %vm62, -inf
      %67 = vst.msk [vmem:[#allocation3] sm:$0xff] %vm62, 0.0
      %68 = vst.msk [vmem:[#allocation3 + $0x8] sm:$0xff] %vm62, 0.0
      %69 = vst.msk [vmem:[#allocation3 + $0x10] sm:$0xff] %vm62, 0.0
      %70 = vst.msk [vmem:[#allocation3 + $0x18] sm:$0xff] %vm62, 0.0
      %vm71 = vcmask 130048
      %72 = vst.msk [vmem:[#allocation4] sm:$0xff] %vm71, 0.0
      %73 = vst.msk [vmem:[#allocation4 + $0x8] sm:$0xff] %vm71, 0.0
      %74 = vst.msk [vmem:[#allocation4 + $0x10] sm:$0xff] %vm71, 0.0
      %75 = vst.msk [vmem:[#allocation4 + $0x18] sm:$0xff] %vm71, 0.0
    $region29: #{_lambda_.40} parent=1 // pred_fallthru
      _
    %v76 = vld [vmem:[#allocation5] sm:$0xf]
    %v77 = vld [vmem:[#allocation5 + $0x4] sm:$0xf]
    %v78 = vld [vmem:[#allocation5 + $0x8] sm:$0xf]
    %v79 = vld [vmem:[#allocation5 + $0xc] sm:$0xf]
    %v80 = vmul.bf16 %v76, 1048592000
    %v81 = vmul.bf16 %v77, 1048592000
    %v82 = vmul.bf16 %v78, 1048592000
    %v83 = vmul.bf16 %v79, 1048592000
    %v84 = vld [vmem:[#allocation8] sm:$0xf]
    %v85 = vld [vmem:[#allocation8 + $0x4] sm:$0xf]
    %v86 = vld [vmem:[#allocation8 + $0x8] sm:$0xf]
    %v87 = vld [vmem:[#allocation8 + $0xc] sm:$0xf]
    %vm88 = vcmask 130048
    %v90 = vsel %vm88, %v80, 0
    %v93 = vsel %vm88, %v84, 0
    %95 = vmatprep.subr.bf16.mxu0 0
    %96 = vmatpush1.bf16.xpose.msra.mxu0 %v93
    %97 = vmatprep.subr.bf16.mxu0 0
    %98 = vmatpush1.bf16.xpose.msra.mxu0 0
    %99 = vmatprep.subr.bf16.mxu0 0
    %100 = vmatpush1.bf16.xpose.msra.mxu0 0
    %101 = vmatprep.subr.bf16.mxu0 0
    %102 = vmatpush1.bf16.xpose.msra.mxu0 0
    %103 = vmatprep.subr.bf16.mxu0 0
    %104 = vmatpush1.bf16.xpose.msra.mxu0 0
    %105 = vmatprep.subr.bf16.mxu0 0
    %106 = vmatpush1.bf16.xpose.msra.mxu0 0
    %107 = vmatprep.subr.bf16.mxu0 0
    %108 = vmatpush1.bf16.xpose.msra.mxu0 0
    %109 = vmatprep.subr.bf16.mxu0 0
    %110 = vmatpush1.bf16.xpose.msra.mxu0 0
    %111 = vmatprep.subr.bf16.mxu0 0
    %112 = vmatpush1.bf16.xpose.msra.mxu0 0
    %113 = vmatprep.subr.bf16.mxu0 0
    %114 = vmatpush1.bf16.xpose.msra.mxu0 0
    %115 = vmatprep.subr.bf16.mxu0 0
    %116 = vmatpush1.bf16.xpose.msra.mxu0 0
    %117 = vmatprep.subr.bf16.mxu0 0
    %118 = vmatpush1.bf16.xpose.msra.mxu0 0
    %119 = vmatprep.subr.bf16.mxu0 0
    %120 = vmatpush1.bf16.xpose.msra.mxu0 0
    %121 = vmatprep.subr.bf16.mxu0 0
    %122 = vmatpush1.bf16.xpose.msra.mxu0 0
    %123 = vmatprep.subr.bf16.mxu0 0
    %124 = vmatpush1.bf16.xpose.msra.mxu0 0
    %125 = vmatprep.subr.bf16.mxu0 0
    %126 = vmatpush1.bf16.xpose.msra.mxu0 0
    %127 = vmatprep.mubr.bf16.mxu0 0
    %128 = vmatmul.mubr.bf16.gmra.mrb[0].mxu0 %v90
    %v129 = vpop.f32.mrb[0].mxu0
    %v130 = vadd.f32 0.0, %v129
    %v131 = vpop.f32.mrb[0].mxu0
    %v132 = vpop.f32.mrb[0].mxu0
    %v133 = vpop.f32.mrb[0].mxu0
    %134 = vdwg.mxu0
    %v136 = vsel %vm88, %v81, 0
    %v139 = vsel %vm88, %v85, 0
    %141 = vmatprep.subr.bf16.mxu0 0
    %142 = vmatpush1.bf16.xpose.msra.mxu0 %v139
    %143 = vmatprep.subr.bf16.mxu0 0
    %144 = vmatpush1.bf16.xpose.msra.mxu0 0
    %145 = vmatprep.subr.bf16.mxu0 0
    %146 = vmatpush1.bf16.xpose.msra.mxu0 0
    %147 = vmatprep.subr.bf16.mxu0 0
    %148 = vmatpush1.bf16.xpose.msra.mxu0 0
    %149 = vmatprep.subr.bf16.mxu0 0
    %150 = vmatpush1.bf16.xpose.msra.mxu0 0
    %151 = vmatprep.subr.bf16.mxu0 0
    %152 = vmatpush1.bf16.xpose.msra.mxu0 0
    %153 = vmatprep.subr.bf16.mxu0 0
    %154 = vmatpush1.bf16.xpose.msra.mxu0 0
    %155 = vmatprep.subr.bf16.mxu0 0
    %156 = vmatpush1.bf16.xpose.msra.mxu0 0
    %157 = vmatprep.subr.bf16.mxu0 0
    %158 = vmatpush1.bf16.xpose.msra.mxu0 0
    %159 = vmatprep.subr.bf16.mxu0 0
    %160 = vmatpush1.bf16.xpose.msra.mxu0 0
    %161 = vmatprep.subr.bf16.mxu0 0
    %162 = vmatpush1.bf16.xpose.msra.mxu0 0
    %163 = vmatprep.subr.bf16.mxu0 0
    %164 = vmatpush1.bf16.xpose.msra.mxu0 0
    %165 = vmatprep.subr.bf16.mxu0 0
    %166 = vmatpush1.bf16.xpose.msra.mxu0 0
    %167 = vmatprep.subr.bf16.mxu0 0
    %168 = vmatpush1.bf16.xpose.msra.mxu0 0
    %169 = vmatprep.subr.bf16.mxu0 0
    %170 = vmatpush1.bf16.xpose.msra.mxu0 0
    %171 = vmatprep.subr.bf16.mxu0 0
    %172 = vmatpush1.bf16.xpose.msra.mxu0 0
    %173 = vmatprep.mubr.bf16.mxu0 0
    %174 = vmatmul.mubr.bf16.gmra.mrb[0].mxu0 %v136
    %v175 = vpop.f32.mrb[0].mxu0
    %v176 = vadd.f32 0.0, %v175
    %v177 = vpop.f32.mrb[0].mxu0
    %v178 = vpop.f32.mrb[0].mxu0
    %v179 = vpop.f32.mrb[0].mxu0
    %180 = vdwg.mxu0
    %v182 = vsel %vm88, %v82, 0
    %v185 = vsel %vm88, %v86, 0
    %187 = vmatprep.subr.bf16.mxu0 0
    %188 = vmatpush1.bf16.xpose.msra.mxu0 %v185
    %189 = vmatprep.subr.bf16.mxu0 0
    %190 = vmatpush1.bf16.xpose.msra.mxu0 0
    %191 = vmatprep.subr.bf16.mxu0 0
    %192 = vmatpush1.bf16.xpose.msra.mxu0 0
    %193 = vmatprep.subr.bf16.mxu0 0
    %194 = vmatpush1.bf16.xpose.msra.mxu0 0
    %195 = vmatprep.subr.bf16.mxu0 0
    %196 = vmatpush1.bf16.xpose.msra.mxu0 0
    %197 = vmatprep.subr.bf16.mxu0 0
    %198 = vmatpush1.bf16.xpose.msra.mxu0 0
    %199 = vmatprep.subr.bf16.mxu0 0
    %200 = vmatpush1.bf16.xpose.msra.mxu0 0
    %201 = vmatprep.subr.bf16.mxu0 0
    %202 = vmatpush1.bf16.xpose.msra.mxu0 0
    %203 = vmatprep.subr.bf16.mxu0 0
    %204 = vmatpush1.bf16.xpose.msra.mxu0 0
    %205 = vmatprep.subr.bf16.mxu0 0
    %206 = vmatpush1.bf16.xpose.msra.mxu0 0
    %207 = vmatprep.subr.bf16.mxu0 0
    %208 = vmatpush1.bf16.xpose.msra.mxu0 0
    %209 = vmatprep.subr.bf16.mxu0 0
    %210 = vmatpush1.bf16.xpose.msra.mxu0 0
    %211 = vmatprep.subr.bf16.mxu0 0
    %212 = vmatpush1.bf16.xpose.msra.mxu0 0
    %213 = vmatprep.subr.bf16.mxu0 0
    %214 = vmatpush1.bf16.xpose.msra.mxu0 0
    %215 = vmatprep.subr.bf16.mxu0 0
    %216 = vmatpush1.bf16.xpose.msra.mxu0 0
    %217 = vmatprep.subr.bf16.mxu0 0
    %218 = vmatpush1.bf16.xpose.msra.mxu0 0
    %219 = vmatprep.mubr.bf16.mxu0 0
    %220 = vmatmul.mubr.bf16.gmra.mrb[0].mxu0 %v182
    %v221 = vpop.f32.mrb[0].mxu0
    %v222 = vadd.f32 0.0, %v221
    %v223 = vpop.f32.mrb[0].mxu0
    %v224 = vpop.f32.mrb[0].mxu0
    %v225 = vpop.f32.mrb[0].mxu0
    %226 = vdwg.mxu0
    %v228 = vsel %vm88, %v83, 0
    %v231 = vsel %vm88, %v87, 0
    %233 = vmatprep.subr.bf16.mxu0 0
    %234 = vmatpush1.bf16.xpose.msra.mxu0 %v231
    %235 = vmatprep.subr.bf16.mxu0 0
    %236 = vmatpush1.bf16.xpose.msra.mxu0 0
    %237 = vmatprep.subr.bf16.mxu0 0
    %238 = vmatpush1.bf16.xpose.msra.mxu0 0
    %239 = vmatprep.subr.bf16.mxu0 0
    %240 = vmatpush1.bf16.xpose.msra.mxu0 0
    %241 = vmatprep.subr.bf16.mxu0 0
    %242 = vmatpush1.bf16.xpose.msra.mxu0 0
    %243 = vmatprep.subr.bf16.mxu0 0
    %244 = vmatpush1.bf16.xpose.msra.mxu0 0
    %245 = vmatprep.subr.bf16.mxu0 0
    %246 = vmatpush1.bf16.xpose.msra.mxu0 0
    %247 = vmatprep.subr.bf16.mxu0 0
    %248 = vmatpush1.bf16.xpose.msra.mxu0 0
    %249 = vmatprep.subr.bf16.mxu0 0
    %250 = vmatpush1.bf16.xpose.msra.mxu0 0
    %251 = vmatprep.subr.bf16.mxu0 0
    %252 = vmatpush1.bf16.xpose.msra.mxu0 0
    %253 = vmatprep.subr.bf16.mxu0 0
    %254 = vmatpush1.bf16.xpose.msra.mxu0 0
    %255 = vmatprep.subr.bf16.mxu0 0
    %256 = vmatpush1.bf16.xpose.msra.mxu0 0
    %257 = vmatprep.subr.bf16.mxu0 0
    %258 = vmatpush1.bf16.xpose.msra.mxu0 0
    %259 = vmatprep.subr.bf16.mxu0 0
    %260 = vmatpush1.bf16.xpose.msra.mxu0 0
    %261 = vmatprep.subr.bf16.mxu0 0
    %262 = vmatpush1.bf16.xpose.msra.mxu0 0
    %263 = vmatprep.subr.bf16.mxu0 0
    %264 = vmatpush1.bf16.xpose.msra.mxu0 0
    %265 = vmatprep.mubr.bf16.mxu0 0
    %266 = vmatmul.mubr.bf16.gmra.mrb[0].mxu0 %v228
    %v267 = vpop.f32.mrb[0].mxu0
    %v268 = vadd.f32 0.0, %v267
    %v269 = vpop.f32.mrb[0].mxu0
    %v270 = vpop.f32.mrb[0].mxu0
    %v271 = vpop.f32.mrb[0].mxu0
    %272 = vdwg.mxu0
    %v273 = vld [vmem:[#allocation2] sm:$0xff]
    %v274 = vld [vmem:[#allocation2 + $0x8] sm:$0xff]
    %v275 = vld [vmem:[#allocation2 + $0x10] sm:$0xff]
    %v276 = vld [vmem:[#allocation2 + $0x18] sm:$0xff]
    %vm277 = vcmask 64512
    %v278 = vsel %vm277, %v130, -inf
    %279 = vmax.xlane.f32.xlu0 %v278
    %v280 = vpop.xlane.xlu0 %279
    %v281 = vsel %vm277, %v176, -inf
    %282 = vmax.xlane.f32.xlu0 %v281
    %v283 = vpop.xlane.xlu0 %282
    %v284 = vsel %vm277, %v222, -inf
    %285 = vmax.xlane.f32.xlu0 %v284
    %v286 = vpop.xlane.xlu0 %285
    %v287 = vsel %vm277, %v268, -inf
    %288 = vmax.xlane.f32.xlu0 %v287
    %v289 = vpop.xlane.xlu0 %288
    %v290 = vmax.f32 %v273, %v280
    %v291 = vmax.f32 %v274, %v283
    %v292 = vmax.f32 %v275, %v286
    %v293 = vmax.f32 %v276, %v289
    %v294 = vsub.f32 %v273, %v290
    %v295 = vsub.f32 %v274, %v291
    %v296 = vsub.f32 %v275, %v292
    %v297 = vsub.f32 %v276, %v293
    %v298 = vmul.f32 %v294, 1.442695
    %v299 = vpow.pop %v298
    %v300 = vmul.f32 %v295, 1.442695
    %v301 = vpow.pop %v300
    %v302 = vmul.f32 %v296, 1.442695
    %v303 = vpow.pop %v302
    %v304 = vmul.f32 %v297, 1.442695
    %v305 = vpow.pop %v304
    %307 = vset.pattern.permute.xlu0 0
    %308 = vperm.xlu0 %307, %v290
    %v309 = vpop.permute.xlu0 %308
    %312 = vset.pattern.permute.xlu0 0
    %313 = vperm.xlu0 %312, %v291
    %v314 = vpop.permute.xlu0 %313
    %317 = vset.pattern.permute.xlu0 0
    %318 = vperm.xlu0 %317, %v292
    %v319 = vpop.permute.xlu0 %318
    %322 = vset.pattern.permute.xlu0 0
    %323 = vperm.xlu0 %322, %v293
    %v324 = vpop.permute.xlu0 %323
    %v326 = vsub.f32 %v130, %v309
    %v327 = vsub.f32 %v176, %v314
    %v328 = vsub.f32 %v222, %v319
    %v329 = vsub.f32 %v268, %v324
    %v330 = vmul.f32 %v326, 1.442695
    %v331 = vpow.pop %v330
    %v332 = vmul.f32 %v327, 1.442695
    %v333 = vpow.pop %v332
    %v334 = vmul.f32 %v328, 1.442695
    %v335 = vpow.pop %v334
    %v336 = vmul.f32 %v329, 1.442695
    %v337 = vpow.pop %v336
    %v338 = vld [vmem:[#allocation3] sm:$0xff]
    %v339 = vld [vmem:[#allocation3 + $0x8] sm:$0xff]
    %v340 = vld [vmem:[#allocation3 + $0x10] sm:$0xff]
    %v341 = vld [vmem:[#allocation3 + $0x18] sm:$0xff]
    %v342 = vmul.f32 %v299, %v338
    %v343 = vmul.f32 %v301, %v339
    %v344 = vmul.f32 %v303, %v340
    %v345 = vmul.f32 %v305, %v341
    %v346 = vsel %vm277, %v331, 0.0
    %347 = vadd.xlane.f32.xlu0 %v346
    %v348 = vpop.xlane.xlu0 %347
    %v349 = vsel %vm277, %v333, 0.0
    %350 = vadd.xlane.f32.xlu0 %v349
    %v351 = vpop.xlane.xlu0 %350
    %v352 = vsel %vm277, %v335, 0.0
    %353 = vadd.xlane.f32.xlu0 %v352
    %v354 = vpop.xlane.xlu0 %353
    %v355 = vsel %vm277, %v337, 0.0
    %356 = vadd.xlane.f32.xlu0 %v355
    %v357 = vpop.xlane.xlu0 %356
    %v358 = vadd.f32 %v342, %v348
    %v359 = vadd.f32 %v343, %v351
    %v360 = vadd.f32 %v344, %v354
    %v361 = vadd.f32 %v345, %v357
    %vm362 = vcmask 7168
    %363 = vst.msk [vmem:[#allocation3] sm:$0xff] %vm362, %v358
    %364 = vst.msk [vmem:[#allocation3 + $0x8] sm:$0xff] %vm362, %v359
    %365 = vst.msk [vmem:[#allocation3 + $0x10] sm:$0xff] %vm362, %v360
    %366 = vst.msk [vmem:[#allocation3 + $0x18] sm:$0xff] %vm362, %v361
    %v367 = vld [vmem:[#allocation4] sm:$0xff]
    %v368 = vld [vmem:[#allocation4 + $0x8] sm:$0xff]
    %v369 = vld [vmem:[#allocation4 + $0x10] sm:$0xff]
    %v370 = vld [vmem:[#allocation4 + $0x18] sm:$0xff]
    %372 = vset.pattern.permute.xlu0 0
    %373 = vperm.xlu0 %372, %v299
    %v374 = vpop.permute.xlu0 %373
    %377 = vset.pattern.permute.xlu0 0
    %378 = vperm.xlu0 %377, %v301
    %v379 = vpop.permute.xlu0 %378
    %382 = vset.pattern.permute.xlu0 0
    %383 = vperm.xlu0 %382, %v303
    %v384 = vpop.permute.xlu0 %383
    %387 = vset.pattern.permute.xlu0 0
    %388 = vperm.xlu0 %387, %v305
    %v389 = vpop.permute.xlu0 %388
    %v391 = vmul.f32 %v374, %v367
    %v392 = vmul.f32 %v379, %v368
    %v393 = vmul.f32 %v384, %v369
    %v394 = vmul.f32 %v389, %v370
    %v395 = vpack.c.bf16 %v331, %v331
    %v396 = vpack.c.bf16 %v333, %v333
    %v397 = vpack.c.bf16 %v335, %v335
    %v398 = vpack.c.bf16 %v337, %v337
    %v399 = vld [vmem:[#allocation10] sm:$0xf]
    %v400 = vld [vmem:[#allocation10 + $0x4] sm:$0xf]
    %v401 = vld [vmem:[#allocation10 + $0x8] sm:$0xf]
    %v402 = vld [vmem:[#allocation10 + $0xc] sm:$0xf]
    %v404 = vsel %vm277, %v395, 0
    %vm406 = vcmask 1043456
    %v408 = vsel %vm406, %v399, 0
    %410 = vmatprep.subr.bf16.mxu0 0
    %411 = vmatpush1.bf16.msra.mxu0 %v408
    %412 = vmatprep.subr.bf16.mxu0 0
    %413 = vmatpush1.bf16.msra.mxu0 0
    %414 = vmatprep.subr.bf16.mxu0 0
    %415 = vmatpush1.bf16.msra.mxu0 0
    %416 = vmatprep.subr.bf16.mxu0 0
    %417 = vmatpush1.bf16.msra.mxu0 0
    %418 = vmatprep.subr.bf16.mxu0 0
    %419 = vmatpush1.bf16.msra.mxu0 0
    %420 = vmatprep.subr.bf16.mxu0 0
    %421 = vmatpush1.bf16.msra.mxu0 0
    %422 = vmatprep.subr.bf16.mxu0 0
    %423 = vmatpush1.bf16.msra.mxu0 0
    %424 = vmatprep.subr.bf16.mxu0 0
    %425 = vmatpush1.bf16.msra.mxu0 0
    %426 = vmatprep.subr.bf16.mxu0 0
    %427 = vmatpush1.bf16.msra.mxu0 0
    %428 = vmatprep.subr.bf16.mxu0 0
    %429 = vmatpush1.bf16.msra.mxu0 0
    %430 = vmatprep.subr.bf16.mxu0 0
    %431 = vmatpush1.bf16.msra.mxu0 0
    %432 = vmatprep.subr.bf16.mxu0 0
    %433 = vmatpush1.bf16.msra.mxu0 0
    %434 = vmatprep.subr.bf16.mxu0 0
    %435 = vmatpush1.bf16.msra.mxu0 0
    %436 = vmatprep.subr.bf16.mxu0 0
    %437 = vmatpush1.bf16.msra.mxu0 0
    %438 = vmatprep.subr.bf16.mxu0 0
    %439 = vmatpush1.bf16.msra.mxu0 0
    %440 = vmatprep.subr.bf16.mxu0 0
    %441 = vmatpush1.bf16.msra.mxu0 0
    %442 = vmatprep.mubr.bf16.mxu0 0
    %443 = vmatmul.mubr.bf16.gmra.mrb[0].mxu0 %v404
    %v444 = vpop.f32.mrb[0].mxu0
    %v445 = vadd.f32 0.0, %v444
    %v446 = vpop.f32.mrb[0].mxu0
    %v447 = vpop.f32.mrb[0].mxu0
    %v448 = vpop.f32.mrb[0].mxu0
    %449 = vdwg.mxu0
    %v451 = vsel %vm277, %v396, 0
    %v454 = vsel %vm406, %v400, 0
    %456 = vmatprep.subr.bf16.mxu0 0
    %457 = vmatpush1.bf16.msra.mxu0 %v454
    %458 = vmatprep.subr.bf16.mxu0 0
    %459 = vmatpush1.bf16.msra.mxu0 0
    %460 = vmatprep.subr.bf16.mxu0 0
    %461 = vmatpush1.bf16.msra.mxu0 0
    %462 = vmatprep.subr.bf16.mxu0 0
    %463 = vmatpush1.bf16.msra.mxu0 0
    %464 = vmatprep.subr.bf16.mxu0 0
    %465 = vmatpush1.bf16.msra.mxu0 0
    %466 = vmatprep.subr.bf16.mxu0 0
    %467 = vmatpush1.bf16.msra.mxu0 0
    %468 = vmatprep.subr.bf16.mxu0 0
    %469 = vmatpush1.bf16.msra.mxu0 0
    %470 = vmatprep.subr.bf16.mxu0 0
    %471 = vmatpush1.bf16.msra.mxu0 0
    %472 = vmatprep.subr.bf16.mxu0 0
    %473 = vmatpush1.bf16.msra.mxu0 0
    %474 = vmatprep.subr.bf16.mxu0 0
    %475 = vmatpush1.bf16.msra.mxu0 0
    %476 = vmatprep.subr.bf16.mxu0 0
    %477 = vmatpush1.bf16.msra.mxu0 0
    %478 = vmatprep.subr.bf16.mxu0 0
    %479 = vmatpush1.bf16.msra.mxu0 0
    %480 = vmatprep.subr.bf16.mxu0 0
    %481 = vmatpush1.bf16.msra.mxu0 0
    %482 = vmatprep.subr.bf16.mxu0 0
    %483 = vmatpush1.bf16.msra.mxu0 0
    %484 = vmatprep.subr.bf16.mxu0 0
    %485 = vmatpush1.bf16.msra.mxu0 0
    %486 = vmatprep.subr.bf16.mxu0 0
    %487 = vmatpush1.bf16.msra.mxu0 0
    %488 = vmatprep.mubr.bf16.mxu0 0
    %489 = vmatmul.mubr.bf16.gmra.mrb[0].mxu0 %v451
    %v490 = vpop.f32.mrb[0].mxu0
    %v491 = vadd.f32 0.0, %v490
    %v492 = vpop.f32.mrb[0].mxu0
    %v493 = vpop.f32.mrb[0].mxu0
    %v494 = vpop.f32.mrb[0].mxu0
    %495 = vdwg.mxu0
    %v497 = vsel %vm277, %v397, 0
    %v500 = vsel %vm406, %v401, 0
    %502 = vmatprep.subr.bf16.mxu0 0
    %503 = vmatpush1.bf16.msra.mxu0 %v500
    %504 = vmatprep.subr.bf16.mxu0 0
    %505 = vmatpush1.bf16.msra.mxu0 0
    %506 = vmatprep.subr.bf16.mxu0 0
    %507 = vmatpush1.bf16.msra.mxu0 0
    %508 = vmatprep.subr.bf16.mxu0 0
    %509 = vmatpush1.bf16.msra.mxu0 0
    %510 = vmatprep.subr.bf16.mxu0 0
    %511 = vmatpush1.bf16.msra.mxu0 0
    %512 = vmatprep.subr.bf16.mxu0 0
    %513 = vmatpush1.bf16.msra.mxu0 0
    %514 = vmatprep.subr.bf16.mxu0 0
    %515 = vmatpush1.bf16.msra.mxu0 0
    %516 = vmatprep.subr.bf16.mxu0 0
    %517 = vmatpush1.bf16.msra.mxu0 0
    %518 = vmatprep.subr.bf16.mxu0 0
    %519 = vmatpush1.bf16.msra.mxu0 0
    %520 = vmatprep.subr.bf16.mxu0 0
    %521 = vmatpush1.bf16.msra.mxu0 0
    %522 = vmatprep.subr.bf16.mxu0 0
    %523 = vmatpush1.bf16.msra.mxu0 0
    %524 = vmatprep.subr.bf16.mxu0 0
    %525 = vmatpush1.bf16.msra.mxu0 0
    %526 = vmatprep.subr.bf16.mxu0 0
    %527 = vmatpush1.bf16.msra.mxu0 0
    %528 = vmatprep.subr.bf16.mxu0 0
    %529 = vmatpush1.bf16.msra.mxu0 0
    %530 = vmatprep.subr.bf16.mxu0 0
    %531 = vmatpush1.bf16.msra.mxu0 0
    %532 = vmatprep.subr.bf16.mxu0 0
    %533 = vmatpush1.bf16.msra.mxu0 0
    %534 = vmatprep.mubr.bf16.mxu0 0
    %535 = vmatmul.mubr.bf16.gmra.mrb[0].mxu0 %v497
    %v536 = vpop.f32.mrb[0].mxu0
    %v537 = vadd.f32 0.0, %v536
    %v538 = vpop.f32.mrb[0].mxu0
    %v539 = vpop.f32.mrb[0].mxu0
    %v540 = vpop.f32.mrb[0].mxu0
    %541 = vdwg.mxu0
    %v543 = vsel %vm277, %v398, 0
    %v546 = vsel %vm406, %v402, 0
    %548 = vmatprep.subr.bf16.mxu0 0
    %549 = vmatpush1.bf16.msra.mxu0 %v546
    %550 = vmatprep.subr.bf16.mxu0 0
    %551 = vmatpush1.bf16.msra.mxu0 0
    %552 = vmatprep.subr.bf16.mxu0 0
    %553 = vmatpush1.bf16.msra.mxu0 0
    %554 = vmatprep.subr.bf16.mxu0 0
    %555 = vmatpush1.bf16.msra.mxu0 0
    %556 = vmatprep.subr.bf16.mxu0 0
    %557 = vmatpush1.bf16.msra.mxu0 0
    %558 = vmatprep.subr.bf16.mxu0 0
    %559 = vmatpush1.bf16.msra.mxu0 0
    %560 = vmatprep.subr.bf16.mxu0 0
    %561 = vmatpush1.bf16.msra.mxu0 0
    %562 = vmatprep.subr.bf16.mxu0 0
    %563 = vmatpush1.bf16.msra.mxu0 0
    %564 = vmatprep.subr.bf16.mxu0 0
    %565 = vmatpush1.bf16.msra.mxu0 0
    %566 = vmatprep.subr.bf16.mxu0 0
    %567 = vmatpush1.bf16.msra.mxu0 0
    %568 = vmatprep.subr.bf16.mxu0 0
    %569 = vmatpush1.bf16.msra.mxu0 0
    %570 = vmatprep.subr.bf16.mxu0 0
    %571 = vmatpush1.bf16.msra.mxu0 0
    %572 = vmatprep.subr.bf16.mxu0 0
    %573 = vmatpush1.bf16.msra.mxu0 0
    %574 = vmatprep.subr.bf16.mxu0 0
    %575 = vmatpush1.bf16.msra.mxu0 0
    %576 = vmatprep.subr.bf16.mxu0 0
    %577 = vmatpush1.bf16.msra.mxu0 0
    %578 = vmatprep.subr.bf16.mxu0 0
    %579 = vmatpush1.bf16.msra.mxu0 0
    %580 = vmatprep.mubr.bf16.mxu0 0
    %581 = vmatmul.mubr.bf16.gmra.mrb[0].mxu0 %v543
    %v582 = vpop.f32.mrb[0].mxu0
    %v583 = vadd.f32 0.0, %v582
    %v584 = vpop.f32.mrb[0].mxu0
    %v585 = vpop.f32.mrb[0].mxu0
    %v586 = vpop.f32.mrb[0].mxu0
    %587 = vdwg.mxu0
    %v588 = vadd.f32 %v391, %v445
    %v589 = vadd.f32 %v392, %v491
    %v590 = vadd.f32 %v393, %v537
    %v591 = vadd.f32 %v394, %v583
    %592 = vst.msk [vmem:[#allocation4] sm:$0xff] %vm88, %v588
    %593 = vst.msk [vmem:[#allocation4 + $0x8] sm:$0xff] %vm88, %v589
    %594 = vst.msk [vmem:[#allocation4 + $0x10] sm:$0xff] %vm88, %v590
    %595 = vst.msk [vmem:[#allocation4 + $0x18] sm:$0xff] %vm88, %v591
    %596 = vst.msk [vmem:[#allocation2] sm:$0xff] %vm362, %v290
    %597 = vst.msk [vmem:[#allocation2 + $0x8] sm:$0xff] %vm362, %v291
    %598 = vst.msk [vmem:[#allocation2 + $0x10] sm:$0xff] %vm362, %v292
    %599 = vst.msk [vmem:[#allocation2 + $0x18] sm:$0xff] %vm362, %v293
    // Predicated region
    $region30: #{_lambda_.40} parent=1 // pred_check
      %p600 = pneg %p58
    $region31: #{_lambda_.40} parent=1 // pred_check_branch
      %602 = sbr.rel (%p600) target = $region33
    $region32: #{_lambda_.40} parent=1 // pred_region
      %v603 = vld [vmem:[#allocation4] sm:$0xff]
      %v604 = vld [vmem:[#allocation4 + $0x8] sm:$0xff]
      %v605 = vld [vmem:[#allocation4 + $0x10] sm:$0xff]
      %v606 = vld [vmem:[#allocation4 + $0x18] sm:$0xff]
      %v607 = vld [vmem:[#allocation3] sm:$0xff]
      %v608 = vld [vmem:[#allocation3 + $0x8] sm:$0xff]
      %v609 = vld [vmem:[#allocation3 + $0x10] sm:$0xff]
      %v610 = vld [vmem:[#allocation3 + $0x18] sm:$0xff]
      %v611 = vrcp.pop %v607
      %v612 = vrcp.pop %v608
      %v613 = vrcp.pop %v609
      %v614 = vrcp.pop %v610
      %616 = vset.pattern.permute.xlu0 0
      %617 = vperm.xlu0 %616, %v611
      %v618 = vpop.permute.xlu0 %617
      %621 = vset.pattern.permute.xlu0 0
      %622 = vperm.xlu0 %621, %v612
      %v623 = vpop.permute.xlu0 %622
      %626 = vset.pattern.permute.xlu0 0
      %627 = vperm.xlu0 %626, %v613
      %v628 = vpop.permute.xlu0 %627
      %631 = vset.pattern.permute.xlu0 0
      %632 = vperm.xlu0 %631, %v614
      %v633 = vpop.permute.xlu0 %632
      %v635 = vmul.f32 %v603, %v618
      %v636 = vmul.f32 %v604, %v623
      %v637 = vmul.f32 %v605, %v628
      %v638 = vmul.f32 %v606, %v633
      %v639 = vpack.c.bf16 %v635, %v635
      %v640 = vpack.c.bf16 %v636, %v636
      %v641 = vpack.c.bf16 %v637, %v637
      %v642 = vpack.c.bf16 %v638, %v638
      %vm643 = vcmask 125952
      %644 = vst.msk [vmem:[#allocation11] sm:$0xf] %vm643, %v639
      %645 = vst.msk [vmem:[#allocation11 + $0x4] sm:$0xf] %vm643, %v640
      %646 = vst.msk [vmem:[#allocation11 + $0x8] sm:$0xf] %vm643, %v641
      %647 = vst.msk [vmem:[#allocation11 + $0xc] sm:$0xf] %vm643, %v642
    $region33: #{_lambda_.40} parent=1 // pred_fallthru
      _
    // Predicated region
    $region34: #{_lambda_.40} parent=1 // pred_check
      _
    $region35: #{_lambda_.40} parent=1 // pred_check_branch
      %649 = sbr.rel (0) target = $region37
    $region36: #{_lambda_.40} parent=1 // pred_region
      %s651 = ssub.s32 256, 256
      %652 = vsyncadd [#allocation7], %s651
      %s653 = sshll.u32 [#allocation11], 4
      %s654 = int_to_ptr.vmem [resolvable:$true] %s653
      %659 = dma.vmem_to_hbm [thread:$0]  %s654, 256, %s3, [#allocation7], 64, 64, 4
    $region37: #{_lambda_.40} parent=1 // pred_fallthru
      _
    // Predicated region
    $region38: #{_lambda_.40} parent=1 // pred_check
      _
    $region39: #{_lambda_.40} parent=1 // pred_check_branch
      %661 = sbr.rel (0) target = $region41
    $region40: #{_lambda_.40} parent=1 // pred_region
      %662 = dma.done [#allocation7], 256
    $region41: #{_lambda_.40} parent=1 // pred_fallthru
      _
    %663 = vsyncpa [#allocation6], 1
    %664 = vsyncpa [#allocation9], 1
    %665 = vsyncpa [#allocation7], 1

// kernel: _lambda_.51
$region0: #{_lambda_.51}
  #allocation0 [shape = 'u32[]', space=smem, size = 0x4, offset = 0x4, fixed_abs, tag = 'smem constant byte address 0x4 - core index']
  #allocation1 [shape = 'u32[144,128]{1,0:T(1,128)}', space=vmem, size = 0x12000, scoped, tag = 'internal scratch']
  %s0 = inlined_call_operand.hbm [shape: bf16[32,16], index: 0, kind: input, shape index: {}]
  %s1 = inlined_call_operand.hbm [shape: bf16[16,32], index: 1, kind: input, shape index: {}]
  %s2 = inlined_call_operand.hbm [shape: f32[1,32], index: 2, kind: input, shape index: {}]
  %s3 = inlined_call_operand.hbm [shape: bf16[32,32], index: 3, kind: output, shape index: {}]
  %s4 = sld [smem:[#allocation0]]
  $region34: #{_lambda_.51} parent=0
    _
  %s6 = ssub.s32 1, %s4
  %s7 = scalar_select 0, %s6, %s4
  $region1: #{_lambda_.51} parent=0
    #allocation2 [shape = 'u8[8192]{0}', space=vmem, size = 0x2000, scoped, tag = 'input window, operand 0, single buffered']
    #allocation3 [shape = 's32[1]{0}', space=sflag, size = 0x4, scoped, tag = 'scoped memory for _lambda_.51']
    #allocation4 [shape = 's32[1]{0}', space=sflag, size = 0x4, scoped, tag = 'scoped memory for _lambda_.51']
    #allocation5 [shape = 'u8[4096]{0}', space=vmem, size = 0x1000, scoped, tag = 'input window, operand 1, single buffered']
    #allocation6 [shape = 's32[1]{0}', space=sflag, size = 0x4, scoped, tag = 'scoped memory for _lambda_.51']
    #allocation7 [shape = 'u8[512]{0}', space=vmem, size = 0x400, scoped, tag = 'input window, operand 2, single buffered']
    #allocation8 [shape = 'u8[8192]{0}', space=vmem, size = 0x2000, scoped, tag = 'output window, operand 0, single buffered']
    %8 = vsyncpa [#allocation3], 0
    %9 = vsyncpa [#allocation6], 0
    %10 = vsyncpa [#allocation4], 0
    // Predicated region
    $region2: #{_lambda_.51} parent=1 // pred_check
      _
    $region3: #{_lambda_.51} parent=1 // pred_check_branch
      %12 = sbr.rel (0) target = $region5
    $region4: #{_lambda_.51} parent=1 // pred_region
      %s14 = ssub.s32 256, 256
      %15 = vsyncadd [#allocation3], %s14
      %s16 = sshll.u32 [#allocation2], 4
      %s17 = int_to_ptr.vmem [resolvable:$true] %s16
      %22 = dma.hbm_to_vmem [thread:$0]  %s0, 256, %s17, [#allocation3], 64, 64, 4
    $region5: #{_lambda_.51} parent=1 // pred_fallthru
      _
    // Predicated region
    $region6: #{_lambda_.51} parent=1 // pred_check
      _
    $region7: #{_lambda_.51} parent=1 // pred_check_branch
      %24 = sbr.rel (0) target = $region9
    $region8: #{_lambda_.51} parent=1 // pred_region
      %s26 = ssub.s32 128, 128
      %27 = vsyncadd [#allocation6], %s26
      %s28 = sshll.u32 [#allocation5], 4
      %s29 = int_to_ptr.vmem [resolvable:$true] %s28
      %34 = dma.hbm_to_vmem [thread:$0]  %s1, 128, %s29, [#allocation6], 64, 64, 4
    $region9: #{_lambda_.51} parent=1 // pred_fallthru
      _
    // Predicated region
    $region10: #{_lambda_.51} parent=1 // pred_check
      _
    $region11: #{_lambda_.51} parent=1 // pred_check_branch
      %36 = sbr.rel (0) target = $region13
    $region12: #{_lambda_.51} parent=1 // pred_region
      %s38 = ssub.s32 16, 16
      %39 = vsyncadd [#allocation6], %s38
      %s41 = sshll.u32 [#allocation7], 4
      %s42 = int_to_ptr.vmem [resolvable:$true] %s41
      %44 = dma.hbm_to_vmem [thread:$0]  %s2, 16, %s42, [#allocation6]
    $region13: #{_lambda_.51} parent=1 // pred_fallthru
      _
    // Predicated region
    $region14: #{_lambda_.51} parent=1 // pred_check
      _
    $region15: #{_lambda_.51} parent=1 // pred_check_branch
      %46 = sbr.rel (0) target = $region17
    $region16: #{_lambda_.51} parent=1 // pred_region
      %47 = dma.done [#allocation3], 256
    $region17: #{_lambda_.51} parent=1 // pred_fallthru
      _
    // Predicated region
    $region18: #{_lambda_.51} parent=1 // pred_check
      _
    $region19: #{_lambda_.51} parent=1 // pred_check_branch
      %49 = sbr.rel (0) target = $region21
    $region20: #{_lambda_.51} parent=1 // pred_region
      %50 = dma.done [#allocation6], 128
    $region21: #{_lambda_.51} parent=1 // pred_fallthru
      _
    // Predicated region
    $region22: #{_lambda_.51} parent=1 // pred_check
      _
    $region23: #{_lambda_.51} parent=1 // pred_check_branch
      %52 = sbr.rel (0) target = $region25
    $region24: #{_lambda_.51} parent=1 // pred_region
      %53 = dma.done [#allocation6], 16
    $region25: #{_lambda_.51} parent=1 // pred_fallthru
      _
    %v55 = vld [vmem:[#allocation2] sm:$0xf]
    %v56 = vld [vmem:[#allocation2 + $0x4] sm:$0xf]
    %v57 = vld [vmem:[#allocation2 + $0x8] sm:$0xf]
    %v58 = vld [vmem:[#allocation2 + $0xc] sm:$0xf]
    %v59 = vld [vmem:[#allocation5] sm:$0xf]
    %v60 = vld [vmem:[#allocation5 + $0x4] sm:$0xf]
    %v61 = vld [vmem:[#allocation7] sm:$0x1]
    %v63 = vlaneseq
    %v64 = vshrl.u32 %v63, 7
    %v65 = vsub.s32 0, %v64
    %v66 = vrot.slane %v61, %v65
    %v72 = vunpack.c.l.b16 %v55
    %v73 = vunpack.c.l.b16 %v56
    %v74 = vunpack.c.l.b16 %v57
    %v75 = vunpack.c.l.b16 %v58
    %v76 = vpack.c.b16 %v73, %v72
    %v77 = vpack.c.b16 %v75, %v74
    %v80 = vunpack.c.l.b16 %v59
    %v81 = vunpack.c.l.b16 %v60
    %v82 = vpack.c.b16 %v81, %v80
    %vm84 = vcmask 130048
    %v86 = vsel %vm84, %v76, 0
    %v89 = vsel %vm84, %v77, 0
    %91 = vmatprep.subr.bf16.mxu0 0
    %92 = vmatpush1.bf16.msra.mxu0 %v82
    %93 = vmatprep.subr.bf16.mxu0 0
    %94 = vmatpush1.bf16.msra.mxu0 0
    %95 = vmatprep.subr.bf16.mxu0 0
    %96 = vmatpush1.bf16.msra.mxu0 0
    %97 = vmatprep.subr.bf16.mxu0 0
    %98 = vmatpush1.bf16.msra.mxu0 0
    %99 = vmatprep.subr.bf16.mxu0 0
    %100 = vmatpush1.bf16.msra.mxu0 0
    %101 = vmatprep.subr.bf16.mxu0 0
    %102 = vmatpush1.bf16.msra.mxu0 0
    %103 = vmatprep.subr.bf16.mxu0 0
    %104 = vmatpush1.bf16.msra.mxu0 0
    %105 = vmatprep.subr.bf16.mxu0 0
    %106 = vmatpush1.bf16.msra.mxu0 0
    %107 = vmatprep.subr.bf16.mxu0 0
    %108 = vmatpush1.bf16.msra.mxu0 0
    %109 = vmatprep.subr.bf16.mxu0 0
    %110 = vmatpush1.bf16.msra.mxu0 0
    %111 = vmatprep.subr.bf16.mxu0 0
    %112 = vmatpush1.bf16.msra.mxu0 0
    %113 = vmatprep.subr.bf16.mxu0 0
    %114 = vmatpush1.bf16.msra.mxu0 0
    %115 = vmatprep.subr.bf16.mxu0 0
    %116 = vmatpush1.bf16.msra.mxu0 0
    %117 = vmatprep.subr.bf16.mxu0 0
    %118 = vmatpush1.bf16.msra.mxu0 0
    %119 = vmatprep.subr.bf16.mxu0 0
    %120 = vmatpush1.bf16.msra.mxu0 0
    %121 = vmatprep.subr.bf16.mxu0 0
    %122 = vmatpush1.bf16.msra.mxu0 0
    %123 = vmatprep.mubr.bf16.mxu0 0
    %124 = vmatmul.mubr.bf16.gmra.mrb[0].mxu0 %v86
    %v125 = vpop.f32.mrb[0].mxu0
    %v126 = vadd.f32 %v66, %v125
    %v127 = vpop.f32.mrb[0].mxu0
    %v128 = vpop.f32.mrb[0].mxu0
    %v129 = vadd.f32 %v66, %v128
    %v130 = vpop.f32.mrb[0].mxu0
    %131 = vmatprep.mubr.bf16.mxu0 0
    %132 = vmatmul.mubr.bf16.gmra.mrb[0].mxu0 %v89
    %v133 = vpop.f32.mrb[0].mxu0
    %v134 = vadd.f32 %v66, %v133
    %v135 = vpop.f32.mrb[0].mxu0
    %v136 = vpop.f32.mrb[0].mxu0
    %v137 = vadd.f32 %v66, %v136
    %v138 = vpop.f32.mrb[0].mxu0
    %139 = vdwg.mxu0
    %v140 = vpack.c.bf16 %v129, %v126
    %v141 = vpack.c.bf16 %v137, %v134
    %v144 = vunpack.c.l.b16 %v140
    %v145 = vunpack.c.h.b16 %v140
    %v146 = vunpack.c.l.b16 %v141
    %v147 = vunpack.c.h.b16 %v141
    %v148 = vpack.c.b16 %v144, %v144
    %v149 = vpack.c.b16 %v145, %v145
    %v150 = vpack.c.b16 %v146, %v146
    %v151 = vpack.c.b16 %v147, %v147
    %vm156 = vcmask 257024
    %157 = vst.msk [vmem:[#allocation8] sm:$0xf] %vm156, %v148
    %158 = vst.msk [vmem:[#allocation8 + $0x4] sm:$0xf] %vm156, %v149
    %159 = vst.msk [vmem:[#allocation8 + $0x8] sm:$0xf] %vm156, %v150
    %160 = vst.msk [vmem:[#allocation8 + $0xc] sm:$0xf] %vm156, %v151
    // Predicated region
    $region26: #{_lambda_.51} parent=1 // pred_check
      _
    $region27: #{_lambda_.51} parent=1 // pred_check_branch
      %162 = sbr.rel (0) target = $region29
    $region28: #{_lambda_.51} parent=1 // pred_region
      %s164 = ssub.s32 256, 256
      %165 = vsyncadd [#allocation4], %s164
      %s166 = sshll.u32 [#allocation8], 4
      %s167 = int_to_ptr.vmem [resolvable:$true] %s166
      %172 = dma.vmem_to_hbm [thread:$0]  %s167, 256, %s3, [#allocation4], 64, 64, 4
    $region29: #{_lambda_.51} parent=1 // pred_fallthru
      _
    // Predicated region
    $region30: #{_lambda_.51} parent=1 // pred_check
      _
    $region31: #{_lambda_.51} parent=1 // pred_check_branch
      %174 = sbr.rel (0) target = $region33
    $region32: #{_lambda_.51} parent=1 // pred_region
      %175 = dma.done [#allocation4], 256
    $region33: #{_lambda_.51} parent=1 // pred_fallthru
      _
    %176 = vsyncpa [#allocation3], 1
    %177 = vsyncpa [#allocation6], 1
    %178 = vsyncpa [#allocation4], 1

// kernel: _lambda_.57
$region0: #{_lambda_.57}
  #allocation0 [shape = 'u32[]', space=smem, size = 0x4, offset = 0x4, fixed_abs, tag = 'smem constant byte address 0x4 - core index']
  #allocation1 [shape = 'u32[144,128]{1,0:T(1,128)}', space=vmem, size = 0x12000, scoped, tag = 'internal scratch']
  %s0 = inlined_call_operand.hbm [shape: bf16[32,16], index: 0, kind: input, shape index: {}]
  %s1 = inlined_call_operand.hbm [shape: bf16[16,32], index: 1, kind: input, shape index: {}]
  %s2 = inlined_call_operand.hbm [shape: f32[1,32], index: 2, kind: input, shape index: {}]
  %s3 = inlined_call_operand.hbm [shape: bf16[32,128], index: 3, kind: input, shape index: {}]
  %s4 = inlined_call_operand.hbm [shape: f32[1,128], index: 4, kind: input, shape index: {}]
  %s5 = inlined_call_operand.hbm [shape: f32[32,128], index: 5, kind: output, shape index: {}]
  %s6 = sld [smem:[#allocation0]]
  $region50: #{_lambda_.57} parent=0
    _
  %s8 = ssub.s32 1, %s6
  %s9 = scalar_select 0, %s8, %s6
  $region1: #{_lambda_.57} parent=0
    #allocation2 [shape = 'u8[8192]{0}', space=vmem, size = 0x2000, scoped, tag = 'input window, operand 0, single buffered']
    #allocation3 [shape = 's32[1]{0}', space=sflag, size = 0x4, scoped, tag = 'scoped memory for _lambda_.57']
    #allocation4 [shape = 's32[1]{0}', space=sflag, size = 0x4, scoped, tag = 'scoped memory for _lambda_.57']
    #allocation5 [shape = 'u8[4096]{0}', space=vmem, size = 0x1000, scoped, tag = 'input window, operand 1, single buffered']
    #allocation6 [shape = 's32[1]{0}', space=sflag, size = 0x4, scoped, tag = 'scoped memory for _lambda_.57']
    #allocation7 [shape = 'u8[512]{0}', space=vmem, size = 0x400, scoped, tag = 'input window, operand 2, single buffered']
    #allocation8 [shape = 'u8[8192]{0}', space=vmem, size = 0x2000, scoped, tag = 'input window, operand 3, single buffered']
    #allocation9 [shape = 's32[1]{0}', space=sflag, size = 0x4, scoped, tag = 'scoped memory for _lambda_.57']
    #allocation10 [shape = 'u8[512]{0}', space=vmem, size = 0x400, scoped, tag = 'input window, operand 4, single buffered']
    #allocation11 [shape = 'u8[16384]{0}', space=vmem, size = 0x4000, scoped, tag = 'output window, operand 0, single buffered']
    %10 = vsyncpa [#allocation3], 0
    %11 = vsyncpa [#allocation6], 0
    %12 = vsyncpa [#allocation9], 0
    %13 = vsyncpa [#allocation4], 0
    // Predicated region
    $region2: #{_lambda_.57} parent=1 // pred_check
      _
    $region3: #{_lambda_.57} parent=1 // pred_check_branch
      %15 = sbr.rel (0) target = $region5
    $region4: #{_lambda_.57} parent=1 // pred_region
      %s17 = ssub.s32 256, 256
      %18 = vsyncadd [#allocation3], %s17
      %s19 = sshll.u32 [#allocation2], 4
      %s20 = int_to_ptr.vmem [resolvable:$true] %s19
      %25 = dma.hbm_to_vmem [thread:$0]  %s0, 256, %s20, [#allocation3], 64, 64, 4
    $region5: #{_lambda_.57} parent=1 // pred_fallthru
      _
    // Predicated region
    $region6: #{_lambda_.57} parent=1 // pred_check
      _
    $region7: #{_lambda_.57} parent=1 // pred_check_branch
      %27 = sbr.rel (0) target = $region9
    $region8: #{_lambda_.57} parent=1 // pred_region
      %s29 = ssub.s32 128, 128
      %30 = vsyncadd [#allocation6], %s29
      %s31 = sshll.u32 [#allocation5], 4
      %s32 = int_to_ptr.vmem [resolvable:$true] %s31
      %37 = dma.hbm_to_vmem [thread:$0]  %s1, 128, %s32, [#allocation6], 64, 64, 4
    $region9: #{_lambda_.57} parent=1 // pred_fallthru
      _
    // Predicated region
    $region10: #{_lambda_.57} parent=1 // pred_check
      _
    $region11: #{_lambda_.57} parent=1 // pred_check_branch
      %39 = sbr.rel (0) target = $region13
    $region12: #{_lambda_.57} parent=1 // pred_region
      %s41 = ssub.s32 16, 16
      %42 = vsyncadd [#allocation6], %s41
      %s44 = sshll.u32 [#allocation7], 4
      %s45 = int_to_ptr.vmem [resolvable:$true] %s44
      %47 = dma.hbm_to_vmem [thread:$0]  %s2, 16, %s45, [#allocation6]
    $region13: #{_lambda_.57} parent=1 // pred_fallthru
      _
    // Predicated region
    $region14: #{_lambda_.57} parent=1 // pred_check
      _
    $region15: #{_lambda_.57} parent=1 // pred_check_branch
      %49 = sbr.rel (0) target = $region17
    $region16: #{_lambda_.57} parent=1 // pred_region
      %s51 = ssub.s32 256, 256
      %52 = vsyncadd [#allocation9], %s51
      %s53 = sshll.u32 [#allocation8], 4
      %s54 = int_to_ptr.vmem [resolvable:$true] %s53
      %59 = dma.hbm_to_vmem [thread:$0]  %s3, 256, %s54, [#allocation9], 64, 64, 4
    $region17: #{_lambda_.57} parent=1 // pred_fallthru
      _
    // Predicated region
    $region18: #{_lambda_.57} parent=1 // pred_check
      _
    $region19: #{_lambda_.57} parent=1 // pred_check_branch
      %61 = sbr.rel (0) target = $region21
    $region20: #{_lambda_.57} parent=1 // pred_region
      %s63 = ssub.s32 16, 16
      %64 = vsyncadd [#allocation9], %s63
      %s66 = sshll.u32 [#allocation10], 4
      %s67 = int_to_ptr.vmem [resolvable:$true] %s66
      %69 = dma.hbm_to_vmem [thread:$0]  %s4, 16, %s67, [#allocation9]
    $region21: #{_lambda_.57} parent=1 // pred_fallthru
      _
    // Predicated region
    $region22: #{_lambda_.57} parent=1 // pred_check
      _
    $region23: #{_lambda_.57} parent=1 // pred_check_branch
      %71 = sbr.rel (0) target = $region25
    $region24: #{_lambda_.57} parent=1 // pred_region
      %72 = dma.done [#allocation3], 256
    $region25: #{_lambda_.57} parent=1 // pred_fallthru
      _
    // Predicated region
    $region26: #{_lambda_.57} parent=1 // pred_check
      _
    $region27: #{_lambda_.57} parent=1 // pred_check_branch
      %74 = sbr.rel (0) target = $region29
    $region28: #{_lambda_.57} parent=1 // pred_region
      %75 = dma.done [#allocation6], 128
    $region29: #{_lambda_.57} parent=1 // pred_fallthru
      _
    // Predicated region
    $region30: #{_lambda_.57} parent=1 // pred_check
      _
    $region31: #{_lambda_.57} parent=1 // pred_check_branch
      %77 = sbr.rel (0) target = $region33
    $region32: #{_lambda_.57} parent=1 // pred_region
      %78 = dma.done [#allocation6], 16
    $region33: #{_lambda_.57} parent=1 // pred_fallthru
      _
    // Predicated region
    $region34: #{_lambda_.57} parent=1 // pred_check
      _
    $region35: #{_lambda_.57} parent=1 // pred_check_branch
      %80 = sbr.rel (0) target = $region37
    $region36: #{_lambda_.57} parent=1 // pred_region
      %81 = dma.done [#allocation9], 256
    $region37: #{_lambda_.57} parent=1 // pred_fallthru
      _
    // Predicated region
    $region38: #{_lambda_.57} parent=1 // pred_check
      _
    $region39: #{_lambda_.57} parent=1 // pred_check_branch
      %83 = sbr.rel (0) target = $region41
    $region40: #{_lambda_.57} parent=1 // pred_region
      %84 = dma.done [#allocation9], 16
    $region41: #{_lambda_.57} parent=1 // pred_fallthru
      _
    %v86 = vld [vmem:[#allocation2] sm:$0xf]
    %v87 = vld [vmem:[#allocation2 + $0x4] sm:$0xf]
    %v88 = vld [vmem:[#allocation2 + $0x8] sm:$0xf]
    %v89 = vld [vmem:[#allocation2 + $0xc] sm:$0xf]
    %v90 = vld [vmem:[#allocation5] sm:$0xf]
    %v91 = vld [vmem:[#allocation5 + $0x4] sm:$0xf]
    %v92 = vld [vmem:[#allocation7] sm:$0x1]
    %v94 = vlaneseq
    %v95 = vshrl.u32 %v94, 7
    %v96 = vsub.s32 0, %v95
    %v97 = vrot.slane %v92, %v96
    %v103 = vunpack.c.l.b16 %v86
    %v104 = vunpack.c.l.b16 %v87
    %v105 = vunpack.c.l.b16 %v88
    %v106 = vunpack.c.l.b16 %v89
    %v107 = vpack.c.b16 %v104, %v103
    %v108 = vpack.c.b16 %v106, %v105
    %v111 = vunpack.c.l.b16 %v90
    %v112 = vunpack.c.l.b16 %v91
    %v113 = vpack.c.b16 %v112, %v111
    %vm115 = vcmask 130048
    %v117 = vsel %vm115, %v107, 0
    %v120 = vsel %vm115, %v108, 0
    %122 = vmatprep.subr.bf16.mxu0 0
    %123 = vmatpush1.bf16.msra.mxu0 %v113
    %124 = vmatprep.subr.bf16.mxu0 0
    %125 = vmatpush1.bf16.msra.mxu0 0
    %126 = vmatprep.subr.bf16.mxu0 0
    %127 = vmatpush1.bf16.msra.mxu0 0
    %128 = vmatprep.subr.bf16.mxu0 0
    %129 = vmatpush1.bf16.msra.mxu0 0
    %130 = vmatprep.subr.bf16.mxu0 0
    %131 = vmatpush1.bf16.msra.mxu0 0
    %132 = vmatprep.subr.bf16.mxu0 0
    %133 = vmatpush1.bf16.msra.mxu0 0
    %134 = vmatprep.subr.bf16.mxu0 0
    %135 = vmatpush1.bf16.msra.mxu0 0
    %136 = vmatprep.subr.bf16.mxu0 0
    %137 = vmatpush1.bf16.msra.mxu0 0
    %138 = vmatprep.subr.bf16.mxu0 0
    %139 = vmatpush1.bf16.msra.mxu0 0
    %140 = vmatprep.subr.bf16.mxu0 0
    %141 = vmatpush1.bf16.msra.mxu0 0
    %142 = vmatprep.subr.bf16.mxu0 0
    %143 = vmatpush1.bf16.msra.mxu0 0
    %144 = vmatprep.subr.bf16.mxu0 0
    %145 = vmatpush1.bf16.msra.mxu0 0
    %146 = vmatprep.subr.bf16.mxu0 0
    %147 = vmatpush1.bf16.msra.mxu0 0
    %148 = vmatprep.subr.bf16.mxu0 0
    %149 = vmatpush1.bf16.msra.mxu0 0
    %150 = vmatprep.subr.bf16.mxu0 0
    %151 = vmatpush1.bf16.msra.mxu0 0
    %152 = vmatprep.subr.bf16.mxu0 0
    %153 = vmatpush1.bf16.msra.mxu0 0
    %154 = vmatprep.mubr.bf16.mxu0 0
    %155 = vmatmul.mubr.bf16.gmra.mrb[0].mxu0 %v117
    %v156 = vpop.f32.mrb[0].mxu0
    %v157 = vadd.f32 %v97, %v156
    %v158 = vpop.f32.mrb[0].mxu0
    %v159 = vpop.f32.mrb[0].mxu0
    %v160 = vadd.f32 %v97, %v159
    %v161 = vpop.f32.mrb[0].mxu0
    %162 = vmatprep.mubr.bf16.mxu0 0
    %163 = vmatmul.mubr.bf16.gmra.mrb[0].mxu0 %v120
    %v164 = vpop.f32.mrb[0].mxu0
    %v165 = vadd.f32 %v97, %v164
    %v166 = vpop.f32.mrb[0].mxu0
    %v167 = vpop.f32.mrb[0].mxu0
    %v168 = vadd.f32 %v97, %v167
    %v169 = vpop.f32.mrb[0].mxu0
    %170 = vdwg.mxu0
    %v171 = vmul.f32 %v157, %v157
    %v172 = vmul.f32 %v160, %v160
    %v173 = vmul.f32 %v165, %v165
    %v174 = vmul.f32 %v168, %v168
    %v175 = vmul.f32 %v157, %v171
    %v176 = vmul.f32 %v160, %v172
    %v177 = vmul.f32 %v165, %v173
    %v178 = vmul.f32 %v168, %v174
    %v179 = vmul.f32 %v175, 0.044715
    %v180 = vmul.f32 %v176, 0.044715
    %v181 = vmul.f32 %v177, 0.044715
    %v182 = vmul.f32 %v178, 0.044715
    %v183 = vadd.f32 %v157, %v179
    %v184 = vadd.f32 %v160, %v180
    %v185 = vadd.f32 %v165, %v181
    %v186 = vadd.f32 %v168, %v182
    %v187 = vmul.f32 %v183, 0.7978846
    %v188 = vmul.f32 %v184, 0.7978846
    %v189 = vmul.f32 %v185, 0.7978846
    %v190 = vmul.f32 %v186, 0.7978846
    %v191 = vtanh.pop %v187
    %v192 = vtanh.pop %v188
    %v193 = vtanh.pop %v189
    %v194 = vtanh.pop %v190
    %v195 = vadd.f32 %v191, 1.0
    %v196 = vadd.f32 %v192, 1.0
    %v197 = vadd.f32 %v193, 1.0
    %v198 = vadd.f32 %v194, 1.0
    %v199 = vmul.f32 %v195, 0.5
    %v200 = vmul.f32 %v196, 0.5
    %v201 = vmul.f32 %v197, 0.5
    %v202 = vmul.f32 %v198, 0.5
    %v203 = vmul.f32 %v157, %v199
    %v204 = vmul.f32 %v160, %v200
    %v205 = vmul.f32 %v165, %v201
    %v206 = vmul.f32 %v168, %v202
    %v207 = vpack.c.bf16 %v204, %v203
    %v208 = vpack.c.bf16 %v206, %v205
    %v209 = vld [vmem:[#allocation8] sm:$0xf]
    %v210 = vld [vmem:[#allocation8 + $0x4] sm:$0xf]
    %v211 = vld [vmem:[#allocation8 + $0x8] sm:$0xf]
    %v212 = vld [vmem:[#allocation8 + $0xc] sm:$0xf]
    %v213 = vld [vmem:[#allocation10] sm:$0x1]
    %v215 = vlaneseq
    %v216 = vshrl.u32 %v215, 7
    %v217 = vsub.s32 0, %v216
    %v218 = vrot.slane %v213, %v217
    %v224 = vunpack.c.l.b16 %v209
    %v225 = vunpack.c.l.b16 %v210
    %v226 = vunpack.c.l.b16 %v211
    %v227 = vunpack.c.l.b16 %v212
    %v228 = vpack.c.b16 %v225, %v224
    %v229 = vpack.c.b16 %v227, %v226
    %vm232 = vcmask 261120
    %v234 = vsel %vm232, %v207, 0
    %v237 = vsel %vm232, %v208, 0
    %239 = vmatprep.subr.bf16.mxu0 0
    %240 = vmatpush1.bf16.msra.mxu0 %v228
    %241 = vmatprep.subr.bf16.mxu0 0
    %242 = vmatpush1.bf16.msra.mxu0 %v229
    %243 = vmatprep.subr.bf16.mxu0 0
    %244 = vmatpush1.bf16.msra.mxu0 0
    %245 = vmatprep.subr.bf16.mxu0 0
    %246 = vmatpush1.bf16.msra.mxu0 0
    %247 = vmatprep.subr.bf16.mxu0 0
    %248 = vmatpush1.bf16.msra.mxu0 0
    %249 = vmatprep.subr.bf16.mxu0 0
    %250 = vmatpush1.bf16.msra.mxu0 0
    %251 = vmatprep.subr.bf16.mxu0 0
    %252 = vmatpush1.bf16.msra.mxu0 0
    %253 = vmatprep.subr.bf16.mxu0 0
    %254 = vmatpush1.bf16.msra.mxu0 0
    %255 = vmatprep.subr.bf16.mxu0 0
    %256 = vmatpush1.bf16.msra.mxu0 0
    %257 = vmatprep.subr.bf16.mxu0 0
    %258 = vmatpush1.bf16.msra.mxu0 0
    %259 = vmatprep.subr.bf16.mxu0 0
    %260 = vmatpush1.bf16.msra.mxu0 0
    %261 = vmatprep.subr.bf16.mxu0 0
    %262 = vmatpush1.bf16.msra.mxu0 0
    %263 = vmatprep.subr.bf16.mxu0 0
    %264 = vmatpush1.bf16.msra.mxu0 0
    %265 = vmatprep.subr.bf16.mxu0 0
    %266 = vmatpush1.bf16.msra.mxu0 0
    %267 = vmatprep.subr.bf16.mxu0 0
    %268 = vmatpush1.bf16.msra.mxu0 0
    %269 = vmatprep.subr.bf16.mxu0 0
    %270 = vmatpush1.bf16.msra.mxu0 0
    %271 = vmatprep.mubr.bf16.mxu0 0
    %272 = vmatmul.mubr.bf16.gmra.mrb[0].mxu0 %v234
    %v273 = vpop.f32.mrb[0].mxu0
    %v274 = vadd.f32 %v218, %v273
    %v275 = vpop.f32.mrb[0].mxu0
    %v276 = vpop.f32.mrb[0].mxu0
    %v277 = vadd.f32 %v218, %v276
    %v278 = vpop.f32.mrb[0].mxu0
    %279 = vmatprep.mubr.bf16.mxu0 0
    %280 = vmatmul.mubr.bf16.gmra.mrb[0].mxu0 %v237
    %v281 = vpop.f32.mrb[0].mxu0
    %v282 = vadd.f32 %v218, %v281
    %v283 = vpop.f32.mrb[0].mxu0
    %v284 = vpop.f32.mrb[0].mxu0
    %v285 = vadd.f32 %v218, %v284
    %v286 = vpop.f32.mrb[0].mxu0
    %287 = vdwg.mxu0
    %288 = vst [vmem:[#allocation11] sm:$0xff] %v274
    %289 = vst [vmem:[#allocation11 + $0x8] sm:$0xff] %v277
    %290 = vst [vmem:[#allocation11 + $0x10] sm:$0xff] %v282
    %291 = vst [vmem:[#allocation11 + $0x18] sm:$0xff] %v285
    // Predicated region
    $region42: #{_lambda_.57} parent=1 // pred_check
      _
    $region43: #{_lambda_.57} parent=1 // pred_check_branch
      %293 = sbr.rel (0) target = $region45
    $region44: #{_lambda_.57} parent=1 // pred_region
      %s295 = ssub.s32 512, 512
      %296 = vsyncadd [#allocation4], %s295
      %s297 = sshll.u32 [#allocation11], 4
      %s298 = int_to_ptr.vmem [resolvable:$true] %s297
      %303 = dma.vmem_to_hbm [thread:$0]  %s298, 512, %s5, [#allocation4], 128, 128, 8
    $region45: #{_lambda_.57} parent=1 // pred_fallthru
      _
    // Predicated region
    $region46: #{_lambda_.57} parent=1 // pred_check
      _
    $region47: #{_lambda_.57} parent=1 // pred_check_branch
      %305 = sbr.rel (0) target = $region49
    $region48: #{_lambda_.57} parent=1 // pred_region
      %306 = dma.done [#allocation4], 512
    $region49: #{_lambda_.57} parent=1 // pred_fallthru
      _
    %307 = vsyncpa [#allocation3], 1
    %308 = vsyncpa [#allocation6], 1
    %309 = vsyncpa [#allocation9], 1
    %310 = vsyncpa [#allocation4], 1

</llo_original>
